<compile_context>
chip_gen: v7x
topology: tpu7x:2x2x1
jax: 0.10.0
libtpu: 0.0.40
codegen_flags: <defaults>
</compile_context>

<pallas_src>
import functools
import math

import jax
import jax.numpy as jnp
from jax.experimental import pallas as pl
from jax.experimental.pallas import tpu as pltpu


# --------------------------- small helpers ----------------------------------

def _cparams(semantics):
    return pltpu.CompilerParams(dimension_semantics=semantics,
                                vmem_limit_bytes=32 * 1024 * 1024)


def _k_tile(n, target=512):
    """Reduction tile: must divide n exactly; prefer multiples of 256 (v6e/v7x MXU)."""
    if n <= target:
        return n
    for step in (256, 128):
        t = (target // step) * step
        while t >= step:
            if n % t == 0:
                return t
            t -= step
    return n


def _frames_per_step(T, max_f):
    for c in range(min(T, max_f), 0, -1):
        if T % c == 0:
            return c
    return 1


# ----------------------- multi-output fused linear ---------------------------

def _make_linear_multi_kernel(n_out):
    def kernel(*refs):
        x_ref = refs[0]
        w_refs = refs[1:1 + n_out]
        b_refs = refs[1 + n_out:1 + 2 * n_out]
        o_refs = refs[1 + 2 * n_out:1 + 3 * n_out]
        acc_refs = refs[1 + 3 * n_out:]
        k = pl.program_id(2)

        @pl.when(k == 0)
        def _():
            for a in acc_refs:
                a[...] = jnp.zeros_like(a)

        xb = x_ref[...].astype(jnp.bfloat16)          # cast on VPU, under the MXU
        for w, a in zip(w_refs, acc_refs):
            a[...] += jnp.dot(xb, w[...], preferred_element_type=jnp.float32)

        @pl.when(k == pl.num_programs(2) - 1)
        def _():
            for b, a, o in zip(b_refs, acc_refs, o_refs):
                o[...] = (a[...] + b[...]).astype(o.dtype)

    return kernel


def linear_multi(x, weights, biases, out_dtype=jnp.bfloat16,
                 tm_target=256, tn_target=256, tk_target=512):
    """y_i = x @ weights[i] + biases[i] for every i, sharing the x tile loads.

    weights[i] are pre-transposed (Din, Dout) bf16 arrays."""
    lead = x.shape[:-1]
    din = x.shape[-1]
    n_out = len(weights)
    dout = weights[0].shape[1]
    x2 = x.reshape(-1, din)
    m = x2.shape[0]
    tm = m if m <= tm_target else tm_target
    tn = dout if (dout <= tn_target or dout % 128 != 0) else tn_target
    tk = _k_tile(din, tk_target)
    grid = (pl.cdiv(m, tm), pl.cdiv(dout, tn), din // tk)

    in_specs = ([pl.BlockSpec((tm, tk), lambda i, j, k: (i, k))]
                + [pl.BlockSpec((tk, tn), lambda i, j, k: (k, j))] * n_out
                + [pl.BlockSpec((1, tn), lambda i, j, k: (0, j))] * n_out)
    out_specs = tuple(pl.BlockSpec((tm, tn), lambda i, j, k: (i, j))
                      for _ in range(n_out))
    out_shape = tuple(jax.ShapeDtypeStruct((m, dout), out_dtype)
                      for _ in range(n_out))

    outs = pl.pallas_call(
        _make_linear_multi_kernel(n_out),
        grid=grid,
        in_specs=in_specs,
        out_specs=out_specs,
        out_shape=out_shape,
        scratch_shapes=[pltpu.VMEM((tm, tn), jnp.float32) for _ in range(n_out)],
        compiler_params=_cparams(("parallel", "parallel", "arbitrary")),
    )(x2, *list(weights), *[b.reshape(1, dout) for b in biases])
    return [o.reshape(lead + (dout,)) for o in outs]


# ----------------------- linear with fused LayerNorm -------------------------

def _linear_ln_kernel(x_ref, w_ref, b_ref, g_ref, bt_ref, o_ref, acc_ref, *, eps):
    k = pl.program_id(1)

    @pl.when(k == 0)
    def _():
        acc_ref[...] = jnp.zeros_like(acc_ref)

    acc_ref[...] += jnp.dot(x_ref[...].astype(jnp.bfloat16), w_ref[...],
                            preferred_element_type=jnp.float32)

    @pl.when(k == pl.num_programs(1) - 1)
    def _():
        y = acc_ref[...] + b_ref[...]
        mu = jnp.mean(y, axis=-1, keepdims=True)
        yc = y - mu
        var = jnp.mean(yc * yc, axis=-1, keepdims=True)
        o_ref[...] = (yc * jax.lax.rsqrt(var + eps) * g_ref[...]
                      + bt_ref[...]).astype(o_ref.dtype)


def linear_ln(x, w_t, b, gamma, beta, eps=1e-12, out_dtype=jnp.bfloat16,
              tm_target=256, tk_target=512):
    """LayerNorm(x @ w_t + b) with LN fused into the matmul epilogue (full-row tiles)."""
    lead = x.shape[:-1]
    din = x.shape[-1]
    dout = w_t.shape[1]
    x2 = x.reshape(-1, din)
    m = x2.shape[0]
    tm = m if m <= tm_target else tm_target
    tk = _k_tile(din, tk_target)
    grid = (pl.cdiv(m, tm), din // tk)
    out = pl.pallas_call(
        functools.partial(_linear_ln_kernel, eps=eps),
        grid=grid,
        in_specs=[pl.BlockSpec((tm, tk), lambda i, k: (i, k)),
                  pl.BlockSpec((tk, dout), lambda i, k: (k, 0)),
                  pl.BlockSpec((1, dout), lambda i, k: (0, 0)),
                  pl.BlockSpec((1, dout), lambda i, k: (0, 0)),
                  pl.BlockSpec((1, dout), lambda i, k: (0, 0))],
        out_specs=pl.BlockSpec((tm, dout), lambda i, k: (i, 0)),
        out_shape=jax.ShapeDtypeStruct((m, dout), out_dtype),
        scratch_shapes=[pltpu.VMEM((tm, dout), jnp.float32)],
        compiler_params=_cparams(("parallel", "arbitrary")),
    )(x2, w_t, b.reshape(1, dout), gamma.reshape(1, dout), beta.reshape(1, dout))
    return out.reshape(lead + (dout,))


# ----------------------------- attention kernels -----------------------------

def _dot_qk(a, b):
    # (Q, d) x (K, d) -> (Q, K), f32 accumulation on the MXU.
    return jax.lax.dot_general(a, b, (((1,), (1,)), ((), ())),
                               preferred_element_type=jnp.float32)


def _attn1_kernel(q_ref, k_ref, v_ref, o_ref, *, h, d_k):
    """Attention 1 (no mask): text queries over each frame's patches.
    q: (1, Q, D); k/v: (1, Tf, K, D); o: (1, Tf, Q, D). Scale folded into W0."""
    Tf = k_ref.shape[1]
    q = q_ref[0]                                   # (Q, D) bf16
    for f in range(Tf):
        k = k_ref[0, f]                            # (K, D)
        v = v_ref[0, f]
        outs = []
        for i in range(h):
            sl = slice(i * d_k, (i + 1) * d_k)
            s = _dot_qk(q[:, sl], k[:, sl])        # (Q, K) f32
            m = jnp.max(s, axis=-1, keepdims=True)
            e = jnp.exp(s - m)
            r = pl.reciprocal(jnp.sum(e, axis=-1, keepdims=True), approx=True)
            p = (e * r).astype(v.dtype)
            outs.append(jnp.dot(p, v[:, sl], preferred_element_type=jnp.float32))
        # single lane-dense (Q, D) store instead of per-head masked stores
        o_ref[0, f] = jnp.concatenate(outs, axis=-1).astype(o_ref.dtype)


def _attn3_kernel(qc_ref, qp_ref, ks_ref, vs_ref, kf_ref, vf_ref,
                  ms_ref, mf_ref, oc_ref, op_ref, *, h, d_k):
    """Attention 3: [cls, patches] queries over shared [txt, cls] keys + this frame's
    patch keys. qc: (1,1,D); qp/kf/vf: (1,Tf,HW,D); ks/vs: (1,Ks,D);
    ms: (1,1,Ks), mf: (1,1,HW) additive f32 biases. Outputs: cls row + patch rows."""
    Tf = qp_ref.shape[1]
    qc = qc_ref[0]                                 # (1, D)
    ks = ks_ref[0]                                 # (Ks, D)
    vs = vs_ref[0]
    ms = ms_ref[0]                                 # (1, Ks)
    mf = mf_ref[0]                                 # (1, HW)
    for f in range(Tf):
        qp = qp_ref[0, f]                          # (HW, D)
        kf = kf_ref[0, f]
        vf = vf_ref[0, f]
        outs = []
        for i in range(h):
            sl = slice(i * d_k, (i + 1) * d_k)
            qi = jnp.concatenate([qc[:, sl], qp[:, sl]], axis=0)   # (1+HW, d_k)
            ss = _dot_qk(qi, ks[:, sl]) + ms
            sf = _dot_qk(qi, kf[:, sl]) + mf
            m = jnp.maximum(jnp.max(ss, axis=-1, keepdims=True),
                            jnp.max(sf, axis=-1, keepdims=True))
            es = jnp.exp(ss - m)
            ef = jnp.exp(sf - m)
            r = pl.reciprocal(jnp.sum(es, axis=-1, keepdims=True)
                              + jnp.sum(ef, axis=-1, keepdims=True), approx=True)
            out_i = (jnp.dot((es * r).astype(vs.dtype), vs[:, sl],
                             preferred_element_type=jnp.float32)
                     + jnp.dot((ef * r).astype(vf.dtype), vf[:, sl],
                               preferred_element_type=jnp.float32))
            outs.append(out_i)
        out = jnp.concatenate(outs, axis=-1)       # (1+HW, D)
        oc_ref[0, f] = out[:1].astype(oc_ref.dtype)
        op_ref[0, f] = out[1:].astype(op_ref.dtype)


def _attn2_kernel(q_ref, kt_ref, vt_ref, kf_ref, vf_ref, ms_ref, mf_ref, o_ref,
                  *, h, d_k):
    """Attention 2: each text query attends to shared W4/W5(txt) keys plus its own
    per-frame keys W4/W5(x1[:, t, q]) (diagonal structure). No (h,Q,T,d_k) temps:
    small online loop over the T frame keys. q/kt/vt: (1,Q,D); kf/vf: (1,T,Q,D)."""
    T = kf_ref.shape[1]
    q = q_ref[0]
    kt = kt_ref[0]
    vt = vt_ref[0]
    ms = ms_ref[0]                                 # (1, Ktxt)
    mf = mf_ref[0]                                 # (1, T)
    outs = []
    for i in range(h):
        sl = slice(i * d_k, (i + 1) * d_k)
        qi = q[:, sl]
        qif = qi.astype(jnp.float32)
        ss = _dot_qk(qi, kt[:, sl]) + ms           # (Q, Ktxt)
        m = jnp.max(ss, axis=-1, keepdims=True)    # (Q, 1)
        sf_ts = []
        for t in range(T):
            kf_ti = kf_ref[0, t, :, sl].astype(jnp.float32)        # (Q, d_k)
            sf_t = jnp.sum(qif * kf_ti, axis=-1, keepdims=True) + mf[:, t:t + 1]
            sf_ts.append(sf_t)
            m = jnp.maximum(m, sf_t)
        es = jnp.exp(ss - m)
        denom = jnp.sum(es, axis=-1, keepdims=True)
        acc = jnp.dot(es.astype(vt.dtype), vt[:, sl],
                      preferred_element_type=jnp.float32)          # (Q, d_k)
        for t in range(T):
            ef_t = jnp.exp(sf_ts[t] - m)                           # (Q, 1)
            denom = denom + ef_t
            acc = acc + ef_t * vf_ref[0, t, :, sl].astype(jnp.float32)
        outs.append(acc * pl.reciprocal(denom, approx=True))
    o_ref[0] = jnp.concatenate(outs, axis=-1).astype(o_ref.dtype)


# ----------------------------- attention wrappers ----------------------------

def attention_frames(q, k, v, *, h, d_k, out_dtype=jnp.bfloat16):
    """q: (B, Q, D) shared across frames; k, v: (B, T, K, D) -> (B, T, Q, D)."""
    B, Q, D = q.shape
    T, K = k.shape[1], k.shape[2]
    Tf = _frames_per_step(T, 4)
    return pl.pallas_call(
        functools.partial(_attn1_kernel, h=h, d_k=d_k),
        out_shape=jax.ShapeDtypeStruct((B, T, Q, D), out_dtype),
        grid=(B, T // Tf),
        in_specs=[pl.BlockSpec((1, Q, D), lambda b, t: (b, 0, 0)),
                  pl.BlockSpec((1, Tf, K, D), lambda b, t: (b, t, 0, 0)),
                  pl.BlockSpec((1, Tf, K, D), lambda b, t: (b, t, 0, 0))],
        out_specs=pl.BlockSpec((1, Tf, Q, D), lambda b, t: (b, t, 0, 0)),
        compiler_params=_cparams(("parallel", "parallel")),
    )(q, k, v)


def attention_video(qc, qp, ks, vs, kf, vf, ms, mf, *, h, d_k,
                    out_dtype=jnp.bfloat16):
    """qc: (B,1,D) cls query; qp/kf/vf: (B,T,HW,D); ks/vs: (B,Ks,D) shared [txt,cls];
    ms: (B,1,Ks), mf: (B,1,HW) additive biases. -> ((B,T,1,D) cls, (B,T,HW,D) patches)."""
    B, T, HW, D = qp.shape
    Ks = ks.shape[1]
    Tf = _frames_per_step(T, 2)
    return pl.pallas_call(
        functools.partial(_attn3_kernel, h=h, d_k=d_k),
        out_shape=(jax.ShapeDtypeStruct((B, T, 1, D), out_dtype),
                   jax.ShapeDtypeStruct((B, T, HW, D), out_dtype)),
        grid=(B, T // Tf),
        in_specs=[pl.BlockSpec((1, 1, D), lambda b, t: (b, 0, 0)),
                  pl.BlockSpec((1, Tf, HW, D), lambda b, t: (b, t, 0, 0)),
                  pl.BlockSpec((1, Ks, D), lambda b, t: (b, 0, 0)),
                  pl.BlockSpec((1, Ks, D), lambda b, t: (b, 0, 0)),
                  pl.BlockSpec((1, Tf, HW, D), lambda b, t: (b, t, 0, 0)),
                  pl.BlockSpec((1, Tf, HW, D), lambda b, t: (b, t, 0, 0)),
                  pl.BlockSpec((1, 1, Ks), lambda b, t: (b, 0, 0)),
                  pl.BlockSpec((1, 1, HW), lambda b, t: (b, 0, 0))],
        out_specs=(pl.BlockSpec((1, Tf, 1, D), lambda b, t: (b, t, 0, 0)),
                   pl.BlockSpec((1, Tf, HW, D), lambda b, t: (b, t, 0, 0))),
        compiler_params=_cparams(("parallel", "parallel")),
    )(qc, qp, ks, vs, kf, vf, ms, mf)


def attention_text(q, kt, vt, kf, vf, ms, mf, *, h, d_k, out_dtype=jnp.bfloat16):
    """q/kt/vt: (B, Q, D); kf/vf: (B, T, Q, D) per-query frame keys;
    ms: (B,1,Q), mf: (B,1,T) additive biases. -> (B, Q, D)."""
    # TODO(synk): for v7x with very small B, an extra 'parallel' Q-tile or head-group
    # grid axis would give the two TensorCores more steps to balance.
    B, Q, D = q.shape
    T = kf.shape[1]
    return pl.pallas_call(
        functools.partial(_attn2_kernel, h=h, d_k=d_k),
        out_shape=jax.ShapeDtypeStruct((B, Q, D), out_dtype),
        grid=(B,),
        in_specs=[pl.BlockSpec((1, Q, D), lambda b: (b, 0, 0)),
                  pl.BlockSpec((1, Q, D), lambda b: (b, 0, 0)),
                  pl.BlockSpec((1, Q, D), lambda b: (b, 0, 0)),
                  pl.BlockSpec((1, T, Q, D), lambda b: (b, 0, 0, 0)),
                  pl.BlockSpec((1, T, Q, D), lambda b: (b, 0, 0, 0)),
                  pl.BlockSpec((1, 1, Q), lambda b: (b, 0, 0)),
                  pl.BlockSpec((1, 1, T), lambda b: (b, 0, 0))],
        out_specs=pl.BlockSpec((1, Q, D), lambda b: (b, 0, 0)),
        compiler_params=_cparams(("parallel",)),
    )(q, kt, vt, kf, vf, ms, mf)


# ------------------------------- parameters ----------------------------------

def init_params(key, d_model, h):
    d_k = d_model // h
    keys = jax.random.split(key, 18)
    wts, bs = [], []
    for i in range(8):
        wts.append(0.05 * jax.random.normal(keys[2 * i], (d_model, d_model), jnp.float32))
        bs.append(0.05 * jax.random.normal(keys[2 * i + 1], (d_model,), jnp.float32))
    # Fold the reference's 1/sqrt(d_k) query scaling into the query projections
    # (linears[0] -> q1/q3, linears[3] -> q2): weights AND biases in f32, then cast.
    scale = 1.0 / math.sqrt(d_k)
    wts[0] = wts[0] * scale
    bs[0] = bs[0] * scale
    wts[3] = wts[3] * scale
    bs[3] = bs[3] * scale
    params = {}
    for i in range(8):
        params[f"w{i}t"] = wts[i].astype(jnp.bfloat16)   # pre-transposed (Din, Dout)
        params[f"b{i}"] = bs[i]
    params["ln_gamma"] = 1.0 + 0.05 * jax.random.normal(keys[16], (d_model,), jnp.float32)
    params["ln_beta"] = 0.05 * jax.random.normal(keys[17], (d_model,), jnp.float32)
    return params


# --------------------------------- forward -----------------------------------

def cross_mha_forward(params, all_token, mask, *, h, T, H, W):
    B, L, D = all_token.shape
    d_k = D // h
    HW = H * W
    THW = T * HW
    txt_len = L - THW - 1

    txt = all_token[:, :txt_len]                    # (B, txt, D) f32
    cls = all_token[:, txt_len:txt_len + 1]         # (B, 1,   D)
    patches = all_token[:, txt_len + 1:]            # (B, THW, D)

    # ---- fused multi-output projections (bf16 weights, f32 activations) ------
    q1, k3_txt, v3_txt, q2, k2_txt, v2_txt = linear_multi(
        txt,
        [params[f"w{i}t"] for i in range(6)],
        [params[f"b{i}"] for i in range(6)])
    q3c, k3c, v3c = linear_multi(
        cls, [params["w0t"], params["w1t"], params["w2t"]],
        [params["b0"], params["b1"], params["b2"]])
    q3p, k1, v1 = linear_multi(
        patches, [params["w0t"], params["w1t"], params["w2t"]],
        [params["b0"], params["b1"], params["b2"]])
    q3p = q3p.reshape(B, T, HW, D)                  # free reshapes (token-major)
    k1 = k1.reshape(B, T, HW, D)
    v1 = v1.reshape(B, T, HW, D)

    # ---- attention 1: text queries over each frame's patches (no mask) -------
    x1_attn = attention_frames(q1, k1, v1, h=h, d_k=d_k)        # (B, T, txt, D)

    # ---- W7 linear with LayerNorm fused into the epilogue ---------------------
    x1 = linear_ln(x1_attn, params["w7t"], params["b7"],
                   params["ln_gamma"], params["ln_beta"])       # (B, T, txt, D)

    # ---- W4|W5 on x1 (per-query frame keys/values for attention 2) -----------
    k2_x1, v2_x1 = linear_multi(x1, [params["w4t"], params["w5t"]],
                                [params["b4"], params["b5"]])   # (B, T, txt, D)

    # ---- masks -> additive f32 biases, positionally identical to the reference
    mask = mask.astype(jnp.int32)

    def bias(m2d):
        return jnp.where(m2d == 0, jnp.float32(-1e9), jnp.float32(0.0))[:, None, :]

    ms2 = bias(mask[:, :txt_len])                               # txt keys   (attn 2)
    mf2 = bias(mask[:, txt_len:txt_len + T])                    # frame keys (attn 2)
    # attn-3 keys are ordered [txt | frame patches | cls] in the reference; mask3 is
    # applied positionally there, so: txt keys <- mask[:txt], patch keys <-
    # mask[txt:txt+HW], cls key <- mask[txt+HW].
    ms3 = bias(jnp.concatenate([mask[:, :txt_len],
                                mask[:, txt_len + HW:txt_len + HW + 1]], axis=1))
    mf3 = bias(mask[:, txt_len:txt_len + HW])

    # ---- attention 2: per-text-token queries over [txt ; x1] -----------------
    x2 = attention_text(q2, k2_txt, v2_txt, k2_x1, v2_x1, ms2, mf2,
                        h=h, d_k=d_k)                           # (B, txt, D)

    # ---- attention 3: [cls, patches] queries over [txt, cls] + frame patches --
    ks3 = jnp.concatenate([k3_txt, k3c], axis=1)                # (B, txt+1, D) small
    vs3 = jnp.concatenate([v3_txt, v3c], axis=1)
    x3_cls_f, x3_pat = attention_video(q3c, q3p, ks3, vs3, k1, v1, ms3, mf3,
                                       h=h, d_k=d_k)
    # reference: per-frame attention for the cls query, then mean over frames.
    x3_cls = jnp.mean(x3_cls_f.astype(jnp.float32), axis=1).astype(jnp.bfloat16)
    x3_no_cls = x3_pat.reshape(B, THW, D)                       # free reshape

    # ---- final W6 on [x2 ; x3_cls ; x3_patches] == cat([W6 x2, W6 x3]) --------
    final_in = jnp.concatenate([x2, x3_cls, x3_no_cls], axis=1)  # (B, L, D) bf16
    # TODO(synk): nn.Dropout(p=0.1) on attention probabilities is eval-mode identity.
    (out,) = linear_multi(final_in, [params["w6t"]], [params["b6"]],
                          out_dtype=jnp.float32, tm_target=512, tn_target=512)
    return out


# ----------------------------------- demo ------------------------------------

if __name__ == "__main__":
    B, d_model, h = 2, 128, 4
    T, H, W = 2, 2, 2
    HW, THW = H * W, T * H * W
    txt_len = 7
    L = txt_len + THW + 1        # 16

    key = jax.random.PRNGKey(0)
    k_params, k_tok = jax.random.split(key)
    params = init_params(k_params, d_model, h)

    all_token = jax.random.normal(k_tok, (B, L, d_model), jnp.float32)
    mask = jnp.ones((B, L), jnp.int32)
    mask = mask.at[0, txt_len - 2:txt_len].set(0)   # pad out two text tokens, batch 0
    mask = mask.at[1, txt_len - 1].set(0)           # pad out one text token, batch 1

    fwd = jax.jit(functools.partial(cross_mha_forward, h=h, T=T, H=H, W=W))
    out = jax.block_until_ready(fwd(params, all_token, mask))

    assert out.shape == (B, L, d_model), out.shape
    assert bool(jnp.all(jnp.isfinite(out)))
    print("KERNEL_OK")
</pallas_src>

<mosaic_0001>
module attributes {stable_mosaic.version = 11 : i64} {
  func.func @kernel(%arg0: i32, %arg1: i32, %arg2: i32, %arg3: memref<2x128xf32, #tpu.memory_space<vmem>>, %arg4: memref<128x128xbf16, #tpu.memory_space<vmem>>, %arg5: memref<128x128xbf16, #tpu.memory_space<vmem>>, %arg6: memref<128x128xbf16, #tpu.memory_space<vmem>>, %arg7: memref<1x128xf32, #tpu.memory_space<vmem>>, %arg8: memref<1x128xf32, #tpu.memory_space<vmem>>, %arg9: memref<1x128xf32, #tpu.memory_space<vmem>>, %arg10: memref<2x128xbf16, #tpu.memory_space<vmem>>, %arg11: memref<2x128xbf16, #tpu.memory_space<vmem>>, %arg12: memref<2x128xbf16, #tpu.memory_space<vmem>>, %arg13: memref<2x128xf32, #tpu.memory_space<vmem>>, %arg14: memref<2x128xf32, #tpu.memory_space<vmem>>, %arg15: memref<2x128xf32, #tpu.memory_space<vmem>>) attributes {dimension_semantics = [#tpu.dimension_semantics<parallel>, #tpu.dimension_semantics<parallel>, #tpu.dimension_semantics<arbitrary>], iteration_bounds = array<i64: 1, 1, 1>, scalar_prefetch = 0 : i64, scratch_operands = 3 : i64, tpu.core_type = #tpu.core_type<tc>, window_params = [{transform_indices = @transform_0, window_bounds = array<i64: 2, 128>}, {transform_indices = @transform_1, window_bounds = array<i64: 128, 128>}, {transform_indices = @transform_2, window_bounds = array<i64: 128, 128>}, {transform_indices = @transform_3, window_bounds = array<i64: 128, 128>}, {transform_indices = @transform_4, window_bounds = array<i64: 1, 128>}, {transform_indices = @transform_5, window_bounds = array<i64: 1, 128>}, {transform_indices = @transform_6, window_bounds = array<i64: 1, 128>}, {transform_indices = @transform_7, window_bounds = array<i64: 2, 128>}, {transform_indices = @transform_8, window_bounds = array<i64: 2, 128>}, {transform_indices = @transform_9, window_bounds = array<i64: 2, 128>}]} {
    %c0_i32 = arith.constant 0 : i32
    %0 = arith.cmpi eq, %arg2, %c0_i32 : i32
    %1 = arith.extui %0 : i1 to i32
    %c0_i32_0 = arith.constant 0 : i32
    %2 = arith.cmpi ne, %1, %c0_i32_0 : i32
    scf.if %2 {
      %cst_24 = arith.constant 0.000000e+00 : f32
      %23 = vector.broadcast %cst_24 : f32 to vector<2x128xf32>
      %c0_25 = arith.constant 0 : index
      %c0_26 = arith.constant 0 : index
      %24 = vector.load %arg13[%c0_25, %c0_26] : memref<2x128xf32, #tpu.memory_space<vmem>>, vector<2x128xf32>
      tpu.vector_store %arg13[%c0_25, %c0_26], %23 {strides = array<i32>} : memref<2x128xf32, #tpu.memory_space<vmem>>, vector<2x128xf32>,
      %cst_27 = arith.constant 0.000000e+00 : f32
      %25 = vector.broadcast %cst_27 : f32 to vector<2x128xf32>
      %c0_28 = arith.constant 0 : index
      %c0_29 = arith.constant 0 : index
      %26 = vector.load %arg14[%c0_28, %c0_29] : memref<2x128xf32, #tpu.memory_space<vmem>>, vector<2x128xf32>
      tpu.vector_store %arg14[%c0_28, %c0_29], %25 {strides = array<i32>} : memref<2x128xf32, #tpu.memory_space<vmem>>, vector<2x128xf32>,
      %cst_30 = arith.constant 0.000000e+00 : f32
      %27 = vector.broadcast %cst_30 : f32 to vector<2x128xf32>
      %c0_31 = arith.constant 0 : index
      %c0_32 = arith.constant 0 : index
      %28 = vector.load %arg15[%c0_31, %c0_32] : memref<2x128xf32, #tpu.memory_space<vmem>>, vector<2x128xf32>
      tpu.vector_store %arg15[%c0_31, %c0_32], %27 {strides = array<i32>} : memref<2x128xf32, #tpu.memory_space<vmem>>, vector<2x128xf32>,
    } else {
    }
    %c0 = arith.constant 0 : index
    %c0_1 = arith.constant 0 : index
    %3 = vector.load %arg3[%c0, %c0_1] : memref<2x128xf32, #tpu.memory_space<vmem>>, vector<2x128xf32>
    %4 = arith.truncf %3 : vector<2x128xf32> to vector<2x128xbf16>
    %c0_2 = arith.constant 0 : index
    %c0_3 = arith.constant 0 : index
    %5 = vector.load %arg13[%c0_2, %c0_3] : memref<2x128xf32, #tpu.memory_space<vmem>>, vector<2x128xf32>
    %c0_4 = arith.constant 0 : index
    %c0_5 = arith.constant 0 : index
    %6 = vector.load %arg4[%c0_4, %c0_5] : memref<128x128xbf16, #tpu.memory_space<vmem>>, vector<128x128xbf16>
    %cst = arith.constant dense<0.000000e+00> : vector<2x128xf32>
    %7 = tpu.matmul %4, %6, %cst {dimension_numbers = #tpu.dot_dimension_numbers<[1], [0], [0], [1], [0, 0, 1, 1], [], []>} : vector<2x128xbf16>, vector<128x128xbf16>, vector<2x128xf32> -> vector<2x128xf32>
    %8 = arith.addf %5, %7 : vector<2x128xf32>
    %c0_6 = arith.constant 0 : index
    %c0_7 = arith.constant 0 : index
    %9 = vector.load %arg13[%c0_6, %c0_7] : memref<2x128xf32, #tpu.memory_space<vmem>>, vector<2x128xf32>
    tpu.vector_store %arg13[%c0_6, %c0_7], %8 {strides = array<i32>} : memref<2x128xf32, #tpu.memory_space<vmem>>, vector<2x128xf32>,
    %c0_8 = arith.constant 0 : index
    %c0_9 = arith.constant 0 : index
    %10 = vector.load %arg14[%c0_8, %c0_9] : memref<2x128xf32, #tpu.memory_space<vmem>>, vector<2x128xf32>
    %c0_10 = arith.constant 0 : index
    %c0_11 = arith.constant 0 : index
    %11 = vector.load %arg5[%c0_10, %c0_11] : memref<128x128xbf16, #tpu.memory_space<vmem>>, vector<128x128xbf16>
    %cst_12 = arith.constant dense<0.000000e+00> : vector<2x128xf32>
    %12 = tpu.matmul %4, %11, %cst_12 {dimension_numbers = #tpu.dot_dimension_numbers<[1], [0], [0], [1], [0, 0, 1, 1], [], []>} : vector<2x128xbf16>, vector<128x128xbf16>, vector<2x128xf32> -> vector<2x128xf32>
    %13 = arith.addf %10, %12 : vector<2x128xf32>
    %c0_13 = arith.constant 0 : index
    %c0_14 = arith.constant 0 : index
    %14 = vector.load %arg14[%c0_13, %c0_14] : memref<2x128xf32, #tpu.memory_space<vmem>>, vector<2x128xf32>
    tpu.vector_store %arg14[%c0_13, %c0_14], %13 {strides = array<i32>} : memref<2x128xf32, #tpu.memory_space<vmem>>, vector<2x128xf32>,
    %c0_15 = arith.constant 0 : index
    %c0_16 = arith.constant 0 : index
    %15 = vector.load %arg15[%c0_15, %c0_16] : memref<2x128xf32, #tpu.memory_space<vmem>>, vector<2x128xf32>
    %c0_17 = arith.constant 0 : index
    %c0_18 = arith.constant 0 : index
    %16 = vector.load %arg6[%c0_17, %c0_18] : memref<128x128xbf16, #tpu.memory_space<vmem>>, vector<128x128xbf16>
    %cst_19 = arith.constant dense<0.000000e+00> : vector<2x128xf32>
    %17 = tpu.matmul %4, %16, %cst_19 {dimension_numbers = #tpu.dot_dimension_numbers<[1], [0], [0], [1], [0, 0, 1, 1], [], []>} : vector<2x128xbf16>, vector<128x128xbf16>, vector<2x128xf32> -> vector<2x128xf32>
    %18 = arith.addf %15, %17 : vector<2x128xf32>
    %c0_20 = arith.constant 0 : index
    %c0_21 = arith.constant 0 : index
    %19 = vector.load %arg15[%c0_20, %c0_21] : memref<2x128xf32, #tpu.memory_space<vmem>>, vector<2x128xf32>
    tpu.vector_store %arg15[%c0_20, %c0_21], %18 {strides = array<i32>} : memref<2x128xf32, #tpu.memory_space<vmem>>, vector<2x128xf32>,
    %c0_i32_22 = arith.constant 0 : i32
    %20 = arith.cmpi eq, %arg2, %c0_i32_22 : i32
    %21 = arith.extui %20 : i1 to i32
    %c0_i32_23 = arith.constant 0 : i32
    %22 = arith.cmpi ne, %21, %c0_i32_23 : i32
    scf.if %22 {
      %c0_24 = arith.constant 0 : index
      %c0_25 = arith.constant 0 : index
      %23 = vector.load %arg13[%c0_24, %c0_25] : memref<2x128xf32, #tpu.memory_space<vmem>>, vector<2x128xf32>
      %c0_26 = arith.constant 0 : index
      %c0_27 = arith.constant 0 : index
      %24 = vector.load %arg7[%c0_26, %c0_27] : memref<1x128xf32, #tpu.memory_space<vmem>>, vector<1x128xf32>
      %25 = vector.broadcast %24 : vector<1x128xf32> to vector<2x128xf32>
      %26 = arith.addf %23, %25 : vector<2x128xf32>
      %27 = arith.truncf %26 : vector<2x128xf32> to vector<2x128xbf16>
      %c0_28 = arith.constant 0 : index
      %c0_29 = arith.constant 0 : index
      %28 = vector.load %arg10[%c0_28, %c0_29] : memref<2x128xbf16, #tpu.memory_space<vmem>>, vector<2x128xbf16>
      tpu.vector_store %arg10[%c0_28, %c0_29], %27 {strides = array<i32>} : memref<2x128xbf16, #tpu.memory_space<vmem>>, vector<2x128xbf16>,
      %c0_30 = arith.constant 0 : index
      %c0_31 = arith.constant 0 : index
      %29 = vector.load %arg14[%c0_30, %c0_31] : memref<2x128xf32, #tpu.memory_space<vmem>>, vector<2x128xf32>
      %c0_32 = arith.constant 0 : index
      %c0_33 = arith.constant 0 : index
      %30 = vector.load %arg8[%c0_32, %c0_33] : memref<1x128xf32, #tpu.memory_space<vmem>>, vector<1x128xf32>
      %31 = vector.broadcast %30 : vector<1x128xf32> to vector<2x128xf32>
      %32 = arith.addf %29, %31 : vector<2x128xf32>
      %33 = arith.truncf %32 : vector<2x128xf32> to vector<2x128xbf16>
      %c0_34 = arith.constant 0 : index
      %c0_35 = arith.constant 0 : index
      %34 = vector.load %arg11[%c0_34, %c0_35] : memref<2x128xbf16, #tpu.memory_space<vmem>>, vector<2x128xbf16>
      tpu.vector_store %arg11[%c0_34, %c0_35], %33 {strides = array<i32>} : memref<2x128xbf16, #tpu.memory_space<vmem>>, vector<2x128xbf16>,
      %c0_36 = arith.constant 0 : index
      %c0_37 = arith.constant 0 : index
      %35 = vector.load %arg15[%c0_36, %c0_37] : memref<2x128xf32, #tpu.memory_space<vmem>>, vector<2x128xf32>
      %c0_38 = arith.constant 0 : index
      %c0_39 = arith.constant 0 : index
      %36 = vector.load %arg9[%c0_38, %c0_39] : memref<1x128xf32, #tpu.memory_space<vmem>>, vector<1x128xf32>
      %37 = vector.broadcast %36 : vector<1x128xf32> to vector<2x128xf32>
      %38 = arith.addf %35, %37 : vector<2x128xf32>
      %39 = arith.truncf %38 : vector<2x128xf32> to vector<2x128xbf16>
      %c0_40 = arith.constant 0 : index
      %c0_41 = arith.constant 0 : index
      %40 = vector.load %arg12[%c0_40, %c0_41] : memref<2x128xbf16, #tpu.memory_space<vmem>>, vector<2x128xbf16>
      tpu.vector_store %arg12[%c0_40, %c0_41], %39 {strides = array<i32>} : memref<2x128xbf16, #tpu.memory_space<vmem>>, vector<2x128xbf16>,
    } else {
    }
    return
  }
  func.func @transform_0(%arg0: i32, %arg1: i32, %arg2: i32) -> (i32, i32) {
    %c0_i32 = arith.constant 0 : i32
    return %arg0, %arg2 : i32, i32
  }
  func.func @transform_1(%arg0: i32, %arg1: i32, %arg2: i32) -> (i32, i32) {
    %c0_i32 = arith.constant 0 : i32
    return %arg2, %arg1 : i32, i32
  }
  func.func @transform_2(%arg0: i32, %arg1: i32, %arg2: i32) -> (i32, i32) {
    %c0_i32 = arith.constant 0 : i32
    return %arg2, %arg1 : i32, i32
  }
  func.func @transform_3(%arg0: i32, %arg1: i32, %arg2: i32) -> (i32, i32) {
    %c0_i32 = arith.constant 0 : i32
    return %arg2, %arg1 : i32, i32
  }
  func.func @transform_4(%arg0: i32, %arg1: i32, %arg2: i32) -> (i32, i32) {
    %c0_i32 = arith.constant 0 : i32
    %c0_i32_0 = arith.constant 0 : i32
    return %c0_i32, %arg1 : i32, i32
  }
  func.func @transform_5(%arg0: i32, %arg1: i32, %arg2: i32) -> (i32, i32) {
    %c0_i32 = arith.constant 0 : i32
    %c0_i32_0 = arith.constant 0 : i32
    return %c0_i32, %arg1 : i32, i32
  }
  func.func @transform_6(%arg0: i32, %arg1: i32, %arg2: i32) -> (i32, i32) {
    %c0_i32 = arith.constant 0 : i32
    %c0_i32_0 = arith.constant 0 : i32
    return %c0_i32, %arg1 : i32, i32
  }
  func.func @transform_7(%arg0: i32, %arg1: i32, %arg2: i32) -> (i32, i32) {
    %c0_i32 = arith.constant 0 : i32
    return %arg0, %arg1 : i32, i32
  }
  func.func @transform_8(%arg0: i32, %arg1: i32, %arg2: i32) -> (i32, i32) {
    %c0_i32 = arith.constant 0 : i32
    return %arg0, %arg1 : i32, i32
  }
  func.func @transform_9(%arg0: i32, %arg1: i32, %arg2: i32) -> (i32, i32) {
    %c0_i32 = arith.constant 0 : i32
    return %arg0, %arg1 : i32, i32
  }
}

module attributes {stable_mosaic.version = 11 : i64} {
  func.func @kernel(%arg0: i32, %arg1: i32, %arg2: i32, %arg3: memref<16x128xf32, #tpu.memory_space<vmem>>, %arg4: memref<128x128xbf16, #tpu.memory_space<vmem>>, %arg5: memref<128x128xbf16, #tpu.memory_space<vmem>>, %arg6: memref<128x128xbf16, #tpu.memory_space<vmem>>, %arg7: memref<1x128xf32, #tpu.memory_space<vmem>>, %arg8: memref<1x128xf32, #tpu.memory_space<vmem>>, %arg9: memref<1x128xf32, #tpu.memory_space<vmem>>, %arg10: memref<16x128xbf16, #tpu.memory_space<vmem>>, %arg11: memref<16x128xbf16, #tpu.memory_space<vmem>>, %arg12: memref<16x128xbf16, #tpu.memory_space<vmem>>, %arg13: memref<16x128xf32, #tpu.memory_space<vmem>>, %arg14: memref<16x128xf32, #tpu.memory_space<vmem>>, %arg15: memref<16x128xf32, #tpu.memory_space<vmem>>) attributes {dimension_semantics = [#tpu.dimension_semantics<parallel>, #tpu.dimension_semantics<parallel>, #tpu.dimension_semantics<arbitrary>], iteration_bounds = array<i64: 1, 1, 1>, scalar_prefetch = 0 : i64, scratch_operands = 3 : i64, tpu.core_type = #tpu.core_type<tc>, window_params = [{transform_indices = @transform_0, window_bounds = array<i64: 16, 128>}, {transform_indices = @transform_1, window_bounds = array<i64: 128, 128>}, {transform_indices = @transform_2, window_bounds = array<i64: 128, 128>}, {transform_indices = @transform_3, window_bounds = array<i64: 128, 128>}, {transform_indices = @transform_4, window_bounds = array<i64: 1, 128>}, {transform_indices = @transform_5, window_bounds = array<i64: 1, 128>}, {transform_indices = @transform_6, window_bounds = array<i64: 1, 128>}, {transform_indices = @transform_7, window_bounds = array<i64: 16, 128>}, {transform_indices = @transform_8, window_bounds = array<i64: 16, 128>}, {transform_indices = @transform_9, window_bounds = array<i64: 16, 128>}]} {
    %c0_i32 = arith.constant 0 : i32
    %0 = arith.cmpi eq, %arg2, %c0_i32 : i32
    %1 = arith.extui %0 : i1 to i32
    %c0_i32_0 = arith.constant 0 : i32
    %2 = arith.cmpi ne, %1, %c0_i32_0 : i32
    scf.if %2 {
      %cst_24 = arith.constant 0.000000e+00 : f32
      %23 = vector.broadcast %cst_24 : f32 to vector<16x128xf32>
      %c0_25 = arith.constant 0 : index
      %c0_26 = arith.constant 0 : index
      %24 = vector.load %arg13[%c0_25, %c0_26] : memref<16x128xf32, #tpu.memory_space<vmem>>, vector<16x128xf32>
      tpu.vector_store %arg13[%c0_25, %c0_26], %23 {strides = array<i32>} : memref<16x128xf32, #tpu.memory_space<vmem>>, vector<16x128xf32>,
      %cst_27 = arith.constant 0.000000e+00 : f32
      %25 = vector.broadcast %cst_27 : f32 to vector<16x128xf32>
      %c0_28 = arith.constant 0 : index
      %c0_29 = arith.constant 0 : index
      %26 = vector.load %arg14[%c0_28, %c0_29] : memref<16x128xf32, #tpu.memory_space<vmem>>, vector<16x128xf32>
      tpu.vector_store %arg14[%c0_28, %c0_29], %25 {strides = array<i32>} : memref<16x128xf32, #tpu.memory_space<vmem>>, vector<16x128xf32>,
      %cst_30 = arith.constant 0.000000e+00 : f32
      %27 = vector.broadcast %cst_30 : f32 to vector<16x128xf32>
      %c0_31 = arith.constant 0 : index
      %c0_32 = arith.constant 0 : index
      %28 = vector.load %arg15[%c0_31, %c0_32] : memref<16x128xf32, #tpu.memory_space<vmem>>, vector<16x128xf32>
      tpu.vector_store %arg15[%c0_31, %c0_32], %27 {strides = array<i32>} : memref<16x128xf32, #tpu.memory_space<vmem>>, vector<16x128xf32>,
    } else {
    }
    %c0 = arith.constant 0 : index
    %c0_1 = arith.constant 0 : index
    %3 = vector.load %arg3[%c0, %c0_1] : memref<16x128xf32, #tpu.memory_space<vmem>>, vector<16x128xf32>
    %4 = arith.truncf %3 : vector<16x128xf32> to vector<16x128xbf16>
    %c0_2 = arith.constant 0 : index
    %c0_3 = arith.constant 0 : index
    %5 = vector.load %arg13[%c0_2, %c0_3] : memref<16x128xf32, #tpu.memory_space<vmem>>, vector<16x128xf32>
    %c0_4 = arith.constant 0 : index
    %c0_5 = arith.constant 0 : index
    %6 = vector.load %arg4[%c0_4, %c0_5] : memref<128x128xbf16, #tpu.memory_space<vmem>>, vector<128x128xbf16>
    %cst = arith.constant dense<0.000000e+00> : vector<16x128xf32>
    %7 = tpu.matmul %4, %6, %cst {dimension_numbers = #tpu.dot_dimension_numbers<[1], [0], [0], [1], [0, 0, 1, 1], [], []>} : vector<16x128xbf16>, vector<128x128xbf16>, vector<16x128xf32> -> vector<16x128xf32>
    %8 = arith.addf %5, %7 : vector<16x128xf32>
    %c0_6 = arith.constant 0 : index
    %c0_7 = arith.constant 0 : index
    %9 = vector.load %arg13[%c0_6, %c0_7] : memref<16x128xf32, #tpu.memory_space<vmem>>, vector<16x128xf32>
    tpu.vector_store %arg13[%c0_6, %c0_7], %8 {strides = array<i32>} : memref<16x128xf32, #tpu.memory_space<vmem>>, vector<16x128xf32>,
    %c0_8 = arith.constant 0 : index
    %c0_9 = arith.constant 0 : index
    %10 = vector.load %arg14[%c0_8, %c0_9] : memref<16x128xf32, #tpu.memory_space<vmem>>, vector<16x128xf32>
    %c0_10 = arith.constant 0 : index
    %c0_11 = arith.constant 0 : index
    %11 = vector.load %arg5[%c0_10, %c0_11] : memref<128x128xbf16, #tpu.memory_space<vmem>>, vector<128x128xbf16>
    %cst_12 = arith.constant dense<0.000000e+00> : vector<16x128xf32>
    %12 = tpu.matmul %4, %11, %cst_12 {dimension_numbers = #tpu.dot_dimension_numbers<[1], [0], [0], [1], [0, 0, 1, 1], [], []>} : vector<16x128xbf16>, vector<128x128xbf16>, vector<16x128xf32> -> vector<16x128xf32>
    %13 = arith.addf %10, %12 : vector<16x128xf32>
    %c0_13 = arith.constant 0 : index
    %c0_14 = arith.constant 0 : index
    %14 = vector.load %arg14[%c0_13, %c0_14] : memref<16x128xf32, #tpu.memory_space<vmem>>, vector<16x128xf32>
    tpu.vector_store %arg14[%c0_13, %c0_14], %13 {strides = array<i32>} : memref<16x128xf32, #tpu.memory_space<vmem>>, vector<16x128xf32>,
    %c0_15 = arith.constant 0 : index
    %c0_16 = arith.constant 0 : index
    %15 = vector.load %arg15[%c0_15, %c0_16] : memref<16x128xf32, #tpu.memory_space<vmem>>, vector<16x128xf32>
    %c0_17 = arith.constant 0 : index
    %c0_18 = arith.constant 0 : index
    %16 = vector.load %arg6[%c0_17, %c0_18] : memref<128x128xbf16, #tpu.memory_space<vmem>>, vector<128x128xbf16>
    %cst_19 = arith.constant dense<0.000000e+00> : vector<16x128xf32>
    %17 = tpu.matmul %4, %16, %cst_19 {dimension_numbers = #tpu.dot_dimension_numbers<[1], [0], [0], [1], [0, 0, 1, 1], [], []>} : vector<16x128xbf16>, vector<128x128xbf16>, vector<16x128xf32> -> vector<16x128xf32>
    %18 = arith.addf %15, %17 : vector<16x128xf32>
    %c0_20 = arith.constant 0 : index
    %c0_21 = arith.constant 0 : index
    %19 = vector.load %arg15[%c0_20, %c0_21] : memref<16x128xf32, #tpu.memory_space<vmem>>, vector<16x128xf32>
    tpu.vector_store %arg15[%c0_20, %c0_21], %18 {strides = array<i32>} : memref<16x128xf32, #tpu.memory_space<vmem>>, vector<16x128xf32>,
    %c0_i32_22 = arith.constant 0 : i32
    %20 = arith.cmpi eq, %arg2, %c0_i32_22 : i32
    %21 = arith.extui %20 : i1 to i32
    %c0_i32_23 = arith.constant 0 : i32
    %22 = arith.cmpi ne, %21, %c0_i32_23 : i32
    scf.if %22 {
      %c0_24 = arith.constant 0 : index
      %c0_25 = arith.constant 0 : index
      %23 = vector.load %arg13[%c0_24, %c0_25] : memref<16x128xf32, #tpu.memory_space<vmem>>, vector<16x128xf32>
      %c0_26 = arith.constant 0 : index
      %c0_27 = arith.constant 0 : index
      %24 = vector.load %arg7[%c0_26, %c0_27] : memref<1x128xf32, #tpu.memory_space<vmem>>, vector<1x128xf32>
      %25 = vector.broadcast %24 : vector<1x128xf32> to vector<16x128xf32>
      %26 = arith.addf %23, %25 : vector<16x128xf32>
      %27 = arith.truncf %26 : vector<16x128xf32> to vector<16x128xbf16>
      %c0_28 = arith.constant 0 : index
      %c0_29 = arith.constant 0 : index
      %28 = vector.load %arg10[%c0_28, %c0_29] : memref<16x128xbf16, #tpu.memory_space<vmem>>, vector<16x128xbf16>
      tpu.vector_store %arg10[%c0_28, %c0_29], %27 {strides = array<i32>} : memref<16x128xbf16, #tpu.memory_space<vmem>>, vector<16x128xbf16>,
      %c0_30 = arith.constant 0 : index
      %c0_31 = arith.constant 0 : index
      %29 = vector.load %arg14[%c0_30, %c0_31] : memref<16x128xf32, #tpu.memory_space<vmem>>, vector<16x128xf32>
      %c0_32 = arith.constant 0 : index
      %c0_33 = arith.constant 0 : index
      %30 = vector.load %arg8[%c0_32, %c0_33] : memref<1x128xf32, #tpu.memory_space<vmem>>, vector<1x128xf32>
      %31 = vector.broadcast %30 : vector<1x128xf32> to vector<16x128xf32>
      %32 = arith.addf %29, %31 : vector<16x128xf32>
      %33 = arith.truncf %32 : vector<16x128xf32> to vector<16x128xbf16>
      %c0_34 = arith.constant 0 : index
      %c0_35 = arith.constant 0 : index
      %34 = vector.load %arg11[%c0_34, %c0_35] : memref<16x128xbf16, #tpu.memory_space<vmem>>, vector<16x128xbf16>
      tpu.vector_store %arg11[%c0_34, %c0_35], %33 {strides = array<i32>} : memref<16x128xbf16, #tpu.memory_space<vmem>>, vector<16x128xbf16>,
      %c0_36 = arith.constant 0 : index
      %c0_37 = arith.constant 0 : index
      %35 = vector.load %arg15[%c0_36, %c0_37] : memref<16x128xf32, #tpu.memory_space<vmem>>, vector<16x128xf32>
      %c0_38 = arith.constant 0 : index
      %c0_39 = arith.constant 0 : index
      %36 = vector.load %arg9[%c0_38, %c0_39] : memref<1x128xf32, #tpu.memory_space<vmem>>, vector<1x128xf32>
      %37 = vector.broadcast %36 : vector<1x128xf32> to vector<16x128xf32>
      %38 = arith.addf %35, %37 : vector<16x128xf32>
      %39 = arith.truncf %38 : vector<16x128xf32> to vector<16x128xbf16>
      %c0_40 = arith.constant 0 : index
      %c0_41 = arith.constant 0 : index
      %40 = vector.load %arg12[%c0_40, %c0_41] : memref<16x128xbf16, #tpu.memory_space<vmem>>, vector<16x128xbf16>
      tpu.vector_store %arg12[%c0_40, %c0_41], %39 {strides = array<i32>} : memref<16x128xbf16, #tpu.memory_space<vmem>>, vector<16x128xbf16>,
    } else {
    }
    return
  }
  func.func @transform_0(%arg0: i32, %arg1: i32, %arg2: i32) -> (i32, i32) {
    %c0_i32 = arith.constant 0 : i32
    return %arg0, %arg2 : i32, i32
  }
  func.func @transform_1(%arg0: i32, %arg1: i32, %arg2: i32) -> (i32, i32) {
    %c0_i32 = arith.constant 0 : i32
    return %arg2, %arg1 : i32, i32
  }
  func.func @transform_2(%arg0: i32, %arg1: i32, %arg2: i32) -> (i32, i32) {
    %c0_i32 = arith.constant 0 : i32
    return %arg2, %arg1 : i32, i32
  }
  func.func @transform_3(%arg0: i32, %arg1: i32, %arg2: i32) -> (i32, i32) {
    %c0_i32 = arith.constant 0 : i32
    return %arg2, %arg1 : i32, i32
  }
  func.func @transform_4(%arg0: i32, %arg1: i32, %arg2: i32) -> (i32, i32) {
    %c0_i32 = arith.constant 0 : i32
    %c0_i32_0 = arith.constant 0 : i32
    return %c0_i32, %arg1 : i32, i32
  }
  func.func @transform_5(%arg0: i32, %arg1: i32, %arg2: i32) -> (i32, i32) {
    %c0_i32 = arith.constant 0 : i32
    %c0_i32_0 = arith.constant 0 : i32
    return %c0_i32, %arg1 : i32, i32
  }
  func.func @transform_6(%arg0: i32, %arg1: i32, %arg2: i32) -> (i32, i32) {
    %c0_i32 = arith.constant 0 : i32
    %c0_i32_0 = arith.constant 0 : i32
    return %c0_i32, %arg1 : i32, i32
  }
  func.func @transform_7(%arg0: i32, %arg1: i32, %arg2: i32) -> (i32, i32) {
    %c0_i32 = arith.constant 0 : i32
    return %arg0, %arg1 : i32, i32
  }
  func.func @transform_8(%arg0: i32, %arg1: i32, %arg2: i32) -> (i32, i32) {
    %c0_i32 = arith.constant 0 : i32
    return %arg0, %arg1 : i32, i32
  }
  func.func @transform_9(%arg0: i32, %arg1: i32, %arg2: i32) -> (i32, i32) {
    %c0_i32 = arith.constant 0 : i32
    return %arg0, %arg1 : i32, i32
  }
}

module attributes {stable_mosaic.version = 11 : i64} {
  func.func @kernel(%arg0: i32, %arg1: i32, %arg2: i32, %arg3: memref<14x128xf32, #tpu.memory_space<vmem>>, %arg4: memref<128x128xbf16, #tpu.memory_space<vmem>>, %arg5: memref<128x128xbf16, #tpu.memory_space<vmem>>, %arg6: memref<128x128xbf16, #tpu.memory_space<vmem>>, %arg7: memref<128x128xbf16, #tpu.memory_space<vmem>>, %arg8: memref<128x128xbf16, #tpu.memory_space<vmem>>, %arg9: memref<128x128xbf16, #tpu.memory_space<vmem>>, %arg10: memref<1x128xf32, #tpu.memory_space<vmem>>, %arg11: memref<1x128xf32, #tpu.memory_space<vmem>>, %arg12: memref<1x128xf32, #tpu.memory_space<vmem>>, %arg13: memref<1x128xf32, #tpu.memory_space<vmem>>, %arg14: memref<1x128xf32, #tpu.memory_space<vmem>>, %arg15: memref<1x128xf32, #tpu.memory_space<vmem>>, %arg16: memref<14x128xbf16, #tpu.memory_space<vmem>>, %arg17: memref<14x128xbf16, #tpu.memory_space<vmem>>, %arg18: memref<14x128xbf16, #tpu.memory_space<vmem>>, %arg19: memref<14x128xbf16, #tpu.memory_space<vmem>>, %arg20: memref<14x128xbf16, #tpu.memory_space<vmem>>, %arg21: memref<14x128xbf16, #tpu.memory_space<vmem>>, %arg22: memref<14x128xf32, #tpu.memory_space<vmem>>, %arg23: memref<14x128xf32, #tpu.memory_space<vmem>>, %arg24: memref<14x128xf32, #tpu.memory_space<vmem>>, %arg25: memref<14x128xf32, #tpu.memory_space<vmem>>, %arg26: memref<14x128xf32, #tpu.memory_space<vmem>>, %arg27: memref<14x128xf32, #tpu.memory_space<vmem>>) attributes {dimension_semantics = [#tpu.dimension_semantics<parallel>, #tpu.dimension_semantics<parallel>, #tpu.dimension_semantics<arbitrary>], iteration_bounds = array<i64: 1, 1, 1>, scalar_prefetch = 0 : i64, scratch_operands = 6 : i64, tpu.core_type = #tpu.core_type<tc>, window_params = [{transform_indices = @transform_0, window_bounds = array<i64: 14, 128>}, {transform_indices = @transform_1, window_bounds = array<i64: 128, 128>}, {transform_indices = @transform_2, window_bounds = array<i64: 128, 128>}, {transform_indices = @transform_3, window_bounds = array<i64: 128, 128>}, {transform_indices = @transform_4, window_bounds = array<i64: 128, 128>}, {transform_indices = @transform_5, window_bounds = array<i64: 128, 128>}, {transform_indices = @transform_6, window_bounds = array<i64: 128, 128>}, {transform_indices = @transform_7, window_bounds = array<i64: 1, 128>}, {transform_indices = @transform_8, window_bounds = array<i64: 1, 128>}, {transform_indices = @transform_9, window_bounds = array<i64: 1, 128>}, {transform_indices = @transform_10, window_bounds = array<i64: 1, 128>}, {transform_indices = @transform_11, window_bounds = array<i64: 1, 128>}, {transform_indices = @transform_12, window_bounds = array<i64: 1, 128>}, {transform_indices = @transform_13, window_bounds = array<i64: 14, 128>}, {transform_indices = @transform_14, window_bounds = array<i64: 14, 128>}, {transform_indices = @transform_15, window_bounds = array<i64: 14, 128>}, {transform_indices = @transform_16, window_bounds = array<i64: 14, 128>}, {transform_indices = @transform_17, window_bounds = array<i64: 14, 128>}, {transform_indices = @transform_18, window_bounds = array<i64: 14, 128>}]} {
    %c0_i32 = arith.constant 0 : i32
    %0 = arith.cmpi eq, %arg2, %c0_i32 : i32
    %1 = arith.extui %0 : i1 to i32
    %c0_i32_0 = arith.constant 0 : i32
    %2 = arith.cmpi ne, %1, %c0_i32_0 : i32
    scf.if %2 {
      %cst_45 = arith.constant 0.000000e+00 : f32
      %38 = vector.broadcast %cst_45 : f32 to vector<14x128xf32>
      %c0_46 = arith.constant 0 : index
      %c0_47 = arith.constant 0 : index
      %39 = vector.load %arg22[%c0_46, %c0_47] : memref<14x128xf32, #tpu.memory_space<vmem>>, vector<14x128xf32>
      tpu.vector_store %arg22[%c0_46, %c0_47], %38 {strides = array<i32>} : memref<14x128xf32, #tpu.memory_space<vmem>>, vector<14x128xf32>,
      %cst_48 = arith.constant 0.000000e+00 : f32
      %40 = vector.broadcast %cst_48 : f32 to vector<14x128xf32>
      %c0_49 = arith.constant 0 : index
      %c0_50 = arith.constant 0 : index
      %41 = vector.load %arg23[%c0_49, %c0_50] : memref<14x128xf32, #tpu.memory_space<vmem>>, vector<14x128xf32>
      tpu.vector_store %arg23[%c0_49, %c0_50], %40 {strides = array<i32>} : memref<14x128xf32, #tpu.memory_space<vmem>>, vector<14x128xf32>,
      %cst_51 = arith.constant 0.000000e+00 : f32
      %42 = vector.broadcast %cst_51 : f32 to vector<14x128xf32>
      %c0_52 = arith.constant 0 : index
      %c0_53 = arith.constant 0 : index
      %43 = vector.load %arg24[%c0_52, %c0_53] : memref<14x128xf32, #tpu.memory_space<vmem>>, vector<14x128xf32>
      tpu.vector_store %arg24[%c0_52, %c0_53], %42 {strides = array<i32>} : memref<14x128xf32, #tpu.memory_space<vmem>>, vector<14x128xf32>,
      %cst_54 = arith.constant 0.000000e+00 : f32
      %44 = vector.broadcast %cst_54 : f32 to vector<14x128xf32>
      %c0_55 = arith.constant 0 : index
      %c0_56 = arith.constant 0 : index
      %45 = vector.load %arg25[%c0_55, %c0_56] : memref<14x128xf32, #tpu.memory_space<vmem>>, vector<14x128xf32>
      tpu.vector_store %arg25[%c0_55, %c0_56], %44 {strides = array<i32>} : memref<14x128xf32, #tpu.memory_space<vmem>>, vector<14x128xf32>,
      %cst_57 = arith.constant 0.000000e+00 : f32
      %46 = vector.broadcast %cst_57 : f32 to vector<14x128xf32>
      %c0_58 = arith.constant 0 : index
      %c0_59 = arith.constant 0 : index
      %47 = vector.load %arg26[%c0_58, %c0_59] : memref<14x128xf32, #tpu.memory_space<vmem>>, vector<14x128xf32>
      tpu.vector_store %arg26[%c0_58, %c0_59], %46 {strides = array<i32>} : memref<14x128xf32, #tpu.memory_space<vmem>>, vector<14x128xf32>,
      %cst_60 = arith.constant 0.000000e+00 : f32
      %48 = vector.broadcast %cst_60 : f32 to vector<14x128xf32>
      %c0_61 = arith.constant 0 : index
      %c0_62 = arith.constant 0 : index
      %49 = vector.load %arg27[%c0_61, %c0_62] : memref<14x128xf32, #tpu.memory_space<vmem>>, vector<14x128xf32>
      tpu.vector_store %arg27[%c0_61, %c0_62], %48 {strides = array<i32>} : memref<14x128xf32, #tpu.memory_space<vmem>>, vector<14x128xf32>,
    } else {
    }
    %c0 = arith.constant 0 : index
    %c0_1 = arith.constant 0 : index
    %3 = vector.load %arg3[%c0, %c0_1] : memref<14x128xf32, #tpu.memory_space<vmem>>, vector<14x128xf32>
    %4 = arith.truncf %3 : vector<14x128xf32> to vector<14x128xbf16>
    %c0_2 = arith.constant 0 : index
    %c0_3 = arith.constant 0 : index
    %5 = vector.load %arg22[%c0_2, %c0_3] : memref<14x128xf32, #tpu.memory_space<vmem>>, vector<14x128xf32>
    %c0_4 = arith.constant 0 : index
    %c0_5 = arith.constant 0 : index
    %6 = vector.load %arg4[%c0_4, %c0_5] : memref<128x128xbf16, #tpu.memory_space<vmem>>, vector<128x128xbf16>
    %cst = arith.constant dense<0.000000e+00> : vector<14x128xf32>
    %7 = tpu.matmul %4, %6, %cst {dimension_numbers = #tpu.dot_dimension_numbers<[1], [0], [0], [1], [0, 0, 1, 1], [], []>} : vector<14x128xbf16>, vector<128x128xbf16>, vector<14x128xf32> -> vector<14x128xf32>
    %8 = arith.addf %5, %7 : vector<14x128xf32>
    %c0_6 = arith.constant 0 : index
    %c0_7 = arith.constant 0 : index
    %9 = vector.load %arg22[%c0_6, %c0_7] : memref<14x128xf32, #tpu.memory_space<vmem>>, vector<14x128xf32>
    tpu.vector_store %arg22[%c0_6, %c0_7], %8 {strides = array<i32>} : memref<14x128xf32, #tpu.memory_space<vmem>>, vector<14x128xf32>,
    %c0_8 = arith.constant 0 : index
    %c0_9 = arith.constant 0 : index
    %10 = vector.load %arg23[%c0_8, %c0_9] : memref<14x128xf32, #tpu.memory_space<vmem>>, vector<14x128xf32>
    %c0_10 = arith.constant 0 : index
    %c0_11 = arith.constant 0 : index
    %11 = vector.load %arg5[%c0_10, %c0_11] : memref<128x128xbf16, #tpu.memory_space<vmem>>, vector<128x128xbf16>
    %cst_12 = arith.constant dense<0.000000e+00> : vector<14x128xf32>
    %12 = tpu.matmul %4, %11, %cst_12 {dimension_numbers = #tpu.dot_dimension_numbers<[1], [0], [0], [1], [0, 0, 1, 1], [], []>} : vector<14x128xbf16>, vector<128x128xbf16>, vector<14x128xf32> -> vector<14x128xf32>
    %13 = arith.addf %10, %12 : vector<14x128xf32>
    %c0_13 = arith.constant 0 : index
    %c0_14 = arith.constant 0 : index
    %14 = vector.load %arg23[%c0_13, %c0_14] : memref<14x128xf32, #tpu.memory_space<vmem>>, vector<14x128xf32>
    tpu.vector_store %arg23[%c0_13, %c0_14], %13 {strides = array<i32>} : memref<14x128xf32, #tpu.memory_space<vmem>>, vector<14x128xf32>,
    %c0_15 = arith.constant 0 : index
    %c0_16 = arith.constant 0 : index
    %15 = vector.load %arg24[%c0_15, %c0_16] : memref<14x128xf32, #tpu.memory_space<vmem>>, vector<14x128xf32>
    %c0_17 = arith.constant 0 : index
    %c0_18 = arith.constant 0 : index
    %16 = vector.load %arg6[%c0_17, %c0_18] : memref<128x128xbf16, #tpu.memory_space<vmem>>, vector<128x128xbf16>
    %cst_19 = arith.constant dense<0.000000e+00> : vector<14x128xf32>
    %17 = tpu.matmul %4, %16, %cst_19 {dimension_numbers = #tpu.dot_dimension_numbers<[1], [0], [0], [1], [0, 0, 1, 1], [], []>} : vector<14x128xbf16>, vector<128x128xbf16>, vector<14x128xf32> -> vector<14x128xf32>
    %18 = arith.addf %15, %17 : vector<14x128xf32>
    %c0_20 = arith.constant 0 : index
    %c0_21 = arith.constant 0 : index
    %19 = vector.load %arg24[%c0_20, %c0_21] : memref<14x128xf32, #tpu.memory_space<vmem>>, vector<14x128xf32>
    tpu.vector_store %arg24[%c0_20, %c0_21], %18 {strides = array<i32>} : memref<14x128xf32, #tpu.memory_space<vmem>>, vector<14x128xf32>,
    %c0_22 = arith.constant 0 : index
    %c0_23 = arith.constant 0 : index
    %20 = vector.load %arg25[%c0_22, %c0_23] : memref<14x128xf32, #tpu.memory_space<vmem>>, vector<14x128xf32>
    %c0_24 = arith.constant 0 : index
    %c0_25 = arith.constant 0 : index
    %21 = vector.load %arg7[%c0_24, %c0_25] : memref<128x128xbf16, #tpu.memory_space<vmem>>, vector<128x128xbf16>
    %cst_26 = arith.constant dense<0.000000e+00> : vector<14x128xf32>
    %22 = tpu.matmul %4, %21, %cst_26 {dimension_numbers = #tpu.dot_dimension_numbers<[1], [0], [0], [1], [0, 0, 1, 1], [], []>} : vector<14x128xbf16>, vector<128x128xbf16>, vector<14x128xf32> -> vector<14x128xf32>
    %23 = arith.addf %20, %22 : vector<14x128xf32>
    %c0_27 = arith.constant 0 : index
    %c0_28 = arith.constant 0 : index
    %24 = vector.load %arg25[%c0_27, %c0_28] : memref<14x128xf32, #tpu.memory_space<vmem>>, vector<14x128xf32>
    tpu.vector_store %arg25[%c0_27, %c0_28], %23 {strides = array<i32>} : memref<14x128xf32, #tpu.memory_space<vmem>>, vector<14x128xf32>,
    %c0_29 = arith.constant 0 : index
    %c0_30 = arith.constant 0 : index
    %25 = vector.load %arg26[%c0_29, %c0_30] : memref<14x128xf32, #tpu.memory_space<vmem>>, vector<14x128xf32>
    %c0_31 = arith.constant 0 : index
    %c0_32 = arith.constant 0 : index
    %26 = vector.load %arg8[%c0_31, %c0_32] : memref<128x128xbf16, #tpu.memory_space<vmem>>, vector<128x128xbf16>
    %cst_33 = arith.constant dense<0.000000e+00> : vector<14x128xf32>
    %27 = tpu.matmul %4, %26, %cst_33 {dimension_numbers = #tpu.dot_dimension_numbers<[1], [0], [0], [1], [0, 0, 1, 1], [], []>} : vector<14x128xbf16>, vector<128x128xbf16>, vector<14x128xf32> -> vector<14x128xf32>
    %28 = arith.addf %25, %27 : vector<14x128xf32>
    %c0_34 = arith.constant 0 : index
    %c0_35 = arith.constant 0 : index
    %29 = vector.load %arg26[%c0_34, %c0_35] : memref<14x128xf32, #tpu.memory_space<vmem>>, vector<14x128xf32>
    tpu.vector_store %arg26[%c0_34, %c0_35], %28 {strides = array<i32>} : memref<14x128xf32, #tpu.memory_space<vmem>>, vector<14x128xf32>,
    %c0_36 = arith.constant 0 : index
    %c0_37 = arith.constant 0 : index
    %30 = vector.load %arg27[%c0_36, %c0_37] : memref<14x128xf32, #tpu.memory_space<vmem>>, vector<14x128xf32>
    %c0_38 = arith.constant 0 : index
    %c0_39 = arith.constant 0 : index
    %31 = vector.load %arg9[%c0_38, %c0_39] : memref<128x128xbf16, #tpu.memory_space<vmem>>, vector<128x128xbf16>
    %cst_40 = arith.constant dense<0.000000e+00> : vector<14x128xf32>
    %32 = tpu.matmul %4, %31, %cst_40 {dimension_numbers = #tpu.dot_dimension_numbers<[1], [0], [0], [1], [0, 0, 1, 1], [], []>} : vector<14x128xbf16>, vector<128x128xbf16>, vector<14x128xf32> -> vector<14x128xf32>
    %33 = arith.addf %30, %32 : vector<14x128xf32>
    %c0_41 = arith.constant 0 : index
    %c0_42 = arith.constant 0 : index
    %34 = vector.load %arg27[%c0_41, %c0_42] : memref<14x128xf32, #tpu.memory_space<vmem>>, vector<14x128xf32>
    tpu.vector_store %arg27[%c0_41, %c0_42], %33 {strides = array<i32>} : memref<14x128xf32, #tpu.memory_space<vmem>>, vector<14x128xf32>,
    %c0_i32_43 = arith.constant 0 : i32
    %35 = arith.cmpi eq, %arg2, %c0_i32_43 : i32
    %36 = arith.extui %35 : i1 to i32
    %c0_i32_44 = arith.constant 0 : i32
    %37 = arith.cmpi ne, %36, %c0_i32_44 : i32
    scf.if %37 {
      %c0_45 = arith.constant 0 : index
      %c0_46 = arith.constant 0 : index
      %38 = vector.load %arg22[%c0_45, %c0_46] : memref<14x128xf32, #tpu.memory_space<vmem>>, vector<14x128xf32>
      %c0_47 = arith.constant 0 : index
      %c0_48 = arith.constant 0 : index
      %39 = vector.load %arg10[%c0_47, %c0_48] : memref<1x128xf32, #tpu.memory_space<vmem>>, vector<1x128xf32>
      %40 = vector.broadcast %39 : vector<1x128xf32> to vector<14x128xf32>
      %41 = arith.addf %38, %40 : vector<14x128xf32>
      %42 = arith.truncf %41 : vector<14x128xf32> to vector<14x128xbf16>
      %c0_49 = arith.constant 0 : index
      %c0_50 = arith.constant 0 : index
      %43 = vector.load %arg16[%c0_49, %c0_50] : memref<14x128xbf16, #tpu.memory_space<vmem>>, vector<14x128xbf16>
      tpu.vector_store %arg16[%c0_49, %c0_50], %42 {strides = array<i32>} : memref<14x128xbf16, #tpu.memory_space<vmem>>, vector<14x128xbf16>,
      %c0_51 = arith.constant 0 : index
      %c0_52 = arith.constant 0 : index
      %44 = vector.load %arg23[%c0_51, %c0_52] : memref<14x128xf32, #tpu.memory_space<vmem>>, vector<14x128xf32>
      %c0_53 = arith.constant 0 : index
      %c0_54 = arith.constant 0 : index
      %45 = vector.load %arg11[%c0_53, %c0_54] : memref<1x128xf32, #tpu.memory_space<vmem>>, vector<1x128xf32>
      %46 = vector.broadcast %45 : vector<1x128xf32> to vector<14x128xf32>
      %47 = arith.addf %44, %46 : vector<14x128xf32>
      %48 = arith.truncf %47 : vector<14x128xf32> to vector<14x128xbf16>
      %c0_55 = arith.constant 0 : index
      %c0_56 = arith.constant 0 : index
      %49 = vector.load %arg17[%c0_55, %c0_56] : memref<14x128xbf16, #tpu.memory_space<vmem>>, vector<14x128xbf16>
      tpu.vector_store %arg17[%c0_55, %c0_56], %48 {strides = array<i32>} : memref<14x128xbf16, #tpu.memory_space<vmem>>, vector<14x128xbf16>,
      %c0_57 = arith.constant 0 : index
      %c0_58 = arith.constant 0 : index
      %50 = vector.load %arg24[%c0_57, %c0_58] : memref<14x128xf32, #tpu.memory_space<vmem>>, vector<14x128xf32>
      %c0_59 = arith.constant 0 : index
      %c0_60 = arith.constant 0 : index
      %51 = vector.load %arg12[%c0_59, %c0_60] : memref<1x128xf32, #tpu.memory_space<vmem>>, vector<1x128xf32>
      %52 = vector.broadcast %51 : vector<1x128xf32> to vector<14x128xf32>
      %53 = arith.addf %50, %52 : vector<14x128xf32>
      %54 = arith.truncf %53 : vector<14x128xf32> to vector<14x128xbf16>
      %c0_61 = arith.constant 0 : index
      %c0_62 = arith.constant 0 : index
      %55 = vector.load %arg18[%c0_61, %c0_62] : memref<14x128xbf16, #tpu.memory_space<vmem>>, vector<14x128xbf16>
      tpu.vector_store %arg18[%c0_61, %c0_62], %54 {strides = array<i32>} : memref<14x128xbf16, #tpu.memory_space<vmem>>, vector<14x128xbf16>,
      %c0_63 = arith.constant 0 : index
      %c0_64 = arith.constant 0 : index
      %56 = vector.load %arg25[%c0_63, %c0_64] : memref<14x128xf32, #tpu.memory_space<vmem>>, vector<14x128xf32>
      %c0_65 = arith.constant 0 : index
      %c0_66 = arith.constant 0 : index
      %57 = vector.load %arg13[%c0_65, %c0_66] : memref<1x128xf32, #tpu.memory_space<vmem>>, vector<1x128xf32>
      %58 = vector.broadcast %57 : vector<1x128xf32> to vector<14x128xf32>
      %59 = arith.addf %56, %58 : vector<14x128xf32>
      %60 = arith.truncf %59 : vector<14x128xf32> to vector<14x128xbf16>
      %c0_67 = arith.constant 0 : index
      %c0_68 = arith.constant 0 : index
      %61 = vector.load %arg19[%c0_67, %c0_68] : memref<14x128xbf16, #tpu.memory_space<vmem>>, vector<14x128xbf16>
      tpu.vector_store %arg19[%c0_67, %c0_68], %60 {strides = array<i32>} : memref<14x128xbf16, #tpu.memory_space<vmem>>, vector<14x128xbf16>,
      %c0_69 = arith.constant 0 : index
      %c0_70 = arith.constant 0 : index
      %62 = vector.load %arg26[%c0_69, %c0_70] : memref<14x128xf32, #tpu.memory_space<vmem>>, vector<14x128xf32>
      %c0_71 = arith.constant 0 : index
      %c0_72 = arith.constant 0 : index
      %63 = vector.load %arg14[%c0_71, %c0_72] : memref<1x128xf32, #tpu.memory_space<vmem>>, vector<1x128xf32>
      %64 = vector.broadcast %63 : vector<1x128xf32> to vector<14x128xf32>
      %65 = arith.addf %62, %64 : vector<14x128xf32>
      %66 = arith.truncf %65 : vector<14x128xf32> to vector<14x128xbf16>
      %c0_73 = arith.constant 0 : index
      %c0_74 = arith.constant 0 : index
      %67 = vector.load %arg20[%c0_73, %c0_74] : memref<14x128xbf16, #tpu.memory_space<vmem>>, vector<14x128xbf16>
      tpu.vector_store %arg20[%c0_73, %c0_74], %66 {strides = array<i32>} : memref<14x128xbf16, #tpu.memory_space<vmem>>, vector<14x128xbf16>,
      %c0_75 = arith.constant 0 : index
      %c0_76 = arith.constant 0 : index
      %68 = vector.load %arg27[%c0_75, %c0_76] : memref<14x128xf32, #tpu.memory_space<vmem>>, vector<14x128xf32>
      %c0_77 = arith.constant 0 : index
      %c0_78 = arith.constant 0 : index
      %69 = vector.load %arg15[%c0_77, %c0_78] : memref<1x128xf32, #tpu.memory_space<vmem>>, vector<1x128xf32>
      %70 = vector.broadcast %69 : vector<1x128xf32> to vector<14x128xf32>
      %71 = arith.addf %68, %70 : vector<14x128xf32>
      %72 = arith.truncf %71 : vector<14x128xf32> to vector<14x128xbf16>
      %c0_79 = arith.constant 0 : index
      %c0_80 = arith.constant 0 : index
      %73 = vector.load %arg21[%c0_79, %c0_80] : memref<14x128xbf16, #tpu.memory_space<vmem>>, vector<14x128xbf16>
      tpu.vector_store %arg21[%c0_79, %c0_80], %72 {strides = array<i32>} : memref<14x128xbf16, #tpu.memory_space<vmem>>, vector<14x128xbf16>,
    } else {
    }
    return
  }
  func.func @transform_0(%arg0: i32, %arg1: i32, %arg2: i32) -> (i32, i32) {
    %c0_i32 = arith.constant 0 : i32
    return %arg0, %arg2 : i32, i32
  }
  func.func @transform_1(%arg0: i32, %arg1: i32, %arg2: i32) -> (i32, i32) {
    %c0_i32 = arith.constant 0 : i32
    return %arg2, %arg1 : i32, i32
  }
  func.func @transform_2(%arg0: i32, %arg1: i32, %arg2: i32) -> (i32, i32) {
    %c0_i32 = arith.constant 0 : i32
    return %arg2, %arg1 : i32, i32
  }
  func.func @transform_3(%arg0: i32, %arg1: i32, %arg2: i32) -> (i32, i32) {
    %c0_i32 = arith.constant 0 : i32
    return %arg2, %arg1 : i32, i32
  }
  func.func @transform_4(%arg0: i32, %arg1: i32, %arg2: i32) -> (i32, i32) {
    %c0_i32 = arith.constant 0 : i32
    return %arg2, %arg1 : i32, i32
  }
  func.func @transform_5(%arg0: i32, %arg1: i32, %arg2: i32) -> (i32, i32) {
    %c0_i32 = arith.constant 0 : i32
    return %arg2, %arg1 : i32, i32
  }
  func.func @transform_6(%arg0: i32, %arg1: i32, %arg2: i32) -> (i32, i32) {
    %c0_i32 = arith.constant 0 : i32
    return %arg2, %arg1 : i32, i32
  }
  func.func @transform_7(%arg0: i32, %arg1: i32, %arg2: i32) -> (i32, i32) {
    %c0_i32 = arith.constant 0 : i32
    %c0_i32_0 = arith.constant 0 : i32
    return %c0_i32, %arg1 : i32, i32
  }
  func.func @transform_8(%arg0: i32, %arg1: i32, %arg2: i32) -> (i32, i32) {
    %c0_i32 = arith.constant 0 : i32
    %c0_i32_0 = arith.constant 0 : i32
    return %c0_i32, %arg1 : i32, i32
  }
  func.func @transform_9(%arg0: i32, %arg1: i32, %arg2: i32) -> (i32, i32) {
    %c0_i32 = arith.constant 0 : i32
    %c0_i32_0 = arith.constant 0 : i32
    return %c0_i32, %arg1 : i32, i32
  }
  func.func @transform_10(%arg0: i32, %arg1: i32, %arg2: i32) -> (i32, i32) {
    %c0_i32 = arith.constant 0 : i32
    %c0_i32_0 = arith.constant 0 : i32
    return %c0_i32, %arg1 : i32, i32
  }
  func.func @transform_11(%arg0: i32, %arg1: i32, %arg2: i32) -> (i32, i32) {
    %c0_i32 = arith.constant 0 : i32
    %c0_i32_0 = arith.constant 0 : i32
    return %c0_i32, %arg1 : i32, i32
  }
  func.func @transform_12(%arg0: i32, %arg1: i32, %arg2: i32) -> (i32, i32) {
    %c0_i32 = arith.constant 0 : i32
    %c0_i32_0 = arith.constant 0 : i32
    return %c0_i32, %arg1 : i32, i32
  }
  func.func @transform_13(%arg0: i32, %arg1: i32, %arg2: i32) -> (i32, i32) {
    %c0_i32 = arith.constant 0 : i32
    return %arg0, %arg1 : i32, i32
  }
  func.func @transform_14(%arg0: i32, %arg1: i32, %arg2: i32) -> (i32, i32) {
    %c0_i32 = arith.constant 0 : i32
    return %arg0, %arg1 : i32, i32
  }
  func.func @transform_15(%arg0: i32, %arg1: i32, %arg2: i32) -> (i32, i32) {
    %c0_i32 = arith.constant 0 : i32
    return %arg0, %arg1 : i32, i32
  }
  func.func @transform_16(%arg0: i32, %arg1: i32, %arg2: i32) -> (i32, i32) {
    %c0_i32 = arith.constant 0 : i32
    return %arg0, %arg1 : i32, i32
  }
  func.func @transform_17(%arg0: i32, %arg1: i32, %arg2: i32) -> (i32, i32) {
    %c0_i32 = arith.constant 0 : i32
    return %arg0, %arg1 : i32, i32
  }
  func.func @transform_18(%arg0: i32, %arg1: i32, %arg2: i32) -> (i32, i32) {
    %c0_i32 = arith.constant 0 : i32
    return %arg0, %arg1 : i32, i32
  }
}

module attributes {stable_mosaic.version = 11 : i64} {
  func.func @_attn3_kernel(%arg0: i32, %arg1: i32, %arg2: memref<1x1x128xbf16, #tpu.memory_space<vmem>>, %arg3: memref<1x2x4x128xbf16, #tpu.memory_space<vmem>>, %arg4: memref<1x8x128xbf16, #tpu.memory_space<vmem>>, %arg5: memref<1x8x128xbf16, #tpu.memory_space<vmem>>, %arg6: memref<1x2x4x128xbf16, #tpu.memory_space<vmem>>, %arg7: memref<1x2x4x128xbf16, #tpu.memory_space<vmem>>, %arg8: memref<1x1x8xf32, #tpu.memory_space<vmem>>, %arg9: memref<1x1x4xf32, #tpu.memory_space<vmem>>, %arg10: memref<1x2x1x128xbf16, #tpu.memory_space<vmem>>, %arg11: memref<1x2x4x128xbf16, #tpu.memory_space<vmem>>) attributes {dimension_semantics = [#tpu.dimension_semantics<parallel>, #tpu.dimension_semantics<parallel>], iteration_bounds = array<i64: 2, 1>, scalar_prefetch = 0 : i64, scratch_operands = 0 : i64, tpu.core_type = #tpu.core_type<tc>, window_params = [{transform_indices = @transform_0, window_bounds = array<i64: 1, 1, 128>}, {transform_indices = @transform_1, window_bounds = array<i64: 1, 2, 4, 128>}, {transform_indices = @transform_2, window_bounds = array<i64: 1, 8, 128>}, {transform_indices = @transform_3, window_bounds = array<i64: 1, 8, 128>}, {transform_indices = @transform_4, window_bounds = array<i64: 1, 2, 4, 128>}, {transform_indices = @transform_5, window_bounds = array<i64: 1, 2, 4, 128>}, {transform_indices = @transform_6, window_bounds = array<i64: 1, 1, 8>}, {transform_indices = @transform_7, window_bounds = array<i64: 1, 1, 4>}, {transform_indices = @transform_8, window_bounds = array<i64: 1, 2, 1, 128>}, {transform_indices = @transform_9, window_bounds = array<i64: 1, 2, 4, 128>}]} {
    %c0 = arith.constant 0 : index
    %c0_0 = arith.constant 0 : index
    %c0_1 = arith.constant 0 : index
    %0 = vector.load %arg2[%c0, %c0_0, %c0_1] : memref<1x1x128xbf16, #tpu.memory_space<vmem>>, vector<1x1x128xbf16>
    %1 = vector.shape_cast %0 : vector<1x1x128xbf16> to vector<1x128xbf16>
    %c0_2 = arith.constant 0 : index
    %c0_3 = arith.constant 0 : index
    %c0_4 = arith.constant 0 : index
    %2 = vector.load %arg4[%c0_2, %c0_3, %c0_4] : memref<1x8x128xbf16, #tpu.memory_space<vmem>>, vector<1x8x128xbf16>
    %3 = vector.shape_cast %2 : vector<1x8x128xbf16> to vector<8x128xbf16>
    %c0_5 = arith.constant 0 : index
    %c0_6 = arith.constant 0 : index
    %c0_7 = arith.constant 0 : index
    %4 = vector.load %arg5[%c0_5, %c0_6, %c0_7] : memref<1x8x128xbf16, #tpu.memory_space<vmem>>, vector<1x8x128xbf16>
    %5 = vector.shape_cast %4 : vector<1x8x128xbf16> to vector<8x128xbf16>
    %c0_8 = arith.constant 0 : index
    %c0_9 = arith.constant 0 : index
    %c0_10 = arith.constant 0 : index
    %6 = vector.load %arg8[%c0_8, %c0_9, %c0_10] : memref<1x1x8xf32, #tpu.memory_space<vmem>>, vector<1x1x8xf32>
    %7 = vector.shape_cast %6 : vector<1x1x8xf32> to vector<1x8xf32>
    %c0_11 = arith.constant 0 : index
    %c0_12 = arith.constant 0 : index
    %c0_13 = arith.constant 0 : index
    %8 = vector.load %arg9[%c0_11, %c0_12, %c0_13] : memref<1x1x4xf32, #tpu.memory_space<vmem>>, vector<1x1x4xf32>
    %9 = vector.shape_cast %8 : vector<1x1x4xf32> to vector<1x4xf32>
    %c0_14 = arith.constant 0 : index
    %c0_15 = arith.constant 0 : index
    %c0_16 = arith.constant 0 : index
    %c0_17 = arith.constant 0 : index
    %10 = vector.load %arg3[%c0_14, %c0_15, %c0_16, %c0_17] : memref<1x2x4x128xbf16, #tpu.memory_space<vmem>>, vector<1x1x4x128xbf16>
    %11 = vector.shape_cast %10 : vector<1x1x4x128xbf16> to vector<4x128xbf16>
    %c0_18 = arith.constant 0 : index
    %c0_19 = arith.constant 0 : index
    %c0_20 = arith.constant 0 : index
    %c0_21 = arith.constant 0 : index
    %12 = vector.load %arg6[%c0_18, %c0_19, %c0_20, %c0_21] : memref<1x2x4x128xbf16, #tpu.memory_space<vmem>>, vector<1x1x4x128xbf16>
    %13 = vector.shape_cast %12 : vector<1x1x4x128xbf16> to vector<4x128xbf16>
    %c0_22 = arith.constant 0 : index
    %c0_23 = arith.constant 0 : index
    %c0_24 = arith.constant 0 : index
    %c0_25 = arith.constant 0 : index
    %14 = vector.load %arg7[%c0_22, %c0_23, %c0_24, %c0_25] : memref<1x2x4x128xbf16, #tpu.memory_space<vmem>>, vector<1x1x4x128xbf16>
    %15 = vector.shape_cast %14 : vector<1x1x4x128xbf16> to vector<4x128xbf16>
    %16 = vector.extract_strided_slice %1 {offsets = [0, 0], sizes = [1, 32], strides = [1, 1]} : vector<1x128xbf16> to vector<1x32xbf16>
    %17 = vector.extract_strided_slice %11 {offsets = [0, 0], sizes = [4, 32], strides = [1, 1]} : vector<4x128xbf16> to vector<4x32xbf16>
    %18 = tpu.concatenate %16, %17 in 0 : vector<1x32xbf16>, vector<4x32xbf16> -> vector<5x32xbf16>
    %19 = vector.extract_strided_slice %3 {offsets = [0, 0], sizes = [8, 32], strides = [1, 1]} : vector<8x128xbf16> to vector<8x32xbf16>
    %cst = arith.constant dense<0.000000e+00> : vector<5x8xf32>
    %20 = tpu.matmul %18, %19, %cst {dimension_numbers = #tpu.dot_dimension_numbers<[1], [1], [0], [0], [0, 0, 1, 0], [], []>} : vector<5x32xbf16>, vector<8x32xbf16>, vector<5x8xf32> -> vector<5x8xf32>
    %21 = vector.broadcast %7 : vector<1x8xf32> to vector<5x8xf32>
    %22 = arith.addf %20, %21 : vector<5x8xf32>
    %23 = vector.extract_strided_slice %13 {offsets = [0, 0], sizes = [4, 32], strides = [1, 1]} : vector<4x128xbf16> to vector<4x32xbf16>
    %cst_26 = arith.constant dense<0.000000e+00> : vector<5x4xf32>
    %24 = tpu.matmul %18, %23, %cst_26 {dimension_numbers = #tpu.dot_dimension_numbers<[1], [1], [0], [0], [0, 0, 1, 0], [], []>} : vector<5x32xbf16>, vector<4x32xbf16>, vector<5x4xf32> -> vector<5x4xf32>
    %25 = vector.broadcast %9 : vector<1x4xf32> to vector<5x4xf32>
    %26 = arith.addf %24, %25 : vector<5x4xf32>
    %cst_27 = arith.constant dense<0xFF800000> : vector<5xf32>
    %27 = vector.multi_reduction <maximumf>, %22, %cst_27 [1] : vector<5x8xf32> to vector<5xf32>
    %28 = vector.shape_cast %27 : vector<5xf32> to vector<5x1xf32>
    %cst_28 = arith.constant dense<0xFF800000> : vector<5xf32>
    %29 = vector.multi_reduction <maximumf>, %26, %cst_28 [1] : vector<5x4xf32> to vector<5xf32>
    %30 = vector.shape_cast %29 : vector<5xf32> to vector<5x1xf32>
    %31 = arith.maximumf %28, %30 : vector<5x1xf32>
    %32 = vector.broadcast %31 : vector<5x1xf32> to vector<5x8xf32>
    %33 = arith.subf %22, %32 : vector<5x8xf32>
    %34 = math.exp %33 : vector<5x8xf32>
    %35 = vector.broadcast %31 : vector<5x1xf32> to vector<5x4xf32>
    %36 = arith.subf %26, %35 : vector<5x4xf32>
    %37 = math.exp %36 : vector<5x4xf32>
    %cst_29 = arith.constant dense<0.000000e+00> : vector<5xf32>
    %38 = vector.multi_reduction <add>, %34, %cst_29 [1] : vector<5x8xf32> to vector<5xf32>
    %39 = vector.shape_cast %38 : vector<5xf32> to vector<5x1xf32>
    %cst_30 = arith.constant dense<0.000000e+00> : vector<5xf32>
    %40 = vector.multi_reduction <add>, %37, %cst_30 [1] : vector<5x4xf32> to vector<5xf32>
    %41 = vector.shape_cast %40 : vector<5xf32> to vector<5x1xf32>
    %42 = arith.addf %39, %41 : vector<5x1xf32>
    %43 = tpu.reciprocal %42 {approx = true} : vector<5x1xf32> -> vector<5x1xf32>
    %44 = vector.broadcast %43 : vector<5x1xf32> to vector<5x8xf32>
    %45 = arith.mulf %34, %44 : vector<5x8xf32>
    %46 = arith.truncf %45 : vector<5x8xf32> to vector<5x8xbf16>
    %47 = vector.extract_strided_slice %5 {offsets = [0, 0], sizes = [8, 32], strides = [1, 1]} : vector<8x128xbf16> to vector<8x32xbf16>
    %cst_31 = arith.constant dense<0.000000e+00> : vector<5x32xf32>
    %48 = tpu.matmul %46, %47, %cst_31 {dimension_numbers = #tpu.dot_dimension_numbers<[1], [0], [0], [1], [0, 0, 1, 1], [], []>} : vector<5x8xbf16>, vector<8x32xbf16>, vector<5x32xf32> -> vector<5x32xf32>
    %49 = vector.broadcast %43 : vector<5x1xf32> to vector<5x4xf32>
    %50 = arith.mulf %37, %49 : vector<5x4xf32>
    %51 = arith.truncf %50 : vector<5x4xf32> to vector<5x4xbf16>
    %52 = vector.extract_strided_slice %15 {offsets = [0, 0], sizes = [4, 32], strides = [1, 1]} : vector<4x128xbf16> to vector<4x32xbf16>
    %cst_32 = arith.constant dense<0.000000e+00> : vector<5x32xf32>
    %53 = tpu.matmul %51, %52, %cst_32 {dimension_numbers = #tpu.dot_dimension_numbers<[1], [0], [0], [1], [0, 0, 1, 1], [], []>} : vector<5x4xbf16>, vector<4x32xbf16>, vector<5x32xf32> -> vector<5x32xf32>
    %54 = arith.addf %48, %53 : vector<5x32xf32>
    %55 = vector.extract_strided_slice %1 {offsets = [0, 32], sizes = [1, 32], strides = [1, 1]} : vector<1x128xbf16> to vector<1x32xbf16>
    %56 = vector.extract_strided_slice %11 {offsets = [0, 32], sizes = [4, 32], strides = [1, 1]} : vector<4x128xbf16> to vector<4x32xbf16>
    %57 = tpu.concatenate %55, %56 in 0 : vector<1x32xbf16>, vector<4x32xbf16> -> vector<5x32xbf16>
    %58 = vector.extract_strided_slice %3 {offsets = [0, 32], sizes = [8, 32], strides = [1, 1]} : vector<8x128xbf16> to vector<8x32xbf16>
    %cst_33 = arith.constant dense<0.000000e+00> : vector<5x8xf32>
    %59 = tpu.matmul %57, %58, %cst_33 {dimension_numbers = #tpu.dot_dimension_numbers<[1], [1], [0], [0], [0, 0, 1, 0], [], []>} : vector<5x32xbf16>, vector<8x32xbf16>, vector<5x8xf32> -> vector<5x8xf32>
    %60 = vector.broadcast %7 : vector<1x8xf32> to vector<5x8xf32>
    %61 = arith.addf %59, %60 : vector<5x8xf32>
    %62 = vector.extract_strided_slice %13 {offsets = [0, 32], sizes = [4, 32], strides = [1, 1]} : vector<4x128xbf16> to vector<4x32xbf16>
    %cst_34 = arith.constant dense<0.000000e+00> : vector<5x4xf32>
    %63 = tpu.matmul %57, %62, %cst_34 {dimension_numbers = #tpu.dot_dimension_numbers<[1], [1], [0], [0], [0, 0, 1, 0], [], []>} : vector<5x32xbf16>, vector<4x32xbf16>, vector<5x4xf32> -> vector<5x4xf32>
    %64 = vector.broadcast %9 : vector<1x4xf32> to vector<5x4xf32>
    %65 = arith.addf %63, %64 : vector<5x4xf32>
    %cst_35 = arith.constant dense<0xFF800000> : vector<5xf32>
    %66 = vector.multi_reduction <maximumf>, %61, %cst_35 [1] : vector<5x8xf32> to vector<5xf32>
    %67 = vector.shape_cast %66 : vector<5xf32> to vector<5x1xf32>
    %cst_36 = arith.constant dense<0xFF800000> : vector<5xf32>
    %68 = vector.multi_reduction <maximumf>, %65, %cst_36 [1] : vector<5x4xf32> to vector<5xf32>
    %69 = vector.shape_cast %68 : vector<5xf32> to vector<5x1xf32>
    %70 = arith.maximumf %67, %69 : vector<5x1xf32>
    %71 = vector.broadcast %70 : vector<5x1xf32> to vector<5x8xf32>
    %72 = arith.subf %61, %71 : vector<5x8xf32>
    %73 = math.exp %72 : vector<5x8xf32>
    %74 = vector.broadcast %70 : vector<5x1xf32> to vector<5x4xf32>
    %75 = arith.subf %65, %74 : vector<5x4xf32>
    %76 = math.exp %75 : vector<5x4xf32>
    %cst_37 = arith.constant dense<0.000000e+00> : vector<5xf32>
    %77 = vector.multi_reduction <add>, %73, %cst_37 [1] : vector<5x8xf32> to vector<5xf32>
    %78 = vector.shape_cast %77 : vector<5xf32> to vector<5x1xf32>
    %cst_38 = arith.constant dense<0.000000e+00> : vector<5xf32>
    %79 = vector.multi_reduction <add>, %76, %cst_38 [1] : vector<5x4xf32> to vector<5xf32>
    %80 = vector.shape_cast %79 : vector<5xf32> to vector<5x1xf32>
    %81 = arith.addf %78, %80 : vector<5x1xf32>
    %82 = tpu.reciprocal %81 {approx = true} : vector<5x1xf32> -> vector<5x1xf32>
    %83 = vector.broadcast %82 : vector<5x1xf32> to vector<5x8xf32>
    %84 = arith.mulf %73, %83 : vector<5x8xf32>
    %85 = arith.truncf %84 : vector<5x8xf32> to vector<5x8xbf16>
    %86 = vector.extract_strided_slice %5 {offsets = [0, 32], sizes = [8, 32], strides = [1, 1]} : vector<8x128xbf16> to vector<8x32xbf16>
    %cst_39 = arith.constant dense<0.000000e+00> : vector<5x32xf32>
    %87 = tpu.matmul %85, %86, %cst_39 {dimension_numbers = #tpu.dot_dimension_numbers<[1], [0], [0], [1], [0, 0, 1, 1], [], []>} : vector<5x8xbf16>, vector<8x32xbf16>, vector<5x32xf32> -> vector<5x32xf32>
    %88 = vector.broadcast %82 : vector<5x1xf32> to vector<5x4xf32>
    %89 = arith.mulf %76, %88 : vector<5x4xf32>
    %90 = arith.truncf %89 : vector<5x4xf32> to vector<5x4xbf16>
    %91 = vector.extract_strided_slice %15 {offsets = [0, 32], sizes = [4, 32], strides = [1, 1]} : vector<4x128xbf16> to vector<4x32xbf16>
    %cst_40 = arith.constant dense<0.000000e+00> : vector<5x32xf32>
    %92 = tpu.matmul %90, %91, %cst_40 {dimension_numbers = #tpu.dot_dimension_numbers<[1], [0], [0], [1], [0, 0, 1, 1], [], []>} : vector<5x4xbf16>, vector<4x32xbf16>, vector<5x32xf32> -> vector<5x32xf32>
    %93 = arith.addf %87, %92 : vector<5x32xf32>
    %94 = vector.extract_strided_slice %1 {offsets = [0, 64], sizes = [1, 32], strides = [1, 1]} : vector<1x128xbf16> to vector<1x32xbf16>
    %95 = vector.extract_strided_slice %11 {offsets = [0, 64], sizes = [4, 32], strides = [1, 1]} : vector<4x128xbf16> to vector<4x32xbf16>
    %96 = tpu.concatenate %94, %95 in 0 : vector<1x32xbf16>, vector<4x32xbf16> -> vector<5x32xbf16>
    %97 = vector.extract_strided_slice %3 {offsets = [0, 64], sizes = [8, 32], strides = [1, 1]} : vector<8x128xbf16> to vector<8x32xbf16>
    %cst_41 = arith.constant dense<0.000000e+00> : vector<5x8xf32>
    %98 = tpu.matmul %96, %97, %cst_41 {dimension_numbers = #tpu.dot_dimension_numbers<[1], [1], [0], [0], [0, 0, 1, 0], [], []>} : vector<5x32xbf16>, vector<8x32xbf16>, vector<5x8xf32> -> vector<5x8xf32>
    %99 = vector.broadcast %7 : vector<1x8xf32> to vector<5x8xf32>
    %100 = arith.addf %98, %99 : vector<5x8xf32>
    %101 = vector.extract_strided_slice %13 {offsets = [0, 64], sizes = [4, 32], strides = [1, 1]} : vector<4x128xbf16> to vector<4x32xbf16>
    %cst_42 = arith.constant dense<0.000000e+00> : vector<5x4xf32>
    %102 = tpu.matmul %96, %101, %cst_42 {dimension_numbers = #tpu.dot_dimension_numbers<[1], [1], [0], [0], [0, 0, 1, 0], [], []>} : vector<5x32xbf16>, vector<4x32xbf16>, vector<5x4xf32> -> vector<5x4xf32>
    %103 = vector.broadcast %9 : vector<1x4xf32> to vector<5x4xf32>
    %104 = arith.addf %102, %103 : vector<5x4xf32>
    %cst_43 = arith.constant dense<0xFF800000> : vector<5xf32>
    %105 = vector.multi_reduction <maximumf>, %100, %cst_43 [1] : vector<5x8xf32> to vector<5xf32>
    %106 = vector.shape_cast %105 : vector<5xf32> to vector<5x1xf32>
    %cst_44 = arith.constant dense<0xFF800000> : vector<5xf32>
    %107 = vector.multi_reduction <maximumf>, %104, %cst_44 [1] : vector<5x4xf32> to vector<5xf32>
    %108 = vector.shape_cast %107 : vector<5xf32> to vector<5x1xf32>
    %109 = arith.maximumf %106, %108 : vector<5x1xf32>
    %110 = vector.broadcast %109 : vector<5x1xf32> to vector<5x8xf32>
    %111 = arith.subf %100, %110 : vector<5x8xf32>
    %112 = math.exp %111 : vector<5x8xf32>
    %113 = vector.broadcast %109 : vector<5x1xf32> to vector<5x4xf32>
    %114 = arith.subf %104, %113 : vector<5x4xf32>
    %115 = math.exp %114 : vector<5x4xf32>
    %cst_45 = arith.constant dense<0.000000e+00> : vector<5xf32>
    %116 = vector.multi_reduction <add>, %112, %cst_45 [1] : vector<5x8xf32> to vector<5xf32>
    %117 = vector.shape_cast %116 : vector<5xf32> to vector<5x1xf32>
    %cst_46 = arith.constant dense<0.000000e+00> : vector<5xf32>
    %118 = vector.multi_reduction <add>, %115, %cst_46 [1] : vector<5x4xf32> to vector<5xf32>
    %119 = vector.shape_cast %118 : vector<5xf32> to vector<5x1xf32>
    %120 = arith.addf %117, %119 : vector<5x1xf32>
    %121 = tpu.reciprocal %120 {approx = true} : vector<5x1xf32> -> vector<5x1xf32>
    %122 = vector.broadcast %121 : vector<5x1xf32> to vector<5x8xf32>
    %123 = arith.mulf %112, %122 : vector<5x8xf32>
    %124 = arith.truncf %123 : vector<5x8xf32> to vector<5x8xbf16>
    %125 = vector.extract_strided_slice %5 {offsets = [0, 64], sizes = [8, 32], strides = [1, 1]} : vector<8x128xbf16> to vector<8x32xbf16>
    %cst_47 = arith.constant dense<0.000000e+00> : vector<5x32xf32>
    %126 = tpu.matmul %124, %125, %cst_47 {dimension_numbers = #tpu.dot_dimension_numbers<[1], [0], [0], [1], [0, 0, 1, 1], [], []>} : vector<5x8xbf16>, vector<8x32xbf16>, vector<5x32xf32> -> vector<5x32xf32>
    %127 = vector.broadcast %121 : vector<5x1xf32> to vector<5x4xf32>
    %128 = arith.mulf %115, %127 : vector<5x4xf32>
    %129 = arith.truncf %128 : vector<5x4xf32> to vector<5x4xbf16>
    %130 = vector.extract_strided_slice %15 {offsets = [0, 64], sizes = [4, 32], strides = [1, 1]} : vector<4x128xbf16> to vector<4x32xbf16>
    %cst_48 = arith.constant dense<0.000000e+00> : vector<5x32xf32>
    %131 = tpu.matmul %129, %130, %cst_48 {dimension_numbers = #tpu.dot_dimension_numbers<[1], [0], [0], [1], [0, 0, 1, 1], [], []>} : vector<5x4xbf16>, vector<4x32xbf16>, vector<5x32xf32> -> vector<5x32xf32>
    %132 = arith.addf %126, %131 : vector<5x32xf32>
    %133 = vector.extract_strided_slice %1 {offsets = [0, 96], sizes = [1, 32], strides = [1, 1]} : vector<1x128xbf16> to vector<1x32xbf16>
    %134 = vector.extract_strided_slice %11 {offsets = [0, 96], sizes = [4, 32], strides = [1, 1]} : vector<4x128xbf16> to vector<4x32xbf16>
    %135 = tpu.concatenate %133, %134 in 0 : vector<1x32xbf16>, vector<4x32xbf16> -> vector<5x32xbf16>
    %136 = vector.extract_strided_slice %3 {offsets = [0, 96], sizes = [8, 32], strides = [1, 1]} : vector<8x128xbf16> to vector<8x32xbf16>
    %cst_49 = arith.constant dense<0.000000e+00> : vector<5x8xf32>
    %137 = tpu.matmul %135, %136, %cst_49 {dimension_numbers = #tpu.dot_dimension_numbers<[1], [1], [0], [0], [0, 0, 1, 0], [], []>} : vector<5x32xbf16>, vector<8x32xbf16>, vector<5x8xf32> -> vector<5x8xf32>
    %138 = vector.broadcast %7 : vector<1x8xf32> to vector<5x8xf32>
    %139 = arith.addf %137, %138 : vector<5x8xf32>
    %140 = vector.extract_strided_slice %13 {offsets = [0, 96], sizes = [4, 32], strides = [1, 1]} : vector<4x128xbf16> to vector<4x32xbf16>
    %cst_50 = arith.constant dense<0.000000e+00> : vector<5x4xf32>
    %141 = tpu.matmul %135, %140, %cst_50 {dimension_numbers = #tpu.dot_dimension_numbers<[1], [1], [0], [0], [0, 0, 1, 0], [], []>} : vector<5x32xbf16>, vector<4x32xbf16>, vector<5x4xf32> -> vector<5x4xf32>
    %142 = vector.broadcast %9 : vector<1x4xf32> to vector<5x4xf32>
    %143 = arith.addf %141, %142 : vector<5x4xf32>
    %cst_51 = arith.constant dense<0xFF800000> : vector<5xf32>
    %144 = vector.multi_reduction <maximumf>, %139, %cst_51 [1] : vector<5x8xf32> to vector<5xf32>
    %145 = vector.shape_cast %144 : vector<5xf32> to vector<5x1xf32>
    %cst_52 = arith.constant dense<0xFF800000> : vector<5xf32>
    %146 = vector.multi_reduction <maximumf>, %143, %cst_52 [1] : vector<5x4xf32> to vector<5xf32>
    %147 = vector.shape_cast %146 : vector<5xf32> to vector<5x1xf32>
    %148 = arith.maximumf %145, %147 : vector<5x1xf32>
    %149 = vector.broadcast %148 : vector<5x1xf32> to vector<5x8xf32>
    %150 = arith.subf %139, %149 : vector<5x8xf32>
    %151 = math.exp %150 : vector<5x8xf32>
    %152 = vector.broadcast %148 : vector<5x1xf32> to vector<5x4xf32>
    %153 = arith.subf %143, %152 : vector<5x4xf32>
    %154 = math.exp %153 : vector<5x4xf32>
    %cst_53 = arith.constant dense<0.000000e+00> : vector<5xf32>
    %155 = vector.multi_reduction <add>, %151, %cst_53 [1] : vector<5x8xf32> to vector<5xf32>
    %156 = vector.shape_cast %155 : vector<5xf32> to vector<5x1xf32>
    %cst_54 = arith.constant dense<0.000000e+00> : vector<5xf32>
    %157 = vector.multi_reduction <add>, %154, %cst_54 [1] : vector<5x4xf32> to vector<5xf32>
    %158 = vector.shape_cast %157 : vector<5xf32> to vector<5x1xf32>
    %159 = arith.addf %156, %158 : vector<5x1xf32>
    %160 = tpu.reciprocal %159 {approx = true} : vector<5x1xf32> -> vector<5x1xf32>
    %161 = vector.broadcast %160 : vector<5x1xf32> to vector<5x8xf32>
    %162 = arith.mulf %151, %161 : vector<5x8xf32>
    %163 = arith.truncf %162 : vector<5x8xf32> to vector<5x8xbf16>
    %164 = vector.extract_strided_slice %5 {offsets = [0, 96], sizes = [8, 32], strides = [1, 1]} : vector<8x128xbf16> to vector<8x32xbf16>
    %cst_55 = arith.constant dense<0.000000e+00> : vector<5x32xf32>
    %165 = tpu.matmul %163, %164, %cst_55 {dimension_numbers = #tpu.dot_dimension_numbers<[1], [0], [0], [1], [0, 0, 1, 1], [], []>} : vector<5x8xbf16>, vector<8x32xbf16>, vector<5x32xf32> -> vector<5x32xf32>
    %166 = vector.broadcast %160 : vector<5x1xf32> to vector<5x4xf32>
    %167 = arith.mulf %154, %166 : vector<5x4xf32>
    %168 = arith.truncf %167 : vector<5x4xf32> to vector<5x4xbf16>
    %169 = vector.extract_strided_slice %15 {offsets = [0, 96], sizes = [4, 32], strides = [1, 1]} : vector<4x128xbf16> to vector<4x32xbf16>
    %cst_56 = arith.constant dense<0.000000e+00> : vector<5x32xf32>
    %170 = tpu.matmul %168, %169, %cst_56 {dimension_numbers = #tpu.dot_dimension_numbers<[1], [0], [0], [1], [0, 0, 1, 1], [], []>} : vector<5x4xbf16>, vector<4x32xbf16>, vector<5x32xf32> -> vector<5x32xf32>
    %171 = arith.addf %165, %170 : vector<5x32xf32>
    %172 = tpu.concatenate %54, %93, %132, %171 in 1 : vector<5x32xf32>, vector<5x32xf32>, vector<5x32xf32>, vector<5x32xf32> -> vector<5x128xf32>
    %173 = vector.extract_strided_slice %172 {offsets = [0, 0], sizes = [1, 128], strides = [1, 1]} : vector<5x128xf32> to vector<1x128xf32>
    %174 = arith.truncf %173 : vector<1x128xf32> to vector<1x128xbf16>
    %c0_57 = arith.constant 0 : index
    %c0_58 = arith.constant 0 : index
    %c0_59 = arith.constant 0 : index
    %c0_60 = arith.constant 0 : index
    %175 = vector.load %arg10[%c0_57, %c0_58, %c0_59, %c0_60] : memref<1x2x1x128xbf16, #tpu.memory_space<vmem>>, vector<1x1x1x128xbf16>
    %176 = vector.shape_cast %175 : vector<1x1x1x128xbf16> to vector<1x128xbf16>
    %177 = vector.shape_cast %174 : vector<1x128xbf16> to vector<1x1x1x128xbf16>
    tpu.vector_store %arg10[%c0_57, %c0_58, %c0_59, %c0_60], %177 {strides = array<i32>} : memref<1x2x1x128xbf16, #tpu.memory_space<vmem>>, vector<1x1x1x128xbf16>,
    %178 = vector.extract_strided_slice %172 {offsets = [1, 0], sizes = [4, 128], strides = [1, 1]} : vector<5x128xf32> to vector<4x128xf32>
    %179 = arith.truncf %178 : vector<4x128xf32> to vector<4x128xbf16>
    %c0_61 = arith.constant 0 : index
    %c0_62 = arith.constant 0 : index
    %c0_63 = arith.constant 0 : index
    %c0_64 = arith.constant 0 : index
    %180 = vector.load %arg11[%c0_61, %c0_62, %c0_63, %c0_64] : memref<1x2x4x128xbf16, #tpu.memory_space<vmem>>, vector<1x1x4x128xbf16>
    %181 = vector.shape_cast %180 : vector<1x1x4x128xbf16> to vector<4x128xbf16>
    %182 = vector.shape_cast %179 : vector<4x128xbf16> to vector<1x1x4x128xbf16>
    tpu.vector_store %arg11[%c0_61, %c0_62, %c0_63, %c0_64], %182 {strides = array<i32>} : memref<1x2x4x128xbf16, #tpu.memory_space<vmem>>, vector<1x1x4x128xbf16>,
    %c0_65 = arith.constant 0 : index
    %c1 = arith.constant 1 : index
    %c0_66 = arith.constant 0 : index
    %c0_67 = arith.constant 0 : index
    %183 = vector.load %arg3[%c0_65, %c1, %c0_66, %c0_67] : memref<1x2x4x128xbf16, #tpu.memory_space<vmem>>, vector<1x1x4x128xbf16>
    %184 = vector.shape_cast %183 : vector<1x1x4x128xbf16> to vector<4x128xbf16>
    %c0_68 = arith.constant 0 : index
    %c1_69 = arith.constant 1 : index
    %c0_70 = arith.constant 0 : index
    %c0_71 = arith.constant 0 : index
    %185 = vector.load %arg6[%c0_68, %c1_69, %c0_70, %c0_71] : memref<1x2x4x128xbf16, #tpu.memory_space<vmem>>, vector<1x1x4x128xbf16>
    %186 = vector.shape_cast %185 : vector<1x1x4x128xbf16> to vector<4x128xbf16>
    %c0_72 = arith.constant 0 : index
    %c1_73 = arith.constant 1 : index
    %c0_74 = arith.constant 0 : index
    %c0_75 = arith.constant 0 : index
    %187 = vector.load %arg7[%c0_72, %c1_73, %c0_74, %c0_75] : memref<1x2x4x128xbf16, #tpu.memory_space<vmem>>, vector<1x1x4x128xbf16>
    %188 = vector.shape_cast %187 : vector<1x1x4x128xbf16> to vector<4x128xbf16>
    %189 = vector.extract_strided_slice %1 {offsets = [0, 0], sizes = [1, 32], strides = [1, 1]} : vector<1x128xbf16> to vector<1x32xbf16>
    %190 = vector.extract_strided_slice %184 {offsets = [0, 0], sizes = [4, 32], strides = [1, 1]} : vector<4x128xbf16> to vector<4x32xbf16>
    %191 = tpu.concatenate %189, %190 in 0 : vector<1x32xbf16>, vector<4x32xbf16> -> vector<5x32xbf16>
    %192 = vector.extract_strided_slice %3 {offsets = [0, 0], sizes = [8, 32], strides = [1, 1]} : vector<8x128xbf16> to vector<8x32xbf16>
    %cst_76 = arith.constant dense<0.000000e+00> : vector<5x8xf32>
    %193 = tpu.matmul %191, %192, %cst_76 {dimension_numbers = #tpu.dot_dimension_numbers<[1], [1], [0], [0], [0, 0, 1, 0], [], []>} : vector<5x32xbf16>, vector<8x32xbf16>, vector<5x8xf32> -> vector<5x8xf32>
    %194 = vector.broadcast %7 : vector<1x8xf32> to vector<5x8xf32>
    %195 = arith.addf %193, %194 : vector<5x8xf32>
    %196 = vector.extract_strided_slice %186 {offsets = [0, 0], sizes = [4, 32], strides = [1, 1]} : vector<4x128xbf16> to vector<4x32xbf16>
    %cst_77 = arith.constant dense<0.000000e+00> : vector<5x4xf32>
    %197 = tpu.matmul %191, %196, %cst_77 {dimension_numbers = #tpu.dot_dimension_numbers<[1], [1], [0], [0], [0, 0, 1, 0], [], []>} : vector<5x32xbf16>, vector<4x32xbf16>, vector<5x4xf32> -> vector<5x4xf32>
    %198 = vector.broadcast %9 : vector<1x4xf32> to vector<5x4xf32>
    %199 = arith.addf %197, %198 : vector<5x4xf32>
    %cst_78 = arith.constant dense<0xFF800000> : vector<5xf32>
    %200 = vector.multi_reduction <maximumf>, %195, %cst_78 [1] : vector<5x8xf32> to vector<5xf32>
    %201 = vector.shape_cast %200 : vector<5xf32> to vector<5x1xf32>
    %cst_79 = arith.constant dense<0xFF800000> : vector<5xf32>
    %202 = vector.multi_reduction <maximumf>, %199, %cst_79 [1] : vector<5x4xf32> to vector<5xf32>
    %203 = vector.shape_cast %202 : vector<5xf32> to vector<5x1xf32>
    %204 = arith.maximumf %201, %203 : vector<5x1xf32>
    %205 = vector.broadcast %204 : vector<5x1xf32> to vector<5x8xf32>
    %206 = arith.subf %195, %205 : vector<5x8xf32>
    %207 = math.exp %206 : vector<5x8xf32>
    %208 = vector.broadcast %204 : vector<5x1xf32> to vector<5x4xf32>
    %209 = arith.subf %199, %208 : vector<5x4xf32>
    %210 = math.exp %209 : vector<5x4xf32>
    %cst_80 = arith.constant dense<0.000000e+00> : vector<5xf32>
    %211 = vector.multi_reduction <add>, %207, %cst_80 [1] : vector<5x8xf32> to vector<5xf32>
    %212 = vector.shape_cast %211 : vector<5xf32> to vector<5x1xf32>
    %cst_81 = arith.constant dense<0.000000e+00> : vector<5xf32>
    %213 = vector.multi_reduction <add>, %210, %cst_81 [1] : vector<5x4xf32> to vector<5xf32>
    %214 = vector.shape_cast %213 : vector<5xf32> to vector<5x1xf32>
    %215 = arith.addf %212, %214 : vector<5x1xf32>
    %216 = tpu.reciprocal %215 {approx = true} : vector<5x1xf32> -> vector<5x1xf32>
    %217 = vector.broadcast %216 : vector<5x1xf32> to vector<5x8xf32>
    %218 = arith.mulf %207, %217 : vector<5x8xf32>
    %219 = arith.truncf %218 : vector<5x8xf32> to vector<5x8xbf16>
    %220 = vector.extract_strided_slice %5 {offsets = [0, 0], sizes = [8, 32], strides = [1, 1]} : vector<8x128xbf16> to vector<8x32xbf16>
    %cst_82 = arith.constant dense<0.000000e+00> : vector<5x32xf32>
    %221 = tpu.matmul %219, %220, %cst_82 {dimension_numbers = #tpu.dot_dimension_numbers<[1], [0], [0], [1], [0, 0, 1, 1], [], []>} : vector<5x8xbf16>, vector<8x32xbf16>, vector<5x32xf32> -> vector<5x32xf32>
    %222 = vector.broadcast %216 : vector<5x1xf32> to vector<5x4xf32>
    %223 = arith.mulf %210, %222 : vector<5x4xf32>
    %224 = arith.truncf %223 : vector<5x4xf32> to vector<5x4xbf16>
    %225 = vector.extract_strided_slice %188 {offsets = [0, 0], sizes = [4, 32], strides = [1, 1]} : vector<4x128xbf16> to vector<4x32xbf16>
    %cst_83 = arith.constant dense<0.000000e+00> : vector<5x32xf32>
    %226 = tpu.matmul %224, %225, %cst_83 {dimension_numbers = #tpu.dot_dimension_numbers<[1], [0], [0], [1], [0, 0, 1, 1], [], []>} : vector<5x4xbf16>, vector<4x32xbf16>, vector<5x32xf32> -> vector<5x32xf32>
    %227 = arith.addf %221, %226 : vector<5x32xf32>
    %228 = vector.extract_strided_slice %1 {offsets = [0, 32], sizes = [1, 32], strides = [1, 1]} : vector<1x128xbf16> to vector<1x32xbf16>
    %229 = vector.extract_strided_slice %184 {offsets = [0, 32], sizes = [4, 32], strides = [1, 1]} : vector<4x128xbf16> to vector<4x32xbf16>
    %230 = tpu.concatenate %228, %229 in 0 : vector<1x32xbf16>, vector<4x32xbf16> -> vector<5x32xbf16>
    %231 = vector.extract_strided_slice %3 {offsets = [0, 32], sizes = [8, 32], strides = [1, 1]} : vector<8x128xbf16> to vector<8x32xbf16>
    %cst_84 = arith.constant dense<0.000000e+00> : vector<5x8xf32>
    %232 = tpu.matmul %230, %231, %cst_84 {dimension_numbers = #tpu.dot_dimension_numbers<[1], [1], [0], [0], [0, 0, 1, 0], [], []>} : vector<5x32xbf16>, vector<8x32xbf16>, vector<5x8xf32> -> vector<5x8xf32>
    %233 = vector.broadcast %7 : vector<1x8xf32> to vector<5x8xf32>
    %234 = arith.addf %232, %233 : vector<5x8xf32>
    %235 = vector.extract_strided_slice %186 {offsets = [0, 32], sizes = [4, 32], strides = [1, 1]} : vector<4x128xbf16> to vector<4x32xbf16>
    %cst_85 = arith.constant dense<0.000000e+00> : vector<5x4xf32>
    %236 = tpu.matmul %230, %235, %cst_85 {dimension_numbers = #tpu.dot_dimension_numbers<[1], [1], [0], [0], [0, 0, 1, 0], [], []>} : vector<5x32xbf16>, vector<4x32xbf16>, vector<5x4xf32> -> vector<5x4xf32>
    %237 = vector.broadcast %9 : vector<1x4xf32> to vector<5x4xf32>
    %238 = arith.addf %236, %237 : vector<5x4xf32>
    %cst_86 = arith.constant dense<0xFF800000> : vector<5xf32>
    %239 = vector.multi_reduction <maximumf>, %234, %cst_86 [1] : vector<5x8xf32> to vector<5xf32>
    %240 = vector.shape_cast %239 : vector<5xf32> to vector<5x1xf32>
    %cst_87 = arith.constant dense<0xFF800000> : vector<5xf32>
    %241 = vector.multi_reduction <maximumf>, %238, %cst_87 [1] : vector<5x4xf32> to vector<5xf32>
    %242 = vector.shape_cast %241 : vector<5xf32> to vector<5x1xf32>
    %243 = arith.maximumf %240, %242 : vector<5x1xf32>
    %244 = vector.broadcast %243 : vector<5x1xf32> to vector<5x8xf32>
    %245 = arith.subf %234, %244 : vector<5x8xf32>
    %246 = math.exp %245 : vector<5x8xf32>
    %247 = vector.broadcast %243 : vector<5x1xf32> to vector<5x4xf32>
    %248 = arith.subf %238, %247 : vector<5x4xf32>
    %249 = math.exp %248 : vector<5x4xf32>
    %cst_88 = arith.constant dense<0.000000e+00> : vector<5xf32>
    %250 = vector.multi_reduction <add>, %246, %cst_88 [1] : vector<5x8xf32> to vector<5xf32>
    %251 = vector.shape_cast %250 : vector<5xf32> to vector<5x1xf32>
    %cst_89 = arith.constant dense<0.000000e+00> : vector<5xf32>
    %252 = vector.multi_reduction <add>, %249, %cst_89 [1] : vector<5x4xf32> to vector<5xf32>
    %253 = vector.shape_cast %252 : vector<5xf32> to vector<5x1xf32>
    %254 = arith.addf %251, %253 : vector<5x1xf32>
    %255 = tpu.reciprocal %254 {approx = true} : vector<5x1xf32> -> vector<5x1xf32>
    %256 = vector.broadcast %255 : vector<5x1xf32> to vector<5x8xf32>
    %257 = arith.mulf %246, %256 : vector<5x8xf32>
    %258 = arith.truncf %257 : vector<5x8xf32> to vector<5x8xbf16>
    %259 = vector.extract_strided_slice %5 {offsets = [0, 32], sizes = [8, 32], strides = [1, 1]} : vector<8x128xbf16> to vector<8x32xbf16>
    %cst_90 = arith.constant dense<0.000000e+00> : vector<5x32xf32>
    %260 = tpu.matmul %258, %259, %cst_90 {dimension_numbers = #tpu.dot_dimension_numbers<[1], [0], [0], [1], [0, 0, 1, 1], [], []>} : vector<5x8xbf16>, vector<8x32xbf16>, vector<5x32xf32> -> vector<5x32xf32>
    %261 = vector.broadcast %255 : vector<5x1xf32> to vector<5x4xf32>
    %262 = arith.mulf %249, %261 : vector<5x4xf32>
    %263 = arith.truncf %262 : vector<5x4xf32> to vector<5x4xbf16>
    %264 = vector.extract_strided_slice %188 {offsets = [0, 32], sizes = [4, 32], strides = [1, 1]} : vector<4x128xbf16> to vector<4x32xbf16>
    %cst_91 = arith.constant dense<0.000000e+00> : vector<5x32xf32>
    %265 = tpu.matmul %263, %264, %cst_91 {dimension_numbers = #tpu.dot_dimension_numbers<[1], [0], [0], [1], [0, 0, 1, 1], [], []>} : vector<5x4xbf16>, vector<4x32xbf16>, vector<5x32xf32> -> vector<5x32xf32>
    %266 = arith.addf %260, %265 : vector<5x32xf32>
    %267 = vector.extract_strided_slice %1 {offsets = [0, 64], sizes = [1, 32], strides = [1, 1]} : vector<1x128xbf16> to vector<1x32xbf16>
    %268 = vector.extract_strided_slice %184 {offsets = [0, 64], sizes = [4, 32], strides = [1, 1]} : vector<4x128xbf16> to vector<4x32xbf16>
    %269 = tpu.concatenate %267, %268 in 0 : vector<1x32xbf16>, vector<4x32xbf16> -> vector<5x32xbf16>
    %270 = vector.extract_strided_slice %3 {offsets = [0, 64], sizes = [8, 32], strides = [1, 1]} : vector<8x128xbf16> to vector<8x32xbf16>
    %cst_92 = arith.constant dense<0.000000e+00> : vector<5x8xf32>
    %271 = tpu.matmul %269, %270, %cst_92 {dimension_numbers = #tpu.dot_dimension_numbers<[1], [1], [0], [0], [0, 0, 1, 0], [], []>} : vector<5x32xbf16>, vector<8x32xbf16>, vector<5x8xf32> -> vector<5x8xf32>
    %272 = vector.broadcast %7 : vector<1x8xf32> to vector<5x8xf32>
    %273 = arith.addf %271, %272 : vector<5x8xf32>
    %274 = vector.extract_strided_slice %186 {offsets = [0, 64], sizes = [4, 32], strides = [1, 1]} : vector<4x128xbf16> to vector<4x32xbf16>
    %cst_93 = arith.constant dense<0.000000e+00> : vector<5x4xf32>
    %275 = tpu.matmul %269, %274, %cst_93 {dimension_numbers = #tpu.dot_dimension_numbers<[1], [1], [0], [0], [0, 0, 1, 0], [], []>} : vector<5x32xbf16>, vector<4x32xbf16>, vector<5x4xf32> -> vector<5x4xf32>
    %276 = vector.broadcast %9 : vector<1x4xf32> to vector<5x4xf32>
    %277 = arith.addf %275, %276 : vector<5x4xf32>
    %cst_94 = arith.constant dense<0xFF800000> : vector<5xf32>
    %278 = vector.multi_reduction <maximumf>, %273, %cst_94 [1] : vector<5x8xf32> to vector<5xf32>
    %279 = vector.shape_cast %278 : vector<5xf32> to vector<5x1xf32>
    %cst_95 = arith.constant dense<0xFF800000> : vector<5xf32>
    %280 = vector.multi_reduction <maximumf>, %277, %cst_95 [1] : vector<5x4xf32> to vector<5xf32>
    %281 = vector.shape_cast %280 : vector<5xf32> to vector<5x1xf32>
    %282 = arith.maximumf %279, %281 : vector<5x1xf32>
    %283 = vector.broadcast %282 : vector<5x1xf32> to vector<5x8xf32>
    %284 = arith.subf %273, %283 : vector<5x8xf32>
    %285 = math.exp %284 : vector<5x8xf32>
    %286 = vector.broadcast %282 : vector<5x1xf32> to vector<5x4xf32>
    %287 = arith.subf %277, %286 : vector<5x4xf32>
    %288 = math.exp %287 : vector<5x4xf32>
    %cst_96 = arith.constant dense<0.000000e+00> : vector<5xf32>
    %289 = vector.multi_reduction <add>, %285, %cst_96 [1] : vector<5x8xf32> to vector<5xf32>
    %290 = vector.shape_cast %289 : vector<5xf32> to vector<5x1xf32>
    %cst_97 = arith.constant dense<0.000000e+00> : vector<5xf32>
    %291 = vector.multi_reduction <add>, %288, %cst_97 [1] : vector<5x4xf32> to vector<5xf32>
    %292 = vector.shape_cast %291 : vector<5xf32> to vector<5x1xf32>
    %293 = arith.addf %290, %292 : vector<5x1xf32>
    %294 = tpu.reciprocal %293 {approx = true} : vector<5x1xf32> -> vector<5x1xf32>
    %295 = vector.broadcast %294 : vector<5x1xf32> to vector<5x8xf32>
    %296 = arith.mulf %285, %295 : vector<5x8xf32>
    %297 = arith.truncf %296 : vector<5x8xf32> to vector<5x8xbf16>
    %298 = vector.extract_strided_slice %5 {offsets = [0, 64], sizes = [8, 32], strides = [1, 1]} : vector<8x128xbf16> to vector<8x32xbf16>
    %cst_98 = arith.constant dense<0.000000e+00> : vector<5x32xf32>
    %299 = tpu.matmul %297, %298, %cst_98 {dimension_numbers = #tpu.dot_dimension_numbers<[1], [0], [0], [1], [0, 0, 1, 1], [], []>} : vector<5x8xbf16>, vector<8x32xbf16>, vector<5x32xf32> -> vector<5x32xf32>
    %300 = vector.broadcast %294 : vector<5x1xf32> to vector<5x4xf32>
    %301 = arith.mulf %288, %300 : vector<5x4xf32>
    %302 = arith.truncf %301 : vector<5x4xf32> to vector<5x4xbf16>
    %303 = vector.extract_strided_slice %188 {offsets = [0, 64], sizes = [4, 32], strides = [1, 1]} : vector<4x128xbf16> to vector<4x32xbf16>
    %cst_99 = arith.constant dense<0.000000e+00> : vector<5x32xf32>
    %304 = tpu.matmul %302, %303, %cst_99 {dimension_numbers = #tpu.dot_dimension_numbers<[1], [0], [0], [1], [0, 0, 1, 1], [], []>} : vector<5x4xbf16>, vector<4x32xbf16>, vector<5x32xf32> -> vector<5x32xf32>
    %305 = arith.addf %299, %304 : vector<5x32xf32>
    %306 = vector.extract_strided_slice %1 {offsets = [0, 96], sizes = [1, 32], strides = [1, 1]} : vector<1x128xbf16> to vector<1x32xbf16>
    %307 = vector.extract_strided_slice %184 {offsets = [0, 96], sizes = [4, 32], strides = [1, 1]} : vector<4x128xbf16> to vector<4x32xbf16>
    %308 = tpu.concatenate %306, %307 in 0 : vector<1x32xbf16>, vector<4x32xbf16> -> vector<5x32xbf16>
    %309 = vector.extract_strided_slice %3 {offsets = [0, 96], sizes = [8, 32], strides = [1, 1]} : vector<8x128xbf16> to vector<8x32xbf16>
    %cst_100 = arith.constant dense<0.000000e+00> : vector<5x8xf32>
    %310 = tpu.matmul %308, %309, %cst_100 {dimension_numbers = #tpu.dot_dimension_numbers<[1], [1], [0], [0], [0, 0, 1, 0], [], []>} : vector<5x32xbf16>, vector<8x32xbf16>, vector<5x8xf32> -> vector<5x8xf32>
    %311 = vector.broadcast %7 : vector<1x8xf32> to vector<5x8xf32>
    %312 = arith.addf %310, %311 : vector<5x8xf32>
    %313 = vector.extract_strided_slice %186 {offsets = [0, 96], sizes = [4, 32], strides = [1, 1]} : vector<4x128xbf16> to vector<4x32xbf16>
    %cst_101 = arith.constant dense<0.000000e+00> : vector<5x4xf32>
    %314 = tpu.matmul %308, %313, %cst_101 {dimension_numbers = #tpu.dot_dimension_numbers<[1], [1], [0], [0], [0, 0, 1, 0], [], []>} : vector<5x32xbf16>, vector<4x32xbf16>, vector<5x4xf32> -> vector<5x4xf32>
    %315 = vector.broadcast %9 : vector<1x4xf32> to vector<5x4xf32>
    %316 = arith.addf %314, %315 : vector<5x4xf32>
    %cst_102 = arith.constant dense<0xFF800000> : vector<5xf32>
    %317 = vector.multi_reduction <maximumf>, %312, %cst_102 [1] : vector<5x8xf32> to vector<5xf32>
    %318 = vector.shape_cast %317 : vector<5xf32> to vector<5x1xf32>
    %cst_103 = arith.constant dense<0xFF800000> : vector<5xf32>
    %319 = vector.multi_reduction <maximumf>, %316, %cst_103 [1] : vector<5x4xf32> to vector<5xf32>
    %320 = vector.shape_cast %319 : vector<5xf32> to vector<5x1xf32>
    %321 = arith.maximumf %318, %320 : vector<5x1xf32>
    %322 = vector.broadcast %321 : vector<5x1xf32> to vector<5x8xf32>
    %323 = arith.subf %312, %322 : vector<5x8xf32>
    %324 = math.exp %323 : vector<5x8xf32>
    %325 = vector.broadcast %321 : vector<5x1xf32> to vector<5x4xf32>
    %326 = arith.subf %316, %325 : vector<5x4xf32>
    %327 = math.exp %326 : vector<5x4xf32>
    %cst_104 = arith.constant dense<0.000000e+00> : vector<5xf32>
    %328 = vector.multi_reduction <add>, %324, %cst_104 [1] : vector<5x8xf32> to vector<5xf32>
    %329 = vector.shape_cast %328 : vector<5xf32> to vector<5x1xf32>
    %cst_105 = arith.constant dense<0.000000e+00> : vector<5xf32>
    %330 = vector.multi_reduction <add>, %327, %cst_105 [1] : vector<5x4xf32> to vector<5xf32>
    %331 = vector.shape_cast %330 : vector<5xf32> to vector<5x1xf32>
    %332 = arith.addf %329, %331 : vector<5x1xf32>
    %333 = tpu.reciprocal %332 {approx = true} : vector<5x1xf32> -> vector<5x1xf32>
    %334 = vector.broadcast %333 : vector<5x1xf32> to vector<5x8xf32>
    %335 = arith.mulf %324, %334 : vector<5x8xf32>
    %336 = arith.truncf %335 : vector<5x8xf32> to vector<5x8xbf16>
    %337 = vector.extract_strided_slice %5 {offsets = [0, 96], sizes = [8, 32], strides = [1, 1]} : vector<8x128xbf16> to vector<8x32xbf16>
    %cst_106 = arith.constant dense<0.000000e+00> : vector<5x32xf32>
    %338 = tpu.matmul %336, %337, %cst_106 {dimension_numbers = #tpu.dot_dimension_numbers<[1], [0], [0], [1], [0, 0, 1, 1], [], []>} : vector<5x8xbf16>, vector<8x32xbf16>, vector<5x32xf32> -> vector<5x32xf32>
    %339 = vector.broadcast %333 : vector<5x1xf32> to vector<5x4xf32>
    %340 = arith.mulf %327, %339 : vector<5x4xf32>
    %341 = arith.truncf %340 : vector<5x4xf32> to vector<5x4xbf16>
    %342 = vector.extract_strided_slice %188 {offsets = [0, 96], sizes = [4, 32], strides = [1, 1]} : vector<4x128xbf16> to vector<4x32xbf16>
    %cst_107 = arith.constant dense<0.000000e+00> : vector<5x32xf32>
    %343 = tpu.matmul %341, %342, %cst_107 {dimension_numbers = #tpu.dot_dimension_numbers<[1], [0], [0], [1], [0, 0, 1, 1], [], []>} : vector<5x4xbf16>, vector<4x32xbf16>, vector<5x32xf32> -> vector<5x32xf32>
    %344 = arith.addf %338, %343 : vector<5x32xf32>
    %345 = tpu.concatenate %227, %266, %305, %344 in 1 : vector<5x32xf32>, vector<5x32xf32>, vector<5x32xf32>, vector<5x32xf32> -> vector<5x128xf32>
    %346 = vector.extract_strided_slice %345 {offsets = [0, 0], sizes = [1, 128], strides = [1, 1]} : vector<5x128xf32> to vector<1x128xf32>
    %347 = arith.truncf %346 : vector<1x128xf32> to vector<1x128xbf16>
    %c0_108 = arith.constant 0 : index
    %c1_109 = arith.constant 1 : index
    %c0_110 = arith.constant 0 : index
    %c0_111 = arith.constant 0 : index
    %348 = vector.load %arg10[%c0_108, %c1_109, %c0_110, %c0_111] : memref<1x2x1x128xbf16, #tpu.memory_space<vmem>>, vector<1x1x1x128xbf16>
    %349 = vector.shape_cast %348 : vector<1x1x1x128xbf16> to vector<1x128xbf16>
    %350 = vector.shape_cast %347 : vector<1x128xbf16> to vector<1x1x1x128xbf16>
    tpu.vector_store %arg10[%c0_108, %c1_109, %c0_110, %c0_111], %350 {strides = array<i32>} : memref<1x2x1x128xbf16, #tpu.memory_space<vmem>>, vector<1x1x1x128xbf16>,
    %351 = vector.extract_strided_slice %345 {offsets = [1, 0], sizes = [4, 128], strides = [1, 1]} : vector<5x128xf32> to vector<4x128xf32>
    %352 = arith.truncf %351 : vector<4x128xf32> to vector<4x128xbf16>
    %c0_112 = arith.constant 0 : index
    %c1_113 = arith.constant 1 : index
    %c0_114 = arith.constant 0 : index
    %c0_115 = arith.constant 0 : index
    %353 = vector.load %arg11[%c0_112, %c1_113, %c0_114, %c0_115] : memref<1x2x4x128xbf16, #tpu.memory_space<vmem>>, vector<1x1x4x128xbf16>
    %354 = vector.shape_cast %353 : vector<1x1x4x128xbf16> to vector<4x128xbf16>
    %355 = vector.shape_cast %352 : vector<4x128xbf16> to vector<1x1x4x128xbf16>
    tpu.vector_store %arg11[%c0_112, %c1_113, %c0_114, %c0_115], %355 {strides = array<i32>} : memref<1x2x4x128xbf16, #tpu.memory_space<vmem>>, vector<1x1x4x128xbf16>,
    return
  }
  func.func @transform_0(%arg0: i32, %arg1: i32) -> (i32, i32, i32) {
    %c0_i32 = arith.constant 0 : i32
    %c0_i32_0 = arith.constant 0 : i32
    %c0_i32_1 = arith.constant 0 : i32
    return %arg0, %c0_i32, %c0_i32_0 : i32, i32, i32
  }
  func.func @transform_1(%arg0: i32, %arg1: i32) -> (i32, i32, i32, i32) {
    %c0_i32 = arith.constant 0 : i32
    %c0_i32_0 = arith.constant 0 : i32
    %c0_i32_1 = arith.constant 0 : i32
    return %arg0, %arg1, %c0_i32, %c0_i32_0 : i32, i32, i32, i32
  }
  func.func @transform_2(%arg0: i32, %arg1: i32) -> (i32, i32, i32) {
    %c0_i32 = arith.constant 0 : i32
    %c0_i32_0 = arith.constant 0 : i32
    %c0_i32_1 = arith.constant 0 : i32
    return %arg0, %c0_i32, %c0_i32_0 : i32, i32, i32
  }
  func.func @transform_3(%arg0: i32, %arg1: i32) -> (i32, i32, i32) {
    %c0_i32 = arith.constant 0 : i32
    %c0_i32_0 = arith.constant 0 : i32
    %c0_i32_1 = arith.constant 0 : i32
    return %arg0, %c0_i32, %c0_i32_0 : i32, i32, i32
  }
  func.func @transform_4(%arg0: i32, %arg1: i32) -> (i32, i32, i32, i32) {
    %c0_i32 = arith.constant 0 : i32
    %c0_i32_0 = arith.constant 0 : i32
    %c0_i32_1 = arith.constant 0 : i32
    return %arg0, %arg1, %c0_i32, %c0_i32_0 : i32, i32, i32, i32
  }
  func.func @transform_5(%arg0: i32, %arg1: i32) -> (i32, i32, i32, i32) {
    %c0_i32 = arith.constant 0 : i32
    %c0_i32_0 = arith.constant 0 : i32
    %c0_i32_1 = arith.constant 0 : i32
    return %arg0, %arg1, %c0_i32, %c0_i32_0 : i32, i32, i32, i32
  }
  func.func @transform_6(%arg0: i32, %arg1: i32) -> (i32, i32, i32) {
    %c0_i32 = arith.constant 0 : i32
    %c0_i32_0 = arith.constant 0 : i32
    %c0_i32_1 = arith.constant 0 : i32
    return %arg0, %c0_i32, %c0_i32_0 : i32, i32, i32
  }
  func.func @transform_7(%arg0: i32, %arg1: i32) -> (i32, i32, i32) {
    %c0_i32 = arith.constant 0 : i32
    %c0_i32_0 = arith.constant 0 : i32
    %c0_i32_1 = arith.constant 0 : i32
    return %arg0, %c0_i32, %c0_i32_0 : i32, i32, i32
  }
  func.func @transform_8(%arg0: i32, %arg1: i32) -> (i32, i32, i32, i32) {
    %c0_i32 = arith.constant 0 : i32
    %c0_i32_0 = arith.constant 0 : i32
    %c0_i32_1 = arith.constant 0 : i32
    return %arg0, %arg1, %c0_i32, %c0_i32_0 : i32, i32, i32, i32
  }
  func.func @transform_9(%arg0: i32, %arg1: i32) -> (i32, i32, i32, i32) {
    %c0_i32 = arith.constant 0 : i32
    %c0_i32_0 = arith.constant 0 : i32
    %c0_i32_1 = arith.constant 0 : i32
    return %arg0, %arg1, %c0_i32, %c0_i32_0 : i32, i32, i32, i32
  }
}

module attributes {stable_mosaic.version = 11 : i64} {
  func.func @_attn1_kernel(%arg0: i32, %arg1: i32, %arg2: memref<1x7x128xbf16, #tpu.memory_space<vmem>>, %arg3: memref<1x2x4x128xbf16, #tpu.memory_space<vmem>>, %arg4: memref<1x2x4x128xbf16, #tpu.memory_space<vmem>>, %arg5: memref<1x2x7x128xbf16, #tpu.memory_space<vmem>>) attributes {dimension_semantics = [#tpu.dimension_semantics<parallel>, #tpu.dimension_semantics<parallel>], iteration_bounds = array<i64: 2, 1>, scalar_prefetch = 0 : i64, scratch_operands = 0 : i64, tpu.core_type = #tpu.core_type<tc>, window_params = [{transform_indices = @transform_0, window_bounds = array<i64: 1, 7, 128>}, {transform_indices = @transform_1, window_bounds = array<i64: 1, 2, 4, 128>}, {transform_indices = @transform_2, window_bounds = array<i64: 1, 2, 4, 128>}, {transform_indices = @transform_3, window_bounds = array<i64: 1, 2, 7, 128>}]} {
    %c0 = arith.constant 0 : index
    %c0_0 = arith.constant 0 : index
    %c0_1 = arith.constant 0 : index
    %0 = vector.load %arg2[%c0, %c0_0, %c0_1] : memref<1x7x128xbf16, #tpu.memory_space<vmem>>, vector<1x7x128xbf16>
    %1 = vector.shape_cast %0 : vector<1x7x128xbf16> to vector<7x128xbf16>
    %c0_2 = arith.constant 0 : index
    %c0_3 = arith.constant 0 : index
    %c0_4 = arith.constant 0 : index
    %c0_5 = arith.constant 0 : index
    %2 = vector.load %arg3[%c0_2, %c0_3, %c0_4, %c0_5] : memref<1x2x4x128xbf16, #tpu.memory_space<vmem>>, vector<1x1x4x128xbf16>
    %3 = vector.shape_cast %2 : vector<1x1x4x128xbf16> to vector<4x128xbf16>
    %c0_6 = arith.constant 0 : index
    %c0_7 = arith.constant 0 : index
    %c0_8 = arith.constant 0 : index
    %c0_9 = arith.constant 0 : index
    %4 = vector.load %arg4[%c0_6, %c0_7, %c0_8, %c0_9] : memref<1x2x4x128xbf16, #tpu.memory_space<vmem>>, vector<1x1x4x128xbf16>
    %5 = vector.shape_cast %4 : vector<1x1x4x128xbf16> to vector<4x128xbf16>
    %6 = vector.extract_strided_slice %1 {offsets = [0, 0], sizes = [7, 32], strides = [1, 1]} : vector<7x128xbf16> to vector<7x32xbf16>
    %7 = vector.extract_strided_slice %3 {offsets = [0, 0], sizes = [4, 32], strides = [1, 1]} : vector<4x128xbf16> to vector<4x32xbf16>
    %cst = arith.constant dense<0.000000e+00> : vector<7x4xf32>
    %8 = tpu.matmul %6, %7, %cst {dimension_numbers = #tpu.dot_dimension_numbers<[1], [1], [0], [0], [0, 0, 1, 0], [], []>} : vector<7x32xbf16>, vector<4x32xbf16>, vector<7x4xf32> -> vector<7x4xf32>
    %cst_10 = arith.constant dense<0xFF800000> : vector<7xf32>
    %9 = vector.multi_reduction <maximumf>, %8, %cst_10 [1] : vector<7x4xf32> to vector<7xf32>
    %10 = vector.shape_cast %9 : vector<7xf32> to vector<7x1xf32>
    %11 = vector.broadcast %10 : vector<7x1xf32> to vector<7x4xf32>
    %12 = arith.subf %8, %11 : vector<7x4xf32>
    %13 = math.exp %12 : vector<7x4xf32>
    %cst_11 = arith.constant dense<0.000000e+00> : vector<7xf32>
    %14 = vector.multi_reduction <add>, %13, %cst_11 [1] : vector<7x4xf32> to vector<7xf32>
    %15 = vector.shape_cast %14 : vector<7xf32> to vector<7x1xf32>
    %16 = tpu.reciprocal %15 {approx = true} : vector<7x1xf32> -> vector<7x1xf32>
    %17 = vector.broadcast %16 : vector<7x1xf32> to vector<7x4xf32>
    %18 = arith.mulf %13, %17 : vector<7x4xf32>
    %19 = arith.truncf %18 : vector<7x4xf32> to vector<7x4xbf16>
    %20 = vector.extract_strided_slice %5 {offsets = [0, 0], sizes = [4, 32], strides = [1, 1]} : vector<4x128xbf16> to vector<4x32xbf16>
    %cst_12 = arith.constant dense<0.000000e+00> : vector<7x32xf32>
    %21 = tpu.matmul %19, %20, %cst_12 {dimension_numbers = #tpu.dot_dimension_numbers<[1], [0], [0], [1], [0, 0, 1, 1], [], []>} : vector<7x4xbf16>, vector<4x32xbf16>, vector<7x32xf32> -> vector<7x32xf32>
    %22 = vector.extract_strided_slice %1 {offsets = [0, 32], sizes = [7, 32], strides = [1, 1]} : vector<7x128xbf16> to vector<7x32xbf16>
    %23 = vector.extract_strided_slice %3 {offsets = [0, 32], sizes = [4, 32], strides = [1, 1]} : vector<4x128xbf16> to vector<4x32xbf16>
    %cst_13 = arith.constant dense<0.000000e+00> : vector<7x4xf32>
    %24 = tpu.matmul %22, %23, %cst_13 {dimension_numbers = #tpu.dot_dimension_numbers<[1], [1], [0], [0], [0, 0, 1, 0], [], []>} : vector<7x32xbf16>, vector<4x32xbf16>, vector<7x4xf32> -> vector<7x4xf32>
    %cst_14 = arith.constant dense<0xFF800000> : vector<7xf32>
    %25 = vector.multi_reduction <maximumf>, %24, %cst_14 [1] : vector<7x4xf32> to vector<7xf32>
    %26 = vector.shape_cast %25 : vector<7xf32> to vector<7x1xf32>
    %27 = vector.broadcast %26 : vector<7x1xf32> to vector<7x4xf32>
    %28 = arith.subf %24, %27 : vector<7x4xf32>
    %29 = math.exp %28 : vector<7x4xf32>
    %cst_15 = arith.constant dense<0.000000e+00> : vector<7xf32>
    %30 = vector.multi_reduction <add>, %29, %cst_15 [1] : vector<7x4xf32> to vector<7xf32>
    %31 = vector.shape_cast %30 : vector<7xf32> to vector<7x1xf32>
    %32 = tpu.reciprocal %31 {approx = true} : vector<7x1xf32> -> vector<7x1xf32>
    %33 = vector.broadcast %32 : vector<7x1xf32> to vector<7x4xf32>
    %34 = arith.mulf %29, %33 : vector<7x4xf32>
    %35 = arith.truncf %34 : vector<7x4xf32> to vector<7x4xbf16>
    %36 = vector.extract_strided_slice %5 {offsets = [0, 32], sizes = [4, 32], strides = [1, 1]} : vector<4x128xbf16> to vector<4x32xbf16>
    %cst_16 = arith.constant dense<0.000000e+00> : vector<7x32xf32>
    %37 = tpu.matmul %35, %36, %cst_16 {dimension_numbers = #tpu.dot_dimension_numbers<[1], [0], [0], [1], [0, 0, 1, 1], [], []>} : vector<7x4xbf16>, vector<4x32xbf16>, vector<7x32xf32> -> vector<7x32xf32>
    %38 = vector.extract_strided_slice %1 {offsets = [0, 64], sizes = [7, 32], strides = [1, 1]} : vector<7x128xbf16> to vector<7x32xbf16>
    %39 = vector.extract_strided_slice %3 {offsets = [0, 64], sizes = [4, 32], strides = [1, 1]} : vector<4x128xbf16> to vector<4x32xbf16>
    %cst_17 = arith.constant dense<0.000000e+00> : vector<7x4xf32>
    %40 = tpu.matmul %38, %39, %cst_17 {dimension_numbers = #tpu.dot_dimension_numbers<[1], [1], [0], [0], [0, 0, 1, 0], [], []>} : vector<7x32xbf16>, vector<4x32xbf16>, vector<7x4xf32> -> vector<7x4xf32>
    %cst_18 = arith.constant dense<0xFF800000> : vector<7xf32>
    %41 = vector.multi_reduction <maximumf>, %40, %cst_18 [1] : vector<7x4xf32> to vector<7xf32>
    %42 = vector.shape_cast %41 : vector<7xf32> to vector<7x1xf32>
    %43 = vector.broadcast %42 : vector<7x1xf32> to vector<7x4xf32>
    %44 = arith.subf %40, %43 : vector<7x4xf32>
    %45 = math.exp %44 : vector<7x4xf32>
    %cst_19 = arith.constant dense<0.000000e+00> : vector<7xf32>
    %46 = vector.multi_reduction <add>, %45, %cst_19 [1] : vector<7x4xf32> to vector<7xf32>
    %47 = vector.shape_cast %46 : vector<7xf32> to vector<7x1xf32>
    %48 = tpu.reciprocal %47 {approx = true} : vector<7x1xf32> -> vector<7x1xf32>
    %49 = vector.broadcast %48 : vector<7x1xf32> to vector<7x4xf32>
    %50 = arith.mulf %45, %49 : vector<7x4xf32>
    %51 = arith.truncf %50 : vector<7x4xf32> to vector<7x4xbf16>
    %52 = vector.extract_strided_slice %5 {offsets = [0, 64], sizes = [4, 32], strides = [1, 1]} : vector<4x128xbf16> to vector<4x32xbf16>
    %cst_20 = arith.constant dense<0.000000e+00> : vector<7x32xf32>
    %53 = tpu.matmul %51, %52, %cst_20 {dimension_numbers = #tpu.dot_dimension_numbers<[1], [0], [0], [1], [0, 0, 1, 1], [], []>} : vector<7x4xbf16>, vector<4x32xbf16>, vector<7x32xf32> -> vector<7x32xf32>
    %54 = vector.extract_strided_slice %1 {offsets = [0, 96], sizes = [7, 32], strides = [1, 1]} : vector<7x128xbf16> to vector<7x32xbf16>
    %55 = vector.extract_strided_slice %3 {offsets = [0, 96], sizes = [4, 32], strides = [1, 1]} : vector<4x128xbf16> to vector<4x32xbf16>
    %cst_21 = arith.constant dense<0.000000e+00> : vector<7x4xf32>
    %56 = tpu.matmul %54, %55, %cst_21 {dimension_numbers = #tpu.dot_dimension_numbers<[1], [1], [0], [0], [0, 0, 1, 0], [], []>} : vector<7x32xbf16>, vector<4x32xbf16>, vector<7x4xf32> -> vector<7x4xf32>
    %cst_22 = arith.constant dense<0xFF800000> : vector<7xf32>
    %57 = vector.multi_reduction <maximumf>, %56, %cst_22 [1] : vector<7x4xf32> to vector<7xf32>
    %58 = vector.shape_cast %57 : vector<7xf32> to vector<7x1xf32>
    %59 = vector.broadcast %58 : vector<7x1xf32> to vector<7x4xf32>
    %60 = arith.subf %56, %59 : vector<7x4xf32>
    %61 = math.exp %60 : vector<7x4xf32>
    %cst_23 = arith.constant dense<0.000000e+00> : vector<7xf32>
    %62 = vector.multi_reduction <add>, %61, %cst_23 [1] : vector<7x4xf32> to vector<7xf32>
    %63 = vector.shape_cast %62 : vector<7xf32> to vector<7x1xf32>
    %64 = tpu.reciprocal %63 {approx = true} : vector<7x1xf32> -> vector<7x1xf32>
    %65 = vector.broadcast %64 : vector<7x1xf32> to vector<7x4xf32>
    %66 = arith.mulf %61, %65 : vector<7x4xf32>
    %67 = arith.truncf %66 : vector<7x4xf32> to vector<7x4xbf16>
    %68 = vector.extract_strided_slice %5 {offsets = [0, 96], sizes = [4, 32], strides = [1, 1]} : vector<4x128xbf16> to vector<4x32xbf16>
    %cst_24 = arith.constant dense<0.000000e+00> : vector<7x32xf32>
    %69 = tpu.matmul %67, %68, %cst_24 {dimension_numbers = #tpu.dot_dimension_numbers<[1], [0], [0], [1], [0, 0, 1, 1], [], []>} : vector<7x4xbf16>, vector<4x32xbf16>, vector<7x32xf32> -> vector<7x32xf32>
    %70 = tpu.concatenate %21, %37, %53, %69 in 1 : vector<7x32xf32>, vector<7x32xf32>, vector<7x32xf32>, vector<7x32xf32> -> vector<7x128xf32>
    %71 = arith.truncf %70 : vector<7x128xf32> to vector<7x128xbf16>
    %c0_25 = arith.constant 0 : index
    %c0_26 = arith.constant 0 : index
    %c0_27 = arith.constant 0 : index
    %c0_28 = arith.constant 0 : index
    %72 = vector.load %arg5[%c0_25, %c0_26, %c0_27, %c0_28] : memref<1x2x7x128xbf16, #tpu.memory_space<vmem>>, vector<1x1x7x128xbf16>
    %73 = vector.shape_cast %72 : vector<1x1x7x128xbf16> to vector<7x128xbf16>
    %74 = vector.shape_cast %71 : vector<7x128xbf16> to vector<1x1x7x128xbf16>
    tpu.vector_store %arg5[%c0_25, %c0_26, %c0_27, %c0_28], %74 {strides = array<i32>} : memref<1x2x7x128xbf16, #tpu.memory_space<vmem>>, vector<1x1x7x128xbf16>,
    %c0_29 = arith.constant 0 : index
    %c1 = arith.constant 1 : index
    %c0_30 = arith.constant 0 : index
    %c0_31 = arith.constant 0 : index
    %75 = vector.load %arg3[%c0_29, %c1, %c0_30, %c0_31] : memref<1x2x4x128xbf16, #tpu.memory_space<vmem>>, vector<1x1x4x128xbf16>
    %76 = vector.shape_cast %75 : vector<1x1x4x128xbf16> to vector<4x128xbf16>
    %c0_32 = arith.constant 0 : index
    %c1_33 = arith.constant 1 : index
    %c0_34 = arith.constant 0 : index
    %c0_35 = arith.constant 0 : index
    %77 = vector.load %arg4[%c0_32, %c1_33, %c0_34, %c0_35] : memref<1x2x4x128xbf16, #tpu.memory_space<vmem>>, vector<1x1x4x128xbf16>
    %78 = vector.shape_cast %77 : vector<1x1x4x128xbf16> to vector<4x128xbf16>
    %79 = vector.extract_strided_slice %1 {offsets = [0, 0], sizes = [7, 32], strides = [1, 1]} : vector<7x128xbf16> to vector<7x32xbf16>
    %80 = vector.extract_strided_slice %76 {offsets = [0, 0], sizes = [4, 32], strides = [1, 1]} : vector<4x128xbf16> to vector<4x32xbf16>
    %cst_36 = arith.constant dense<0.000000e+00> : vector<7x4xf32>
    %81 = tpu.matmul %79, %80, %cst_36 {dimension_numbers = #tpu.dot_dimension_numbers<[1], [1], [0], [0], [0, 0, 1, 0], [], []>} : vector<7x32xbf16>, vector<4x32xbf16>, vector<7x4xf32> -> vector<7x4xf32>
    %cst_37 = arith.constant dense<0xFF800000> : vector<7xf32>
    %82 = vector.multi_reduction <maximumf>, %81, %cst_37 [1] : vector<7x4xf32> to vector<7xf32>
    %83 = vector.shape_cast %82 : vector<7xf32> to vector<7x1xf32>
    %84 = vector.broadcast %83 : vector<7x1xf32> to vector<7x4xf32>
    %85 = arith.subf %81, %84 : vector<7x4xf32>
    %86 = math.exp %85 : vector<7x4xf32>
    %cst_38 = arith.constant dense<0.000000e+00> : vector<7xf32>
    %87 = vector.multi_reduction <add>, %86, %cst_38 [1] : vector<7x4xf32> to vector<7xf32>
    %88 = vector.shape_cast %87 : vector<7xf32> to vector<7x1xf32>
    %89 = tpu.reciprocal %88 {approx = true} : vector<7x1xf32> -> vector<7x1xf32>
    %90 = vector.broadcast %89 : vector<7x1xf32> to vector<7x4xf32>
    %91 = arith.mulf %86, %90 : vector<7x4xf32>
    %92 = arith.truncf %91 : vector<7x4xf32> to vector<7x4xbf16>
    %93 = vector.extract_strided_slice %78 {offsets = [0, 0], sizes = [4, 32], strides = [1, 1]} : vector<4x128xbf16> to vector<4x32xbf16>
    %cst_39 = arith.constant dense<0.000000e+00> : vector<7x32xf32>
    %94 = tpu.matmul %92, %93, %cst_39 {dimension_numbers = #tpu.dot_dimension_numbers<[1], [0], [0], [1], [0, 0, 1, 1], [], []>} : vector<7x4xbf16>, vector<4x32xbf16>, vector<7x32xf32> -> vector<7x32xf32>
    %95 = vector.extract_strided_slice %1 {offsets = [0, 32], sizes = [7, 32], strides = [1, 1]} : vector<7x128xbf16> to vector<7x32xbf16>
    %96 = vector.extract_strided_slice %76 {offsets = [0, 32], sizes = [4, 32], strides = [1, 1]} : vector<4x128xbf16> to vector<4x32xbf16>
    %cst_40 = arith.constant dense<0.000000e+00> : vector<7x4xf32>
    %97 = tpu.matmul %95, %96, %cst_40 {dimension_numbers = #tpu.dot_dimension_numbers<[1], [1], [0], [0], [0, 0, 1, 0], [], []>} : vector<7x32xbf16>, vector<4x32xbf16>, vector<7x4xf32> -> vector<7x4xf32>
    %cst_41 = arith.constant dense<0xFF800000> : vector<7xf32>
    %98 = vector.multi_reduction <maximumf>, %97, %cst_41 [1] : vector<7x4xf32> to vector<7xf32>
    %99 = vector.shape_cast %98 : vector<7xf32> to vector<7x1xf32>
    %100 = vector.broadcast %99 : vector<7x1xf32> to vector<7x4xf32>
    %101 = arith.subf %97, %100 : vector<7x4xf32>
    %102 = math.exp %101 : vector<7x4xf32>
    %cst_42 = arith.constant dense<0.000000e+00> : vector<7xf32>
    %103 = vector.multi_reduction <add>, %102, %cst_42 [1] : vector<7x4xf32> to vector<7xf32>
    %104 = vector.shape_cast %103 : vector<7xf32> to vector<7x1xf32>
    %105 = tpu.reciprocal %104 {approx = true} : vector<7x1xf32> -> vector<7x1xf32>
    %106 = vector.broadcast %105 : vector<7x1xf32> to vector<7x4xf32>
    %107 = arith.mulf %102, %106 : vector<7x4xf32>
    %108 = arith.truncf %107 : vector<7x4xf32> to vector<7x4xbf16>
    %109 = vector.extract_strided_slice %78 {offsets = [0, 32], sizes = [4, 32], strides = [1, 1]} : vector<4x128xbf16> to vector<4x32xbf16>
    %cst_43 = arith.constant dense<0.000000e+00> : vector<7x32xf32>
    %110 = tpu.matmul %108, %109, %cst_43 {dimension_numbers = #tpu.dot_dimension_numbers<[1], [0], [0], [1], [0, 0, 1, 1], [], []>} : vector<7x4xbf16>, vector<4x32xbf16>, vector<7x32xf32> -> vector<7x32xf32>
    %111 = vector.extract_strided_slice %1 {offsets = [0, 64], sizes = [7, 32], strides = [1, 1]} : vector<7x128xbf16> to vector<7x32xbf16>
    %112 = vector.extract_strided_slice %76 {offsets = [0, 64], sizes = [4, 32], strides = [1, 1]} : vector<4x128xbf16> to vector<4x32xbf16>
    %cst_44 = arith.constant dense<0.000000e+00> : vector<7x4xf32>
    %113 = tpu.matmul %111, %112, %cst_44 {dimension_numbers = #tpu.dot_dimension_numbers<[1], [1], [0], [0], [0, 0, 1, 0], [], []>} : vector<7x32xbf16>, vector<4x32xbf16>, vector<7x4xf32> -> vector<7x4xf32>
    %cst_45 = arith.constant dense<0xFF800000> : vector<7xf32>
    %114 = vector.multi_reduction <maximumf>, %113, %cst_45 [1] : vector<7x4xf32> to vector<7xf32>
    %115 = vector.shape_cast %114 : vector<7xf32> to vector<7x1xf32>
    %116 = vector.broadcast %115 : vector<7x1xf32> to vector<7x4xf32>
    %117 = arith.subf %113, %116 : vector<7x4xf32>
    %118 = math.exp %117 : vector<7x4xf32>
    %cst_46 = arith.constant dense<0.000000e+00> : vector<7xf32>
    %119 = vector.multi_reduction <add>, %118, %cst_46 [1] : vector<7x4xf32> to vector<7xf32>
    %120 = vector.shape_cast %119 : vector<7xf32> to vector<7x1xf32>
    %121 = tpu.reciprocal %120 {approx = true} : vector<7x1xf32> -> vector<7x1xf32>
    %122 = vector.broadcast %121 : vector<7x1xf32> to vector<7x4xf32>
    %123 = arith.mulf %118, %122 : vector<7x4xf32>
    %124 = arith.truncf %123 : vector<7x4xf32> to vector<7x4xbf16>
    %125 = vector.extract_strided_slice %78 {offsets = [0, 64], sizes = [4, 32], strides = [1, 1]} : vector<4x128xbf16> to vector<4x32xbf16>
    %cst_47 = arith.constant dense<0.000000e+00> : vector<7x32xf32>
    %126 = tpu.matmul %124, %125, %cst_47 {dimension_numbers = #tpu.dot_dimension_numbers<[1], [0], [0], [1], [0, 0, 1, 1], [], []>} : vector<7x4xbf16>, vector<4x32xbf16>, vector<7x32xf32> -> vector<7x32xf32>
    %127 = vector.extract_strided_slice %1 {offsets = [0, 96], sizes = [7, 32], strides = [1, 1]} : vector<7x128xbf16> to vector<7x32xbf16>
    %128 = vector.extract_strided_slice %76 {offsets = [0, 96], sizes = [4, 32], strides = [1, 1]} : vector<4x128xbf16> to vector<4x32xbf16>
    %cst_48 = arith.constant dense<0.000000e+00> : vector<7x4xf32>
    %129 = tpu.matmul %127, %128, %cst_48 {dimension_numbers = #tpu.dot_dimension_numbers<[1], [1], [0], [0], [0, 0, 1, 0], [], []>} : vector<7x32xbf16>, vector<4x32xbf16>, vector<7x4xf32> -> vector<7x4xf32>
    %cst_49 = arith.constant dense<0xFF800000> : vector<7xf32>
    %130 = vector.multi_reduction <maximumf>, %129, %cst_49 [1] : vector<7x4xf32> to vector<7xf32>
    %131 = vector.shape_cast %130 : vector<7xf32> to vector<7x1xf32>
    %132 = vector.broadcast %131 : vector<7x1xf32> to vector<7x4xf32>
    %133 = arith.subf %129, %132 : vector<7x4xf32>
    %134 = math.exp %133 : vector<7x4xf32>
    %cst_50 = arith.constant dense<0.000000e+00> : vector<7xf32>
    %135 = vector.multi_reduction <add>, %134, %cst_50 [1] : vector<7x4xf32> to vector<7xf32>
    %136 = vector.shape_cast %135 : vector<7xf32> to vector<7x1xf32>
    %137 = tpu.reciprocal %136 {approx = true} : vector<7x1xf32> -> vector<7x1xf32>
    %138 = vector.broadcast %137 : vector<7x1xf32> to vector<7x4xf32>
    %139 = arith.mulf %134, %138 : vector<7x4xf32>
    %140 = arith.truncf %139 : vector<7x4xf32> to vector<7x4xbf16>
    %141 = vector.extract_strided_slice %78 {offsets = [0, 96], sizes = [4, 32], strides = [1, 1]} : vector<4x128xbf16> to vector<4x32xbf16>
    %cst_51 = arith.constant dense<0.000000e+00> : vector<7x32xf32>
    %142 = tpu.matmul %140, %141, %cst_51 {dimension_numbers = #tpu.dot_dimension_numbers<[1], [0], [0], [1], [0, 0, 1, 1], [], []>} : vector<7x4xbf16>, vector<4x32xbf16>, vector<7x32xf32> -> vector<7x32xf32>
    %143 = tpu.concatenate %94, %110, %126, %142 in 1 : vector<7x32xf32>, vector<7x32xf32>, vector<7x32xf32>, vector<7x32xf32> -> vector<7x128xf32>
    %144 = arith.truncf %143 : vector<7x128xf32> to vector<7x128xbf16>
    %c0_52 = arith.constant 0 : index
    %c1_53 = arith.constant 1 : index
    %c0_54 = arith.constant 0 : index
    %c0_55 = arith.constant 0 : index
    %145 = vector.load %arg5[%c0_52, %c1_53, %c0_54, %c0_55] : memref<1x2x7x128xbf16, #tpu.memory_space<vmem>>, vector<1x1x7x128xbf16>
    %146 = vector.shape_cast %145 : vector<1x1x7x128xbf16> to vector<7x128xbf16>
    %147 = vector.shape_cast %144 : vector<7x128xbf16> to vector<1x1x7x128xbf16>
    tpu.vector_store %arg5[%c0_52, %c1_53, %c0_54, %c0_55], %147 {strides = array<i32>} : memref<1x2x7x128xbf16, #tpu.memory_space<vmem>>, vector<1x1x7x128xbf16>,
    return
  }
  func.func @transform_0(%arg0: i32, %arg1: i32) -> (i32, i32, i32) {
    %c0_i32 = arith.constant 0 : i32
    %c0_i32_0 = arith.constant 0 : i32
    %c0_i32_1 = arith.constant 0 : i32
    return %arg0, %c0_i32, %c0_i32_0 : i32, i32, i32
  }
  func.func @transform_1(%arg0: i32, %arg1: i32) -> (i32, i32, i32, i32) {
    %c0_i32 = arith.constant 0 : i32
    %c0_i32_0 = arith.constant 0 : i32
    %c0_i32_1 = arith.constant 0 : i32
    return %arg0, %arg1, %c0_i32, %c0_i32_0 : i32, i32, i32, i32
  }
  func.func @transform_2(%arg0: i32, %arg1: i32) -> (i32, i32, i32, i32) {
    %c0_i32 = arith.constant 0 : i32
    %c0_i32_0 = arith.constant 0 : i32
    %c0_i32_1 = arith.constant 0 : i32
    return %arg0, %arg1, %c0_i32, %c0_i32_0 : i32, i32, i32, i32
  }
  func.func @transform_3(%arg0: i32, %arg1: i32) -> (i32, i32, i32, i32) {
    %c0_i32 = arith.constant 0 : i32
    %c0_i32_0 = arith.constant 0 : i32
    %c0_i32_1 = arith.constant 0 : i32
    return %arg0, %arg1, %c0_i32, %c0_i32_0 : i32, i32, i32, i32
  }
}

module attributes {stable_mosaic.version = 11 : i64} {
  func.func @_linear_ln_kernel(%arg0: i32, %arg1: i32, %arg2: memref<28x128xbf16, #tpu.memory_space<vmem>>, %arg3: memref<128x128xbf16, #tpu.memory_space<vmem>>, %arg4: memref<1x128xf32, #tpu.memory_space<vmem>>, %arg5: memref<1x128xf32, #tpu.memory_space<vmem>>, %arg6: memref<1x128xf32, #tpu.memory_space<vmem>>, %arg7: memref<28x128xbf16, #tpu.memory_space<vmem>>, %arg8: memref<28x128xf32, #tpu.memory_space<vmem>>) attributes {dimension_semantics = [#tpu.dimension_semantics<parallel>, #tpu.dimension_semantics<arbitrary>], iteration_bounds = array<i64: 1, 1>, scalar_prefetch = 0 : i64, scratch_operands = 1 : i64, tpu.core_type = #tpu.core_type<tc>, window_params = [{transform_indices = @transform_0, window_bounds = array<i64: 28, 128>}, {transform_indices = @transform_1, window_bounds = array<i64: 128, 128>}, {pipeline_mode = #tpu.pipeline_mode<synchronous>, transform_indices = @transform_2, window_bounds = array<i64: 1, 128>}, {pipeline_mode = #tpu.pipeline_mode<synchronous>, transform_indices = @transform_3, window_bounds = array<i64: 1, 128>}, {pipeline_mode = #tpu.pipeline_mode<synchronous>, transform_indices = @transform_4, window_bounds = array<i64: 1, 128>}, {transform_indices = @transform_5, window_bounds = array<i64: 28, 128>}]} {
    %c0_i32 = arith.constant 0 : i32
    %0 = arith.cmpi eq, %arg1, %c0_i32 : i32
    %1 = arith.extui %0 : i1 to i32
    %c0_i32_0 = arith.constant 0 : i32
    %2 = arith.cmpi ne, %1, %c0_i32_0 : i32
    scf.if %2 {
      %cst_10 = arith.constant 0.000000e+00 : f32
      %12 = vector.broadcast %cst_10 : f32 to vector<28x128xf32>
      %c0_11 = arith.constant 0 : index
      %c0_12 = arith.constant 0 : index
      %13 = vector.load %arg8[%c0_11, %c0_12] : memref<28x128xf32, #tpu.memory_space<vmem>>, vector<28x128xf32>
      tpu.vector_store %arg8[%c0_11, %c0_12], %12 {strides = array<i32>} : memref<28x128xf32, #tpu.memory_space<vmem>>, vector<28x128xf32>,
    } else {
    }
    %c0 = arith.constant 0 : index
    %c0_1 = arith.constant 0 : index
    %3 = vector.load %arg8[%c0, %c0_1] : memref<28x128xf32, #tpu.memory_space<vmem>>, vector<28x128xf32>
    %c0_2 = arith.constant 0 : index
    %c0_3 = arith.constant 0 : index
    %4 = vector.load %arg2[%c0_2, %c0_3] : memref<28x128xbf16, #tpu.memory_space<vmem>>, vector<28x128xbf16>
    %c0_4 = arith.constant 0 : index
    %c0_5 = arith.constant 0 : index
    %5 = vector.load %arg3[%c0_4, %c0_5] : memref<128x128xbf16, #tpu.memory_space<vmem>>, vector<128x128xbf16>
    %cst = arith.constant dense<0.000000e+00> : vector<28x128xf32>
    %6 = tpu.matmul %4, %5, %cst {dimension_numbers = #tpu.dot_dimension_numbers<[1], [0], [0], [1], [0, 0, 1, 1], [], []>} : vector<28x128xbf16>, vector<128x128xbf16>, vector<28x128xf32> -> vector<28x128xf32>
    %7 = arith.addf %3, %6 : vector<28x128xf32>
    %c0_6 = arith.constant 0 : index
    %c0_7 = arith.constant 0 : index
    %8 = vector.load %arg8[%c0_6, %c0_7] : memref<28x128xf32, #tpu.memory_space<vmem>>, vector<28x128xf32>
    tpu.vector_store %arg8[%c0_6, %c0_7], %7 {strides = array<i32>} : memref<28x128xf32, #tpu.memory_space<vmem>>, vector<28x128xf32>,
    %c0_i32_8 = arith.constant 0 : i32
    %9 = arith.cmpi eq, %arg1, %c0_i32_8 : i32
    %10 = arith.extui %9 : i1 to i32
    %c0_i32_9 = arith.constant 0 : i32
    %11 = arith.cmpi ne, %10, %c0_i32_9 : i32
    scf.if %11 {
      %c0_10 = arith.constant 0 : index
      %c0_11 = arith.constant 0 : index
      %12 = vector.load %arg8[%c0_10, %c0_11] : memref<28x128xf32, #tpu.memory_space<vmem>>, vector<28x128xf32>
      %c0_12 = arith.constant 0 : index
      %c0_13 = arith.constant 0 : index
      %13 = vector.load %arg4[%c0_12, %c0_13] : memref<1x128xf32, #tpu.memory_space<vmem>>, vector<1x128xf32>
      %14 = vector.broadcast %13 : vector<1x128xf32> to vector<28x128xf32>
      %15 = arith.addf %12, %14 : vector<28x128xf32>
      %cst_14 = arith.constant dense<0.000000e+00> : vector<28xf32>
      %16 = vector.multi_reduction <add>, %15, %cst_14 [1] : vector<28x128xf32> to vector<28xf32>
      %17 = vector.shape_cast %16 : vector<28xf32> to vector<28x1xf32>
      %cst_15 = arith.constant 1.280000e+02 : f32
      %18 = vector.broadcast %cst_15 : f32 to vector<28x1xf32>
      %19 = arith.divf %17, %18 : vector<28x1xf32>
      %20 = vector.broadcast %19 : vector<28x1xf32> to vector<28x128xf32>
      %21 = arith.subf %15, %20 : vector<28x128xf32>
      %22 = arith.mulf %21, %21 : vector<28x128xf32>
      %cst_16 = arith.constant dense<0.000000e+00> : vector<28xf32>
      %23 = vector.multi_reduction <add>, %22, %cst_16 [1] : vector<28x128xf32> to vector<28xf32>
      %24 = vector.shape_cast %23 : vector<28xf32> to vector<28x1xf32>
      %cst_17 = arith.constant 1.280000e+02 : f32
      %25 = vector.broadcast %cst_17 : f32 to vector<28x1xf32>
      %26 = arith.divf %24, %25 : vector<28x1xf32>
      %cst_18 = arith.constant 9.99999996E-13 : f32
      %27 = vector.broadcast %cst_18 : f32 to vector<28x1xf32>
      %28 = arith.addf %26, %27 : vector<28x1xf32>
      %29 = math.rsqrt %28 : vector<28x1xf32>
      %30 = vector.broadcast %29 : vector<28x1xf32> to vector<28x128xf32>
      %31 = arith.mulf %21, %30 : vector<28x128xf32>
      %c0_19 = arith.constant 0 : index
      %c0_20 = arith.constant 0 : index
      %32 = vector.load %arg5[%c0_19, %c0_20] : memref<1x128xf32, #tpu.memory_space<vmem>>, vector<1x128xf32>
      %33 = vector.broadcast %32 : vector<1x128xf32> to vector<28x128xf32>
      %34 = arith.mulf %31, %33 : vector<28x128xf32>
      %c0_21 = arith.constant 0 : index
      %c0_22 = arith.constant 0 : index
      %35 = vector.load %arg6[%c0_21, %c0_22] : memref<1x128xf32, #tpu.memory_space<vmem>>, vector<1x128xf32>
      %36 = vector.broadcast %35 : vector<1x128xf32> to vector<28x128xf32>
      %37 = arith.addf %34, %36 : vector<28x128xf32>
      %38 = arith.truncf %37 : vector<28x128xf32> to vector<28x128xbf16>
      %c0_23 = arith.constant 0 : index
      %c0_24 = arith.constant 0 : index
      %39 = vector.load %arg7[%c0_23, %c0_24] : memref<28x128xbf16, #tpu.memory_space<vmem>>, vector<28x128xbf16>
      tpu.vector_store %arg7[%c0_23, %c0_24], %38 {strides = array<i32>} : memref<28x128xbf16, #tpu.memory_space<vmem>>, vector<28x128xbf16>,
    } else {
    }
    return
  }
  func.func @transform_0(%arg0: i32, %arg1: i32) -> (i32, i32) {
    %c0_i32 = arith.constant 0 : i32
    return %arg0, %arg1 : i32, i32
  }
  func.func @transform_1(%arg0: i32, %arg1: i32) -> (i32, i32) {
    %c0_i32 = arith.constant 0 : i32
    %c0_i32_0 = arith.constant 0 : i32
    return %arg1, %c0_i32 : i32, i32
  }
  func.func @transform_2(%arg0: i32, %arg1: i32) -> (i32, i32) {
    %c0_i32 = arith.constant 0 : i32
    %c0_i32_0 = arith.constant 0 : i32
    %c0_i32_1 = arith.constant 0 : i32
    return %c0_i32, %c0_i32_0 : i32, i32
  }
  func.func @transform_3(%arg0: i32, %arg1: i32) -> (i32, i32) {
    %c0_i32 = arith.constant 0 : i32
    %c0_i32_0 = arith.constant 0 : i32
    %c0_i32_1 = arith.constant 0 : i32
    return %c0_i32, %c0_i32_0 : i32, i32
  }
  func.func @transform_4(%arg0: i32, %arg1: i32) -> (i32, i32) {
    %c0_i32 = arith.constant 0 : i32
    %c0_i32_0 = arith.constant 0 : i32
    %c0_i32_1 = arith.constant 0 : i32
    return %c0_i32, %c0_i32_0 : i32, i32
  }
  func.func @transform_5(%arg0: i32, %arg1: i32) -> (i32, i32) {
    %c0_i32 = arith.constant 0 : i32
    %c0_i32_0 = arith.constant 0 : i32
    return %arg0, %c0_i32 : i32, i32
  }
}

module attributes {stable_mosaic.version = 11 : i64} {
  func.func @kernel(%arg0: i32, %arg1: i32, %arg2: i32, %arg3: memref<28x128xbf16, #tpu.memory_space<vmem>>, %arg4: memref<128x128xbf16, #tpu.memory_space<vmem>>, %arg5: memref<128x128xbf16, #tpu.memory_space<vmem>>, %arg6: memref<1x128xf32, #tpu.memory_space<vmem>>, %arg7: memref<1x128xf32, #tpu.memory_space<vmem>>, %arg8: memref<28x128xbf16, #tpu.memory_space<vmem>>, %arg9: memref<28x128xbf16, #tpu.memory_space<vmem>>, %arg10: memref<28x128xf32, #tpu.memory_space<vmem>>, %arg11: memref<28x128xf32, #tpu.memory_space<vmem>>) attributes {dimension_semantics = [#tpu.dimension_semantics<parallel>, #tpu.dimension_semantics<parallel>, #tpu.dimension_semantics<arbitrary>], iteration_bounds = array<i64: 1, 1, 1>, scalar_prefetch = 0 : i64, scratch_operands = 2 : i64, tpu.core_type = #tpu.core_type<tc>, window_params = [{transform_indices = @transform_0, window_bounds = array<i64: 28, 128>}, {transform_indices = @transform_1, window_bounds = array<i64: 128, 128>}, {transform_indices = @transform_2, window_bounds = array<i64: 128, 128>}, {transform_indices = @transform_3, window_bounds = array<i64: 1, 128>}, {transform_indices = @transform_4, window_bounds = array<i64: 1, 128>}, {transform_indices = @transform_5, window_bounds = array<i64: 28, 128>}, {transform_indices = @transform_6, window_bounds = array<i64: 28, 128>}]} {
    %c0_i32 = arith.constant 0 : i32
    %0 = arith.cmpi eq, %arg2, %c0_i32 : i32
    %1 = arith.extui %0 : i1 to i32
    %c0_i32_0 = arith.constant 0 : i32
    %2 = arith.cmpi ne, %1, %c0_i32_0 : i32
    scf.if %2 {
      %cst_17 = arith.constant 0.000000e+00 : f32
      %17 = vector.broadcast %cst_17 : f32 to vector<28x128xf32>
      %c0_18 = arith.constant 0 : index
      %c0_19 = arith.constant 0 : index
      %18 = vector.load %arg10[%c0_18, %c0_19] : memref<28x128xf32, #tpu.memory_space<vmem>>, vector<28x128xf32>
      tpu.vector_store %arg10[%c0_18, %c0_19], %17 {strides = array<i32>} : memref<28x128xf32, #tpu.memory_space<vmem>>, vector<28x128xf32>,
      %cst_20 = arith.constant 0.000000e+00 : f32
      %19 = vector.broadcast %cst_20 : f32 to vector<28x128xf32>
      %c0_21 = arith.constant 0 : index
      %c0_22 = arith.constant 0 : index
      %20 = vector.load %arg11[%c0_21, %c0_22] : memref<28x128xf32, #tpu.memory_space<vmem>>, vector<28x128xf32>
      tpu.vector_store %arg11[%c0_21, %c0_22], %19 {strides = array<i32>} : memref<28x128xf32, #tpu.memory_space<vmem>>, vector<28x128xf32>,
    } else {
    }
    %c0 = arith.constant 0 : index
    %c0_1 = arith.constant 0 : index
    %3 = vector.load %arg3[%c0, %c0_1] : memref<28x128xbf16, #tpu.memory_space<vmem>>, vector<28x128xbf16>
    %c0_2 = arith.constant 0 : index
    %c0_3 = arith.constant 0 : index
    %4 = vector.load %arg10[%c0_2, %c0_3] : memref<28x128xf32, #tpu.memory_space<vmem>>, vector<28x128xf32>
    %c0_4 = arith.constant 0 : index
    %c0_5 = arith.constant 0 : index
    %5 = vector.load %arg4[%c0_4, %c0_5] : memref<128x128xbf16, #tpu.memory_space<vmem>>, vector<128x128xbf16>
    %cst = arith.constant dense<0.000000e+00> : vector<28x128xf32>
    %6 = tpu.matmul %3, %5, %cst {dimension_numbers = #tpu.dot_dimension_numbers<[1], [0], [0], [1], [0, 0, 1, 1], [], []>} : vector<28x128xbf16>, vector<128x128xbf16>, vector<28x128xf32> -> vector<28x128xf32>
    %7 = arith.addf %4, %6 : vector<28x128xf32>
    %c0_6 = arith.constant 0 : index
    %c0_7 = arith.constant 0 : index
    %8 = vector.load %arg10[%c0_6, %c0_7] : memref<28x128xf32, #tpu.memory_space<vmem>>, vector<28x128xf32>
    tpu.vector_store %arg10[%c0_6, %c0_7], %7 {strides = array<i32>} : memref<28x128xf32, #tpu.memory_space<vmem>>, vector<28x128xf32>,
    %c0_8 = arith.constant 0 : index
    %c0_9 = arith.constant 0 : index
    %9 = vector.load %arg11[%c0_8, %c0_9] : memref<28x128xf32, #tpu.memory_space<vmem>>, vector<28x128xf32>
    %c0_10 = arith.constant 0 : index
    %c0_11 = arith.constant 0 : index
    %10 = vector.load %arg5[%c0_10, %c0_11] : memref<128x128xbf16, #tpu.memory_space<vmem>>, vector<128x128xbf16>
    %cst_12 = arith.constant dense<0.000000e+00> : vector<28x128xf32>
    %11 = tpu.matmul %3, %10, %cst_12 {dimension_numbers = #tpu.dot_dimension_numbers<[1], [0], [0], [1], [0, 0, 1, 1], [], []>} : vector<28x128xbf16>, vector<128x128xbf16>, vector<28x128xf32> -> vector<28x128xf32>
    %12 = arith.addf %9, %11 : vector<28x128xf32>
    %c0_13 = arith.constant 0 : index
    %c0_14 = arith.constant 0 : index
    %13 = vector.load %arg11[%c0_13, %c0_14] : memref<28x128xf32, #tpu.memory_space<vmem>>, vector<28x128xf32>
    tpu.vector_store %arg11[%c0_13, %c0_14], %12 {strides = array<i32>} : memref<28x128xf32, #tpu.memory_space<vmem>>, vector<28x128xf32>,
    %c0_i32_15 = arith.constant 0 : i32
    %14 = arith.cmpi eq, %arg2, %c0_i32_15 : i32
    %15 = arith.extui %14 : i1 to i32
    %c0_i32_16 = arith.constant 0 : i32
    %16 = arith.cmpi ne, %15, %c0_i32_16 : i32
    scf.if %16 {
      %c0_17 = arith.constant 0 : index
      %c0_18 = arith.constant 0 : index
      %17 = vector.load %arg10[%c0_17, %c0_18] : memref<28x128xf32, #tpu.memory_space<vmem>>, vector<28x128xf32>
      %c0_19 = arith.constant 0 : index
      %c0_20 = arith.constant 0 : index
      %18 = vector.load %arg6[%c0_19, %c0_20] : memref<1x128xf32, #tpu.memory_space<vmem>>, vector<1x128xf32>
      %19 = vector.broadcast %18 : vector<1x128xf32> to vector<28x128xf32>
      %20 = arith.addf %17, %19 : vector<28x128xf32>
      %21 = arith.truncf %20 : vector<28x128xf32> to vector<28x128xbf16>
      %c0_21 = arith.constant 0 : index
      %c0_22 = arith.constant 0 : index
      %22 = vector.load %arg8[%c0_21, %c0_22] : memref<28x128xbf16, #tpu.memory_space<vmem>>, vector<28x128xbf16>
      tpu.vector_store %arg8[%c0_21, %c0_22], %21 {strides = array<i32>} : memref<28x128xbf16, #tpu.memory_space<vmem>>, vector<28x128xbf16>,
      %c0_23 = arith.constant 0 : index
      %c0_24 = arith.constant 0 : index
      %23 = vector.load %arg11[%c0_23, %c0_24] : memref<28x128xf32, #tpu.memory_space<vmem>>, vector<28x128xf32>
      %c0_25 = arith.constant 0 : index
      %c0_26 = arith.constant 0 : index
      %24 = vector.load %arg7[%c0_25, %c0_26] : memref<1x128xf32, #tpu.memory_space<vmem>>, vector<1x128xf32>
      %25 = vector.broadcast %24 : vector<1x128xf32> to vector<28x128xf32>
      %26 = arith.addf %23, %25 : vector<28x128xf32>
      %27 = arith.truncf %26 : vector<28x128xf32> to vector<28x128xbf16>
      %c0_27 = arith.constant 0 : index
      %c0_28 = arith.constant 0 : index
      %28 = vector.load %arg9[%c0_27, %c0_28] : memref<28x128xbf16, #tpu.memory_space<vmem>>, vector<28x128xbf16>
      tpu.vector_store %arg9[%c0_27, %c0_28], %27 {strides = array<i32>} : memref<28x128xbf16, #tpu.memory_space<vmem>>, vector<28x128xbf16>,
    } else {
    }
    return
  }
  func.func @transform_0(%arg0: i32, %arg1: i32, %arg2: i32) -> (i32, i32) {
    %c0_i32 = arith.constant 0 : i32
    return %arg0, %arg2 : i32, i32
  }
  func.func @transform_1(%arg0: i32, %arg1: i32, %arg2: i32) -> (i32, i32) {
    %c0_i32 = arith.constant 0 : i32
    return %arg2, %arg1 : i32, i32
  }
  func.func @transform_2(%arg0: i32, %arg1: i32, %arg2: i32) -> (i32, i32) {
    %c0_i32 = arith.constant 0 : i32
    return %arg2, %arg1 : i32, i32
  }
  func.func @transform_3(%arg0: i32, %arg1: i32, %arg2: i32) -> (i32, i32) {
    %c0_i32 = arith.constant 0 : i32
    %c0_i32_0 = arith.constant 0 : i32
    return %c0_i32, %arg1 : i32, i32
  }
  func.func @transform_4(%arg0: i32, %arg1: i32, %arg2: i32) -> (i32, i32) {
    %c0_i32 = arith.constant 0 : i32
    %c0_i32_0 = arith.constant 0 : i32
    return %c0_i32, %arg1 : i32, i32
  }
  func.func @transform_5(%arg0: i32, %arg1: i32, %arg2: i32) -> (i32, i32) {
    %c0_i32 = arith.constant 0 : i32
    return %arg0, %arg1 : i32, i32
  }
  func.func @transform_6(%arg0: i32, %arg1: i32, %arg2: i32) -> (i32, i32) {
    %c0_i32 = arith.constant 0 : i32
    return %arg0, %arg1 : i32, i32
  }
}

module attributes {stable_mosaic.version = 11 : i64} {
  func.func @_attn2_kernel(%arg0: i32, %arg1: memref<1x7x128xbf16, #tpu.memory_space<vmem>>, %arg2: memref<1x7x128xbf16, #tpu.memory_space<vmem>>, %arg3: memref<1x7x128xbf16, #tpu.memory_space<vmem>>, %arg4: memref<1x2x7x128xbf16, #tpu.memory_space<vmem>>, %arg5: memref<1x2x7x128xbf16, #tpu.memory_space<vmem>>, %arg6: memref<1x1x7xf32, #tpu.memory_space<vmem>>, %arg7: memref<1x1x2xf32, #tpu.memory_space<vmem>>, %arg8: memref<1x7x128xbf16, #tpu.memory_space<vmem>>) attributes {dimension_semantics = [#tpu.dimension_semantics<parallel>], iteration_bounds = array<i64: 2>, scalar_prefetch = 0 : i64, scratch_operands = 0 : i64, tpu.core_type = #tpu.core_type<tc>, window_params = [{transform_indices = @transform_0, window_bounds = array<i64: 1, 7, 128>}, {transform_indices = @transform_1, window_bounds = array<i64: 1, 7, 128>}, {transform_indices = @transform_2, window_bounds = array<i64: 1, 7, 128>}, {transform_indices = @transform_3, window_bounds = array<i64: 1, 2, 7, 128>}, {transform_indices = @transform_4, window_bounds = array<i64: 1, 2, 7, 128>}, {transform_indices = @transform_5, window_bounds = array<i64: 1, 1, 7>}, {transform_indices = @transform_6, window_bounds = array<i64: 1, 1, 2>}, {transform_indices = @transform_7, window_bounds = array<i64: 1, 7, 128>}]} {
    %c0 = arith.constant 0 : index
    %c0_0 = arith.constant 0 : index
    %c0_1 = arith.constant 0 : index
    %0 = vector.load %arg1[%c0, %c0_0, %c0_1] : memref<1x7x128xbf16, #tpu.memory_space<vmem>>, vector<1x7x128xbf16>
    %1 = vector.shape_cast %0 : vector<1x7x128xbf16> to vector<7x128xbf16>
    %c0_2 = arith.constant 0 : index
    %c0_3 = arith.constant 0 : index
    %c0_4 = arith.constant 0 : index
    %2 = vector.load %arg2[%c0_2, %c0_3, %c0_4] : memref<1x7x128xbf16, #tpu.memory_space<vmem>>, vector<1x7x128xbf16>
    %3 = vector.shape_cast %2 : vector<1x7x128xbf16> to vector<7x128xbf16>
    %c0_5 = arith.constant 0 : index
    %c0_6 = arith.constant 0 : index
    %c0_7 = arith.constant 0 : index
    %4 = vector.load %arg3[%c0_5, %c0_6, %c0_7] : memref<1x7x128xbf16, #tpu.memory_space<vmem>>, vector<1x7x128xbf16>
    %5 = vector.shape_cast %4 : vector<1x7x128xbf16> to vector<7x128xbf16>
    %c0_8 = arith.constant 0 : index
    %c0_9 = arith.constant 0 : index
    %c0_10 = arith.constant 0 : index
    %6 = vector.load %arg6[%c0_8, %c0_9, %c0_10] : memref<1x1x7xf32, #tpu.memory_space<vmem>>, vector<1x1x7xf32>
    %7 = vector.shape_cast %6 : vector<1x1x7xf32> to vector<1x7xf32>
    %c0_11 = arith.constant 0 : index
    %c0_12 = arith.constant 0 : index
    %c0_13 = arith.constant 0 : index
    %8 = vector.load %arg7[%c0_11, %c0_12, %c0_13] : memref<1x1x2xf32, #tpu.memory_space<vmem>>, vector<1x1x2xf32>
    %9 = vector.shape_cast %8 : vector<1x1x2xf32> to vector<1x2xf32>
    %10 = vector.extract_strided_slice %1 {offsets = [0, 0], sizes = [7, 32], strides = [1, 1]} : vector<7x128xbf16> to vector<7x32xbf16>
    %11 = arith.extf %10 : vector<7x32xbf16> to vector<7x32xf32>
    %12 = vector.extract_strided_slice %3 {offsets = [0, 0], sizes = [7, 32], strides = [1, 1]} : vector<7x128xbf16> to vector<7x32xbf16>
    %cst = arith.constant dense<0.000000e+00> : vector<7x7xf32>
    %13 = tpu.matmul %10, %12, %cst {dimension_numbers = #tpu.dot_dimension_numbers<[1], [1], [0], [0], [0, 0, 1, 0], [], []>} : vector<7x32xbf16>, vector<7x32xbf16>, vector<7x7xf32> -> vector<7x7xf32>
    %14 = vector.broadcast %7 : vector<1x7xf32> to vector<7x7xf32>
    %15 = arith.addf %13, %14 : vector<7x7xf32>
    %cst_14 = arith.constant dense<0xFF800000> : vector<7xf32>
    %16 = vector.multi_reduction <maximumf>, %15, %cst_14 [1] : vector<7x7xf32> to vector<7xf32>
    %17 = vector.shape_cast %16 : vector<7xf32> to vector<7x1xf32>
    %c0_15 = arith.constant 0 : index
    %c0_16 = arith.constant 0 : index
    %c0_17 = arith.constant 0 : index
    %c0_18 = arith.constant 0 : index
    %18 = vector.load %arg4[%c0_15, %c0_16, %c0_17, %c0_18] : memref<1x2x7x128xbf16, #tpu.memory_space<vmem>>, vector<1x1x7x32xbf16>
    %19 = vector.shape_cast %18 : vector<1x1x7x32xbf16> to vector<7x32xbf16>
    %20 = arith.extf %19 : vector<7x32xbf16> to vector<7x32xf32>
    %21 = arith.mulf %11, %20 : vector<7x32xf32>
    %cst_19 = arith.constant dense<0.000000e+00> : vector<7xf32>
    %22 = vector.multi_reduction <add>, %21, %cst_19 [1] : vector<7x32xf32> to vector<7xf32>
    %23 = vector.shape_cast %22 : vector<7xf32> to vector<7x1xf32>
    %24 = vector.extract_strided_slice %9 {offsets = [0, 0], sizes = [1, 1], strides = [1, 1]} : vector<1x2xf32> to vector<1x1xf32>
    %25 = vector.broadcast %24 : vector<1x1xf32> to vector<7x1xf32>
    %26 = arith.addf %23, %25 : vector<7x1xf32>
    %27 = arith.maximumf %17, %26 : vector<7x1xf32>
    %c0_20 = arith.constant 0 : index
    %c1 = arith.constant 1 : index
    %c0_21 = arith.constant 0 : index
    %c0_22 = arith.constant 0 : index
    %28 = vector.load %arg4[%c0_20, %c1, %c0_21, %c0_22] : memref<1x2x7x128xbf16, #tpu.memory_space<vmem>>, vector<1x1x7x32xbf16>
    %29 = vector.shape_cast %28 : vector<1x1x7x32xbf16> to vector<7x32xbf16>
    %30 = arith.extf %29 : vector<7x32xbf16> to vector<7x32xf32>
    %31 = arith.mulf %11, %30 : vector<7x32xf32>
    %cst_23 = arith.constant dense<0.000000e+00> : vector<7xf32>
    %32 = vector.multi_reduction <add>, %31, %cst_23 [1] : vector<7x32xf32> to vector<7xf32>
    %33 = vector.shape_cast %32 : vector<7xf32> to vector<7x1xf32>
    %34 = vector.extract_strided_slice %9 {offsets = [0, 1], sizes = [1, 1], strides = [1, 1]} : vector<1x2xf32> to vector<1x1xf32>
    %35 = vector.broadcast %34 : vector<1x1xf32> to vector<7x1xf32>
    %36 = arith.addf %33, %35 : vector<7x1xf32>
    %37 = arith.maximumf %27, %36 : vector<7x1xf32>
    %38 = vector.broadcast %37 : vector<7x1xf32> to vector<7x7xf32>
    %39 = arith.subf %15, %38 : vector<7x7xf32>
    %40 = math.exp %39 : vector<7x7xf32>
    %cst_24 = arith.constant dense<0.000000e+00> : vector<7xf32>
    %41 = vector.multi_reduction <add>, %40, %cst_24 [1] : vector<7x7xf32> to vector<7xf32>
    %42 = vector.shape_cast %41 : vector<7xf32> to vector<7x1xf32>
    %43 = arith.truncf %40 : vector<7x7xf32> to vector<7x7xbf16>
    %44 = vector.extract_strided_slice %5 {offsets = [0, 0], sizes = [7, 32], strides = [1, 1]} : vector<7x128xbf16> to vector<7x32xbf16>
    %cst_25 = arith.constant dense<0.000000e+00> : vector<7x32xf32>
    %45 = tpu.matmul %43, %44, %cst_25 {dimension_numbers = #tpu.dot_dimension_numbers<[1], [0], [0], [1], [0, 0, 1, 1], [], []>} : vector<7x7xbf16>, vector<7x32xbf16>, vector<7x32xf32> -> vector<7x32xf32>
    %46 = arith.subf %26, %37 : vector<7x1xf32>
    %47 = math.exp %46 : vector<7x1xf32>
    %48 = arith.addf %42, %47 : vector<7x1xf32>
    %c0_26 = arith.constant 0 : index
    %c0_27 = arith.constant 0 : index
    %c0_28 = arith.constant 0 : index
    %c0_29 = arith.constant 0 : index
    %49 = vector.load %arg5[%c0_26, %c0_27, %c0_28, %c0_29] : memref<1x2x7x128xbf16, #tpu.memory_space<vmem>>, vector<1x1x7x32xbf16>
    %50 = vector.shape_cast %49 : vector<1x1x7x32xbf16> to vector<7x32xbf16>
    %51 = arith.extf %50 : vector<7x32xbf16> to vector<7x32xf32>
    %52 = vector.broadcast %47 : vector<7x1xf32> to vector<7x32xf32>
    %53 = arith.mulf %52, %51 : vector<7x32xf32>
    %54 = arith.addf %45, %53 : vector<7x32xf32>
    %55 = arith.subf %36, %37 : vector<7x1xf32>
    %56 = math.exp %55 : vector<7x1xf32>
    %57 = arith.addf %48, %56 : vector<7x1xf32>
    %c0_30 = arith.constant 0 : index
    %c1_31 = arith.constant 1 : index
    %c0_32 = arith.constant 0 : index
    %c0_33 = arith.constant 0 : index
    %58 = vector.load %arg5[%c0_30, %c1_31, %c0_32, %c0_33] : memref<1x2x7x128xbf16, #tpu.memory_space<vmem>>, vector<1x1x7x32xbf16>
    %59 = vector.shape_cast %58 : vector<1x1x7x32xbf16> to vector<7x32xbf16>
    %60 = arith.extf %59 : vector<7x32xbf16> to vector<7x32xf32>
    %61 = vector.broadcast %56 : vector<7x1xf32> to vector<7x32xf32>
    %62 = arith.mulf %61, %60 : vector<7x32xf32>
    %63 = arith.addf %54, %62 : vector<7x32xf32>
    %64 = tpu.reciprocal %57 {approx = true} : vector<7x1xf32> -> vector<7x1xf32>
    %65 = vector.broadcast %64 : vector<7x1xf32> to vector<7x32xf32>
    %66 = arith.mulf %63, %65 : vector<7x32xf32>
    %67 = vector.extract_strided_slice %1 {offsets = [0, 32], sizes = [7, 32], strides = [1, 1]} : vector<7x128xbf16> to vector<7x32xbf16>
    %68 = arith.extf %67 : vector<7x32xbf16> to vector<7x32xf32>
    %69 = vector.extract_strided_slice %3 {offsets = [0, 32], sizes = [7, 32], strides = [1, 1]} : vector<7x128xbf16> to vector<7x32xbf16>
    %cst_34 = arith.constant dense<0.000000e+00> : vector<7x7xf32>
    %70 = tpu.matmul %67, %69, %cst_34 {dimension_numbers = #tpu.dot_dimension_numbers<[1], [1], [0], [0], [0, 0, 1, 0], [], []>} : vector<7x32xbf16>, vector<7x32xbf16>, vector<7x7xf32> -> vector<7x7xf32>
    %71 = vector.broadcast %7 : vector<1x7xf32> to vector<7x7xf32>
    %72 = arith.addf %70, %71 : vector<7x7xf32>
    %cst_35 = arith.constant dense<0xFF800000> : vector<7xf32>
    %73 = vector.multi_reduction <maximumf>, %72, %cst_35 [1] : vector<7x7xf32> to vector<7xf32>
    %74 = vector.shape_cast %73 : vector<7xf32> to vector<7x1xf32>
    %c0_36 = arith.constant 0 : index
    %c0_37 = arith.constant 0 : index
    %c0_38 = arith.constant 0 : index
    %c32 = arith.constant 32 : index
    %75 = vector.load %arg4[%c0_36, %c0_37, %c0_38, %c32] : memref<1x2x7x128xbf16, #tpu.memory_space<vmem>>, vector<1x1x7x32xbf16>
    %76 = vector.shape_cast %75 : vector<1x1x7x32xbf16> to vector<7x32xbf16>
    %77 = arith.extf %76 : vector<7x32xbf16> to vector<7x32xf32>
    %78 = arith.mulf %68, %77 : vector<7x32xf32>
    %cst_39 = arith.constant dense<0.000000e+00> : vector<7xf32>
    %79 = vector.multi_reduction <add>, %78, %cst_39 [1] : vector<7x32xf32> to vector<7xf32>
    %80 = vector.shape_cast %79 : vector<7xf32> to vector<7x1xf32>
    %81 = vector.extract_strided_slice %9 {offsets = [0, 0], sizes = [1, 1], strides = [1, 1]} : vector<1x2xf32> to vector<1x1xf32>
    %82 = vector.broadcast %81 : vector<1x1xf32> to vector<7x1xf32>
    %83 = arith.addf %80, %82 : vector<7x1xf32>
    %84 = arith.maximumf %74, %83 : vector<7x1xf32>
    %c0_40 = arith.constant 0 : index
    %c1_41 = arith.constant 1 : index
    %c0_42 = arith.constant 0 : index
    %c32_43 = arith.constant 32 : index
    %85 = vector.load %arg4[%c0_40, %c1_41, %c0_42, %c32_43] : memref<1x2x7x128xbf16, #tpu.memory_space<vmem>>, vector<1x1x7x32xbf16>
    %86 = vector.shape_cast %85 : vector<1x1x7x32xbf16> to vector<7x32xbf16>
    %87 = arith.extf %86 : vector<7x32xbf16> to vector<7x32xf32>
    %88 = arith.mulf %68, %87 : vector<7x32xf32>
    %cst_44 = arith.constant dense<0.000000e+00> : vector<7xf32>
    %89 = vector.multi_reduction <add>, %88, %cst_44 [1] : vector<7x32xf32> to vector<7xf32>
    %90 = vector.shape_cast %89 : vector<7xf32> to vector<7x1xf32>
    %91 = vector.extract_strided_slice %9 {offsets = [0, 1], sizes = [1, 1], strides = [1, 1]} : vector<1x2xf32> to vector<1x1xf32>
    %92 = vector.broadcast %91 : vector<1x1xf32> to vector<7x1xf32>
    %93 = arith.addf %90, %92 : vector<7x1xf32>
    %94 = arith.maximumf %84, %93 : vector<7x1xf32>
    %95 = vector.broadcast %94 : vector<7x1xf32> to vector<7x7xf32>
    %96 = arith.subf %72, %95 : vector<7x7xf32>
    %97 = math.exp %96 : vector<7x7xf32>
    %cst_45 = arith.constant dense<0.000000e+00> : vector<7xf32>
    %98 = vector.multi_reduction <add>, %97, %cst_45 [1] : vector<7x7xf32> to vector<7xf32>
    %99 = vector.shape_cast %98 : vector<7xf32> to vector<7x1xf32>
    %100 = arith.truncf %97 : vector<7x7xf32> to vector<7x7xbf16>
    %101 = vector.extract_strided_slice %5 {offsets = [0, 32], sizes = [7, 32], strides = [1, 1]} : vector<7x128xbf16> to vector<7x32xbf16>
    %cst_46 = arith.constant dense<0.000000e+00> : vector<7x32xf32>
    %102 = tpu.matmul %100, %101, %cst_46 {dimension_numbers = #tpu.dot_dimension_numbers<[1], [0], [0], [1], [0, 0, 1, 1], [], []>} : vector<7x7xbf16>, vector<7x32xbf16>, vector<7x32xf32> -> vector<7x32xf32>
    %103 = arith.subf %83, %94 : vector<7x1xf32>
    %104 = math.exp %103 : vector<7x1xf32>
    %105 = arith.addf %99, %104 : vector<7x1xf32>
    %c0_47 = arith.constant 0 : index
    %c0_48 = arith.constant 0 : index
    %c0_49 = arith.constant 0 : index
    %c32_50 = arith.constant 32 : index
    %106 = vector.load %arg5[%c0_47, %c0_48, %c0_49, %c32_50] : memref<1x2x7x128xbf16, #tpu.memory_space<vmem>>, vector<1x1x7x32xbf16>
    %107 = vector.shape_cast %106 : vector<1x1x7x32xbf16> to vector<7x32xbf16>
    %108 = arith.extf %107 : vector<7x32xbf16> to vector<7x32xf32>
    %109 = vector.broadcast %104 : vector<7x1xf32> to vector<7x32xf32>
    %110 = arith.mulf %109, %108 : vector<7x32xf32>
    %111 = arith.addf %102, %110 : vector<7x32xf32>
    %112 = arith.subf %93, %94 : vector<7x1xf32>
    %113 = math.exp %112 : vector<7x1xf32>
    %114 = arith.addf %105, %113 : vector<7x1xf32>
    %c0_51 = arith.constant 0 : index
    %c1_52 = arith.constant 1 : index
    %c0_53 = arith.constant 0 : index
    %c32_54 = arith.constant 32 : index
    %115 = vector.load %arg5[%c0_51, %c1_52, %c0_53, %c32_54] : memref<1x2x7x128xbf16, #tpu.memory_space<vmem>>, vector<1x1x7x32xbf16>
    %116 = vector.shape_cast %115 : vector<1x1x7x32xbf16> to vector<7x32xbf16>
    %117 = arith.extf %116 : vector<7x32xbf16> to vector<7x32xf32>
    %118 = vector.broadcast %113 : vector<7x1xf32> to vector<7x32xf32>
    %119 = arith.mulf %118, %117 : vector<7x32xf32>
    %120 = arith.addf %111, %119 : vector<7x32xf32>
    %121 = tpu.reciprocal %114 {approx = true} : vector<7x1xf32> -> vector<7x1xf32>
    %122 = vector.broadcast %121 : vector<7x1xf32> to vector<7x32xf32>
    %123 = arith.mulf %120, %122 : vector<7x32xf32>
    %124 = vector.extract_strided_slice %1 {offsets = [0, 64], sizes = [7, 32], strides = [1, 1]} : vector<7x128xbf16> to vector<7x32xbf16>
    %125 = arith.extf %124 : vector<7x32xbf16> to vector<7x32xf32>
    %126 = vector.extract_strided_slice %3 {offsets = [0, 64], sizes = [7, 32], strides = [1, 1]} : vector<7x128xbf16> to vector<7x32xbf16>
    %cst_55 = arith.constant dense<0.000000e+00> : vector<7x7xf32>
    %127 = tpu.matmul %124, %126, %cst_55 {dimension_numbers = #tpu.dot_dimension_numbers<[1], [1], [0], [0], [0, 0, 1, 0], [], []>} : vector<7x32xbf16>, vector<7x32xbf16>, vector<7x7xf32> -> vector<7x7xf32>
    %128 = vector.broadcast %7 : vector<1x7xf32> to vector<7x7xf32>
    %129 = arith.addf %127, %128 : vector<7x7xf32>
    %cst_56 = arith.constant dense<0xFF800000> : vector<7xf32>
    %130 = vector.multi_reduction <maximumf>, %129, %cst_56 [1] : vector<7x7xf32> to vector<7xf32>
    %131 = vector.shape_cast %130 : vector<7xf32> to vector<7x1xf32>
    %c0_57 = arith.constant 0 : index
    %c0_58 = arith.constant 0 : index
    %c0_59 = arith.constant 0 : index
    %c64 = arith.constant 64 : index
    %132 = vector.load %arg4[%c0_57, %c0_58, %c0_59, %c64] : memref<1x2x7x128xbf16, #tpu.memory_space<vmem>>, vector<1x1x7x32xbf16>
    %133 = vector.shape_cast %132 : vector<1x1x7x32xbf16> to vector<7x32xbf16>
    %134 = arith.extf %133 : vector<7x32xbf16> to vector<7x32xf32>
    %135 = arith.mulf %125, %134 : vector<7x32xf32>
    %cst_60 = arith.constant dense<0.000000e+00> : vector<7xf32>
    %136 = vector.multi_reduction <add>, %135, %cst_60 [1] : vector<7x32xf32> to vector<7xf32>
    %137 = vector.shape_cast %136 : vector<7xf32> to vector<7x1xf32>
    %138 = vector.extract_strided_slice %9 {offsets = [0, 0], sizes = [1, 1], strides = [1, 1]} : vector<1x2xf32> to vector<1x1xf32>
    %139 = vector.broadcast %138 : vector<1x1xf32> to vector<7x1xf32>
    %140 = arith.addf %137, %139 : vector<7x1xf32>
    %141 = arith.maximumf %131, %140 : vector<7x1xf32>
    %c0_61 = arith.constant 0 : index
    %c1_62 = arith.constant 1 : index
    %c0_63 = arith.constant 0 : index
    %c64_64 = arith.constant 64 : index
    %142 = vector.load %arg4[%c0_61, %c1_62, %c0_63, %c64_64] : memref<1x2x7x128xbf16, #tpu.memory_space<vmem>>, vector<1x1x7x32xbf16>
    %143 = vector.shape_cast %142 : vector<1x1x7x32xbf16> to vector<7x32xbf16>
    %144 = arith.extf %143 : vector<7x32xbf16> to vector<7x32xf32>
    %145 = arith.mulf %125, %144 : vector<7x32xf32>
    %cst_65 = arith.constant dense<0.000000e+00> : vector<7xf32>
    %146 = vector.multi_reduction <add>, %145, %cst_65 [1] : vector<7x32xf32> to vector<7xf32>
    %147 = vector.shape_cast %146 : vector<7xf32> to vector<7x1xf32>
    %148 = vector.extract_strided_slice %9 {offsets = [0, 1], sizes = [1, 1], strides = [1, 1]} : vector<1x2xf32> to vector<1x1xf32>
    %149 = vector.broadcast %148 : vector<1x1xf32> to vector<7x1xf32>
    %150 = arith.addf %147, %149 : vector<7x1xf32>
    %151 = arith.maximumf %141, %150 : vector<7x1xf32>
    %152 = vector.broadcast %151 : vector<7x1xf32> to vector<7x7xf32>
    %153 = arith.subf %129, %152 : vector<7x7xf32>
    %154 = math.exp %153 : vector<7x7xf32>
    %cst_66 = arith.constant dense<0.000000e+00> : vector<7xf32>
    %155 = vector.multi_reduction <add>, %154, %cst_66 [1] : vector<7x7xf32> to vector<7xf32>
    %156 = vector.shape_cast %155 : vector<7xf32> to vector<7x1xf32>
    %157 = arith.truncf %154 : vector<7x7xf32> to vector<7x7xbf16>
    %158 = vector.extract_strided_slice %5 {offsets = [0, 64], sizes = [7, 32], strides = [1, 1]} : vector<7x128xbf16> to vector<7x32xbf16>
    %cst_67 = arith.constant dense<0.000000e+00> : vector<7x32xf32>
    %159 = tpu.matmul %157, %158, %cst_67 {dimension_numbers = #tpu.dot_dimension_numbers<[1], [0], [0], [1], [0, 0, 1, 1], [], []>} : vector<7x7xbf16>, vector<7x32xbf16>, vector<7x32xf32> -> vector<7x32xf32>
    %160 = arith.subf %140, %151 : vector<7x1xf32>
    %161 = math.exp %160 : vector<7x1xf32>
    %162 = arith.addf %156, %161 : vector<7x1xf32>
    %c0_68 = arith.constant 0 : index
    %c0_69 = arith.constant 0 : index
    %c0_70 = arith.constant 0 : index
    %c64_71 = arith.constant 64 : index
    %163 = vector.load %arg5[%c0_68, %c0_69, %c0_70, %c64_71] : memref<1x2x7x128xbf16, #tpu.memory_space<vmem>>, vector<1x1x7x32xbf16>
    %164 = vector.shape_cast %163 : vector<1x1x7x32xbf16> to vector<7x32xbf16>
    %165 = arith.extf %164 : vector<7x32xbf16> to vector<7x32xf32>
    %166 = vector.broadcast %161 : vector<7x1xf32> to vector<7x32xf32>
    %167 = arith.mulf %166, %165 : vector<7x32xf32>
    %168 = arith.addf %159, %167 : vector<7x32xf32>
    %169 = arith.subf %150, %151 : vector<7x1xf32>
    %170 = math.exp %169 : vector<7x1xf32>
    %171 = arith.addf %162, %170 : vector<7x1xf32>
    %c0_72 = arith.constant 0 : index
    %c1_73 = arith.constant 1 : index
    %c0_74 = arith.constant 0 : index
    %c64_75 = arith.constant 64 : index
    %172 = vector.load %arg5[%c0_72, %c1_73, %c0_74, %c64_75] : memref<1x2x7x128xbf16, #tpu.memory_space<vmem>>, vector<1x1x7x32xbf16>
    %173 = vector.shape_cast %172 : vector<1x1x7x32xbf16> to vector<7x32xbf16>
    %174 = arith.extf %173 : vector<7x32xbf16> to vector<7x32xf32>
    %175 = vector.broadcast %170 : vector<7x1xf32> to vector<7x32xf32>
    %176 = arith.mulf %175, %174 : vector<7x32xf32>
    %177 = arith.addf %168, %176 : vector<7x32xf32>
    %178 = tpu.reciprocal %171 {approx = true} : vector<7x1xf32> -> vector<7x1xf32>
    %179 = vector.broadcast %178 : vector<7x1xf32> to vector<7x32xf32>
    %180 = arith.mulf %177, %179 : vector<7x32xf32>
    %181 = vector.extract_strided_slice %1 {offsets = [0, 96], sizes = [7, 32], strides = [1, 1]} : vector<7x128xbf16> to vector<7x32xbf16>
    %182 = arith.extf %181 : vector<7x32xbf16> to vector<7x32xf32>
    %183 = vector.extract_strided_slice %3 {offsets = [0, 96], sizes = [7, 32], strides = [1, 1]} : vector<7x128xbf16> to vector<7x32xbf16>
    %cst_76 = arith.constant dense<0.000000e+00> : vector<7x7xf32>
    %184 = tpu.matmul %181, %183, %cst_76 {dimension_numbers = #tpu.dot_dimension_numbers<[1], [1], [0], [0], [0, 0, 1, 0], [], []>} : vector<7x32xbf16>, vector<7x32xbf16>, vector<7x7xf32> -> vector<7x7xf32>
    %185 = vector.broadcast %7 : vector<1x7xf32> to vector<7x7xf32>
    %186 = arith.addf %184, %185 : vector<7x7xf32>
    %cst_77 = arith.constant dense<0xFF800000> : vector<7xf32>
    %187 = vector.multi_reduction <maximumf>, %186, %cst_77 [1] : vector<7x7xf32> to vector<7xf32>
    %188 = vector.shape_cast %187 : vector<7xf32> to vector<7x1xf32>
    %c0_78 = arith.constant 0 : index
    %c0_79 = arith.constant 0 : index
    %c0_80 = arith.constant 0 : index
    %c96 = arith.constant 96 : index
    %189 = vector.load %arg4[%c0_78, %c0_79, %c0_80, %c96] : memref<1x2x7x128xbf16, #tpu.memory_space<vmem>>, vector<1x1x7x32xbf16>
    %190 = vector.shape_cast %189 : vector<1x1x7x32xbf16> to vector<7x32xbf16>
    %191 = arith.extf %190 : vector<7x32xbf16> to vector<7x32xf32>
    %192 = arith.mulf %182, %191 : vector<7x32xf32>
    %cst_81 = arith.constant dense<0.000000e+00> : vector<7xf32>
    %193 = vector.multi_reduction <add>, %192, %cst_81 [1] : vector<7x32xf32> to vector<7xf32>
    %194 = vector.shape_cast %193 : vector<7xf32> to vector<7x1xf32>
    %195 = vector.extract_strided_slice %9 {offsets = [0, 0], sizes = [1, 1], strides = [1, 1]} : vector<1x2xf32> to vector<1x1xf32>
    %196 = vector.broadcast %195 : vector<1x1xf32> to vector<7x1xf32>
    %197 = arith.addf %194, %196 : vector<7x1xf32>
    %198 = arith.maximumf %188, %197 : vector<7x1xf32>
    %c0_82 = arith.constant 0 : index
    %c1_83 = arith.constant 1 : index
    %c0_84 = arith.constant 0 : index
    %c96_85 = arith.constant 96 : index
    %199 = vector.load %arg4[%c0_82, %c1_83, %c0_84, %c96_85] : memref<1x2x7x128xbf16, #tpu.memory_space<vmem>>, vector<1x1x7x32xbf16>
    %200 = vector.shape_cast %199 : vector<1x1x7x32xbf16> to vector<7x32xbf16>
    %201 = arith.extf %200 : vector<7x32xbf16> to vector<7x32xf32>
    %202 = arith.mulf %182, %201 : vector<7x32xf32>
    %cst_86 = arith.constant dense<0.000000e+00> : vector<7xf32>
    %203 = vector.multi_reduction <add>, %202, %cst_86 [1] : vector<7x32xf32> to vector<7xf32>
    %204 = vector.shape_cast %203 : vector<7xf32> to vector<7x1xf32>
    %205 = vector.extract_strided_slice %9 {offsets = [0, 1], sizes = [1, 1], strides = [1, 1]} : vector<1x2xf32> to vector<1x1xf32>
    %206 = vector.broadcast %205 : vector<1x1xf32> to vector<7x1xf32>
    %207 = arith.addf %204, %206 : vector<7x1xf32>
    %208 = arith.maximumf %198, %207 : vector<7x1xf32>
    %209 = vector.broadcast %208 : vector<7x1xf32> to vector<7x7xf32>
    %210 = arith.subf %186, %209 : vector<7x7xf32>
    %211 = math.exp %210 : vector<7x7xf32>
    %cst_87 = arith.constant dense<0.000000e+00> : vector<7xf32>
    %212 = vector.multi_reduction <add>, %211, %cst_87 [1] : vector<7x7xf32> to vector<7xf32>
    %213 = vector.shape_cast %212 : vector<7xf32> to vector<7x1xf32>
    %214 = arith.truncf %211 : vector<7x7xf32> to vector<7x7xbf16>
    %215 = vector.extract_strided_slice %5 {offsets = [0, 96], sizes = [7, 32], strides = [1, 1]} : vector<7x128xbf16> to vector<7x32xbf16>
    %cst_88 = arith.constant dense<0.000000e+00> : vector<7x32xf32>
    %216 = tpu.matmul %214, %215, %cst_88 {dimension_numbers = #tpu.dot_dimension_numbers<[1], [0], [0], [1], [0, 0, 1, 1], [], []>} : vector<7x7xbf16>, vector<7x32xbf16>, vector<7x32xf32> -> vector<7x32xf32>
    %217 = arith.subf %197, %208 : vector<7x1xf32>
    %218 = math.exp %217 : vector<7x1xf32>
    %219 = arith.addf %213, %218 : vector<7x1xf32>
    %c0_89 = arith.constant 0 : index
    %c0_90 = arith.constant 0 : index
    %c0_91 = arith.constant 0 : index
    %c96_92 = arith.constant 96 : index
    %220 = vector.load %arg5[%c0_89, %c0_90, %c0_91, %c96_92] : memref<1x2x7x128xbf16, #tpu.memory_space<vmem>>, vector<1x1x7x32xbf16>
    %221 = vector.shape_cast %220 : vector<1x1x7x32xbf16> to vector<7x32xbf16>
    %222 = arith.extf %221 : vector<7x32xbf16> to vector<7x32xf32>
    %223 = vector.broadcast %218 : vector<7x1xf32> to vector<7x32xf32>
    %224 = arith.mulf %223, %222 : vector<7x32xf32>
    %225 = arith.addf %216, %224 : vector<7x32xf32>
    %226 = arith.subf %207, %208 : vector<7x1xf32>
    %227 = math.exp %226 : vector<7x1xf32>
    %228 = arith.addf %219, %227 : vector<7x1xf32>
    %c0_93 = arith.constant 0 : index
    %c1_94 = arith.constant 1 : index
    %c0_95 = arith.constant 0 : index
    %c96_96 = arith.constant 96 : index
    %229 = vector.load %arg5[%c0_93, %c1_94, %c0_95, %c96_96] : memref<1x2x7x128xbf16, #tpu.memory_space<vmem>>, vector<1x1x7x32xbf16>
    %230 = vector.shape_cast %229 : vector<1x1x7x32xbf16> to vector<7x32xbf16>
    %231 = arith.extf %230 : vector<7x32xbf16> to vector<7x32xf32>
    %232 = vector.broadcast %227 : vector<7x1xf32> to vector<7x32xf32>
    %233 = arith.mulf %232, %231 : vector<7x32xf32>
    %234 = arith.addf %225, %233 : vector<7x32xf32>
    %235 = tpu.reciprocal %228 {approx = true} : vector<7x1xf32> -> vector<7x1xf32>
    %236 = vector.broadcast %235 : vector<7x1xf32> to vector<7x32xf32>
    %237 = arith.mulf %234, %236 : vector<7x32xf32>
    %238 = tpu.concatenate %66, %123, %180, %237 in 1 : vector<7x32xf32>, vector<7x32xf32>, vector<7x32xf32>, vector<7x32xf32> -> vector<7x128xf32>
    %239 = arith.truncf %238 : vector<7x128xf32> to vector<7x128xbf16>
    %c0_97 = arith.constant 0 : index
    %c0_98 = arith.constant 0 : index
    %c0_99 = arith.constant 0 : index
    %240 = vector.load %arg8[%c0_97, %c0_98, %c0_99] : memref<1x7x128xbf16, #tpu.memory_space<vmem>>, vector<1x7x128xbf16>
    %241 = vector.shape_cast %240 : vector<1x7x128xbf16> to vector<7x128xbf16>
    %242 = vector.shape_cast %239 : vector<7x128xbf16> to vector<1x7x128xbf16>
    tpu.vector_store %arg8[%c0_97, %c0_98, %c0_99], %242 {strides = array<i32>} : memref<1x7x128xbf16, #tpu.memory_space<vmem>>, vector<1x7x128xbf16>,
    return
  }
  func.func @transform_0(%arg0: i32) -> (i32, i32, i32) {
    %c0_i32 = arith.constant 0 : i32
    %c0_i32_0 = arith.constant 0 : i32
    %c0_i32_1 = arith.constant 0 : i32
    return %arg0, %c0_i32, %c0_i32_0 : i32, i32, i32
  }
  func.func @transform_1(%arg0: i32) -> (i32, i32, i32) {
    %c0_i32 = arith.constant 0 : i32
    %c0_i32_0 = arith.constant 0 : i32
    %c0_i32_1 = arith.constant 0 : i32
    return %arg0, %c0_i32, %c0_i32_0 : i32, i32, i32
  }
  func.func @transform_2(%arg0: i32) -> (i32, i32, i32) {
    %c0_i32 = arith.constant 0 : i32
    %c0_i32_0 = arith.constant 0 : i32
    %c0_i32_1 = arith.constant 0 : i32
    return %arg0, %c0_i32, %c0_i32_0 : i32, i32, i32
  }
  func.func @transform_3(%arg0: i32) -> (i32, i32, i32, i32) {
    %c0_i32 = arith.constant 0 : i32
    %c0_i32_0 = arith.constant 0 : i32
    %c0_i32_1 = arith.constant 0 : i32
    %c0_i32_2 = arith.constant 0 : i32
    return %arg0, %c0_i32, %c0_i32_0, %c0_i32_1 : i32, i32, i32, i32
  }
  func.func @transform_4(%arg0: i32) -> (i32, i32, i32, i32) {
    %c0_i32 = arith.constant 0 : i32
    %c0_i32_0 = arith.constant 0 : i32
    %c0_i32_1 = arith.constant 0 : i32
    %c0_i32_2 = arith.constant 0 : i32
    return %arg0, %c0_i32, %c0_i32_0, %c0_i32_1 : i32, i32, i32, i32
  }
  func.func @transform_5(%arg0: i32) -> (i32, i32, i32) {
    %c0_i32 = arith.constant 0 : i32
    %c0_i32_0 = arith.constant 0 : i32
    %c0_i32_1 = arith.constant 0 : i32
    return %arg0, %c0_i32, %c0_i32_0 : i32, i32, i32
  }
  func.func @transform_6(%arg0: i32) -> (i32, i32, i32) {
    %c0_i32 = arith.constant 0 : i32
    %c0_i32_0 = arith.constant 0 : i32
    %c0_i32_1 = arith.constant 0 : i32
    return %arg0, %c0_i32, %c0_i32_0 : i32, i32, i32
  }
  func.func @transform_7(%arg0: i32) -> (i32, i32, i32) {
    %c0_i32 = arith.constant 0 : i32
    %c0_i32_0 = arith.constant 0 : i32
    %c0_i32_1 = arith.constant 0 : i32
    return %arg0, %c0_i32, %c0_i32_0 : i32, i32, i32
  }
}

module attributes {stable_mosaic.version = 11 : i64} {
  func.func @kernel(%arg0: i32, %arg1: i32, %arg2: i32, %arg3: memref<32x128xbf16, #tpu.memory_space<vmem>>, %arg4: memref<128x128xbf16, #tpu.memory_space<vmem>>, %arg5: memref<1x128xf32, #tpu.memory_space<vmem>>, %arg6: memref<32x128xf32, #tpu.memory_space<vmem>>, %arg7: memref<32x128xf32, #tpu.memory_space<vmem>>) attributes {dimension_semantics = [#tpu.dimension_semantics<parallel>, #tpu.dimension_semantics<parallel>, #tpu.dimension_semantics<arbitrary>], iteration_bounds = array<i64: 1, 1, 1>, scalar_prefetch = 0 : i64, scratch_operands = 1 : i64, tpu.core_type = #tpu.core_type<tc>, window_params = [{transform_indices = @transform_0, window_bounds = array<i64: 32, 128>}, {transform_indices = @transform_1, window_bounds = array<i64: 128, 128>}, {transform_indices = @transform_2, window_bounds = array<i64: 1, 128>}, {transform_indices = @transform_3, window_bounds = array<i64: 32, 128>}]} {
    %c0_i32 = arith.constant 0 : i32
    %0 = arith.cmpi eq, %arg2, %c0_i32 : i32
    %1 = arith.extui %0 : i1 to i32
    %c0_i32_0 = arith.constant 0 : i32
    %2 = arith.cmpi ne, %1, %c0_i32_0 : i32
    scf.if %2 {
      %cst_10 = arith.constant 0.000000e+00 : f32
      %12 = vector.broadcast %cst_10 : f32 to vector<32x128xf32>
      %c0_11 = arith.constant 0 : index
      %c0_12 = arith.constant 0 : index
      %13 = vector.load %arg7[%c0_11, %c0_12] : memref<32x128xf32, #tpu.memory_space<vmem>>, vector<32x128xf32>
      tpu.vector_store %arg7[%c0_11, %c0_12], %12 {strides = array<i32>} : memref<32x128xf32, #tpu.memory_space<vmem>>, vector<32x128xf32>,
    } else {
    }
    %c0 = arith.constant 0 : index
    %c0_1 = arith.constant 0 : index
    %3 = vector.load %arg3[%c0, %c0_1] : memref<32x128xbf16, #tpu.memory_space<vmem>>, vector<32x128xbf16>
    %c0_2 = arith.constant 0 : index
    %c0_3 = arith.constant 0 : index
    %4 = vector.load %arg7[%c0_2, %c0_3] : memref<32x128xf32, #tpu.memory_space<vmem>>, vector<32x128xf32>
    %c0_4 = arith.constant 0 : index
    %c0_5 = arith.constant 0 : index
    %5 = vector.load %arg4[%c0_4, %c0_5] : memref<128x128xbf16, #tpu.memory_space<vmem>>, vector<128x128xbf16>
    %cst = arith.constant dense<0.000000e+00> : vector<32x128xf32>
    %6 = tpu.matmul %3, %5, %cst {dimension_numbers = #tpu.dot_dimension_numbers<[1], [0], [0], [1], [0, 0, 1, 1], [], []>} : vector<32x128xbf16>, vector<128x128xbf16>, vector<32x128xf32> -> vector<32x128xf32>
    %7 = arith.addf %4, %6 : vector<32x128xf32>
    %c0_6 = arith.constant 0 : index
    %c0_7 = arith.constant 0 : index
    %8 = vector.load %arg7[%c0_6, %c0_7] : memref<32x128xf32, #tpu.memory_space<vmem>>, vector<32x128xf32>
    tpu.vector_store %arg7[%c0_6, %c0_7], %7 {strides = array<i32>} : memref<32x128xf32, #tpu.memory_space<vmem>>, vector<32x128xf32>,
    %c0_i32_8 = arith.constant 0 : i32
    %9 = arith.cmpi eq, %arg2, %c0_i32_8 : i32
    %10 = arith.extui %9 : i1 to i32
    %c0_i32_9 = arith.constant 0 : i32
    %11 = arith.cmpi ne, %10, %c0_i32_9 : i32
    scf.if %11 {
      %c0_10 = arith.constant 0 : index
      %c0_11 = arith.constant 0 : index
      %12 = vector.load %arg7[%c0_10, %c0_11] : memref<32x128xf32, #tpu.memory_space<vmem>>, vector<32x128xf32>
      %c0_12 = arith.constant 0 : index
      %c0_13 = arith.constant 0 : index
      %13 = vector.load %arg5[%c0_12, %c0_13] : memref<1x128xf32, #tpu.memory_space<vmem>>, vector<1x128xf32>
      %14 = vector.broadcast %13 : vector<1x128xf32> to vector<32x128xf32>
      %15 = arith.addf %12, %14 : vector<32x128xf32>
      %c0_14 = arith.constant 0 : index
      %c0_15 = arith.constant 0 : index
      %16 = vector.load %arg6[%c0_14, %c0_15] : memref<32x128xf32, #tpu.memory_space<vmem>>, vector<32x128xf32>
      tpu.vector_store %arg6[%c0_14, %c0_15], %15 {strides = array<i32>} : memref<32x128xf32, #tpu.memory_space<vmem>>, vector<32x128xf32>,
    } else {
    }
    return
  }
  func.func @transform_0(%arg0: i32, %arg1: i32, %arg2: i32) -> (i32, i32) {
    %c0_i32 = arith.constant 0 : i32
    return %arg0, %arg2 : i32, i32
  }
  func.func @transform_1(%arg0: i32, %arg1: i32, %arg2: i32) -> (i32, i32) {
    %c0_i32 = arith.constant 0 : i32
    return %arg2, %arg1 : i32, i32
  }
  func.func @transform_2(%arg0: i32, %arg1: i32, %arg2: i32) -> (i32, i32) {
    %c0_i32 = arith.constant 0 : i32
    %c0_i32_0 = arith.constant 0 : i32
    return %c0_i32, %arg1 : i32, i32
  }
  func.func @transform_3(%arg0: i32, %arg1: i32, %arg2: i32) -> (i32, i32) {
    %c0_i32 = arith.constant 0 : i32
    return %arg0, %arg1 : i32, i32
  }
}

</mosaic_0001>

<llo_original>
// kernel: cross_mha_forward.10
$region0: #{cross_mha_forward.10}
  #allocation0 [shape = 'u32[]', space=smem, size = 0x4, offset = 0x4, fixed_abs, tag = 'smem constant byte address 0x4 - core index']
  #allocation1 [shape = 'u32[144,128]{1,0:T(1,128)}', space=vmem, size = 0x12000, scoped, tag = 'internal scratch']
  #allocation2 [shape = 'f32[2,128]{1,0:T(2,128)}', space=vmem, size = 0x400, scoped, tag = 'scratch operand']
  #allocation3 [shape = 'f32[2,128]{1,0:T(2,128)}', space=vmem, size = 0x400, scoped, tag = 'scratch operand']
  #allocation4 [shape = 'f32[2,128]{1,0:T(2,128)}', space=vmem, size = 0x400, scoped, tag = 'scratch operand']
  %s0 = inlined_call_operand.vmem [shape: f32[2,128], index: 0, kind: input, shape index: {}]
  %s1 = inlined_call_operand.vmem [shape: bf16[128,128], index: 1, kind: input, shape index: {}]
  %s2 = inlined_call_operand.hbm [shape: bf16[128,128], index: 2, kind: input, shape index: {}]
  %s3 = inlined_call_operand.hbm [shape: bf16[128,128], index: 3, kind: input, shape index: {}]
  %s4 = inlined_call_operand.vmem [shape: f32[1,128], index: 4, kind: input, shape index: {}]
  %s5 = inlined_call_operand.vmem [shape: f32[1,128], index: 5, kind: input, shape index: {}]
  %s6 = inlined_call_operand.vmem [shape: f32[1,128], index: 6, kind: input, shape index: {}]
  %s7 = inlined_call_operand.vmem [shape: bf16[2,128], index: 7, kind: output, shape index: {0}]
  %s8 = inlined_call_operand.vmem [shape: bf16[2,128], index: 8, kind: output, shape index: {1}]
  %s9 = inlined_call_operand.vmem [shape: bf16[2,128], index: 9, kind: output, shape index: {2}]
  %10 = xla_tuple %s7, %s8, %s9
  %s11 = sld [smem:[#allocation0]]
  $region70: #{cross_mha_forward.10} parent=0
    _
  %s13 = ssub.s32 1, %s11
  %s14 = scalar_select 0, %s13, %s11
  $region1: #{cross_mha_forward.10} parent=0
    #allocation5 [shape = 'u8[32768]{0}', space=vmem, size = 0x8000, scoped, tag = 'input window, operand 2, single buffered']
    #allocation6 [shape = 's32[1]{0}', space=sflag, size = 0x4, scoped, tag = 'scoped memory for cross_mha_forward.10']
    #allocation7 [shape = 'u8[32768]{0}', space=vmem, size = 0x8000, scoped, tag = 'input window, operand 3, single buffered']
    #allocation8 [shape = 's32[1]{0}', space=sflag, size = 0x4, scoped, tag = 'scoped memory for cross_mha_forward.10']
    %15 = vsyncpa [#allocation6], 0
    %16 = vsyncpa [#allocation8], 0
    // Predicated region
    $region2: #{cross_mha_forward.10} parent=1 // pred_check
      _
    $region3: #{cross_mha_forward.10} parent=1 // pred_check_branch
      %18 = sbr.rel (0) target = $region5
    $region4: #{cross_mha_forward.10} parent=1 // pred_region
      _
    $region5: #{cross_mha_forward.10} parent=1 // pred_fallthru
      _
    // Predicated region
    $region6: #{cross_mha_forward.10} parent=1 // pred_check
      _
    $region7: #{cross_mha_forward.10} parent=1 // pred_check_branch
      %20 = sbr.rel (0) target = $region9
    $region8: #{cross_mha_forward.10} parent=1 // pred_region
      _
    $region9: #{cross_mha_forward.10} parent=1 // pred_fallthru
      _
    // Predicated region
    $region10: #{cross_mha_forward.10} parent=1 // pred_check
      _
    $region11: #{cross_mha_forward.10} parent=1 // pred_check_branch
      %22 = sbr.rel (0) target = $region13
    $region12: #{cross_mha_forward.10} parent=1 // pred_region
      %s24 = ssub.s32 1024, 1024
      %25 = vsyncadd [#allocation6], %s24
      %s26 = sshll.u32 [#allocation5], 4
      %s27 = int_to_ptr.vmem [resolvable:$true] %s26
      %32 = dma.hbm_to_vmem [thread:$0]  %s2, 1024, %s27, [#allocation6], 64, 64, 4
    $region13: #{cross_mha_forward.10} parent=1 // pred_fallthru
      _
    // Predicated region
    $region14: #{cross_mha_forward.10} parent=1 // pred_check
      _
    $region15: #{cross_mha_forward.10} parent=1 // pred_check_branch
      %34 = sbr.rel (0) target = $region17
    $region16: #{cross_mha_forward.10} parent=1 // pred_region
      %s36 = ssub.s32 1024, 1024
      %37 = vsyncadd [#allocation8], %s36
      %s38 = sshll.u32 [#allocation7], 4
      %s39 = int_to_ptr.vmem [resolvable:$true] %s38
      %44 = dma.hbm_to_vmem [thread:$0]  %s3, 1024, %s39, [#allocation8], 64, 64, 4
    $region17: #{cross_mha_forward.10} parent=1 // pred_fallthru
      _
    // Predicated region
    $region18: #{cross_mha_forward.10} parent=1 // pred_check
      _
    $region19: #{cross_mha_forward.10} parent=1 // pred_check_branch
      %46 = sbr.rel (0) target = $region21
    $region20: #{cross_mha_forward.10} parent=1 // pred_region
      _
    $region21: #{cross_mha_forward.10} parent=1 // pred_fallthru
      _
    // Predicated region
    $region22: #{cross_mha_forward.10} parent=1 // pred_check
      _
    $region23: #{cross_mha_forward.10} parent=1 // pred_check_branch
      %48 = sbr.rel (0) target = $region25
    $region24: #{cross_mha_forward.10} parent=1 // pred_region
      _
    $region25: #{cross_mha_forward.10} parent=1 // pred_fallthru
      _
    // Predicated region
    $region26: #{cross_mha_forward.10} parent=1 // pred_check
      _
    $region27: #{cross_mha_forward.10} parent=1 // pred_check_branch
      %50 = sbr.rel (0) target = $region29
    $region28: #{cross_mha_forward.10} parent=1 // pred_region
      _
    $region29: #{cross_mha_forward.10} parent=1 // pred_fallthru
      _
    // Predicated region
    $region30: #{cross_mha_forward.10} parent=1 // pred_check
      _
    $region31: #{cross_mha_forward.10} parent=1 // pred_check_branch
      %52 = sbr.rel (0) target = $region33
    $region32: #{cross_mha_forward.10} parent=1 // pred_region
      %53 = dma.done [#allocation6], 1024
    $region33: #{cross_mha_forward.10} parent=1 // pred_fallthru
      _
    // Predicated region
    $region34: #{cross_mha_forward.10} parent=1 // pred_check
      _
    $region35: #{cross_mha_forward.10} parent=1 // pred_check_branch
      %55 = sbr.rel (0) target = $region37
    $region36: #{cross_mha_forward.10} parent=1 // pred_region
      %56 = dma.done [#allocation8], 1024
    $region37: #{cross_mha_forward.10} parent=1 // pred_fallthru
      _
    %p58 = scmp.eq.s32.totalorder 0, 0
    // Predicated region
    $region38: #{cross_mha_forward.10} parent=1 // pred_check
      %p59 = pneg %p58
    $region39: #{cross_mha_forward.10} parent=1 // pred_check_branch
      %61 = sbr.rel (%p59) target = $region41
    $region40: #{cross_mha_forward.10} parent=1 // pred_region
      %62 = vst [vmem:[#allocation2] sm:$0x3] 0.0
      %63 = vst [vmem:[#allocation3] sm:$0x3] 0.0
      %64 = vst [vmem:[#allocation4] sm:$0x3] 0.0
    $region41: #{cross_mha_forward.10} parent=1 // pred_fallthru
      _
    %v65 = vld [vmem:[%s0] sm:$0x3]
    %v66 = vpack.c.bf16 %v65, %v65
    %v67 = vld [vmem:[#allocation2] sm:$0x3]
    %v68 = vld [vmem:[%s1] sm:$0xf]
    %v69 = vld [vmem:[%s1 + $0x4] sm:$0xf]
    %v70 = vld [vmem:[%s1 + $0x8] sm:$0xf]
    %v71 = vld [vmem:[%s1 + $0xc] sm:$0xf]
    %v72 = vld [vmem:[%s1 + $0x10] sm:$0xf]
    %v73 = vld [vmem:[%s1 + $0x14] sm:$0xf]
    %v74 = vld [vmem:[%s1 + $0x18] sm:$0xf]
    %v75 = vld [vmem:[%s1 + $0x1c] sm:$0xf]
    %v76 = vld [vmem:[%s1 + $0x20] sm:$0xf]
    %v77 = vld [vmem:[%s1 + $0x24] sm:$0xf]
    %v78 = vld [vmem:[%s1 + $0x28] sm:$0xf]
    %v79 = vld [vmem:[%s1 + $0x2c] sm:$0xf]
    %v80 = vld [vmem:[%s1 + $0x30] sm:$0xf]
    %v81 = vld [vmem:[%s1 + $0x34] sm:$0xf]
    %v82 = vld [vmem:[%s1 + $0x38] sm:$0xf]
    %v83 = vld [vmem:[%s1 + $0x3c] sm:$0xf]
    %v100 = vunpack.c.l.b16 %v68
    %v101 = vunpack.c.l.b16 %v69
    %v102 = vunpack.c.l.b16 %v70
    %v103 = vunpack.c.l.b16 %v71
    %v104 = vunpack.c.l.b16 %v72
    %v105 = vunpack.c.l.b16 %v73
    %v106 = vunpack.c.l.b16 %v74
    %v107 = vunpack.c.l.b16 %v75
    %v108 = vunpack.c.l.b16 %v76
    %v109 = vunpack.c.l.b16 %v77
    %v110 = vunpack.c.l.b16 %v78
    %v111 = vunpack.c.l.b16 %v79
    %v112 = vunpack.c.l.b16 %v80
    %v113 = vunpack.c.l.b16 %v81
    %v114 = vunpack.c.l.b16 %v82
    %v115 = vunpack.c.l.b16 %v83
    %v116 = vpack.c.b16 %v101, %v100
    %v117 = vpack.c.b16 %v103, %v102
    %v118 = vpack.c.b16 %v105, %v104
    %v119 = vpack.c.b16 %v107, %v106
    %v120 = vpack.c.b16 %v109, %v108
    %v121 = vpack.c.b16 %v111, %v110
    %v122 = vpack.c.b16 %v113, %v112
    %v123 = vpack.c.b16 %v115, %v114
    %132 = vmatprep.subr.bf16.mxu0 0
    %133 = vmatpush1.bf16.msra.mxu0 %v116
    %134 = vmatprep.subr.bf16.mxu0 0
    %135 = vmatpush1.bf16.msra.mxu0 %v117
    %136 = vmatprep.subr.bf16.mxu0 0
    %137 = vmatpush1.bf16.msra.mxu0 %v118
    %138 = vmatprep.subr.bf16.mxu0 0
    %139 = vmatpush1.bf16.msra.mxu0 %v119
    %140 = vmatprep.subr.bf16.mxu0 0
    %141 = vmatpush1.bf16.msra.mxu0 %v120
    %142 = vmatprep.subr.bf16.mxu0 0
    %143 = vmatpush1.bf16.msra.mxu0 %v121
    %144 = vmatprep.subr.bf16.mxu0 0
    %145 = vmatpush1.bf16.msra.mxu0 %v122
    %146 = vmatprep.subr.bf16.mxu0 0
    %147 = vmatpush1.bf16.msra.mxu0 %v123
    %148 = vmatprep.subr.bf16.mxu0 0
    %149 = vmatpush1.bf16.msra.mxu0 0
    %150 = vmatprep.subr.bf16.mxu0 0
    %151 = vmatpush1.bf16.msra.mxu0 0
    %152 = vmatprep.subr.bf16.mxu0 0
    %153 = vmatpush1.bf16.msra.mxu0 0
    %154 = vmatprep.subr.bf16.mxu0 0
    %155 = vmatpush1.bf16.msra.mxu0 0
    %156 = vmatprep.subr.bf16.mxu0 0
    %157 = vmatpush1.bf16.msra.mxu0 0
    %158 = vmatprep.subr.bf16.mxu0 0
    %159 = vmatpush1.bf16.msra.mxu0 0
    %160 = vmatprep.subr.bf16.mxu0 0
    %161 = vmatpush1.bf16.msra.mxu0 0
    %162 = vmatprep.subr.bf16.mxu0 0
    %163 = vmatpush1.bf16.msra.mxu0 0
    %164 = vmatprep.mubr.bf16.mxu0 0
    %165 = vmatmul.mubr.bf16.gmra.mrb[0].mxu0 %v66
    %v166 = vpop.f32.mrb[0].mxu0
    %v167 = vadd.f32 0.0, %v166
    %v168 = vpop.f32.mrb[0].mxu0
    %v169 = vpop.f32.mrb[0].mxu0
    %v170 = vpop.f32.mrb[0].mxu0
    %171 = vdwg.mxu0
    %v172 = vadd.f32 %v67, %v167
    %173 = vst [vmem:[#allocation2] sm:$0x3] %v172
    %v174 = vld [vmem:[#allocation3] sm:$0x3]
    %v175 = vld [vmem:[#allocation5] sm:$0xf]
    %v176 = vld [vmem:[#allocation5 + $0x4] sm:$0xf]
    %v177 = vld [vmem:[#allocation5 + $0x8] sm:$0xf]
    %v178 = vld [vmem:[#allocation5 + $0xc] sm:$0xf]
    %v179 = vld [vmem:[#allocation5 + $0x10] sm:$0xf]
    %v180 = vld [vmem:[#allocation5 + $0x14] sm:$0xf]
    %v181 = vld [vmem:[#allocation5 + $0x18] sm:$0xf]
    %v182 = vld [vmem:[#allocation5 + $0x1c] sm:$0xf]
    %v183 = vld [vmem:[#allocation5 + $0x20] sm:$0xf]
    %v184 = vld [vmem:[#allocation5 + $0x24] sm:$0xf]
    %v185 = vld [vmem:[#allocation5 + $0x28] sm:$0xf]
    %v186 = vld [vmem:[#allocation5 + $0x2c] sm:$0xf]
    %v187 = vld [vmem:[#allocation5 + $0x30] sm:$0xf]
    %v188 = vld [vmem:[#allocation5 + $0x34] sm:$0xf]
    %v189 = vld [vmem:[#allocation5 + $0x38] sm:$0xf]
    %v190 = vld [vmem:[#allocation5 + $0x3c] sm:$0xf]
    %v207 = vunpack.c.l.b16 %v175
    %v208 = vunpack.c.l.b16 %v176
    %v209 = vunpack.c.l.b16 %v177
    %v210 = vunpack.c.l.b16 %v178
    %v211 = vunpack.c.l.b16 %v179
    %v212 = vunpack.c.l.b16 %v180
    %v213 = vunpack.c.l.b16 %v181
    %v214 = vunpack.c.l.b16 %v182
    %v215 = vunpack.c.l.b16 %v183
    %v216 = vunpack.c.l.b16 %v184
    %v217 = vunpack.c.l.b16 %v185
    %v218 = vunpack.c.l.b16 %v186
    %v219 = vunpack.c.l.b16 %v187
    %v220 = vunpack.c.l.b16 %v188
    %v221 = vunpack.c.l.b16 %v189
    %v222 = vunpack.c.l.b16 %v190
    %v223 = vpack.c.b16 %v208, %v207
    %v224 = vpack.c.b16 %v210, %v209
    %v225 = vpack.c.b16 %v212, %v211
    %v226 = vpack.c.b16 %v214, %v213
    %v227 = vpack.c.b16 %v216, %v215
    %v228 = vpack.c.b16 %v218, %v217
    %v229 = vpack.c.b16 %v220, %v219
    %v230 = vpack.c.b16 %v222, %v221
    %239 = vmatprep.subr.bf16.mxu0 0
    %240 = vmatpush1.bf16.msra.mxu0 %v223
    %241 = vmatprep.subr.bf16.mxu0 0
    %242 = vmatpush1.bf16.msra.mxu0 %v224
    %243 = vmatprep.subr.bf16.mxu0 0
    %244 = vmatpush1.bf16.msra.mxu0 %v225
    %245 = vmatprep.subr.bf16.mxu0 0
    %246 = vmatpush1.bf16.msra.mxu0 %v226
    %247 = vmatprep.subr.bf16.mxu0 0
    %248 = vmatpush1.bf16.msra.mxu0 %v227
    %249 = vmatprep.subr.bf16.mxu0 0
    %250 = vmatpush1.bf16.msra.mxu0 %v228
    %251 = vmatprep.subr.bf16.mxu0 0
    %252 = vmatpush1.bf16.msra.mxu0 %v229
    %253 = vmatprep.subr.bf16.mxu0 0
    %254 = vmatpush1.bf16.msra.mxu0 %v230
    %255 = vmatprep.subr.bf16.mxu0 0
    %256 = vmatpush1.bf16.msra.mxu0 0
    %257 = vmatprep.subr.bf16.mxu0 0
    %258 = vmatpush1.bf16.msra.mxu0 0
    %259 = vmatprep.subr.bf16.mxu0 0
    %260 = vmatpush1.bf16.msra.mxu0 0
    %261 = vmatprep.subr.bf16.mxu0 0
    %262 = vmatpush1.bf16.msra.mxu0 0
    %263 = vmatprep.subr.bf16.mxu0 0
    %264 = vmatpush1.bf16.msra.mxu0 0
    %265 = vmatprep.subr.bf16.mxu0 0
    %266 = vmatpush1.bf16.msra.mxu0 0
    %267 = vmatprep.subr.bf16.mxu0 0
    %268 = vmatpush1.bf16.msra.mxu0 0
    %269 = vmatprep.subr.bf16.mxu0 0
    %270 = vmatpush1.bf16.msra.mxu0 0
    %271 = vmatprep.mubr.bf16.mxu0 0
    %272 = vmatmul.mubr.bf16.gmra.mrb[0].mxu0 %v66
    %v273 = vpop.f32.mrb[0].mxu0
    %v274 = vadd.f32 0.0, %v273
    %v275 = vpop.f32.mrb[0].mxu0
    %v276 = vpop.f32.mrb[0].mxu0
    %v277 = vpop.f32.mrb[0].mxu0
    %278 = vdwg.mxu0
    %v279 = vadd.f32 %v174, %v274
    %280 = vst [vmem:[#allocation3] sm:$0x3] %v279
    %v281 = vld [vmem:[#allocation4] sm:$0x3]
    %v282 = vld [vmem:[#allocation7] sm:$0xf]
    %v283 = vld [vmem:[#allocation7 + $0x4] sm:$0xf]
    %v284 = vld [vmem:[#allocation7 + $0x8] sm:$0xf]
    %v285 = vld [vmem:[#allocation7 + $0xc] sm:$0xf]
    %v286 = vld [vmem:[#allocation7 + $0x10] sm:$0xf]
    %v287 = vld [vmem:[#allocation7 + $0x14] sm:$0xf]
    %v288 = vld [vmem:[#allocation7 + $0x18] sm:$0xf]
    %v289 = vld [vmem:[#allocation7 + $0x1c] sm:$0xf]
    %v290 = vld [vmem:[#allocation7 + $0x20] sm:$0xf]
    %v291 = vld [vmem:[#allocation7 + $0x24] sm:$0xf]
    %v292 = vld [vmem:[#allocation7 + $0x28] sm:$0xf]
    %v293 = vld [vmem:[#allocation7 + $0x2c] sm:$0xf]
    %v294 = vld [vmem:[#allocation7 + $0x30] sm:$0xf]
    %v295 = vld [vmem:[#allocation7 + $0x34] sm:$0xf]
    %v296 = vld [vmem:[#allocation7 + $0x38] sm:$0xf]
    %v297 = vld [vmem:[#allocation7 + $0x3c] sm:$0xf]
    %v314 = vunpack.c.l.b16 %v282
    %v315 = vunpack.c.l.b16 %v283
    %v316 = vunpack.c.l.b16 %v284
    %v317 = vunpack.c.l.b16 %v285
    %v318 = vunpack.c.l.b16 %v286
    %v319 = vunpack.c.l.b16 %v287
    %v320 = vunpack.c.l.b16 %v288
    %v321 = vunpack.c.l.b16 %v289
    %v322 = vunpack.c.l.b16 %v290
    %v323 = vunpack.c.l.b16 %v291
    %v324 = vunpack.c.l.b16 %v292
    %v325 = vunpack.c.l.b16 %v293
    %v326 = vunpack.c.l.b16 %v294
    %v327 = vunpack.c.l.b16 %v295
    %v328 = vunpack.c.l.b16 %v296
    %v329 = vunpack.c.l.b16 %v297
    %v330 = vpack.c.b16 %v315, %v314
    %v331 = vpack.c.b16 %v317, %v316
    %v332 = vpack.c.b16 %v319, %v318
    %v333 = vpack.c.b16 %v321, %v320
    %v334 = vpack.c.b16 %v323, %v322
    %v335 = vpack.c.b16 %v325, %v324
    %v336 = vpack.c.b16 %v327, %v326
    %v337 = vpack.c.b16 %v329, %v328
    %346 = vmatprep.subr.bf16.mxu0 0
    %347 = vmatpush1.bf16.msra.mxu0 %v330
    %348 = vmatprep.subr.bf16.mxu0 0
    %349 = vmatpush1.bf16.msra.mxu0 %v331
    %350 = vmatprep.subr.bf16.mxu0 0
    %351 = vmatpush1.bf16.msra.mxu0 %v332
    %352 = vmatprep.subr.bf16.mxu0 0
    %353 = vmatpush1.bf16.msra.mxu0 %v333
    %354 = vmatprep.subr.bf16.mxu0 0
    %355 = vmatpush1.bf16.msra.mxu0 %v334
    %356 = vmatprep.subr.bf16.mxu0 0
    %357 = vmatpush1.bf16.msra.mxu0 %v335
    %358 = vmatprep.subr.bf16.mxu0 0
    %359 = vmatpush1.bf16.msra.mxu0 %v336
    %360 = vmatprep.subr.bf16.mxu0 0
    %361 = vmatpush1.bf16.msra.mxu0 %v337
    %362 = vmatprep.subr.bf16.mxu0 0
    %363 = vmatpush1.bf16.msra.mxu0 0
    %364 = vmatprep.subr.bf16.mxu0 0
    %365 = vmatpush1.bf16.msra.mxu0 0
    %366 = vmatprep.subr.bf16.mxu0 0
    %367 = vmatpush1.bf16.msra.mxu0 0
    %368 = vmatprep.subr.bf16.mxu0 0
    %369 = vmatpush1.bf16.msra.mxu0 0
    %370 = vmatprep.subr.bf16.mxu0 0
    %371 = vmatpush1.bf16.msra.mxu0 0
    %372 = vmatprep.subr.bf16.mxu0 0
    %373 = vmatpush1.bf16.msra.mxu0 0
    %374 = vmatprep.subr.bf16.mxu0 0
    %375 = vmatpush1.bf16.msra.mxu0 0
    %376 = vmatprep.subr.bf16.mxu0 0
    %377 = vmatpush1.bf16.msra.mxu0 0
    %378 = vmatprep.mubr.bf16.mxu0 0
    %379 = vmatmul.mubr.bf16.gmra.mrb[0].mxu0 %v66
    %v380 = vpop.f32.mrb[0].mxu0
    %v381 = vadd.f32 0.0, %v380
    %v382 = vpop.f32.mrb[0].mxu0
    %v383 = vpop.f32.mrb[0].mxu0
    %v384 = vpop.f32.mrb[0].mxu0
    %385 = vdwg.mxu0
    %v386 = vadd.f32 %v281, %v381
    %387 = vst [vmem:[#allocation4] sm:$0x3] %v386
    // Predicated region
    $region42: #{cross_mha_forward.10} parent=1 // pred_check
      %p388 = pneg %p58
    $region43: #{cross_mha_forward.10} parent=1 // pred_check_branch
      %390 = sbr.rel (%p388) target = $region45
    $region44: #{cross_mha_forward.10} parent=1 // pred_region
      %v391 = vld [vmem:[#allocation2] sm:$0x3]
      %v392 = vld [vmem:[%s4] sm:$0x1]
      %v394 = vlaneseq
      %v395 = vshrl.u32 %v394, 7
      %v396 = vsub.s32 0, %v395
      %v397 = vrot.slane %v392, %v396
      %v399 = vadd.f32 %v391, %v397
      %v400 = vpack.c.bf16 %v399, %v399
      %401 = vst [vmem:[%s7] sm:$0x1] %v400
      %v402 = vld [vmem:[#allocation3] sm:$0x3]
      %v403 = vld [vmem:[%s5] sm:$0x1]
      %v405 = vlaneseq
      %v406 = vshrl.u32 %v405, 7
      %v407 = vsub.s32 0, %v406
      %v408 = vrot.slane %v403, %v407
      %v410 = vadd.f32 %v402, %v408
      %v411 = vpack.c.bf16 %v410, %v410
      %412 = vst [vmem:[%s8] sm:$0x1] %v411
      %v413 = vld [vmem:[#allocation4] sm:$0x3]
      %v414 = vld [vmem:[%s6] sm:$0x1]
      %v416 = vlaneseq
      %v417 = vshrl.u32 %v416, 7
      %v418 = vsub.s32 0, %v417
      %v419 = vrot.slane %v414, %v418
      %v421 = vadd.f32 %v413, %v419
      %v422 = vpack.c.bf16 %v421, %v421
      %423 = vst [vmem:[%s9] sm:$0x1] %v422
    $region45: #{cross_mha_forward.10} parent=1 // pred_fallthru
      _
    // Predicated region
    $region46: #{cross_mha_forward.10} parent=1 // pred_check
      _
    $region47: #{cross_mha_forward.10} parent=1 // pred_check_branch
      %425 = sbr.rel (0) target = $region49
    $region48: #{cross_mha_forward.10} parent=1 // pred_region
      _
    $region49: #{cross_mha_forward.10} parent=1 // pred_fallthru
      _
    // Predicated region
    $region50: #{cross_mha_forward.10} parent=1 // pred_check
      _
    $region51: #{cross_mha_forward.10} parent=1 // pred_check_branch
      %427 = sbr.rel (0) target = $region53
    $region52: #{cross_mha_forward.10} parent=1 // pred_region
      _
    $region53: #{cross_mha_forward.10} parent=1 // pred_fallthru
      _
    // Predicated region
    $region54: #{cross_mha_forward.10} parent=1 // pred_check
      _
    $region55: #{cross_mha_forward.10} parent=1 // pred_check_branch
      %429 = sbr.rel (0) target = $region57
    $region56: #{cross_mha_forward.10} parent=1 // pred_region
      _
    $region57: #{cross_mha_forward.10} parent=1 // pred_fallthru
      _
    // Predicated region
    $region58: #{cross_mha_forward.10} parent=1 // pred_check
      _
    $region59: #{cross_mha_forward.10} parent=1 // pred_check_branch
      %431 = sbr.rel (0) target = $region61
    $region60: #{cross_mha_forward.10} parent=1 // pred_region
      _
    $region61: #{cross_mha_forward.10} parent=1 // pred_fallthru
      _
    // Predicated region
    $region62: #{cross_mha_forward.10} parent=1 // pred_check
      _
    $region63: #{cross_mha_forward.10} parent=1 // pred_check_branch
      %433 = sbr.rel (0) target = $region65
    $region64: #{cross_mha_forward.10} parent=1 // pred_region
      _
    $region65: #{cross_mha_forward.10} parent=1 // pred_fallthru
      _
    // Predicated region
    $region66: #{cross_mha_forward.10} parent=1 // pred_check
      _
    $region67: #{cross_mha_forward.10} parent=1 // pred_check_branch
      %435 = sbr.rel (0) target = $region69
    $region68: #{cross_mha_forward.10} parent=1 // pred_region
      _
    $region69: #{cross_mha_forward.10} parent=1 // pred_fallthru
      _
    %436 = vsyncpa [#allocation6], 1
    %437 = vsyncpa [#allocation8], 1

// kernel: cross_mha_forward.11
$region0: #{cross_mha_forward.11}
  #allocation0 [shape = 'u32[]', space=smem, size = 0x4, offset = 0x4, fixed_abs, tag = 'smem constant byte address 0x4 - core index']
  #allocation1 [shape = 'u32[144,128]{1,0:T(1,128)}', space=vmem, size = 0x12000, scoped, tag = 'internal scratch']
  #allocation2 [shape = 'f32[16,128]{1,0:T(8,128)}', space=vmem, size = 0x2000, scoped, tag = 'scratch operand']
  #allocation3 [shape = 'f32[16,128]{1,0:T(8,128)}', space=vmem, size = 0x2000, scoped, tag = 'scratch operand']
  #allocation4 [shape = 'f32[16,128]{1,0:T(8,128)}', space=vmem, size = 0x2000, scoped, tag = 'scratch operand']
  %s0 = inlined_call_operand.vmem [shape: f32[16,128], index: 0, kind: input, shape index: {}]
  %s1 = inlined_call_operand.vmem [shape: bf16[128,128], index: 1, kind: input, shape index: {}]
  %s2 = inlined_call_operand.vmem [shape: bf16[128,128], index: 2, kind: input, shape index: {}]
  %s3 = inlined_call_operand.vmem [shape: bf16[128,128], index: 3, kind: input, shape index: {}]
  %s4 = inlined_call_operand.vmem [shape: f32[1,128], index: 4, kind: input, shape index: {}]
  %s5 = inlined_call_operand.vmem [shape: f32[1,128], index: 5, kind: input, shape index: {}]
  %s6 = inlined_call_operand.vmem [shape: f32[1,128], index: 6, kind: input, shape index: {}]
  %s7 = inlined_call_operand.vmem [shape: bf16[16,128], index: 7, kind: output, shape index: {0}]
  %s8 = inlined_call_operand.vmem [shape: bf16[16,128], index: 8, kind: output, shape index: {1}]
  %s9 = inlined_call_operand.vmem [shape: bf16[16,128], index: 9, kind: output, shape index: {2}]
  %10 = xla_tuple %s7, %s8, %s9
  %s11 = sld [smem:[#allocation0]]
  $region62: #{cross_mha_forward.11} parent=0
    _
  %s13 = ssub.s32 1, %s11
  %s14 = scalar_select 0, %s13, %s11
  // Predicated region
  $region2: #{cross_mha_forward.11} parent=0 // pred_check
    _
  $region3: #{cross_mha_forward.11} parent=0 // pred_check_branch
    %16 = sbr.rel (0) target = $region5
  $region4: #{cross_mha_forward.11} parent=0 // pred_region
    _
  $region5: #{cross_mha_forward.11} parent=0 // pred_fallthru
    _
  // Predicated region
  $region6: #{cross_mha_forward.11} parent=0 // pred_check
    _
  $region7: #{cross_mha_forward.11} parent=0 // pred_check_branch
    %18 = sbr.rel (0) target = $region9
  $region8: #{cross_mha_forward.11} parent=0 // pred_region
    _
  $region9: #{cross_mha_forward.11} parent=0 // pred_fallthru
    _
  // Predicated region
  $region10: #{cross_mha_forward.11} parent=0 // pred_check
    _
  $region11: #{cross_mha_forward.11} parent=0 // pred_check_branch
    %20 = sbr.rel (0) target = $region13
  $region12: #{cross_mha_forward.11} parent=0 // pred_region
    _
  $region13: #{cross_mha_forward.11} parent=0 // pred_fallthru
    _
  // Predicated region
  $region14: #{cross_mha_forward.11} parent=0 // pred_check
    _
  $region15: #{cross_mha_forward.11} parent=0 // pred_check_branch
    %22 = sbr.rel (0) target = $region17
  $region16: #{cross_mha_forward.11} parent=0 // pred_region
    _
  $region17: #{cross_mha_forward.11} parent=0 // pred_fallthru
    _
  // Predicated region
  $region18: #{cross_mha_forward.11} parent=0 // pred_check
    _
  $region19: #{cross_mha_forward.11} parent=0 // pred_check_branch
    %24 = sbr.rel (0) target = $region21
  $region20: #{cross_mha_forward.11} parent=0 // pred_region
    _
  $region21: #{cross_mha_forward.11} parent=0 // pred_fallthru
    _
  // Predicated region
  $region22: #{cross_mha_forward.11} parent=0 // pred_check
    _
  $region23: #{cross_mha_forward.11} parent=0 // pred_check_branch
    %26 = sbr.rel (0) target = $region25
  $region24: #{cross_mha_forward.11} parent=0 // pred_region
    _
  $region25: #{cross_mha_forward.11} parent=0 // pred_fallthru
    _
  // Predicated region
  $region26: #{cross_mha_forward.11} parent=0 // pred_check
    _
  $region27: #{cross_mha_forward.11} parent=0 // pred_check_branch
    %28 = sbr.rel (0) target = $region29
  $region28: #{cross_mha_forward.11} parent=0 // pred_region
    _
  $region29: #{cross_mha_forward.11} parent=0 // pred_fallthru
    _
  %p30 = scmp.eq.s32.totalorder 0, 0
  // Predicated region
  $region30: #{cross_mha_forward.11} parent=0 // pred_check
    %p31 = pneg %p30
  $region31: #{cross_mha_forward.11} parent=0 // pred_check_branch
    %33 = sbr.rel (%p31) target = $region33
  $region32: #{cross_mha_forward.11} parent=0 // pred_region
    %34 = vst [vmem:[#allocation2] sm:$0xff] 0.0
    %35 = vst [vmem:[#allocation2 + $0x8] sm:$0xff] 0.0
    %36 = vst [vmem:[#allocation3] sm:$0xff] 0.0
    %37 = vst [vmem:[#allocation3 + $0x8] sm:$0xff] 0.0
    %38 = vst [vmem:[#allocation4] sm:$0xff] 0.0
    %39 = vst [vmem:[#allocation4 + $0x8] sm:$0xff] 0.0
  $region33: #{cross_mha_forward.11} parent=0 // pred_fallthru
    _
  %v40 = vld [vmem:[%s0] sm:$0xff]
  %v41 = vld [vmem:[%s0 + $0x8] sm:$0xff]
  %v42 = vpack.c.bf16 %v41, %v40
  %v43 = vld [vmem:[#allocation2] sm:$0xff]
  %v44 = vld [vmem:[#allocation2 + $0x8] sm:$0xff]
  %v45 = vld [vmem:[%s1] sm:$0xf]
  %v46 = vld [vmem:[%s1 + $0x4] sm:$0xf]
  %v47 = vld [vmem:[%s1 + $0x8] sm:$0xf]
  %v48 = vld [vmem:[%s1 + $0xc] sm:$0xf]
  %v49 = vld [vmem:[%s1 + $0x10] sm:$0xf]
  %v50 = vld [vmem:[%s1 + $0x14] sm:$0xf]
  %v51 = vld [vmem:[%s1 + $0x18] sm:$0xf]
  %v52 = vld [vmem:[%s1 + $0x1c] sm:$0xf]
  %v53 = vld [vmem:[%s1 + $0x20] sm:$0xf]
  %v54 = vld [vmem:[%s1 + $0x24] sm:$0xf]
  %v55 = vld [vmem:[%s1 + $0x28] sm:$0xf]
  %v56 = vld [vmem:[%s1 + $0x2c] sm:$0xf]
  %v57 = vld [vmem:[%s1 + $0x30] sm:$0xf]
  %v58 = vld [vmem:[%s1 + $0x34] sm:$0xf]
  %v59 = vld [vmem:[%s1 + $0x38] sm:$0xf]
  %v60 = vld [vmem:[%s1 + $0x3c] sm:$0xf]
  %v77 = vunpack.c.l.b16 %v45
  %v78 = vunpack.c.l.b16 %v46
  %v79 = vunpack.c.l.b16 %v47
  %v80 = vunpack.c.l.b16 %v48
  %v81 = vunpack.c.l.b16 %v49
  %v82 = vunpack.c.l.b16 %v50
  %v83 = vunpack.c.l.b16 %v51
  %v84 = vunpack.c.l.b16 %v52
  %v85 = vunpack.c.l.b16 %v53
  %v86 = vunpack.c.l.b16 %v54
  %v87 = vunpack.c.l.b16 %v55
  %v88 = vunpack.c.l.b16 %v56
  %v89 = vunpack.c.l.b16 %v57
  %v90 = vunpack.c.l.b16 %v58
  %v91 = vunpack.c.l.b16 %v59
  %v92 = vunpack.c.l.b16 %v60
  %v93 = vpack.c.b16 %v78, %v77
  %v94 = vpack.c.b16 %v80, %v79
  %v95 = vpack.c.b16 %v82, %v81
  %v96 = vpack.c.b16 %v84, %v83
  %v97 = vpack.c.b16 %v86, %v85
  %v98 = vpack.c.b16 %v88, %v87
  %v99 = vpack.c.b16 %v90, %v89
  %v100 = vpack.c.b16 %v92, %v91
  %109 = vmatprep.subr.bf16.mxu0 0
  %110 = vmatpush1.bf16.msra.mxu0 %v93
  %111 = vmatprep.subr.bf16.mxu0 0
  %112 = vmatpush1.bf16.msra.mxu0 %v94
  %113 = vmatprep.subr.bf16.mxu0 0
  %114 = vmatpush1.bf16.msra.mxu0 %v95
  %115 = vmatprep.subr.bf16.mxu0 0
  %116 = vmatpush1.bf16.msra.mxu0 %v96
  %117 = vmatprep.subr.bf16.mxu0 0
  %118 = vmatpush1.bf16.msra.mxu0 %v97
  %119 = vmatprep.subr.bf16.mxu0 0
  %120 = vmatpush1.bf16.msra.mxu0 %v98
  %121 = vmatprep.subr.bf16.mxu0 0
  %122 = vmatpush1.bf16.msra.mxu0 %v99
  %123 = vmatprep.subr.bf16.mxu0 0
  %124 = vmatpush1.bf16.msra.mxu0 %v100
  %125 = vmatprep.subr.bf16.mxu0 0
  %126 = vmatpush1.bf16.msra.mxu0 0
  %127 = vmatprep.subr.bf16.mxu0 0
  %128 = vmatpush1.bf16.msra.mxu0 0
  %129 = vmatprep.subr.bf16.mxu0 0
  %130 = vmatpush1.bf16.msra.mxu0 0
  %131 = vmatprep.subr.bf16.mxu0 0
  %132 = vmatpush1.bf16.msra.mxu0 0
  %133 = vmatprep.subr.bf16.mxu0 0
  %134 = vmatpush1.bf16.msra.mxu0 0
  %135 = vmatprep.subr.bf16.mxu0 0
  %136 = vmatpush1.bf16.msra.mxu0 0
  %137 = vmatprep.subr.bf16.mxu0 0
  %138 = vmatpush1.bf16.msra.mxu0 0
  %139 = vmatprep.subr.bf16.mxu0 0
  %140 = vmatpush1.bf16.msra.mxu0 0
  %141 = vmatprep.mubr.bf16.mxu0 0
  %142 = vmatmul.mubr.bf16.gmra.mrb[0].mxu0 %v42
  %v143 = vpop.f32.mrb[0].mxu0
  %v144 = vadd.f32 0.0, %v143
  %v145 = vpop.f32.mrb[0].mxu0
  %v146 = vpop.f32.mrb[0].mxu0
  %v147 = vadd.f32 0.0, %v146
  %v148 = vpop.f32.mrb[0].mxu0
  %149 = vdwg.mxu0
  %v150 = vadd.f32 %v43, %v144
  %v151 = vadd.f32 %v44, %v147
  %152 = vst [vmem:[#allocation2] sm:$0xff] %v150
  %153 = vst [vmem:[#allocation2 + $0x8] sm:$0xff] %v151
  %v154 = vld [vmem:[#allocation3] sm:$0xff]
  %v155 = vld [vmem:[#allocation3 + $0x8] sm:$0xff]
  %v156 = vld [vmem:[%s2] sm:$0xf]
  %v157 = vld [vmem:[%s2 + $0x4] sm:$0xf]
  %v158 = vld [vmem:[%s2 + $0x8] sm:$0xf]
  %v159 = vld [vmem:[%s2 + $0xc] sm:$0xf]
  %v160 = vld [vmem:[%s2 + $0x10] sm:$0xf]
  %v161 = vld [vmem:[%s2 + $0x14] sm:$0xf]
  %v162 = vld [vmem:[%s2 + $0x18] sm:$0xf]
  %v163 = vld [vmem:[%s2 + $0x1c] sm:$0xf]
  %v164 = vld [vmem:[%s2 + $0x20] sm:$0xf]
  %v165 = vld [vmem:[%s2 + $0x24] sm:$0xf]
  %v166 = vld [vmem:[%s2 + $0x28] sm:$0xf]
  %v167 = vld [vmem:[%s2 + $0x2c] sm:$0xf]
  %v168 = vld [vmem:[%s2 + $0x30] sm:$0xf]
  %v169 = vld [vmem:[%s2 + $0x34] sm:$0xf]
  %v170 = vld [vmem:[%s2 + $0x38] sm:$0xf]
  %v171 = vld [vmem:[%s2 + $0x3c] sm:$0xf]
  %v188 = vunpack.c.l.b16 %v156
  %v189 = vunpack.c.l.b16 %v157
  %v190 = vunpack.c.l.b16 %v158
  %v191 = vunpack.c.l.b16 %v159
  %v192 = vunpack.c.l.b16 %v160
  %v193 = vunpack.c.l.b16 %v161
  %v194 = vunpack.c.l.b16 %v162
  %v195 = vunpack.c.l.b16 %v163
  %v196 = vunpack.c.l.b16 %v164
  %v197 = vunpack.c.l.b16 %v165
  %v198 = vunpack.c.l.b16 %v166
  %v199 = vunpack.c.l.b16 %v167
  %v200 = vunpack.c.l.b16 %v168
  %v201 = vunpack.c.l.b16 %v169
  %v202 = vunpack.c.l.b16 %v170
  %v203 = vunpack.c.l.b16 %v171
  %v204 = vpack.c.b16 %v189, %v188
  %v205 = vpack.c.b16 %v191, %v190
  %v206 = vpack.c.b16 %v193, %v192
  %v207 = vpack.c.b16 %v195, %v194
  %v208 = vpack.c.b16 %v197, %v196
  %v209 = vpack.c.b16 %v199, %v198
  %v210 = vpack.c.b16 %v201, %v200
  %v211 = vpack.c.b16 %v203, %v202
  %220 = vmatprep.subr.bf16.mxu0 0
  %221 = vmatpush1.bf16.msra.mxu0 %v204
  %222 = vmatprep.subr.bf16.mxu0 0
  %223 = vmatpush1.bf16.msra.mxu0 %v205
  %224 = vmatprep.subr.bf16.mxu0 0
  %225 = vmatpush1.bf16.msra.mxu0 %v206
  %226 = vmatprep.subr.bf16.mxu0 0
  %227 = vmatpush1.bf16.msra.mxu0 %v207
  %228 = vmatprep.subr.bf16.mxu0 0
  %229 = vmatpush1.bf16.msra.mxu0 %v208
  %230 = vmatprep.subr.bf16.mxu0 0
  %231 = vmatpush1.bf16.msra.mxu0 %v209
  %232 = vmatprep.subr.bf16.mxu0 0
  %233 = vmatpush1.bf16.msra.mxu0 %v210
  %234 = vmatprep.subr.bf16.mxu0 0
  %235 = vmatpush1.bf16.msra.mxu0 %v211
  %236 = vmatprep.subr.bf16.mxu0 0
  %237 = vmatpush1.bf16.msra.mxu0 0
  %238 = vmatprep.subr.bf16.mxu0 0
  %239 = vmatpush1.bf16.msra.mxu0 0
  %240 = vmatprep.subr.bf16.mxu0 0
  %241 = vmatpush1.bf16.msra.mxu0 0
  %242 = vmatprep.subr.bf16.mxu0 0
  %243 = vmatpush1.bf16.msra.mxu0 0
  %244 = vmatprep.subr.bf16.mxu0 0
  %245 = vmatpush1.bf16.msra.mxu0 0
  %246 = vmatprep.subr.bf16.mxu0 0
  %247 = vmatpush1.bf16.msra.mxu0 0
  %248 = vmatprep.subr.bf16.mxu0 0
  %249 = vmatpush1.bf16.msra.mxu0 0
  %250 = vmatprep.subr.bf16.mxu0 0
  %251 = vmatpush1.bf16.msra.mxu0 0
  %252 = vmatprep.mubr.bf16.mxu0 0
  %253 = vmatmul.mubr.bf16.gmra.mrb[0].mxu0 %v42
  %v254 = vpop.f32.mrb[0].mxu0
  %v255 = vadd.f32 0.0, %v254
  %v256 = vpop.f32.mrb[0].mxu0
  %v257 = vpop.f32.mrb[0].mxu0
  %v258 = vadd.f32 0.0, %v257
  %v259 = vpop.f32.mrb[0].mxu0
  %260 = vdwg.mxu0
  %v261 = vadd.f32 %v154, %v255
  %v262 = vadd.f32 %v155, %v258
  %263 = vst [vmem:[#allocation3] sm:$0xff] %v261
  %264 = vst [vmem:[#allocation3 + $0x8] sm:$0xff] %v262
  %v265 = vld [vmem:[#allocation4] sm:$0xff]
  %v266 = vld [vmem:[#allocation4 + $0x8] sm:$0xff]
  %v267 = vld [vmem:[%s3] sm:$0xf]
  %v268 = vld [vmem:[%s3 + $0x4] sm:$0xf]
  %v269 = vld [vmem:[%s3 + $0x8] sm:$0xf]
  %v270 = vld [vmem:[%s3 + $0xc] sm:$0xf]
  %v271 = vld [vmem:[%s3 + $0x10] sm:$0xf]
  %v272 = vld [vmem:[%s3 + $0x14] sm:$0xf]
  %v273 = vld [vmem:[%s3 + $0x18] sm:$0xf]
  %v274 = vld [vmem:[%s3 + $0x1c] sm:$0xf]
  %v275 = vld [vmem:[%s3 + $0x20] sm:$0xf]
  %v276 = vld [vmem:[%s3 + $0x24] sm:$0xf]
  %v277 = vld [vmem:[%s3 + $0x28] sm:$0xf]
  %v278 = vld [vmem:[%s3 + $0x2c] sm:$0xf]
  %v279 = vld [vmem:[%s3 + $0x30] sm:$0xf]
  %v280 = vld [vmem:[%s3 + $0x34] sm:$0xf]
  %v281 = vld [vmem:[%s3 + $0x38] sm:$0xf]
  %v282 = vld [vmem:[%s3 + $0x3c] sm:$0xf]
  %v299 = vunpack.c.l.b16 %v267
  %v300 = vunpack.c.l.b16 %v268
  %v301 = vunpack.c.l.b16 %v269
  %v302 = vunpack.c.l.b16 %v270
  %v303 = vunpack.c.l.b16 %v271
  %v304 = vunpack.c.l.b16 %v272
  %v305 = vunpack.c.l.b16 %v273
  %v306 = vunpack.c.l.b16 %v274
  %v307 = vunpack.c.l.b16 %v275
  %v308 = vunpack.c.l.b16 %v276
  %v309 = vunpack.c.l.b16 %v277
  %v310 = vunpack.c.l.b16 %v278
  %v311 = vunpack.c.l.b16 %v279
  %v312 = vunpack.c.l.b16 %v280
  %v313 = vunpack.c.l.b16 %v281
  %v314 = vunpack.c.l.b16 %v282
  %v315 = vpack.c.b16 %v300, %v299
  %v316 = vpack.c.b16 %v302, %v301
  %v317 = vpack.c.b16 %v304, %v303
  %v318 = vpack.c.b16 %v306, %v305
  %v319 = vpack.c.b16 %v308, %v307
  %v320 = vpack.c.b16 %v310, %v309
  %v321 = vpack.c.b16 %v312, %v311
  %v322 = vpack.c.b16 %v314, %v313
  %331 = vmatprep.subr.bf16.mxu0 0
  %332 = vmatpush1.bf16.msra.mxu0 %v315
  %333 = vmatprep.subr.bf16.mxu0 0
  %334 = vmatpush1.bf16.msra.mxu0 %v316
  %335 = vmatprep.subr.bf16.mxu0 0
  %336 = vmatpush1.bf16.msra.mxu0 %v317
  %337 = vmatprep.subr.bf16.mxu0 0
  %338 = vmatpush1.bf16.msra.mxu0 %v318
  %339 = vmatprep.subr.bf16.mxu0 0
  %340 = vmatpush1.bf16.msra.mxu0 %v319
  %341 = vmatprep.subr.bf16.mxu0 0
  %342 = vmatpush1.bf16.msra.mxu0 %v320
  %343 = vmatprep.subr.bf16.mxu0 0
  %344 = vmatpush1.bf16.msra.mxu0 %v321
  %345 = vmatprep.subr.bf16.mxu0 0
  %346 = vmatpush1.bf16.msra.mxu0 %v322
  %347 = vmatprep.subr.bf16.mxu0 0
  %348 = vmatpush1.bf16.msra.mxu0 0
  %349 = vmatprep.subr.bf16.mxu0 0
  %350 = vmatpush1.bf16.msra.mxu0 0
  %351 = vmatprep.subr.bf16.mxu0 0
  %352 = vmatpush1.bf16.msra.mxu0 0
  %353 = vmatprep.subr.bf16.mxu0 0
  %354 = vmatpush1.bf16.msra.mxu0 0
  %355 = vmatprep.subr.bf16.mxu0 0
  %356 = vmatpush1.bf16.msra.mxu0 0
  %357 = vmatprep.subr.bf16.mxu0 0
  %358 = vmatpush1.bf16.msra.mxu0 0
  %359 = vmatprep.subr.bf16.mxu0 0
  %360 = vmatpush1.bf16.msra.mxu0 0
  %361 = vmatprep.subr.bf16.mxu0 0
  %362 = vmatpush1.bf16.msra.mxu0 0
  %363 = vmatprep.mubr.bf16.mxu0 0
  %364 = vmatmul.mubr.bf16.gmra.mrb[0].mxu0 %v42
  %v365 = vpop.f32.mrb[0].mxu0
  %v366 = vadd.f32 0.0, %v365
  %v367 = vpop.f32.mrb[0].mxu0
  %v368 = vpop.f32.mrb[0].mxu0
  %v369 = vadd.f32 0.0, %v368
  %v370 = vpop.f32.mrb[0].mxu0
  %371 = vdwg.mxu0
  %v372 = vadd.f32 %v265, %v366
  %v373 = vadd.f32 %v266, %v369
  %374 = vst [vmem:[#allocation4] sm:$0xff] %v372
  %375 = vst [vmem:[#allocation4 + $0x8] sm:$0xff] %v373
  // Predicated region
  $region34: #{cross_mha_forward.11} parent=0 // pred_check
    %p376 = pneg %p30
  $region35: #{cross_mha_forward.11} parent=0 // pred_check_branch
    %378 = sbr.rel (%p376) target = $region37
  $region36: #{cross_mha_forward.11} parent=0 // pred_region
    %v379 = vld [vmem:[#allocation2] sm:$0xff]
    %v380 = vld [vmem:[#allocation2 + $0x8] sm:$0xff]
    %v381 = vld [vmem:[%s4] sm:$0x1]
    %v383 = vlaneseq
    %v384 = vshrl.u32 %v383, 7
    %v385 = vsub.s32 0, %v384
    %v386 = vrot.slane %v381, %v385
    %v388 = vadd.f32 %v379, %v386
    %v389 = vadd.f32 %v380, %v386
    %v390 = vpack.c.bf16 %v389, %v388
    %v392 = vunpack.c.l.b16 %v390
    %v393 = vunpack.c.h.b16 %v390
    %v394 = vpack.c.b16 %v392, %v392
    %v395 = vpack.c.b16 %v393, %v393
    %398 = vst [vmem:[%s7] sm:$0xf] %v394
    %399 = vst [vmem:[%s7 + $0x4] sm:$0xf] %v395
    %v400 = vld [vmem:[#allocation3] sm:$0xff]
    %v401 = vld [vmem:[#allocation3 + $0x8] sm:$0xff]
    %v402 = vld [vmem:[%s5] sm:$0x1]
    %v404 = vlaneseq
    %v405 = vshrl.u32 %v404, 7
    %v406 = vsub.s32 0, %v405
    %v407 = vrot.slane %v402, %v406
    %v409 = vadd.f32 %v400, %v407
    %v410 = vadd.f32 %v401, %v407
    %v411 = vpack.c.bf16 %v410, %v409
    %v413 = vunpack.c.l.b16 %v411
    %v414 = vunpack.c.h.b16 %v411
    %v415 = vpack.c.b16 %v413, %v413
    %v416 = vpack.c.b16 %v414, %v414
    %419 = vst [vmem:[%s8] sm:$0xf] %v415
    %420 = vst [vmem:[%s8 + $0x4] sm:$0xf] %v416
    %v421 = vld [vmem:[#allocation4] sm:$0xff]
    %v422 = vld [vmem:[#allocation4 + $0x8] sm:$0xff]
    %v423 = vld [vmem:[%s6] sm:$0x1]
    %v425 = vlaneseq
    %v426 = vshrl.u32 %v425, 7
    %v427 = vsub.s32 0, %v426
    %v428 = vrot.slane %v423, %v427
    %v430 = vadd.f32 %v421, %v428
    %v431 = vadd.f32 %v422, %v428
    %v432 = vpack.c.bf16 %v431, %v430
    %v434 = vunpack.c.l.b16 %v432
    %v435 = vunpack.c.h.b16 %v432
    %v436 = vpack.c.b16 %v434, %v434
    %v437 = vpack.c.b16 %v435, %v435
    %440 = vst [vmem:[%s9] sm:$0xf] %v436
    %441 = vst [vmem:[%s9 + $0x4] sm:$0xf] %v437
  $region37: #{cross_mha_forward.11} parent=0 // pred_fallthru
    _
  // Predicated region
  $region38: #{cross_mha_forward.11} parent=0 // pred_check
    _
  $region39: #{cross_mha_forward.11} parent=0 // pred_check_branch
    %443 = sbr.rel (0) target = $region41
  $region40: #{cross_mha_forward.11} parent=0 // pred_region
    _
  $region41: #{cross_mha_forward.11} parent=0 // pred_fallthru
    _
  // Predicated region
  $region42: #{cross_mha_forward.11} parent=0 // pred_check
    _
  $region43: #{cross_mha_forward.11} parent=0 // pred_check_branch
    %445 = sbr.rel (0) target = $region45
  $region44: #{cross_mha_forward.11} parent=0 // pred_region
    _
  $region45: #{cross_mha_forward.11} parent=0 // pred_fallthru
    _
  // Predicated region
  $region46: #{cross_mha_forward.11} parent=0 // pred_check
    _
  $region47: #{cross_mha_forward.11} parent=0 // pred_check_branch
    %447 = sbr.rel (0) target = $region49
  $region48: #{cross_mha_forward.11} parent=0 // pred_region
    _
  $region49: #{cross_mha_forward.11} parent=0 // pred_fallthru
    _
  // Predicated region
  $region50: #{cross_mha_forward.11} parent=0 // pred_check
    _
  $region51: #{cross_mha_forward.11} parent=0 // pred_check_branch
    %449 = sbr.rel (0) target = $region53
  $region52: #{cross_mha_forward.11} parent=0 // pred_region
    _
  $region53: #{cross_mha_forward.11} parent=0 // pred_fallthru
    _
  // Predicated region
  $region54: #{cross_mha_forward.11} parent=0 // pred_check
    _
  $region55: #{cross_mha_forward.11} parent=0 // pred_check_branch
    %451 = sbr.rel (0) target = $region57
  $region56: #{cross_mha_forward.11} parent=0 // pred_region
    _
  $region57: #{cross_mha_forward.11} parent=0 // pred_fallthru
    _
  // Predicated region
  $region58: #{cross_mha_forward.11} parent=0 // pred_check
    _
  $region59: #{cross_mha_forward.11} parent=0 // pred_check_branch
    %453 = sbr.rel (0) target = $region61
  $region60: #{cross_mha_forward.11} parent=0 // pred_region
    _
  $region61: #{cross_mha_forward.11} parent=0 // pred_fallthru
    _

// kernel: cross_mha_forward.9
$region0: #{cross_mha_forward.9}
  #allocation0 [shape = 'u32[]', space=smem, size = 0x4, offset = 0x4, fixed_abs, tag = 'smem constant byte address 0x4 - core index']
  #allocation1 [shape = 'u32[144,128]{1,0:T(1,128)}', space=vmem, size = 0x12000, scoped, tag = 'internal scratch']
  #allocation2 [shape = 'f32[14,128]{1,0:T(8,128)}', space=vmem, size = 0x2000, scoped, tag = 'scratch operand']
  #allocation3 [shape = 'f32[14,128]{1,0:T(8,128)}', space=vmem, size = 0x2000, scoped, tag = 'scratch operand']
  #allocation4 [shape = 'f32[14,128]{1,0:T(8,128)}', space=vmem, size = 0x2000, scoped, tag = 'scratch operand']
  #allocation5 [shape = 'f32[14,128]{1,0:T(8,128)}', space=vmem, size = 0x2000, scoped, tag = 'scratch operand']
  #allocation6 [shape = 'f32[14,128]{1,0:T(8,128)}', space=vmem, size = 0x2000, scoped, tag = 'scratch operand']
  #allocation7 [shape = 'f32[14,128]{1,0:T(8,128)}', space=vmem, size = 0x2000, scoped, tag = 'scratch operand']
  %s0 = inlined_call_operand.vmem [shape: f32[14,128], index: 0, kind: input, shape index: {}]
  %s1 = inlined_call_operand.vmem [shape: bf16[128,128], index: 1, kind: input, shape index: {}]
  %s2 = inlined_call_operand.vmem [shape: bf16[128,128], index: 2, kind: input, shape index: {}]
  %s3 = inlined_call_operand.vmem [shape: bf16[128,128], index: 3, kind: input, shape index: {}]
  %s4 = inlined_call_operand.vmem [shape: bf16[128,128], index: 4, kind: input, shape index: {}]
  %s5 = inlined_call_operand.vmem [shape: bf16[128,128], index: 5, kind: input, shape index: {}]
  %s6 = inlined_call_operand.vmem [shape: bf16[128,128], index: 6, kind: input, shape index: {}]
  %s7 = inlined_call_operand.vmem [shape: f32[1,128], index: 7, kind: input, shape index: {}]
  %s8 = inlined_call_operand.vmem [shape: f32[1,128], index: 8, kind: input, shape index: {}]
  %s9 = inlined_call_operand.vmem [shape: f32[1,128], index: 9, kind: input, shape index: {}]
  %s10 = inlined_call_operand.vmem [shape: f32[1,128], index: 10, kind: input, shape index: {}]
  %s11 = inlined_call_operand.vmem [shape: f32[1,128], index: 11, kind: input, shape index: {}]
  %s12 = inlined_call_operand.vmem [shape: f32[1,128], index: 12, kind: input, shape index: {}]
  %s13 = inlined_call_operand.vmem [shape: bf16[14,128], index: 13, kind: output, shape index: {0}]
  %s14 = inlined_call_operand.vmem [shape: bf16[14,128], index: 14, kind: output, shape index: {1}]
  %s15 = inlined_call_operand.vmem [shape: bf16[14,128], index: 15, kind: output, shape index: {2}]
  %s16 = inlined_call_operand.vmem [shape: bf16[14,128], index: 16, kind: output, shape index: {3}]
  %s17 = inlined_call_operand.vmem [shape: bf16[14,128], index: 17, kind: output, shape index: {4}]
  %s18 = inlined_call_operand.vmem [shape: bf16[14,128], index: 18, kind: output, shape index: {5}]
  %19 = xla_tuple %s13, %s14, %s15, %s16, %s17, %s18
  %s20 = sld [smem:[#allocation0]]
  $region110: #{cross_mha_forward.9} parent=0
    _
  %s22 = ssub.s32 1, %s20
  %s23 = scalar_select 0, %s22, %s20
  // Predicated region
  $region2: #{cross_mha_forward.9} parent=0 // pred_check
    _
  $region3: #{cross_mha_forward.9} parent=0 // pred_check_branch
    %25 = sbr.rel (0) target = $region5
  $region4: #{cross_mha_forward.9} parent=0 // pred_region
    _
  $region5: #{cross_mha_forward.9} parent=0 // pred_fallthru
    _
  // Predicated region
  $region6: #{cross_mha_forward.9} parent=0 // pred_check
    _
  $region7: #{cross_mha_forward.9} parent=0 // pred_check_branch
    %27 = sbr.rel (0) target = $region9
  $region8: #{cross_mha_forward.9} parent=0 // pred_region
    _
  $region9: #{cross_mha_forward.9} parent=0 // pred_fallthru
    _
  // Predicated region
  $region10: #{cross_mha_forward.9} parent=0 // pred_check
    _
  $region11: #{cross_mha_forward.9} parent=0 // pred_check_branch
    %29 = sbr.rel (0) target = $region13
  $region12: #{cross_mha_forward.9} parent=0 // pred_region
    _
  $region13: #{cross_mha_forward.9} parent=0 // pred_fallthru
    _
  // Predicated region
  $region14: #{cross_mha_forward.9} parent=0 // pred_check
    _
  $region15: #{cross_mha_forward.9} parent=0 // pred_check_branch
    %31 = sbr.rel (0) target = $region17
  $region16: #{cross_mha_forward.9} parent=0 // pred_region
    _
  $region17: #{cross_mha_forward.9} parent=0 // pred_fallthru
    _
  // Predicated region
  $region18: #{cross_mha_forward.9} parent=0 // pred_check
    _
  $region19: #{cross_mha_forward.9} parent=0 // pred_check_branch
    %33 = sbr.rel (0) target = $region21
  $region20: #{cross_mha_forward.9} parent=0 // pred_region
    _
  $region21: #{cross_mha_forward.9} parent=0 // pred_fallthru
    _
  // Predicated region
  $region22: #{cross_mha_forward.9} parent=0 // pred_check
    _
  $region23: #{cross_mha_forward.9} parent=0 // pred_check_branch
    %35 = sbr.rel (0) target = $region25
  $region24: #{cross_mha_forward.9} parent=0 // pred_region
    _
  $region25: #{cross_mha_forward.9} parent=0 // pred_fallthru
    _
  // Predicated region
  $region26: #{cross_mha_forward.9} parent=0 // pred_check
    _
  $region27: #{cross_mha_forward.9} parent=0 // pred_check_branch
    %37 = sbr.rel (0) target = $region29
  $region28: #{cross_mha_forward.9} parent=0 // pred_region
    _
  $region29: #{cross_mha_forward.9} parent=0 // pred_fallthru
    _
  // Predicated region
  $region30: #{cross_mha_forward.9} parent=0 // pred_check
    _
  $region31: #{cross_mha_forward.9} parent=0 // pred_check_branch
    %39 = sbr.rel (0) target = $region33
  $region32: #{cross_mha_forward.9} parent=0 // pred_region
    _
  $region33: #{cross_mha_forward.9} parent=0 // pred_fallthru
    _
  // Predicated region
  $region34: #{cross_mha_forward.9} parent=0 // pred_check
    _
  $region35: #{cross_mha_forward.9} parent=0 // pred_check_branch
    %41 = sbr.rel (0) target = $region37
  $region36: #{cross_mha_forward.9} parent=0 // pred_region
    _
  $region37: #{cross_mha_forward.9} parent=0 // pred_fallthru
    _
  // Predicated region
  $region38: #{cross_mha_forward.9} parent=0 // pred_check
    _
  $region39: #{cross_mha_forward.9} parent=0 // pred_check_branch
    %43 = sbr.rel (0) target = $region41
  $region40: #{cross_mha_forward.9} parent=0 // pred_region
    _
  $region41: #{cross_mha_forward.9} parent=0 // pred_fallthru
    _
  // Predicated region
  $region42: #{cross_mha_forward.9} parent=0 // pred_check
    _
  $region43: #{cross_mha_forward.9} parent=0 // pred_check_branch
    %45 = sbr.rel (0) target = $region45
  $region44: #{cross_mha_forward.9} parent=0 // pred_region
    _
  $region45: #{cross_mha_forward.9} parent=0 // pred_fallthru
    _
  // Predicated region
  $region46: #{cross_mha_forward.9} parent=0 // pred_check
    _
  $region47: #{cross_mha_forward.9} parent=0 // pred_check_branch
    %47 = sbr.rel (0) target = $region49
  $region48: #{cross_mha_forward.9} parent=0 // pred_region
    _
  $region49: #{cross_mha_forward.9} parent=0 // pred_fallthru
    _
  // Predicated region
  $region50: #{cross_mha_forward.9} parent=0 // pred_check
    _
  $region51: #{cross_mha_forward.9} parent=0 // pred_check_branch
    %49 = sbr.rel (0) target = $region53
  $region52: #{cross_mha_forward.9} parent=0 // pred_region
    _
  $region53: #{cross_mha_forward.9} parent=0 // pred_fallthru
    _
  %p51 = scmp.eq.s32.totalorder 0, 0
  // Predicated region
  $region54: #{cross_mha_forward.9} parent=0 // pred_check
    %p52 = pneg %p51
  $region55: #{cross_mha_forward.9} parent=0 // pred_check_branch
    %54 = sbr.rel (%p52) target = $region57
  $region56: #{cross_mha_forward.9} parent=0 // pred_region
    %55 = vst [vmem:[#allocation2] sm:$0xff] 0.0
    %56 = vst [vmem:[#allocation2 + $0x8] sm:$0x3f] 0.0
    %57 = vst [vmem:[#allocation3] sm:$0xff] 0.0
    %58 = vst [vmem:[#allocation3 + $0x8] sm:$0x3f] 0.0
    %59 = vst [vmem:[#allocation4] sm:$0xff] 0.0
    %60 = vst [vmem:[#allocation4 + $0x8] sm:$0x3f] 0.0
    %61 = vst [vmem:[#allocation5] sm:$0xff] 0.0
    %62 = vst [vmem:[#allocation5 + $0x8] sm:$0x3f] 0.0
    %63 = vst [vmem:[#allocation6] sm:$0xff] 0.0
    %64 = vst [vmem:[#allocation6 + $0x8] sm:$0x3f] 0.0
    %65 = vst [vmem:[#allocation7] sm:$0xff] 0.0
    %66 = vst [vmem:[#allocation7 + $0x8] sm:$0x3f] 0.0
  $region57: #{cross_mha_forward.9} parent=0 // pred_fallthru
    _
  %v67 = vld [vmem:[%s0] sm:$0xff]
  %v68 = vld [vmem:[%s0 + $0x8] sm:$0x3f]
  %v69 = vpack.c.bf16 %v68, %v67
  %v70 = vld [vmem:[#allocation2] sm:$0xff]
  %v71 = vld [vmem:[#allocation2 + $0x8] sm:$0x3f]
  %v72 = vld [vmem:[%s1] sm:$0xf]
  %v73 = vld [vmem:[%s1 + $0x4] sm:$0xf]
  %v74 = vld [vmem:[%s1 + $0x8] sm:$0xf]
  %v75 = vld [vmem:[%s1 + $0xc] sm:$0xf]
  %v76 = vld [vmem:[%s1 + $0x10] sm:$0xf]
  %v77 = vld [vmem:[%s1 + $0x14] sm:$0xf]
  %v78 = vld [vmem:[%s1 + $0x18] sm:$0xf]
  %v79 = vld [vmem:[%s1 + $0x1c] sm:$0xf]
  %v80 = vld [vmem:[%s1 + $0x20] sm:$0xf]
  %v81 = vld [vmem:[%s1 + $0x24] sm:$0xf]
  %v82 = vld [vmem:[%s1 + $0x28] sm:$0xf]
  %v83 = vld [vmem:[%s1 + $0x2c] sm:$0xf]
  %v84 = vld [vmem:[%s1 + $0x30] sm:$0xf]
  %v85 = vld [vmem:[%s1 + $0x34] sm:$0xf]
  %v86 = vld [vmem:[%s1 + $0x38] sm:$0xf]
  %v87 = vld [vmem:[%s1 + $0x3c] sm:$0xf]
  %v104 = vunpack.c.l.b16 %v72
  %v105 = vunpack.c.l.b16 %v73
  %v106 = vunpack.c.l.b16 %v74
  %v107 = vunpack.c.l.b16 %v75
  %v108 = vunpack.c.l.b16 %v76
  %v109 = vunpack.c.l.b16 %v77
  %v110 = vunpack.c.l.b16 %v78
  %v111 = vunpack.c.l.b16 %v79
  %v112 = vunpack.c.l.b16 %v80
  %v113 = vunpack.c.l.b16 %v81
  %v114 = vunpack.c.l.b16 %v82
  %v115 = vunpack.c.l.b16 %v83
  %v116 = vunpack.c.l.b16 %v84
  %v117 = vunpack.c.l.b16 %v85
  %v118 = vunpack.c.l.b16 %v86
  %v119 = vunpack.c.l.b16 %v87
  %v120 = vpack.c.b16 %v105, %v104
  %v121 = vpack.c.b16 %v107, %v106
  %v122 = vpack.c.b16 %v109, %v108
  %v123 = vpack.c.b16 %v111, %v110
  %v124 = vpack.c.b16 %v113, %v112
  %v125 = vpack.c.b16 %v115, %v114
  %v126 = vpack.c.b16 %v117, %v116
  %v127 = vpack.c.b16 %v119, %v118
  %136 = vmatprep.subr.bf16.mxu0 0
  %137 = vmatpush1.bf16.msra.mxu0 %v120
  %138 = vmatprep.subr.bf16.mxu0 0
  %139 = vmatpush1.bf16.msra.mxu0 %v121
  %140 = vmatprep.subr.bf16.mxu0 0
  %141 = vmatpush1.bf16.msra.mxu0 %v122
  %142 = vmatprep.subr.bf16.mxu0 0
  %143 = vmatpush1.bf16.msra.mxu0 %v123
  %144 = vmatprep.subr.bf16.mxu0 0
  %145 = vmatpush1.bf16.msra.mxu0 %v124
  %146 = vmatprep.subr.bf16.mxu0 0
  %147 = vmatpush1.bf16.msra.mxu0 %v125
  %148 = vmatprep.subr.bf16.mxu0 0
  %149 = vmatpush1.bf16.msra.mxu0 %v126
  %150 = vmatprep.subr.bf16.mxu0 0
  %151 = vmatpush1.bf16.msra.mxu0 %v127
  %152 = vmatprep.subr.bf16.mxu0 0
  %153 = vmatpush1.bf16.msra.mxu0 0
  %154 = vmatprep.subr.bf16.mxu0 0
  %155 = vmatpush1.bf16.msra.mxu0 0
  %156 = vmatprep.subr.bf16.mxu0 0
  %157 = vmatpush1.bf16.msra.mxu0 0
  %158 = vmatprep.subr.bf16.mxu0 0
  %159 = vmatpush1.bf16.msra.mxu0 0
  %160 = vmatprep.subr.bf16.mxu0 0
  %161 = vmatpush1.bf16.msra.mxu0 0
  %162 = vmatprep.subr.bf16.mxu0 0
  %163 = vmatpush1.bf16.msra.mxu0 0
  %164 = vmatprep.subr.bf16.mxu0 0
  %165 = vmatpush1.bf16.msra.mxu0 0
  %166 = vmatprep.subr.bf16.mxu0 0
  %167 = vmatpush1.bf16.msra.mxu0 0
  %168 = vmatprep.mubr.bf16.mxu0 0
  %169 = vmatmul.mubr.bf16.gmra.mrb[0].mxu0 %v69
  %v170 = vpop.f32.mrb[0].mxu0
  %v171 = vadd.f32 0.0, %v170
  %v172 = vpop.f32.mrb[0].mxu0
  %v173 = vpop.f32.mrb[0].mxu0
  %v174 = vadd.f32 0.0, %v173
  %v175 = vpop.f32.mrb[0].mxu0
  %176 = vdwg.mxu0
  %v177 = vadd.f32 %v70, %v171
  %v178 = vadd.f32 %v71, %v174
  %179 = vst [vmem:[#allocation2] sm:$0xff] %v177
  %180 = vst [vmem:[#allocation2 + $0x8] sm:$0x3f] %v178
  %v181 = vld [vmem:[#allocation3] sm:$0xff]
  %v182 = vld [vmem:[#allocation3 + $0x8] sm:$0x3f]
  %v183 = vld [vmem:[%s2] sm:$0xf]
  %v184 = vld [vmem:[%s2 + $0x4] sm:$0xf]
  %v185 = vld [vmem:[%s2 + $0x8] sm:$0xf]
  %v186 = vld [vmem:[%s2 + $0xc] sm:$0xf]
  %v187 = vld [vmem:[%s2 + $0x10] sm:$0xf]
  %v188 = vld [vmem:[%s2 + $0x14] sm:$0xf]
  %v189 = vld [vmem:[%s2 + $0x18] sm:$0xf]
  %v190 = vld [vmem:[%s2 + $0x1c] sm:$0xf]
  %v191 = vld [vmem:[%s2 + $0x20] sm:$0xf]
  %v192 = vld [vmem:[%s2 + $0x24] sm:$0xf]
  %v193 = vld [vmem:[%s2 + $0x28] sm:$0xf]
  %v194 = vld [vmem:[%s2 + $0x2c] sm:$0xf]
  %v195 = vld [vmem:[%s2 + $0x30] sm:$0xf]
  %v196 = vld [vmem:[%s2 + $0x34] sm:$0xf]
  %v197 = vld [vmem:[%s2 + $0x38] sm:$0xf]
  %v198 = vld [vmem:[%s2 + $0x3c] sm:$0xf]
  %v215 = vunpack.c.l.b16 %v183
  %v216 = vunpack.c.l.b16 %v184
  %v217 = vunpack.c.l.b16 %v185
  %v218 = vunpack.c.l.b16 %v186
  %v219 = vunpack.c.l.b16 %v187
  %v220 = vunpack.c.l.b16 %v188
  %v221 = vunpack.c.l.b16 %v189
  %v222 = vunpack.c.l.b16 %v190
  %v223 = vunpack.c.l.b16 %v191
  %v224 = vunpack.c.l.b16 %v192
  %v225 = vunpack.c.l.b16 %v193
  %v226 = vunpack.c.l.b16 %v194
  %v227 = vunpack.c.l.b16 %v195
  %v228 = vunpack.c.l.b16 %v196
  %v229 = vunpack.c.l.b16 %v197
  %v230 = vunpack.c.l.b16 %v198
  %v231 = vpack.c.b16 %v216, %v215
  %v232 = vpack.c.b16 %v218, %v217
  %v233 = vpack.c.b16 %v220, %v219
  %v234 = vpack.c.b16 %v222, %v221
  %v235 = vpack.c.b16 %v224, %v223
  %v236 = vpack.c.b16 %v226, %v225
  %v237 = vpack.c.b16 %v228, %v227
  %v238 = vpack.c.b16 %v230, %v229
  %247 = vmatprep.subr.bf16.mxu0 0
  %248 = vmatpush1.bf16.msra.mxu0 %v231
  %249 = vmatprep.subr.bf16.mxu0 0
  %250 = vmatpush1.bf16.msra.mxu0 %v232
  %251 = vmatprep.subr.bf16.mxu0 0
  %252 = vmatpush1.bf16.msra.mxu0 %v233
  %253 = vmatprep.subr.bf16.mxu0 0
  %254 = vmatpush1.bf16.msra.mxu0 %v234
  %255 = vmatprep.subr.bf16.mxu0 0
  %256 = vmatpush1.bf16.msra.mxu0 %v235
  %257 = vmatprep.subr.bf16.mxu0 0
  %258 = vmatpush1.bf16.msra.mxu0 %v236
  %259 = vmatprep.subr.bf16.mxu0 0
  %260 = vmatpush1.bf16.msra.mxu0 %v237
  %261 = vmatprep.subr.bf16.mxu0 0
  %262 = vmatpush1.bf16.msra.mxu0 %v238
  %263 = vmatprep.subr.bf16.mxu0 0
  %264 = vmatpush1.bf16.msra.mxu0 0
  %265 = vmatprep.subr.bf16.mxu0 0
  %266 = vmatpush1.bf16.msra.mxu0 0
  %267 = vmatprep.subr.bf16.mxu0 0
  %268 = vmatpush1.bf16.msra.mxu0 0
  %269 = vmatprep.subr.bf16.mxu0 0
  %270 = vmatpush1.bf16.msra.mxu0 0
  %271 = vmatprep.subr.bf16.mxu0 0
  %272 = vmatpush1.bf16.msra.mxu0 0
  %273 = vmatprep.subr.bf16.mxu0 0
  %274 = vmatpush1.bf16.msra.mxu0 0
  %275 = vmatprep.subr.bf16.mxu0 0
  %276 = vmatpush1.bf16.msra.mxu0 0
  %277 = vmatprep.subr.bf16.mxu0 0
  %278 = vmatpush1.bf16.msra.mxu0 0
  %279 = vmatprep.mubr.bf16.mxu0 0
  %280 = vmatmul.mubr.bf16.gmra.mrb[0].mxu0 %v69
  %v281 = vpop.f32.mrb[0].mxu0
  %v282 = vadd.f32 0.0, %v281
  %v283 = vpop.f32.mrb[0].mxu0
  %v284 = vpop.f32.mrb[0].mxu0
  %v285 = vadd.f32 0.0, %v284
  %v286 = vpop.f32.mrb[0].mxu0
  %287 = vdwg.mxu0
  %v288 = vadd.f32 %v181, %v282
  %v289 = vadd.f32 %v182, %v285
  %290 = vst [vmem:[#allocation3] sm:$0xff] %v288
  %291 = vst [vmem:[#allocation3 + $0x8] sm:$0x3f] %v289
  %v292 = vld [vmem:[#allocation4] sm:$0xff]
  %v293 = vld [vmem:[#allocation4 + $0x8] sm:$0x3f]
  %v294 = vld [vmem:[%s3] sm:$0xf]
  %v295 = vld [vmem:[%s3 + $0x4] sm:$0xf]
  %v296 = vld [vmem:[%s3 + $0x8] sm:$0xf]
  %v297 = vld [vmem:[%s3 + $0xc] sm:$0xf]
  %v298 = vld [vmem:[%s3 + $0x10] sm:$0xf]
  %v299 = vld [vmem:[%s3 + $0x14] sm:$0xf]
  %v300 = vld [vmem:[%s3 + $0x18] sm:$0xf]
  %v301 = vld [vmem:[%s3 + $0x1c] sm:$0xf]
  %v302 = vld [vmem:[%s3 + $0x20] sm:$0xf]
  %v303 = vld [vmem:[%s3 + $0x24] sm:$0xf]
  %v304 = vld [vmem:[%s3 + $0x28] sm:$0xf]
  %v305 = vld [vmem:[%s3 + $0x2c] sm:$0xf]
  %v306 = vld [vmem:[%s3 + $0x30] sm:$0xf]
  %v307 = vld [vmem:[%s3 + $0x34] sm:$0xf]
  %v308 = vld [vmem:[%s3 + $0x38] sm:$0xf]
  %v309 = vld [vmem:[%s3 + $0x3c] sm:$0xf]
  %v326 = vunpack.c.l.b16 %v294
  %v327 = vunpack.c.l.b16 %v295
  %v328 = vunpack.c.l.b16 %v296
  %v329 = vunpack.c.l.b16 %v297
  %v330 = vunpack.c.l.b16 %v298
  %v331 = vunpack.c.l.b16 %v299
  %v332 = vunpack.c.l.b16 %v300
  %v333 = vunpack.c.l.b16 %v301
  %v334 = vunpack.c.l.b16 %v302
  %v335 = vunpack.c.l.b16 %v303
  %v336 = vunpack.c.l.b16 %v304
  %v337 = vunpack.c.l.b16 %v305
  %v338 = vunpack.c.l.b16 %v306
  %v339 = vunpack.c.l.b16 %v307
  %v340 = vunpack.c.l.b16 %v308
  %v341 = vunpack.c.l.b16 %v309
  %v342 = vpack.c.b16 %v327, %v326
  %v343 = vpack.c.b16 %v329, %v328
  %v344 = vpack.c.b16 %v331, %v330
  %v345 = vpack.c.b16 %v333, %v332
  %v346 = vpack.c.b16 %v335, %v334
  %v347 = vpack.c.b16 %v337, %v336
  %v348 = vpack.c.b16 %v339, %v338
  %v349 = vpack.c.b16 %v341, %v340
  %358 = vmatprep.subr.bf16.mxu0 0
  %359 = vmatpush1.bf16.msra.mxu0 %v342
  %360 = vmatprep.subr.bf16.mxu0 0
  %361 = vmatpush1.bf16.msra.mxu0 %v343
  %362 = vmatprep.subr.bf16.mxu0 0
  %363 = vmatpush1.bf16.msra.mxu0 %v344
  %364 = vmatprep.subr.bf16.mxu0 0
  %365 = vmatpush1.bf16.msra.mxu0 %v345
  %366 = vmatprep.subr.bf16.mxu0 0
  %367 = vmatpush1.bf16.msra.mxu0 %v346
  %368 = vmatprep.subr.bf16.mxu0 0
  %369 = vmatpush1.bf16.msra.mxu0 %v347
  %370 = vmatprep.subr.bf16.mxu0 0
  %371 = vmatpush1.bf16.msra.mxu0 %v348
  %372 = vmatprep.subr.bf16.mxu0 0
  %373 = vmatpush1.bf16.msra.mxu0 %v349
  %374 = vmatprep.subr.bf16.mxu0 0
  %375 = vmatpush1.bf16.msra.mxu0 0
  %376 = vmatprep.subr.bf16.mxu0 0
  %377 = vmatpush1.bf16.msra.mxu0 0
  %378 = vmatprep.subr.bf16.mxu0 0
  %379 = vmatpush1.bf16.msra.mxu0 0
  %380 = vmatprep.subr.bf16.mxu0 0
  %381 = vmatpush1.bf16.msra.mxu0 0
  %382 = vmatprep.subr.bf16.mxu0 0
  %383 = vmatpush1.bf16.msra.mxu0 0
  %384 = vmatprep.subr.bf16.mxu0 0
  %385 = vmatpush1.bf16.msra.mxu0 0
  %386 = vmatprep.subr.bf16.mxu0 0
  %387 = vmatpush1.bf16.msra.mxu0 0
  %388 = vmatprep.subr.bf16.mxu0 0
  %389 = vmatpush1.bf16.msra.mxu0 0
  %390 = vmatprep.mubr.bf16.mxu0 0
  %391 = vmatmul.mubr.bf16.gmra.mrb[0].mxu0 %v69
  %v392 = vpop.f32.mrb[0].mxu0
  %v393 = vadd.f32 0.0, %v392
  %v394 = vpop.f32.mrb[0].mxu0
  %v395 = vpop.f32.mrb[0].mxu0
  %v396 = vadd.f32 0.0, %v395
  %v397 = vpop.f32.mrb[0].mxu0
  %398 = vdwg.mxu0
  %v399 = vadd.f32 %v292, %v393
  %v400 = vadd.f32 %v293, %v396
  %401 = vst [vmem:[#allocation4] sm:$0xff] %v399
  %402 = vst [vmem:[#allocation4 + $0x8] sm:$0x3f] %v400
  %v403 = vld [vmem:[#allocation5] sm:$0xff]
  %v404 = vld [vmem:[#allocation5 + $0x8] sm:$0x3f]
  %v405 = vld [vmem:[%s4] sm:$0xf]
  %v406 = vld [vmem:[%s4 + $0x4] sm:$0xf]
  %v407 = vld [vmem:[%s4 + $0x8] sm:$0xf]
  %v408 = vld [vmem:[%s4 + $0xc] sm:$0xf]
  %v409 = vld [vmem:[%s4 + $0x10] sm:$0xf]
  %v410 = vld [vmem:[%s4 + $0x14] sm:$0xf]
  %v411 = vld [vmem:[%s4 + $0x18] sm:$0xf]
  %v412 = vld [vmem:[%s4 + $0x1c] sm:$0xf]
  %v413 = vld [vmem:[%s4 + $0x20] sm:$0xf]
  %v414 = vld [vmem:[%s4 + $0x24] sm:$0xf]
  %v415 = vld [vmem:[%s4 + $0x28] sm:$0xf]
  %v416 = vld [vmem:[%s4 + $0x2c] sm:$0xf]
  %v417 = vld [vmem:[%s4 + $0x30] sm:$0xf]
  %v418 = vld [vmem:[%s4 + $0x34] sm:$0xf]
  %v419 = vld [vmem:[%s4 + $0x38] sm:$0xf]
  %v420 = vld [vmem:[%s4 + $0x3c] sm:$0xf]
  %v437 = vunpack.c.l.b16 %v405
  %v438 = vunpack.c.l.b16 %v406
  %v439 = vunpack.c.l.b16 %v407
  %v440 = vunpack.c.l.b16 %v408
  %v441 = vunpack.c.l.b16 %v409
  %v442 = vunpack.c.l.b16 %v410
  %v443 = vunpack.c.l.b16 %v411
  %v444 = vunpack.c.l.b16 %v412
  %v445 = vunpack.c.l.b16 %v413
  %v446 = vunpack.c.l.b16 %v414
  %v447 = vunpack.c.l.b16 %v415
  %v448 = vunpack.c.l.b16 %v416
  %v449 = vunpack.c.l.b16 %v417
  %v450 = vunpack.c.l.b16 %v418
  %v451 = vunpack.c.l.b16 %v419
  %v452 = vunpack.c.l.b16 %v420
  %v453 = vpack.c.b16 %v438, %v437
  %v454 = vpack.c.b16 %v440, %v439
  %v455 = vpack.c.b16 %v442, %v441
  %v456 = vpack.c.b16 %v444, %v443
  %v457 = vpack.c.b16 %v446, %v445
  %v458 = vpack.c.b16 %v448, %v447
  %v459 = vpack.c.b16 %v450, %v449
  %v460 = vpack.c.b16 %v452, %v451
  %469 = vmatprep.subr.bf16.mxu0 0
  %470 = vmatpush1.bf16.msra.mxu0 %v453
  %471 = vmatprep.subr.bf16.mxu0 0
  %472 = vmatpush1.bf16.msra.mxu0 %v454
  %473 = vmatprep.subr.bf16.mxu0 0
  %474 = vmatpush1.bf16.msra.mxu0 %v455
  %475 = vmatprep.subr.bf16.mxu0 0
  %476 = vmatpush1.bf16.msra.mxu0 %v456
  %477 = vmatprep.subr.bf16.mxu0 0
  %478 = vmatpush1.bf16.msra.mxu0 %v457
  %479 = vmatprep.subr.bf16.mxu0 0
  %480 = vmatpush1.bf16.msra.mxu0 %v458
  %481 = vmatprep.subr.bf16.mxu0 0
  %482 = vmatpush1.bf16.msra.mxu0 %v459
  %483 = vmatprep.subr.bf16.mxu0 0
  %484 = vmatpush1.bf16.msra.mxu0 %v460
  %485 = vmatprep.subr.bf16.mxu0 0
  %486 = vmatpush1.bf16.msra.mxu0 0
  %487 = vmatprep.subr.bf16.mxu0 0
  %488 = vmatpush1.bf16.msra.mxu0 0
  %489 = vmatprep.subr.bf16.mxu0 0
  %490 = vmatpush1.bf16.msra.mxu0 0
  %491 = vmatprep.subr.bf16.mxu0 0
  %492 = vmatpush1.bf16.msra.mxu0 0
  %493 = vmatprep.subr.bf16.mxu0 0
  %494 = vmatpush1.bf16.msra.mxu0 0
  %495 = vmatprep.subr.bf16.mxu0 0
  %496 = vmatpush1.bf16.msra.mxu0 0
  %497 = vmatprep.subr.bf16.mxu0 0
  %498 = vmatpush1.bf16.msra.mxu0 0
  %499 = vmatprep.subr.bf16.mxu0 0
  %500 = vmatpush1.bf16.msra.mxu0 0
  %501 = vmatprep.mubr.bf16.mxu0 0
  %502 = vmatmul.mubr.bf16.gmra.mrb[0].mxu0 %v69
  %v503 = vpop.f32.mrb[0].mxu0
  %v504 = vadd.f32 0.0, %v503
  %v505 = vpop.f32.mrb[0].mxu0
  %v506 = vpop.f32.mrb[0].mxu0
  %v507 = vadd.f32 0.0, %v506
  %v508 = vpop.f32.mrb[0].mxu0
  %509 = vdwg.mxu0
  %v510 = vadd.f32 %v403, %v504
  %v511 = vadd.f32 %v404, %v507
  %512 = vst [vmem:[#allocation5] sm:$0xff] %v510
  %513 = vst [vmem:[#allocation5 + $0x8] sm:$0x3f] %v511
  %v514 = vld [vmem:[#allocation6] sm:$0xff]
  %v515 = vld [vmem:[#allocation6 + $0x8] sm:$0x3f]
  %v516 = vld [vmem:[%s5] sm:$0xf]
  %v517 = vld [vmem:[%s5 + $0x4] sm:$0xf]
  %v518 = vld [vmem:[%s5 + $0x8] sm:$0xf]
  %v519 = vld [vmem:[%s5 + $0xc] sm:$0xf]
  %v520 = vld [vmem:[%s5 + $0x10] sm:$0xf]
  %v521 = vld [vmem:[%s5 + $0x14] sm:$0xf]
  %v522 = vld [vmem:[%s5 + $0x18] sm:$0xf]
  %v523 = vld [vmem:[%s5 + $0x1c] sm:$0xf]
  %v524 = vld [vmem:[%s5 + $0x20] sm:$0xf]
  %v525 = vld [vmem:[%s5 + $0x24] sm:$0xf]
  %v526 = vld [vmem:[%s5 + $0x28] sm:$0xf]
  %v527 = vld [vmem:[%s5 + $0x2c] sm:$0xf]
  %v528 = vld [vmem:[%s5 + $0x30] sm:$0xf]
  %v529 = vld [vmem:[%s5 + $0x34] sm:$0xf]
  %v530 = vld [vmem:[%s5 + $0x38] sm:$0xf]
  %v531 = vld [vmem:[%s5 + $0x3c] sm:$0xf]
  %v548 = vunpack.c.l.b16 %v516
  %v549 = vunpack.c.l.b16 %v517
  %v550 = vunpack.c.l.b16 %v518
  %v551 = vunpack.c.l.b16 %v519
  %v552 = vunpack.c.l.b16 %v520
  %v553 = vunpack.c.l.b16 %v521
  %v554 = vunpack.c.l.b16 %v522
  %v555 = vunpack.c.l.b16 %v523
  %v556 = vunpack.c.l.b16 %v524
  %v557 = vunpack.c.l.b16 %v525
  %v558 = vunpack.c.l.b16 %v526
  %v559 = vunpack.c.l.b16 %v527
  %v560 = vunpack.c.l.b16 %v528
  %v561 = vunpack.c.l.b16 %v529
  %v562 = vunpack.c.l.b16 %v530
  %v563 = vunpack.c.l.b16 %v531
  %v564 = vpack.c.b16 %v549, %v548
  %v565 = vpack.c.b16 %v551, %v550
  %v566 = vpack.c.b16 %v553, %v552
  %v567 = vpack.c.b16 %v555, %v554
  %v568 = vpack.c.b16 %v557, %v556
  %v569 = vpack.c.b16 %v559, %v558
  %v570 = vpack.c.b16 %v561, %v560
  %v571 = vpack.c.b16 %v563, %v562
  %580 = vmatprep.subr.bf16.mxu0 0
  %581 = vmatpush1.bf16.msra.mxu0 %v564
  %582 = vmatprep.subr.bf16.mxu0 0
  %583 = vmatpush1.bf16.msra.mxu0 %v565
  %584 = vmatprep.subr.bf16.mxu0 0
  %585 = vmatpush1.bf16.msra.mxu0 %v566
  %586 = vmatprep.subr.bf16.mxu0 0
  %587 = vmatpush1.bf16.msra.mxu0 %v567
  %588 = vmatprep.subr.bf16.mxu0 0
  %589 = vmatpush1.bf16.msra.mxu0 %v568
  %590 = vmatprep.subr.bf16.mxu0 0
  %591 = vmatpush1.bf16.msra.mxu0 %v569
  %592 = vmatprep.subr.bf16.mxu0 0
  %593 = vmatpush1.bf16.msra.mxu0 %v570
  %594 = vmatprep.subr.bf16.mxu0 0
  %595 = vmatpush1.bf16.msra.mxu0 %v571
  %596 = vmatprep.subr.bf16.mxu0 0
  %597 = vmatpush1.bf16.msra.mxu0 0
  %598 = vmatprep.subr.bf16.mxu0 0
  %599 = vmatpush1.bf16.msra.mxu0 0
  %600 = vmatprep.subr.bf16.mxu0 0
  %601 = vmatpush1.bf16.msra.mxu0 0
  %602 = vmatprep.subr.bf16.mxu0 0
  %603 = vmatpush1.bf16.msra.mxu0 0
  %604 = vmatprep.subr.bf16.mxu0 0
  %605 = vmatpush1.bf16.msra.mxu0 0
  %606 = vmatprep.subr.bf16.mxu0 0
  %607 = vmatpush1.bf16.msra.mxu0 0
  %608 = vmatprep.subr.bf16.mxu0 0
  %609 = vmatpush1.bf16.msra.mxu0 0
  %610 = vmatprep.subr.bf16.mxu0 0
  %611 = vmatpush1.bf16.msra.mxu0 0
  %612 = vmatprep.mubr.bf16.mxu0 0
  %613 = vmatmul.mubr.bf16.gmra.mrb[0].mxu0 %v69
  %v614 = vpop.f32.mrb[0].mxu0
  %v615 = vadd.f32 0.0, %v614
  %v616 = vpop.f32.mrb[0].mxu0
  %v617 = vpop.f32.mrb[0].mxu0
  %v618 = vadd.f32 0.0, %v617
  %v619 = vpop.f32.mrb[0].mxu0
  %620 = vdwg.mxu0
  %v621 = vadd.f32 %v514, %v615
  %v622 = vadd.f32 %v515, %v618
  %623 = vst [vmem:[#allocation6] sm:$0xff] %v621
  %624 = vst [vmem:[#allocation6 + $0x8] sm:$0x3f] %v622
  %v625 = vld [vmem:[#allocation7] sm:$0xff]
  %v626 = vld [vmem:[#allocation7 + $0x8] sm:$0x3f]
  %v627 = vld [vmem:[%s6] sm:$0xf]
  %v628 = vld [vmem:[%s6 + $0x4] sm:$0xf]
  %v629 = vld [vmem:[%s6 + $0x8] sm:$0xf]
  %v630 = vld [vmem:[%s6 + $0xc] sm:$0xf]
  %v631 = vld [vmem:[%s6 + $0x10] sm:$0xf]
  %v632 = vld [vmem:[%s6 + $0x14] sm:$0xf]
  %v633 = vld [vmem:[%s6 + $0x18] sm:$0xf]
  %v634 = vld [vmem:[%s6 + $0x1c] sm:$0xf]
  %v635 = vld [vmem:[%s6 + $0x20] sm:$0xf]
  %v636 = vld [vmem:[%s6 + $0x24] sm:$0xf]
  %v637 = vld [vmem:[%s6 + $0x28] sm:$0xf]
  %v638 = vld [vmem:[%s6 + $0x2c] sm:$0xf]
  %v639 = vld [vmem:[%s6 + $0x30] sm:$0xf]
  %v640 = vld [vmem:[%s6 + $0x34] sm:$0xf]
  %v641 = vld [vmem:[%s6 + $0x38] sm:$0xf]
  %v642 = vld [vmem:[%s6 + $0x3c] sm:$0xf]
  %v659 = vunpack.c.l.b16 %v627
  %v660 = vunpack.c.l.b16 %v628
  %v661 = vunpack.c.l.b16 %v629
  %v662 = vunpack.c.l.b16 %v630
  %v663 = vunpack.c.l.b16 %v631
  %v664 = vunpack.c.l.b16 %v632
  %v665 = vunpack.c.l.b16 %v633
  %v666 = vunpack.c.l.b16 %v634
  %v667 = vunpack.c.l.b16 %v635
  %v668 = vunpack.c.l.b16 %v636
  %v669 = vunpack.c.l.b16 %v637
  %v670 = vunpack.c.l.b16 %v638
  %v671 = vunpack.c.l.b16 %v639
  %v672 = vunpack.c.l.b16 %v640
  %v673 = vunpack.c.l.b16 %v641
  %v674 = vunpack.c.l.b16 %v642
  %v675 = vpack.c.b16 %v660, %v659
  %v676 = vpack.c.b16 %v662, %v661
  %v677 = vpack.c.b16 %v664, %v663
  %v678 = vpack.c.b16 %v666, %v665
  %v679 = vpack.c.b16 %v668, %v667
  %v680 = vpack.c.b16 %v670, %v669
  %v681 = vpack.c.b16 %v672, %v671
  %v682 = vpack.c.b16 %v674, %v673
  %691 = vmatprep.subr.bf16.mxu0 0
  %692 = vmatpush1.bf16.msra.mxu0 %v675
  %693 = vmatprep.subr.bf16.mxu0 0
  %694 = vmatpush1.bf16.msra.mxu0 %v676
  %695 = vmatprep.subr.bf16.mxu0 0
  %696 = vmatpush1.bf16.msra.mxu0 %v677
  %697 = vmatprep.subr.bf16.mxu0 0
  %698 = vmatpush1.bf16.msra.mxu0 %v678
  %699 = vmatprep.subr.bf16.mxu0 0
  %700 = vmatpush1.bf16.msra.mxu0 %v679
  %701 = vmatprep.subr.bf16.mxu0 0
  %702 = vmatpush1.bf16.msra.mxu0 %v680
  %703 = vmatprep.subr.bf16.mxu0 0
  %704 = vmatpush1.bf16.msra.mxu0 %v681
  %705 = vmatprep.subr.bf16.mxu0 0
  %706 = vmatpush1.bf16.msra.mxu0 %v682
  %707 = vmatprep.subr.bf16.mxu0 0
  %708 = vmatpush1.bf16.msra.mxu0 0
  %709 = vmatprep.subr.bf16.mxu0 0
  %710 = vmatpush1.bf16.msra.mxu0 0
  %711 = vmatprep.subr.bf16.mxu0 0
  %712 = vmatpush1.bf16.msra.mxu0 0
  %713 = vmatprep.subr.bf16.mxu0 0
  %714 = vmatpush1.bf16.msra.mxu0 0
  %715 = vmatprep.subr.bf16.mxu0 0
  %716 = vmatpush1.bf16.msra.mxu0 0
  %717 = vmatprep.subr.bf16.mxu0 0
  %718 = vmatpush1.bf16.msra.mxu0 0
  %719 = vmatprep.subr.bf16.mxu0 0
  %720 = vmatpush1.bf16.msra.mxu0 0
  %721 = vmatprep.subr.bf16.mxu0 0
  %722 = vmatpush1.bf16.msra.mxu0 0
  %723 = vmatprep.mubr.bf16.mxu0 0
  %724 = vmatmul.mubr.bf16.gmra.mrb[0].mxu0 %v69
  %v725 = vpop.f32.mrb[0].mxu0
  %v726 = vadd.f32 0.0, %v725
  %v727 = vpop.f32.mrb[0].mxu0
  %v728 = vpop.f32.mrb[0].mxu0
  %v729 = vadd.f32 0.0, %v728
  %v730 = vpop.f32.mrb[0].mxu0
  %731 = vdwg.mxu0
  %v732 = vadd.f32 %v625, %v726
  %v733 = vadd.f32 %v626, %v729
  %734 = vst [vmem:[#allocation7] sm:$0xff] %v732
  %735 = vst [vmem:[#allocation7 + $0x8] sm:$0x3f] %v733
  // Predicated region
  $region58: #{cross_mha_forward.9} parent=0 // pred_check
    %p736 = pneg %p51
  $region59: #{cross_mha_forward.9} parent=0 // pred_check_branch
    %738 = sbr.rel (%p736) target = $region61
  $region60: #{cross_mha_forward.9} parent=0 // pred_region
    %v739 = vld [vmem:[#allocation2] sm:$0xff]
    %v740 = vld [vmem:[#allocation2 + $0x8] sm:$0x3f]
    %v741 = vld [vmem:[%s7] sm:$0x1]
    %v743 = vlaneseq
    %v744 = vshrl.u32 %v743, 7
    %v745 = vsub.s32 0, %v744
    %v746 = vrot.slane %v741, %v745
    %v748 = vadd.f32 %v739, %v746
    %v749 = vadd.f32 %v740, %v746
    %v750 = vpack.c.bf16 %v749, %v748
    %v752 = vunpack.c.l.b16 %v750
    %v753 = vunpack.c.h.b16 %v750
    %v754 = vpack.c.b16 %v752, %v752
    %v755 = vpack.c.b16 %v753, %v753
    %758 = vst [vmem:[%s13] sm:$0xf] %v754
    %759 = vst [vmem:[%s13 + $0x4] sm:$0x7] %v755
    %v760 = vld [vmem:[#allocation3] sm:$0xff]
    %v761 = vld [vmem:[#allocation3 + $0x8] sm:$0x3f]
    %v762 = vld [vmem:[%s8] sm:$0x1]
    %v764 = vlaneseq
    %v765 = vshrl.u32 %v764, 7
    %v766 = vsub.s32 0, %v765
    %v767 = vrot.slane %v762, %v766
    %v769 = vadd.f32 %v760, %v767
    %v770 = vadd.f32 %v761, %v767
    %v771 = vpack.c.bf16 %v770, %v769
    %v773 = vunpack.c.l.b16 %v771
    %v774 = vunpack.c.h.b16 %v771
    %v775 = vpack.c.b16 %v773, %v773
    %v776 = vpack.c.b16 %v774, %v774
    %779 = vst [vmem:[%s14] sm:$0xf] %v775
    %780 = vst [vmem:[%s14 + $0x4] sm:$0x7] %v776
    %v781 = vld [vmem:[#allocation4] sm:$0xff]
    %v782 = vld [vmem:[#allocation4 + $0x8] sm:$0x3f]
    %v783 = vld [vmem:[%s9] sm:$0x1]
    %v785 = vlaneseq
    %v786 = vshrl.u32 %v785, 7
    %v787 = vsub.s32 0, %v786
    %v788 = vrot.slane %v783, %v787
    %v790 = vadd.f32 %v781, %v788
    %v791 = vadd.f32 %v782, %v788
    %v792 = vpack.c.bf16 %v791, %v790
    %v794 = vunpack.c.l.b16 %v792
    %v795 = vunpack.c.h.b16 %v792
    %v796 = vpack.c.b16 %v794, %v794
    %v797 = vpack.c.b16 %v795, %v795
    %800 = vst [vmem:[%s15] sm:$0xf] %v796
    %801 = vst [vmem:[%s15 + $0x4] sm:$0x7] %v797
    %v802 = vld [vmem:[#allocation5] sm:$0xff]
    %v803 = vld [vmem:[#allocation5 + $0x8] sm:$0x3f]
    %v804 = vld [vmem:[%s10] sm:$0x1]
    %v806 = vlaneseq
    %v807 = vshrl.u32 %v806, 7
    %v808 = vsub.s32 0, %v807
    %v809 = vrot.slane %v804, %v808
    %v811 = vadd.f32 %v802, %v809
    %v812 = vadd.f32 %v803, %v809
    %v813 = vpack.c.bf16 %v812, %v811
    %v815 = vunpack.c.l.b16 %v813
    %v816 = vunpack.c.h.b16 %v813
    %v817 = vpack.c.b16 %v815, %v815
    %v818 = vpack.c.b16 %v816, %v816
    %821 = vst [vmem:[%s16] sm:$0xf] %v817
    %822 = vst [vmem:[%s16 + $0x4] sm:$0x7] %v818
    %v823 = vld [vmem:[#allocation6] sm:$0xff]
    %v824 = vld [vmem:[#allocation6 + $0x8] sm:$0x3f]
    %v825 = vld [vmem:[%s11] sm:$0x1]
    %v827 = vlaneseq
    %v828 = vshrl.u32 %v827, 7
    %v829 = vsub.s32 0, %v828
    %v830 = vrot.slane %v825, %v829
    %v832 = vadd.f32 %v823, %v830
    %v833 = vadd.f32 %v824, %v830
    %v834 = vpack.c.bf16 %v833, %v832
    %v836 = vunpack.c.l.b16 %v834
    %v837 = vunpack.c.h.b16 %v834
    %v838 = vpack.c.b16 %v836, %v836
    %v839 = vpack.c.b16 %v837, %v837
    %842 = vst [vmem:[%s17] sm:$0xf] %v838
    %843 = vst [vmem:[%s17 + $0x4] sm:$0x7] %v839
    %v844 = vld [vmem:[#allocation7] sm:$0xff]
    %v845 = vld [vmem:[#allocation7 + $0x8] sm:$0x3f]
    %v846 = vld [vmem:[%s12] sm:$0x1]
    %v848 = vlaneseq
    %v849 = vshrl.u32 %v848, 7
    %v850 = vsub.s32 0, %v849
    %v851 = vrot.slane %v846, %v850
    %v853 = vadd.f32 %v844, %v851
    %v854 = vadd.f32 %v845, %v851
    %v855 = vpack.c.bf16 %v854, %v853
    %v857 = vunpack.c.l.b16 %v855
    %v858 = vunpack.c.h.b16 %v855
    %v859 = vpack.c.b16 %v857, %v857
    %v860 = vpack.c.b16 %v858, %v858
    %863 = vst [vmem:[%s18] sm:$0xf] %v859
    %864 = vst [vmem:[%s18 + $0x4] sm:$0x7] %v860
  $region61: #{cross_mha_forward.9} parent=0 // pred_fallthru
    _
  // Predicated region
  $region62: #{cross_mha_forward.9} parent=0 // pred_check
    _
  $region63: #{cross_mha_forward.9} parent=0 // pred_check_branch
    %866 = sbr.rel (0) target = $region65
  $region64: #{cross_mha_forward.9} parent=0 // pred_region
    _
  $region65: #{cross_mha_forward.9} parent=0 // pred_fallthru
    _
  // Predicated region
  $region66: #{cross_mha_forward.9} parent=0 // pred_check
    _
  $region67: #{cross_mha_forward.9} parent=0 // pred_check_branch
    %868 = sbr.rel (0) target = $region69
  $region68: #{cross_mha_forward.9} parent=0 // pred_region
    _
  $region69: #{cross_mha_forward.9} parent=0 // pred_fallthru
    _
  // Predicated region
  $region70: #{cross_mha_forward.9} parent=0 // pred_check
    _
  $region71: #{cross_mha_forward.9} parent=0 // pred_check_branch
    %870 = sbr.rel (0) target = $region73
  $region72: #{cross_mha_forward.9} parent=0 // pred_region
    _
  $region73: #{cross_mha_forward.9} parent=0 // pred_fallthru
    _
  // Predicated region
  $region74: #{cross_mha_forward.9} parent=0 // pred_check
    _
  $region75: #{cross_mha_forward.9} parent=0 // pred_check_branch
    %872 = sbr.rel (0) target = $region77
  $region76: #{cross_mha_forward.9} parent=0 // pred_region
    _
  $region77: #{cross_mha_forward.9} parent=0 // pred_fallthru
    _
  // Predicated region
  $region78: #{cross_mha_forward.9} parent=0 // pred_check
    _
  $region79: #{cross_mha_forward.9} parent=0 // pred_check_branch
    %874 = sbr.rel (0) target = $region81
  $region80: #{cross_mha_forward.9} parent=0 // pred_region
    _
  $region81: #{cross_mha_forward.9} parent=0 // pred_fallthru
    _
  // Predicated region
  $region82: #{cross_mha_forward.9} parent=0 // pred_check
    _
  $region83: #{cross_mha_forward.9} parent=0 // pred_check_branch
    %876 = sbr.rel (0) target = $region85
  $region84: #{cross_mha_forward.9} parent=0 // pred_region
    _
  $region85: #{cross_mha_forward.9} parent=0 // pred_fallthru
    _
  // Predicated region
  $region86: #{cross_mha_forward.9} parent=0 // pred_check
    _
  $region87: #{cross_mha_forward.9} parent=0 // pred_check_branch
    %878 = sbr.rel (0) target = $region89
  $region88: #{cross_mha_forward.9} parent=0 // pred_region
    _
  $region89: #{cross_mha_forward.9} parent=0 // pred_fallthru
    _
  // Predicated region
  $region90: #{cross_mha_forward.9} parent=0 // pred_check
    _
  $region91: #{cross_mha_forward.9} parent=0 // pred_check_branch
    %880 = sbr.rel (0) target = $region93
  $region92: #{cross_mha_forward.9} parent=0 // pred_region
    _
  $region93: #{cross_mha_forward.9} parent=0 // pred_fallthru
    _
  // Predicated region
  $region94: #{cross_mha_forward.9} parent=0 // pred_check
    _
  $region95: #{cross_mha_forward.9} parent=0 // pred_check_branch
    %882 = sbr.rel (0) target = $region97
  $region96: #{cross_mha_forward.9} parent=0 // pred_region
    _
  $region97: #{cross_mha_forward.9} parent=0 // pred_fallthru
    _
  // Predicated region
  $region98: #{cross_mha_forward.9} parent=0 // pred_check
    _
  $region99: #{cross_mha_forward.9} parent=0 // pred_check_branch
    %884 = sbr.rel (0) target = $region101
  $region100: #{cross_mha_forward.9} parent=0 // pred_region
    _
  $region101: #{cross_mha_forward.9} parent=0 // pred_fallthru
    _
  // Predicated region
  $region102: #{cross_mha_forward.9} parent=0 // pred_check
    _
  $region103: #{cross_mha_forward.9} parent=0 // pred_check_branch
    %886 = sbr.rel (0) target = $region105
  $region104: #{cross_mha_forward.9} parent=0 // pred_region
    _
  $region105: #{cross_mha_forward.9} parent=0 // pred_fallthru
    _
  // Predicated region
  $region106: #{cross_mha_forward.9} parent=0 // pred_check
    _
  $region107: #{cross_mha_forward.9} parent=0 // pred_check_branch
    %888 = sbr.rel (0) target = $region109
  $region108: #{cross_mha_forward.9} parent=0 // pred_region
    _
  $region109: #{cross_mha_forward.9} parent=0 // pred_fallthru
    _

// kernel: cross_mha_forward.13
$region0: #{cross_mha_forward.13}
  #allocation0 [shape = 'u32[]', space=smem, size = 0x4, offset = 0x4, fixed_abs, tag = 'smem constant byte address 0x4 - core index']
  #allocation1 [shape = 'u32[144,128]{1,0:T(1,128)}', space=vmem, size = 0x12000, scoped, tag = 'internal scratch']
  #allocation2 [shape = 'f32[28,128]{1,0:T(8,128)}', space=vmem, size = 0x4000, scoped, tag = 'scratch operand']
  %s0 = inlined_call_operand.vmem [shape: bf16[28,128], index: 0, kind: input, shape index: {}]
  %s1 = inlined_call_operand.vmem [shape: bf16[128,128], index: 1, kind: input, shape index: {}]
  %s2 = inlined_call_operand.vmem [shape: f32[1,128], index: 2, kind: input, shape index: {}]
  %s3 = inlined_call_operand.vmem [shape: f32[1,128], index: 3, kind: input, shape index: {}]
  %s4 = inlined_call_operand.vmem [shape: f32[1,128], index: 4, kind: input, shape index: {}]
  %s5 = inlined_call_operand.vmem [shape: bf16[28,128], index: 5, kind: output, shape index: {}]
  %s6 = sld [smem:[#allocation0]]
  $region38: #{cross_mha_forward.13} parent=0
    _
  %s8 = ssub.s32 1, %s6
  %s9 = scalar_select 0, %s8, %s6
  // Predicated region
  $region2: #{cross_mha_forward.13} parent=0 // pred_check
    _
  $region3: #{cross_mha_forward.13} parent=0 // pred_check_branch
    %11 = sbr.rel (0) target = $region5
  $region4: #{cross_mha_forward.13} parent=0 // pred_region
    _
  $region5: #{cross_mha_forward.13} parent=0 // pred_fallthru
    _
  // Predicated region
  $region6: #{cross_mha_forward.13} parent=0 // pred_check
    _
  $region7: #{cross_mha_forward.13} parent=0 // pred_check_branch
    %13 = sbr.rel (0) target = $region9
  $region8: #{cross_mha_forward.13} parent=0 // pred_region
    _
  $region9: #{cross_mha_forward.13} parent=0 // pred_fallthru
    _
  // Predicated region
  $region10: #{cross_mha_forward.13} parent=0 // pred_check
    _
  $region11: #{cross_mha_forward.13} parent=0 // pred_check_branch
    %15 = sbr.rel (0) target = $region13
  $region12: #{cross_mha_forward.13} parent=0 // pred_region
    _
  $region13: #{cross_mha_forward.13} parent=0 // pred_fallthru
    _
  // Predicated region
  $region14: #{cross_mha_forward.13} parent=0 // pred_check
    _
  $region15: #{cross_mha_forward.13} parent=0 // pred_check_branch
    %17 = sbr.rel (0) target = $region17
  $region16: #{cross_mha_forward.13} parent=0 // pred_region
    _
  $region17: #{cross_mha_forward.13} parent=0 // pred_fallthru
    _
  // Predicated region
  $region18: #{cross_mha_forward.13} parent=0 // pred_check
    _
  $region19: #{cross_mha_forward.13} parent=0 // pred_check_branch
    %19 = sbr.rel (0) target = $region21
  $region20: #{cross_mha_forward.13} parent=0 // pred_region
    _
  $region21: #{cross_mha_forward.13} parent=0 // pred_fallthru
    _
  %p21 = scmp.eq.s32.totalorder 0, 0
  // Predicated region
  $region22: #{cross_mha_forward.13} parent=0 // pred_check
    %p22 = pneg %p21
  $region23: #{cross_mha_forward.13} parent=0 // pred_check_branch
    %24 = sbr.rel (%p22) target = $region25
  $region24: #{cross_mha_forward.13} parent=0 // pred_region
    %25 = vst [vmem:[#allocation2] sm:$0xff] 0.0
    %26 = vst [vmem:[#allocation2 + $0x8] sm:$0xff] 0.0
    %27 = vst [vmem:[#allocation2 + $0x10] sm:$0xff] 0.0
    %28 = vst [vmem:[#allocation2 + $0x18] sm:$0xf] 0.0
  $region25: #{cross_mha_forward.13} parent=0 // pred_fallthru
    _
  %v29 = vld [vmem:[#allocation2] sm:$0xff]
  %v30 = vld [vmem:[#allocation2 + $0x8] sm:$0xff]
  %v31 = vld [vmem:[#allocation2 + $0x10] sm:$0xff]
  %v32 = vld [vmem:[#allocation2 + $0x18] sm:$0xf]
  %v33 = vld [vmem:[%s0] sm:$0xf]
  %v34 = vld [vmem:[%s0 + $0x4] sm:$0xf]
  %v35 = vld [vmem:[%s0 + $0x8] sm:$0xf]
  %v36 = vld [vmem:[%s0 + $0xc] sm:$0x3]
  %v37 = vld [vmem:[%s1] sm:$0xf]
  %v38 = vld [vmem:[%s1 + $0x4] sm:$0xf]
  %v39 = vld [vmem:[%s1 + $0x8] sm:$0xf]
  %v40 = vld [vmem:[%s1 + $0xc] sm:$0xf]
  %v41 = vld [vmem:[%s1 + $0x10] sm:$0xf]
  %v42 = vld [vmem:[%s1 + $0x14] sm:$0xf]
  %v43 = vld [vmem:[%s1 + $0x18] sm:$0xf]
  %v44 = vld [vmem:[%s1 + $0x1c] sm:$0xf]
  %v45 = vld [vmem:[%s1 + $0x20] sm:$0xf]
  %v46 = vld [vmem:[%s1 + $0x24] sm:$0xf]
  %v47 = vld [vmem:[%s1 + $0x28] sm:$0xf]
  %v48 = vld [vmem:[%s1 + $0x2c] sm:$0xf]
  %v49 = vld [vmem:[%s1 + $0x30] sm:$0xf]
  %v50 = vld [vmem:[%s1 + $0x34] sm:$0xf]
  %v51 = vld [vmem:[%s1 + $0x38] sm:$0xf]
  %v52 = vld [vmem:[%s1 + $0x3c] sm:$0xf]
  %v57 = vunpack.c.l.b16 %v33
  %v58 = vunpack.c.l.b16 %v34
  %v59 = vunpack.c.l.b16 %v35
  %v60 = vunpack.c.l.b16 %v36
  %v61 = vpack.c.b16 %v58, %v57
  %v62 = vpack.c.b16 %v60, %v59
  %v81 = vunpack.c.l.b16 %v37
  %v82 = vunpack.c.l.b16 %v38
  %v83 = vunpack.c.l.b16 %v39
  %v84 = vunpack.c.l.b16 %v40
  %v85 = vunpack.c.l.b16 %v41
  %v86 = vunpack.c.l.b16 %v42
  %v87 = vunpack.c.l.b16 %v43
  %v88 = vunpack.c.l.b16 %v44
  %v89 = vunpack.c.l.b16 %v45
  %v90 = vunpack.c.l.b16 %v46
  %v91 = vunpack.c.l.b16 %v47
  %v92 = vunpack.c.l.b16 %v48
  %v93 = vunpack.c.l.b16 %v49
  %v94 = vunpack.c.l.b16 %v50
  %v95 = vunpack.c.l.b16 %v51
  %v96 = vunpack.c.l.b16 %v52
  %v97 = vpack.c.b16 %v82, %v81
  %v98 = vpack.c.b16 %v84, %v83
  %v99 = vpack.c.b16 %v86, %v85
  %v100 = vpack.c.b16 %v88, %v87
  %v101 = vpack.c.b16 %v90, %v89
  %v102 = vpack.c.b16 %v92, %v91
  %v103 = vpack.c.b16 %v94, %v93
  %v104 = vpack.c.b16 %v96, %v95
  %113 = vmatprep.subr.bf16.mxu0 0
  %114 = vmatpush1.bf16.msra.mxu0 %v97
  %115 = vmatprep.subr.bf16.mxu0 0
  %116 = vmatpush1.bf16.msra.mxu0 %v98
  %117 = vmatprep.subr.bf16.mxu0 0
  %118 = vmatpush1.bf16.msra.mxu0 %v99
  %119 = vmatprep.subr.bf16.mxu0 0
  %120 = vmatpush1.bf16.msra.mxu0 %v100
  %121 = vmatprep.subr.bf16.mxu0 0
  %122 = vmatpush1.bf16.msra.mxu0 %v101
  %123 = vmatprep.subr.bf16.mxu0 0
  %124 = vmatpush1.bf16.msra.mxu0 %v102
  %125 = vmatprep.subr.bf16.mxu0 0
  %126 = vmatpush1.bf16.msra.mxu0 %v103
  %127 = vmatprep.subr.bf16.mxu0 0
  %128 = vmatpush1.bf16.msra.mxu0 %v104
  %129 = vmatprep.subr.bf16.mxu0 0
  %130 = vmatpush1.bf16.msra.mxu0 0
  %131 = vmatprep.subr.bf16.mxu0 0
  %132 = vmatpush1.bf16.msra.mxu0 0
  %133 = vmatprep.subr.bf16.mxu0 0
  %134 = vmatpush1.bf16.msra.mxu0 0
  %135 = vmatprep.subr.bf16.mxu0 0
  %136 = vmatpush1.bf16.msra.mxu0 0
  %137 = vmatprep.subr.bf16.mxu0 0
  %138 = vmatpush1.bf16.msra.mxu0 0
  %139 = vmatprep.subr.bf16.mxu0 0
  %140 = vmatpush1.bf16.msra.mxu0 0
  %141 = vmatprep.subr.bf16.mxu0 0
  %142 = vmatpush1.bf16.msra.mxu0 0
  %143 = vmatprep.subr.bf16.mxu0 0
  %144 = vmatpush1.bf16.msra.mxu0 0
  %145 = vmatprep.mubr.bf16.mxu0 0
  %146 = vmatmul.mubr.bf16.gmra.mrb[0].mxu0 %v61
  %v147 = vpop.f32.mrb[0].mxu0
  %v148 = vadd.f32 0.0, %v147
  %v149 = vpop.f32.mrb[0].mxu0
  %v150 = vpop.f32.mrb[0].mxu0
  %v151 = vadd.f32 0.0, %v150
  %v152 = vpop.f32.mrb[0].mxu0
  %153 = vmatprep.mubr.bf16.mxu0 0
  %154 = vmatmul.mubr.bf16.gmra.mrb[0].mxu0 %v62
  %v155 = vpop.f32.mrb[0].mxu0
  %v156 = vadd.f32 0.0, %v155
  %v157 = vpop.f32.mrb[0].mxu0
  %v158 = vpop.f32.mrb[0].mxu0
  %v159 = vadd.f32 0.0, %v158
  %v160 = vpop.f32.mrb[0].mxu0
  %161 = vdwg.mxu0
  %v162 = vadd.f32 %v29, %v148
  %v163 = vadd.f32 %v30, %v151
  %v164 = vadd.f32 %v31, %v156
  %v165 = vadd.f32 %v32, %v159
  %166 = vst [vmem:[#allocation2] sm:$0xff] %v162
  %167 = vst [vmem:[#allocation2 + $0x8] sm:$0xff] %v163
  %168 = vst [vmem:[#allocation2 + $0x10] sm:$0xff] %v164
  %169 = vst [vmem:[#allocation2 + $0x18] sm:$0xf] %v165
  // Predicated region
  $region26: #{cross_mha_forward.13} parent=0 // pred_check
    %p170 = pneg %p21
  $region27: #{cross_mha_forward.13} parent=0 // pred_check_branch
    %172 = sbr.rel (%p170) target = $region29
  $region28: #{cross_mha_forward.13} parent=0 // pred_region
    %v173 = vld [vmem:[#allocation2] sm:$0xff]
    %v174 = vld [vmem:[#allocation2 + $0x8] sm:$0xff]
    %v175 = vld [vmem:[#allocation2 + $0x10] sm:$0xff]
    %v176 = vld [vmem:[#allocation2 + $0x18] sm:$0xf]
    %v177 = vld [vmem:[%s2] sm:$0x1]
    %v179 = vlaneseq
    %v180 = vshrl.u32 %v179, 7
    %v181 = vsub.s32 0, %v180
    %v182 = vrot.slane %v177, %v181
    %v184 = vadd.f32 %v173, %v182
    %v185 = vadd.f32 %v174, %v182
    %v186 = vadd.f32 %v175, %v182
    %v187 = vadd.f32 %v176, %v182
    %188 = vadd.xlane.f32.xlu0 %v184
    %v189 = vpop.xlane.xlu0 %188
    %190 = vadd.xlane.f32.xlu0 %v185
    %v191 = vpop.xlane.xlu0 %190
    %192 = vadd.xlane.f32.xlu0 %v186
    %v193 = vpop.xlane.xlu0 %192
    %vm194 = vcmask 1043456
    %v195 = vsel %vm194, %v187, 0.0
    %196 = vadd.xlane.f32.xlu0 %v195
    %v197 = vpop.xlane.xlu0 %196
    %v198 = vrcp.pop 128.0
    %v199 = vmul.f32 %v189, %v198
    %v200 = vmul.f32 %v191, %v198
    %v201 = vmul.f32 %v193, %v198
    %v202 = vmul.f32 %v197, %v198
    %v203 = vsub.f32 %v184, %v199
    %v204 = vsub.f32 %v185, %v200
    %v205 = vsub.f32 %v186, %v201
    %v206 = vsub.f32 %v187, %v202
    %v207 = vmul.f32 %v203, %v203
    %v208 = vmul.f32 %v204, %v204
    %v209 = vmul.f32 %v205, %v205
    %v210 = vmul.f32 %v206, %v206
    %211 = vadd.xlane.f32.xlu0 %v207
    %v212 = vpop.xlane.xlu0 %211
    %213 = vadd.xlane.f32.xlu0 %v208
    %v214 = vpop.xlane.xlu0 %213
    %215 = vadd.xlane.f32.xlu0 %v209
    %v216 = vpop.xlane.xlu0 %215
    %v217 = vsel %vm194, %v210, 0.0
    %218 = vadd.xlane.f32.xlu0 %v217
    %v219 = vpop.xlane.xlu0 %218
    %v220 = vmul.f32 %v212, %v198
    %v221 = vmul.f32 %v214, %v198
    %v222 = vmul.f32 %v216, %v198
    %v223 = vmul.f32 %v219, %v198
    %v224 = vadd.f32 %v220, 1e-12
    %v225 = vadd.f32 %v221, 1e-12
    %v226 = vadd.f32 %v222, 1e-12
    %v227 = vadd.f32 %v223, 1e-12
    %v228 = vrsqrt.pop %v224
    %v229 = vrsqrt.pop %v225
    %v230 = vrsqrt.pop %v226
    %v231 = vrsqrt.pop %v227
    %v232 = vmul.f32 %v203, %v228
    %v233 = vmul.f32 %v204, %v229
    %v234 = vmul.f32 %v205, %v230
    %v235 = vmul.f32 %v206, %v231
    %v236 = vld [vmem:[%s3] sm:$0x1]
    %v238 = vlaneseq
    %v239 = vshrl.u32 %v238, 7
    %v240 = vsub.s32 0, %v239
    %v241 = vrot.slane %v236, %v240
    %v243 = vmul.f32 %v232, %v241
    %v244 = vmul.f32 %v233, %v241
    %v245 = vmul.f32 %v234, %v241
    %v246 = vmul.f32 %v235, %v241
    %v247 = vld [vmem:[%s4] sm:$0x1]
    %v249 = vlaneseq
    %v250 = vshrl.u32 %v249, 7
    %v251 = vsub.s32 0, %v250
    %v252 = vrot.slane %v247, %v251
    %v254 = vadd.f32 %v243, %v252
    %v255 = vadd.f32 %v244, %v252
    %v256 = vadd.f32 %v245, %v252
    %v257 = vadd.f32 %v246, %v252
    %v258 = vpack.c.bf16 %v255, %v254
    %v259 = vpack.c.bf16 %v257, %v256
    %v262 = vunpack.c.l.b16 %v258
    %v263 = vunpack.c.h.b16 %v258
    %v264 = vunpack.c.l.b16 %v259
    %v265 = vunpack.c.h.b16 %v259
    %v266 = vpack.c.b16 %v262, %v262
    %v267 = vpack.c.b16 %v263, %v263
    %v268 = vpack.c.b16 %v264, %v264
    %v269 = vpack.c.b16 %v265, %v265
    %274 = vst [vmem:[%s5] sm:$0xf] %v266
    %275 = vst [vmem:[%s5 + $0x4] sm:$0xf] %v267
    %276 = vst [vmem:[%s5 + $0x8] sm:$0xf] %v268
    %277 = vst [vmem:[%s5 + $0xc] sm:$0x3] %v269
  $region29: #{cross_mha_forward.13} parent=0 // pred_fallthru
    _
  // Predicated region
  $region30: #{cross_mha_forward.13} parent=0 // pred_check
    _
  $region31: #{cross_mha_forward.13} parent=0 // pred_check_branch
    %279 = sbr.rel (0) target = $region33
  $region32: #{cross_mha_forward.13} parent=0 // pred_region
    _
  $region33: #{cross_mha_forward.13} parent=0 // pred_fallthru
    _
  // Predicated region
  $region34: #{cross_mha_forward.13} parent=0 // pred_check
    _
  $region35: #{cross_mha_forward.13} parent=0 // pred_check_branch
    %281 = sbr.rel (0) target = $region37
  $region36: #{cross_mha_forward.13} parent=0 // pred_region
    _
  $region37: #{cross_mha_forward.13} parent=0 // pred_fallthru
    _

// kernel: cross_mha_forward.12
$region0: #{cross_mha_forward.12}
  #allocation0 [shape = 'u32[]', space=smem, size = 0x4, offset = 0x4, fixed_abs, tag = 'smem constant byte address 0x4 - core index']
  #allocation1 [shape = 'u32[144,128]{1,0:T(1,128)}', space=vmem, size = 0x12000, scoped, tag = 'internal scratch']
  %s0 = inlined_call_operand.vmem [shape: bf16[2,7,128], index: 0, kind: input, shape index: {}]
  %s1 = inlined_call_operand.vmem [shape: bf16[2,2,4,128], index: 1, kind: input, shape index: {}]
  %s2 = inlined_call_operand.vmem [shape: bf16[2,2,4,128], index: 2, kind: input, shape index: {}]
  %s3 = inlined_call_operand.vmem [shape: bf16[2,2,7,128], index: 3, kind: output, shape index: {}]
  %s4 = sld [smem:[#allocation0]]
  $region45: #{cross_mha_forward.12} parent=0
    _
  %s6 = ssub.s32 1, %s4
  %s7 = scalar_select 0, %s6, %s4
  loop: start=0, step=1, limit=4
  $region2: #{cross_mha_forward.12} parent=0 // loop_pre_header
    _
  $region3: #{cross_mha_forward.12} parent=0 // loop_header
    %s9 = sphi 0, %s13
    %p10 = scmp.ge.s32.totalorder %s9, 4
    %s16 = sphi 0, %s28
    %s17 = sphi 0, %s24
    %s18 = sphi 0, %s16
    %s19 = sphi 0, %s17
    %s20 = sphi 0, %s18
    %s21 = sphi 0, %s19
    %s31 = sphi 0, %s33
    %s34 = sphi 0, %s31
    %s35 = sphi 0, %s34
    %s51 = sphi 0, %s35
    %s59 = sphi 0, %s61
    %s62 = sphi 0, %s59
    %s63 = sphi 0, %s62
    %s79 = sphi 0, %s63
    %s87 = sphi 0, %s89
    %s90 = sphi 0, %s87
    %s91 = sphi 0, %s90
    %s107 = sphi 0, %s91
    %s115 = sphi 0, %s117
    %s118 = sphi 0, %s115
    %s119 = sphi 0, %s118
    %s135 = sphi 0, %s119
  $region4: #{cross_mha_forward.12} parent=0 // loop_header_branch
    %12 = sbr.rel (%p10) target = $region8
  $region5: #{cross_mha_forward.12} parent=0 // loop_body
    %s14 = ssub.s32 %s9, 1
    %s15 = ssub.s32 %s9, 2
    %s22 = sadd.s32 1, %s17
    %p23 = scmp.ge.s32.totalorder %s22, 1
    %s24 = scalar_select %p23, 0, %s22
    %s25 = sadd.s32 1, %s16
    %s26 = scalar_select %p23, %s25, %s16
    %p27 = scmp.ge.s32.totalorder %s26, 2
    %s28 = scalar_select %p27, 0, %s26
    %s29 = ssub.s32 %s16, %s28
    %p30 = scmp.eq.s32.totalorder %s29, 0
    %s32 = sadd.s32 %s31, 1
    %s33 = scalar_select %p30, %s31, %s32
    %p36 = pneg %p30
    %p37 = scmp.eq.s32.totalorder %s9, 1
    %p38 = por %p36, %p37
    %p39 = scmp.ne.s32.totalorder %s31, %s34
    %p40 = scmp.eq.s32.totalorder %s9, 0
    %p41 = por %p39, %p40
    %p42 = scmp.ne.s32.totalorder %s31, %s34
    %p43 = scmp.eq.s32.totalorder %s14, 1
    %p44 = por %p42, %p43
    %p45 = scmp.ne.s32.totalorder %s34, %s35
    %p46 = scmp.eq.s32.totalorder %s14, 0
    %p47 = por %p45, %p46
    %p48 = scmp.ne.s32.totalorder %s34, %s35
    %p49 = scmp.eq.s32.totalorder %s15, 1
    %p50 = por %p48, %p49
    %p52 = scmp.ne.s32.totalorder %s35, %s51
    %p53 = scmp.eq.s32.totalorder %s15, 0
    %p54 = por %p52, %p53
    %s55 = ssub.s32 %s16, %s28
    %s56 = ssub.s32 %s17, %s24
    %s57 = sor.u32 %s55, %s56
    %p58 = scmp.eq.s32.totalorder %s57, 0
    %s60 = sadd.s32 %s59, 1
    %s61 = scalar_select %p58, %s59, %s60
    %p64 = pneg %p58
    %p65 = scmp.eq.s32.totalorder %s9, 1
    %p66 = por %p64, %p65
    %p67 = scmp.ne.s32.totalorder %s59, %s62
    %p68 = scmp.eq.s32.totalorder %s9, 0
    %p69 = por %p67, %p68
    %p70 = scmp.ne.s32.totalorder %s59, %s62
    %p71 = scmp.eq.s32.totalorder %s14, 1
    %p72 = por %p70, %p71
    %p73 = scmp.ne.s32.totalorder %s62, %s63
    %p74 = scmp.eq.s32.totalorder %s14, 0
    %p75 = por %p73, %p74
    %p76 = scmp.ne.s32.totalorder %s62, %s63
    %p77 = scmp.eq.s32.totalorder %s15, 1
    %p78 = por %p76, %p77
    %p80 = scmp.ne.s32.totalorder %s63, %s79
    %p81 = scmp.eq.s32.totalorder %s15, 0
    %p82 = por %p80, %p81
    %s83 = ssub.s32 %s16, %s28
    %s84 = ssub.s32 %s17, %s24
    %s85 = sor.u32 %s83, %s84
    %p86 = scmp.eq.s32.totalorder %s85, 0
    %s88 = sadd.s32 %s87, 1
    %s89 = scalar_select %p86, %s87, %s88
    %p92 = pneg %p86
    %p93 = scmp.eq.s32.totalorder %s9, 1
    %p94 = por %p92, %p93
    %p95 = scmp.ne.s32.totalorder %s87, %s90
    %p96 = scmp.eq.s32.totalorder %s9, 0
    %p97 = por %p95, %p96
    %p98 = scmp.ne.s32.totalorder %s87, %s90
    %p99 = scmp.eq.s32.totalorder %s14, 1
    %p100 = por %p98, %p99
    %p101 = scmp.ne.s32.totalorder %s90, %s91
    %p102 = scmp.eq.s32.totalorder %s14, 0
    %p103 = por %p101, %p102
    %p104 = scmp.ne.s32.totalorder %s90, %s91
    %p105 = scmp.eq.s32.totalorder %s15, 1
    %p106 = por %p104, %p105
    %p108 = scmp.ne.s32.totalorder %s91, %s107
    %p109 = scmp.eq.s32.totalorder %s15, 0
    %p110 = por %p108, %p109
    %s111 = ssub.s32 %s16, %s28
    %s112 = ssub.s32 %s17, %s24
    %s113 = sor.u32 %s111, %s112
    %p114 = scmp.eq.s32.totalorder %s113, 0
    %s116 = sadd.s32 %s115, 1
    %s117 = scalar_select %p114, %s115, %s116
    %p120 = pneg %p114
    %p121 = scmp.eq.s32.totalorder %s9, 1
    %p122 = por %p120, %p121
    %p123 = scmp.ne.s32.totalorder %s115, %s118
    %p124 = scmp.eq.s32.totalorder %s9, 0
    %p125 = por %p123, %p124
    %p126 = scmp.ne.s32.totalorder %s115, %s118
    %p127 = scmp.eq.s32.totalorder %s14, 1
    %p128 = por %p126, %p127
    %p129 = scmp.ne.s32.totalorder %s118, %s119
    %p130 = scmp.eq.s32.totalorder %s14, 0
    %p131 = por %p129, %p130
    %p132 = scmp.ne.s32.totalorder %s118, %s119
    %p133 = scmp.eq.s32.totalorder %s15, 1
    %p134 = por %p132, %p133
    %p136 = scmp.ne.s32.totalorder %s119, %s135
    %p137 = scmp.eq.s32.totalorder %s15, 0
    %p138 = por %p136, %p137
    %p139 = scmp.le.s32.totalorder 1, %s9
    %p140 = scmp.lt.s32.totalorder %s9, 3
    %p141 = pnand %p139, %p140
    %p142 = pneg %p141
    // Predicated region
    $region9: #{cross_mha_forward.12} parent=5 // pred_check
      _
    $region10: #{cross_mha_forward.12} parent=5 // pred_check_branch
      %144 = sbr.rel (%p141) target = $region12
    $region11: #{cross_mha_forward.12} parent=5 // pred_region
      %s145 = ssub.s32 %s9, 1
    $region12: #{cross_mha_forward.12} parent=5 // pred_fallthru
      _
    %p146 = scmp.lt.s32.totalorder %s9, 2
    // Predicated region
    $region13: #{cross_mha_forward.12} parent=5 // pred_check
      %p147 = pneg %p146
    $region14: #{cross_mha_forward.12} parent=5 // pred_check_branch
      %149 = sbr.rel (%p147) target = $region16
    $region15: #{cross_mha_forward.12} parent=5 // pred_region
      // Predicated region
      $region17: #{cross_mha_forward.12} parent=15 // pred_check
        %p150 = pneg %p41
      $region18: #{cross_mha_forward.12} parent=15 // pred_check_branch
        %152 = sbr.rel (%p150) target = $region20
      $region19: #{cross_mha_forward.12} parent=15 // pred_region
        %p153 = scmp.lt.s32.totalorder %s16, 1
        %s154 = scalar_select %p153, %s16, 1
        %s155 = smul.addr %s154, 4
        %s156 = scalar_lea.vmem %s0, %s155
      $region20: #{cross_mha_forward.12} parent=15 // pred_fallthru
        _
      // Predicated region
      $region21: #{cross_mha_forward.12} parent=15 // pred_check
        %p157 = pneg %p69
      $region22: #{cross_mha_forward.12} parent=15 // pred_check_branch
        %159 = sbr.rel (%p157) target = $region24
      $region23: #{cross_mha_forward.12} parent=15 // pred_region
        %s160 = smul.u32 2, %s17
        %p161 = scmp.lt.s32.totalorder %s16, 1
        %s162 = scalar_select %p161, %s16, 1
        %p163 = scmp.lt.s32.totalorder %s160, 1
        %s164 = scalar_select %p163, %s160, 1
        %s165 = smul.addr %s162, 2
        %s166 = sadd.s32 %s164, %s165
        %s167 = smul.addr %s166, 2
        %s168 = scalar_lea.vmem %s1, %s167
        %s169 = smul.u32 2, %s17
      $region24: #{cross_mha_forward.12} parent=15 // pred_fallthru
        _
      // Predicated region
      $region25: #{cross_mha_forward.12} parent=15 // pred_check
        %p170 = pneg %p97
      $region26: #{cross_mha_forward.12} parent=15 // pred_check_branch
        %172 = sbr.rel (%p170) target = $region28
      $region27: #{cross_mha_forward.12} parent=15 // pred_region
        %s173 = smul.u32 2, %s17
        %p174 = scmp.lt.s32.totalorder %s16, 1
        %s175 = scalar_select %p174, %s16, 1
        %p176 = scmp.lt.s32.totalorder %s173, 1
        %s177 = scalar_select %p176, %s173, 1
        %s178 = smul.addr %s175, 2
        %s179 = sadd.s32 %s177, %s178
        %s180 = smul.addr %s179, 2
        %s181 = scalar_lea.vmem %s2, %s180
        %s182 = smul.u32 2, %s17
      $region28: #{cross_mha_forward.12} parent=15 // pred_fallthru
        _
    $region16: #{cross_mha_forward.12} parent=5 // pred_fallthru
      _
    %p183 = scmp.le.s32.totalorder 1, %s9
    %p184 = scmp.lt.s32.totalorder %s9, 3
    %p185 = pnand %p183, %p184
    %p186 = pneg %p185
    // Predicated region
    $region29: #{cross_mha_forward.12} parent=5 // pred_check
      _
    $region30: #{cross_mha_forward.12} parent=5 // pred_check_branch
      %188 = sbr.rel (%p185) target = $region32
    $region31: #{cross_mha_forward.12} parent=5 // pred_region
      %s189 = ssub.s32 %s9, 1
      %p190 = scmp.lt.s32.totalorder %s18, 1
      %s191 = scalar_select %p190, %s18, 1
      %s192 = smul.addr %s191, 4
      %s193 = scalar_lea.vmem %s0, %s192
      %p194 = pneg %p47
      %p195 = pneg %p44
      %s196 = smul.u32 2, %s19
      %p197 = scmp.lt.s32.totalorder %s18, 1
      %s198 = scalar_select %p197, %s18, 1
      %p199 = scmp.lt.s32.totalorder %s196, 1
      %s200 = scalar_select %p199, %s196, 1
      %s201 = smul.addr %s198, 2
      %s202 = sadd.s32 %s200, %s201
      %s203 = smul.addr %s202, 2
      %s204 = scalar_lea.vmem %s1, %s203
      %p205 = pneg %p75
      %p206 = pneg %p72
      %s207 = smul.u32 2, %s19
      %p208 = scmp.lt.s32.totalorder %s18, 1
      %s209 = scalar_select %p208, %s18, 1
      %p210 = scmp.lt.s32.totalorder %s207, 1
      %s211 = scalar_select %p210, %s207, 1
      %s212 = smul.addr %s209, 2
      %s213 = sadd.s32 %s211, %s212
      %s214 = smul.addr %s213, 2
      %s215 = scalar_lea.vmem %s2, %s214
      %p216 = pneg %p103
      %p217 = pneg %p100
      %p218 = pneg %p131
      %p219 = pneg %p128
      %s220 = smul.u32 2, %s19
      %p221 = scmp.lt.s32.totalorder %s18, 1
      %s222 = scalar_select %p221, %s18, 1
      %p223 = scmp.lt.s32.totalorder %s220, 1
      %s224 = scalar_select %p223, %s220, 1
      %s225 = smul.addr %s222, 2
      %s226 = sadd.s32 %s224, %s225
      %s227 = smul.addr %s226, 4
      %s228 = scalar_lea.vmem %s3, %s227
      %p229 = scmp.lt.s32.totalorder %s18, 1
      %s230 = scalar_select %p229, %s18, 1
      %s231 = smul.addr %s230, 4
      %s232 = scalar_lea.vmem %s0, %s231
      %s233 = smul.u32 2, %s19
      %p234 = scmp.lt.s32.totalorder %s18, 1
      %s235 = scalar_select %p234, %s18, 1
      %p236 = scmp.lt.s32.totalorder %s233, 1
      %s237 = scalar_select %p236, %s233, 1
      %s238 = smul.addr %s235, 2
      %s239 = sadd.s32 %s237, %s238
      %s240 = smul.addr %s239, 2
      %s241 = scalar_lea.vmem %s1, %s240
      %s242 = smul.u32 2, %s19
      %s243 = smul.u32 2, %s19
      %p244 = scmp.lt.s32.totalorder %s18, 1
      %s245 = scalar_select %p244, %s18, 1
      %p246 = scmp.lt.s32.totalorder %s243, 1
      %s247 = scalar_select %p246, %s243, 1
      %s248 = smul.addr %s245, 2
      %s249 = sadd.s32 %s247, %s248
      %s250 = smul.addr %s249, 2
      %s251 = scalar_lea.vmem %s2, %s250
      %s252 = smul.u32 2, %s19
      %s253 = smul.u32 2, %s19
      %p254 = scmp.lt.s32.totalorder %s18, 1
      %s255 = scalar_select %p254, %s18, 1
      %p256 = scmp.lt.s32.totalorder %s253, 1
      %s257 = scalar_select %p256, %s253, 1
      %s258 = smul.addr %s255, 2
      %s259 = sadd.s32 %s257, %s258
      %s260 = smul.addr %s259, 4
      %s261 = scalar_lea.vmem %s3, %s260
      %s262 = smul.u32 2, %s19
      %v264 = vld [vmem:[%s232] sm:$0xf]
      %v265 = vld [vmem:[%s241] sm:$0x3]
      %v266 = vld [vmem:[%s251] sm:$0x3]
      %vm267 = vcmask 261120
      %v269 = vsel %vm267, %v264, 0
      %v272 = vsel %vm267, %v265, 0
      %274 = vmatprep.subr.bf16.mxu0 0
      %275 = vmatpush1.bf16.xpose.msra.mxu0 %v272
      %276 = vmatprep.subr.bf16.mxu0 0
      %277 = vmatpush1.bf16.xpose.msra.mxu0 0
      %278 = vmatprep.subr.bf16.mxu0 0
      %279 = vmatpush1.bf16.xpose.msra.mxu0 0
      %280 = vmatprep.subr.bf16.mxu0 0
      %281 = vmatpush1.bf16.xpose.msra.mxu0 0
      %282 = vmatprep.subr.bf16.mxu0 0
      %283 = vmatpush1.bf16.xpose.msra.mxu0 0
      %284 = vmatprep.subr.bf16.mxu0 0
      %285 = vmatpush1.bf16.xpose.msra.mxu0 0
      %286 = vmatprep.subr.bf16.mxu0 0
      %287 = vmatpush1.bf16.xpose.msra.mxu0 0
      %288 = vmatprep.subr.bf16.mxu0 0
      %289 = vmatpush1.bf16.xpose.msra.mxu0 0
      %290 = vmatprep.subr.bf16.mxu0 0
      %291 = vmatpush1.bf16.xpose.msra.mxu0 0
      %292 = vmatprep.subr.bf16.mxu0 0
      %293 = vmatpush1.bf16.xpose.msra.mxu0 0
      %294 = vmatprep.subr.bf16.mxu0 0
      %295 = vmatpush1.bf16.xpose.msra.mxu0 0
      %296 = vmatprep.subr.bf16.mxu0 0
      %297 = vmatpush1.bf16.xpose.msra.mxu0 0
      %298 = vmatprep.subr.bf16.mxu0 0
      %299 = vmatpush1.bf16.xpose.msra.mxu0 0
      %300 = vmatprep.subr.bf16.mxu0 0
      %301 = vmatpush1.bf16.xpose.msra.mxu0 0
      %302 = vmatprep.subr.bf16.mxu0 0
      %303 = vmatpush1.bf16.xpose.msra.mxu0 0
      %304 = vmatprep.subr.bf16.mxu0 0
      %305 = vmatpush1.bf16.xpose.msra.mxu0 0
      %306 = vmatprep.mubr.bf16.mxu0 0
      %307 = vmatmul.mubr.bf16.gmra.mrb[0].mxu0 %v269
      %v308 = vpop.f32.mrb[0].mxu0
      %v309 = vadd.f32 0.0, %v308
      %v310 = vpop.f32.mrb[0].mxu0
      %v311 = vpop.f32.mrb[0].mxu0
      %v312 = vpop.f32.mrb[0].mxu0
      %313 = vdwg.mxu0
      %vm314 = vcmask 30720
      %v315 = vsel %vm314, %v309, -inf
      %316 = vmax.xlane.f32.xlu0 %v315
      %v317 = vpop.xlane.xlu0 %316
      %v318 = vsub.f32 %v309, %v317
      %v319 = vmul.f32 %v318, 1.442695
      %v320 = vpow.pop %v319
      %v321 = vsel %vm314, %v320, 0.0
      %322 = vadd.xlane.f32.xlu0 %v321
      %v323 = vpop.xlane.xlu0 %322
      %v324 = vrcp.pop %v323
      %v325 = vmul.f32 %v320, %v324
      %v326 = vpack.c.bf16 %v325, %v325
      %vm327 = vcmask 31744
      %v329 = vsel %vm327, %v326, 0
      %vm331 = vcmask 1041408
      %v333 = vsel %vm331, %v266, 0
      %335 = vmatprep.subr.bf16.mxu0 0
      %336 = vmatpush1.bf16.msra.mxu0 %v333
      %337 = vmatprep.subr.bf16.mxu0 0
      %338 = vmatpush1.bf16.msra.mxu0 0
      %339 = vmatprep.subr.bf16.mxu0 0
      %340 = vmatpush1.bf16.msra.mxu0 0
      %341 = vmatprep.subr.bf16.mxu0 0
      %342 = vmatpush1.bf16.msra.mxu0 0
      %343 = vmatprep.subr.bf16.mxu0 0
      %344 = vmatpush1.bf16.msra.mxu0 0
      %345 = vmatprep.subr.bf16.mxu0 0
      %346 = vmatpush1.bf16.msra.mxu0 0
      %347 = vmatprep.subr.bf16.mxu0 0
      %348 = vmatpush1.bf16.msra.mxu0 0
      %349 = vmatprep.subr.bf16.mxu0 0
      %350 = vmatpush1.bf16.msra.mxu0 0
      %351 = vmatprep.subr.bf16.mxu0 0
      %352 = vmatpush1.bf16.msra.mxu0 0
      %353 = vmatprep.subr.bf16.mxu0 0
      %354 = vmatpush1.bf16.msra.mxu0 0
      %355 = vmatprep.subr.bf16.mxu0 0
      %356 = vmatpush1.bf16.msra.mxu0 0
      %357 = vmatprep.subr.bf16.mxu0 0
      %358 = vmatpush1.bf16.msra.mxu0 0
      %359 = vmatprep.subr.bf16.mxu0 0
      %360 = vmatpush1.bf16.msra.mxu0 0
      %361 = vmatprep.subr.bf16.mxu0 0
      %362 = vmatpush1.bf16.msra.mxu0 0
      %363 = vmatprep.subr.bf16.mxu0 0
      %364 = vmatpush1.bf16.msra.mxu0 0
      %365 = vmatprep.subr.bf16.mxu0 0
      %366 = vmatpush1.bf16.msra.mxu0 0
      %367 = vmatprep.mubr.bf16.mxu0 0
      %368 = vmatmul.mubr.bf16.gmra.mrb[0].mxu0 %v329
      %v369 = vpop.f32.mrb[0].mxu0
      %v370 = vadd.f32 0.0, %v369
      %v371 = vpop.f32.mrb[0].mxu0
      %v372 = vpop.f32.mrb[0].mxu0
      %v373 = vpop.f32.mrb[0].mxu0
      %374 = vdwg.mxu0
      %v376 = vunpack.c.l.b16 %v264
      %v377 = vpack.c.b16 %v376, %v376
      %378 = vrot.lane.b32.xlu0 %v377, 96
      %v379 = vpop.permute.xlu0 %378
      %v382 = vunpack.c.l.s4 1983009808
      %v383 = vunpack.c.0.s8 %v382
      %v384 = vlaneseq
      %v385 = vshrl.u32 %v384, 7
      %v386 = vsub.s32 %v383, %v385
      %v387 = vrot.slane %v265, %v386
      %388 = vrot.lane.b32.xlu0 %v387, 96
      %v389 = vpop.permute.xlu0 %388
      %v391 = vsel %vm267, %v379, 0
      %v394 = vsel %vm267, %v389, 0
      %396 = vmatprep.subr.bf16.mxu0 0
      %397 = vmatpush1.bf16.xpose.msra.mxu0 %v394
      %398 = vmatprep.subr.bf16.mxu0 0
      %399 = vmatpush1.bf16.xpose.msra.mxu0 0
      %400 = vmatprep.subr.bf16.mxu0 0
      %401 = vmatpush1.bf16.xpose.msra.mxu0 0
      %402 = vmatprep.subr.bf16.mxu0 0
      %403 = vmatpush1.bf16.xpose.msra.mxu0 0
      %404 = vmatprep.subr.bf16.mxu0 0
      %405 = vmatpush1.bf16.xpose.msra.mxu0 0
      %406 = vmatprep.subr.bf16.mxu0 0
      %407 = vmatpush1.bf16.xpose.msra.mxu0 0
      %408 = vmatprep.subr.bf16.mxu0 0
      %409 = vmatpush1.bf16.xpose.msra.mxu0 0
      %410 = vmatprep.subr.bf16.mxu0 0
      %411 = vmatpush1.bf16.xpose.msra.mxu0 0
      %412 = vmatprep.subr.bf16.mxu0 0
      %413 = vmatpush1.bf16.xpose.msra.mxu0 0
      %414 = vmatprep.subr.bf16.mxu0 0
      %415 = vmatpush1.bf16.xpose.msra.mxu0 0
      %416 = vmatprep.subr.bf16.mxu0 0
      %417 = vmatpush1.bf16.xpose.msra.mxu0 0
      %418 = vmatprep.subr.bf16.mxu0 0
      %419 = vmatpush1.bf16.xpose.msra.mxu0 0
      %420 = vmatprep.subr.bf16.mxu0 0
      %421 = vmatpush1.bf16.xpose.msra.mxu0 0
      %422 = vmatprep.subr.bf16.mxu0 0
      %423 = vmatpush1.bf16.xpose.msra.mxu0 0
      %424 = vmatprep.subr.bf16.mxu0 0
      %425 = vmatpush1.bf16.xpose.msra.mxu0 0
      %426 = vmatprep.subr.bf16.mxu0 0
      %427 = vmatpush1.bf16.xpose.msra.mxu0 0
      %428 = vmatprep.mubr.bf16.mxu0 0
      %429 = vmatmul.mubr.bf16.gmra.mrb[0].mxu0 %v391
      %v430 = vpop.f32.mrb[0].mxu0
      %v431 = vadd.f32 0.0, %v430
      %v432 = vpop.f32.mrb[0].mxu0
      %v433 = vpop.f32.mrb[0].mxu0
      %v434 = vpop.f32.mrb[0].mxu0
      %435 = vdwg.mxu0
      %v436 = vsel %vm314, %v431, -inf
      %437 = vmax.xlane.f32.xlu0 %v436
      %v438 = vpop.xlane.xlu0 %437
      %v439 = vsub.f32 %v431, %v438
      %v440 = vmul.f32 %v439, 1.442695
      %v441 = vpow.pop %v440
      %v442 = vsel %vm314, %v441, 0.0
      %443 = vadd.xlane.f32.xlu0 %v442
      %v444 = vpop.xlane.xlu0 %443
      %v445 = vrcp.pop %v444
      %v446 = vmul.f32 %v441, %v445
      %v447 = vpack.c.bf16 %v446, %v446
      %v450 = vunpack.c.l.s4 1983009808
      %v451 = vunpack.c.0.s8 %v450
      %v452 = vlaneseq
      %v453 = vshrl.u32 %v452, 7
      %v454 = vsub.s32 %v451, %v453
      %v455 = vrot.slane %v266, %v454
      %456 = vrot.lane.b32.xlu0 %v455, 96
      %v457 = vpop.permute.xlu0 %456
      %v459 = vsel %vm327, %v447, 0
      %v462 = vsel %vm331, %v457, 0
      %464 = vmatprep.subr.bf16.mxu0 0
      %465 = vmatpush1.bf16.msra.mxu0 %v462
      %466 = vmatprep.subr.bf16.mxu0 0
      %467 = vmatpush1.bf16.msra.mxu0 0
      %468 = vmatprep.subr.bf16.mxu0 0
      %469 = vmatpush1.bf16.msra.mxu0 0
      %470 = vmatprep.subr.bf16.mxu0 0
      %471 = vmatpush1.bf16.msra.mxu0 0
      %472 = vmatprep.subr.bf16.mxu0 0
      %473 = vmatpush1.bf16.msra.mxu0 0
      %474 = vmatprep.subr.bf16.mxu0 0
      %475 = vmatpush1.bf16.msra.mxu0 0
      %476 = vmatprep.subr.bf16.mxu0 0
      %477 = vmatpush1.bf16.msra.mxu0 0
      %478 = vmatprep.subr.bf16.mxu0 0
      %479 = vmatpush1.bf16.msra.mxu0 0
      %480 = vmatprep.subr.bf16.mxu0 0
      %481 = vmatpush1.bf16.msra.mxu0 0
      %482 = vmatprep.subr.bf16.mxu0 0
      %483 = vmatpush1.bf16.msra.mxu0 0
      %484 = vmatprep.subr.bf16.mxu0 0
      %485 = vmatpush1.bf16.msra.mxu0 0
      %486 = vmatprep.subr.bf16.mxu0 0
      %487 = vmatpush1.bf16.msra.mxu0 0
      %488 = vmatprep.subr.bf16.mxu0 0
      %489 = vmatpush1.bf16.msra.mxu0 0
      %490 = vmatprep.subr.bf16.mxu0 0
      %491 = vmatpush1.bf16.msra.mxu0 0
      %492 = vmatprep.subr.bf16.mxu0 0
      %493 = vmatpush1.bf16.msra.mxu0 0
      %494 = vmatprep.subr.bf16.mxu0 0
      %495 = vmatpush1.bf16.msra.mxu0 0
      %496 = vmatprep.mubr.bf16.mxu0 0
      %497 = vmatmul.mubr.bf16.gmra.mrb[0].mxu0 %v459
      %v498 = vpop.f32.mrb[0].mxu0
      %v499 = vadd.f32 0.0, %v498
      %v500 = vpop.f32.mrb[0].mxu0
      %v501 = vpop.f32.mrb[0].mxu0
      %v502 = vpop.f32.mrb[0].mxu0
      %503 = vdwg.mxu0
      %504 = vrot.lane.b32.xlu0 %v377, 64
      %v505 = vpop.permute.xlu0 %504
      %506 = vrot.lane.b32.xlu0 %v387, 64
      %v507 = vpop.permute.xlu0 %506
      %v509 = vsel %vm267, %v505, 0
      %v512 = vsel %vm267, %v507, 0
      %514 = vmatprep.subr.bf16.mxu0 0
      %515 = vmatpush1.bf16.xpose.msra.mxu0 %v512
      %516 = vmatprep.subr.bf16.mxu0 0
      %517 = vmatpush1.bf16.xpose.msra.mxu0 0
      %518 = vmatprep.subr.bf16.mxu0 0
      %519 = vmatpush1.bf16.xpose.msra.mxu0 0
      %520 = vmatprep.subr.bf16.mxu0 0
      %521 = vmatpush1.bf16.xpose.msra.mxu0 0
      %522 = vmatprep.subr.bf16.mxu0 0
      %523 = vmatpush1.bf16.xpose.msra.mxu0 0
      %524 = vmatprep.subr.bf16.mxu0 0
      %525 = vmatpush1.bf16.xpose.msra.mxu0 0
      %526 = vmatprep.subr.bf16.mxu0 0
      %527 = vmatpush1.bf16.xpose.msra.mxu0 0
      %528 = vmatprep.subr.bf16.mxu0 0
      %529 = vmatpush1.bf16.xpose.msra.mxu0 0
      %530 = vmatprep.subr.bf16.mxu0 0
      %531 = vmatpush1.bf16.xpose.msra.mxu0 0
      %532 = vmatprep.subr.bf16.mxu0 0
      %533 = vmatpush1.bf16.xpose.msra.mxu0 0
      %534 = vmatprep.subr.bf16.mxu0 0
      %535 = vmatpush1.bf16.xpose.msra.mxu0 0
      %536 = vmatprep.subr.bf16.mxu0 0
      %537 = vmatpush1.bf16.xpose.msra.mxu0 0
      %538 = vmatprep.subr.bf16.mxu0 0
      %539 = vmatpush1.bf16.xpose.msra.mxu0 0
      %540 = vmatprep.subr.bf16.mxu0 0
      %541 = vmatpush1.bf16.xpose.msra.mxu0 0
      %542 = vmatprep.subr.bf16.mxu0 0
      %543 = vmatpush1.bf16.xpose.msra.mxu0 0
      %544 = vmatprep.subr.bf16.mxu0 0
      %545 = vmatpush1.bf16.xpose.msra.mxu0 0
      %546 = vmatprep.mubr.bf16.mxu0 0
      %547 = vmatmul.mubr.bf16.gmra.mrb[0].mxu0 %v509
      %v548 = vpop.f32.mrb[0].mxu0
      %v549 = vadd.f32 0.0, %v548
      %v550 = vpop.f32.mrb[0].mxu0
      %v551 = vpop.f32.mrb[0].mxu0
      %v552 = vpop.f32.mrb[0].mxu0
      %553 = vdwg.mxu0
      %v554 = vsel %vm314, %v549, -inf
      %555 = vmax.xlane.f32.xlu0 %v554
      %v556 = vpop.xlane.xlu0 %555
      %v557 = vsub.f32 %v549, %v556
      %v558 = vmul.f32 %v557, 1.442695
      %v559 = vpow.pop %v558
      %v560 = vsel %vm314, %v559, 0.0
      %561 = vadd.xlane.f32.xlu0 %v560
      %v562 = vpop.xlane.xlu0 %561
      %v563 = vrcp.pop %v562
      %v564 = vmul.f32 %v559, %v563
      %v565 = vpack.c.bf16 %v564, %v564
      %566 = vrot.lane.b32.xlu0 %v455, 64
      %v567 = vpop.permute.xlu0 %566
      %v569 = vsel %vm327, %v565, 0
      %v572 = vsel %vm331, %v567, 0
      %574 = vmatprep.subr.bf16.mxu0 0
      %575 = vmatpush1.bf16.msra.mxu0 %v572
      %576 = vmatprep.subr.bf16.mxu0 0
      %577 = vmatpush1.bf16.msra.mxu0 0
      %578 = vmatprep.subr.bf16.mxu0 0
      %579 = vmatpush1.bf16.msra.mxu0 0
      %580 = vmatprep.subr.bf16.mxu0 0
      %581 = vmatpush1.bf16.msra.mxu0 0
      %582 = vmatprep.subr.bf16.mxu0 0
      %583 = vmatpush1.bf16.msra.mxu0 0
      %584 = vmatprep.subr.bf16.mxu0 0
      %585 = vmatpush1.bf16.msra.mxu0 0
      %586 = vmatprep.subr.bf16.mxu0 0
      %587 = vmatpush1.bf16.msra.mxu0 0
      %588 = vmatprep.subr.bf16.mxu0 0
      %589 = vmatpush1.bf16.msra.mxu0 0
      %590 = vmatprep.subr.bf16.mxu0 0
      %591 = vmatpush1.bf16.msra.mxu0 0
      %592 = vmatprep.subr.bf16.mxu0 0
      %593 = vmatpush1.bf16.msra.mxu0 0
      %594 = vmatprep.subr.bf16.mxu0 0
      %595 = vmatpush1.bf16.msra.mxu0 0
      %596 = vmatprep.subr.bf16.mxu0 0
      %597 = vmatpush1.bf16.msra.mxu0 0
      %598 = vmatprep.subr.bf16.mxu0 0
      %599 = vmatpush1.bf16.msra.mxu0 0
      %600 = vmatprep.subr.bf16.mxu0 0
      %601 = vmatpush1.bf16.msra.mxu0 0
      %602 = vmatprep.subr.bf16.mxu0 0
      %603 = vmatpush1.bf16.msra.mxu0 0
      %604 = vmatprep.subr.bf16.mxu0 0
      %605 = vmatpush1.bf16.msra.mxu0 0
      %606 = vmatprep.mubr.bf16.mxu0 0
      %607 = vmatmul.mubr.bf16.gmra.mrb[0].mxu0 %v569
      %v608 = vpop.f32.mrb[0].mxu0
      %v609 = vadd.f32 0.0, %v608
      %v610 = vpop.f32.mrb[0].mxu0
      %v611 = vpop.f32.mrb[0].mxu0
      %v612 = vpop.f32.mrb[0].mxu0
      %613 = vdwg.mxu0
      %614 = vrot.lane.b32.xlu0 %v377, 32
      %v615 = vpop.permute.xlu0 %614
      %616 = vrot.lane.b32.xlu0 %v387, 32
      %v617 = vpop.permute.xlu0 %616
      %v619 = vsel %vm267, %v615, 0
      %v622 = vsel %vm267, %v617, 0
      %624 = vmatprep.subr.bf16.mxu0 0
      %625 = vmatpush1.bf16.xpose.msra.mxu0 %v622
      %626 = vmatprep.subr.bf16.mxu0 0
      %627 = vmatpush1.bf16.xpose.msra.mxu0 0
      %628 = vmatprep.subr.bf16.mxu0 0
      %629 = vmatpush1.bf16.xpose.msra.mxu0 0
      %630 = vmatprep.subr.bf16.mxu0 0
      %631 = vmatpush1.bf16.xpose.msra.mxu0 0
      %632 = vmatprep.subr.bf16.mxu0 0
      %633 = vmatpush1.bf16.xpose.msra.mxu0 0
      %634 = vmatprep.subr.bf16.mxu0 0
      %635 = vmatpush1.bf16.xpose.msra.mxu0 0
      %636 = vmatprep.subr.bf16.mxu0 0
      %637 = vmatpush1.bf16.xpose.msra.mxu0 0
      %638 = vmatprep.subr.bf16.mxu0 0
      %639 = vmatpush1.bf16.xpose.msra.mxu0 0
      %640 = vmatprep.subr.bf16.mxu0 0
      %641 = vmatpush1.bf16.xpose.msra.mxu0 0
      %642 = vmatprep.subr.bf16.mxu0 0
      %643 = vmatpush1.bf16.xpose.msra.mxu0 0
      %644 = vmatprep.subr.bf16.mxu0 0
      %645 = vmatpush1.bf16.xpose.msra.mxu0 0
      %646 = vmatprep.subr.bf16.mxu0 0
      %647 = vmatpush1.bf16.xpose.msra.mxu0 0
      %648 = vmatprep.subr.bf16.mxu0 0
      %649 = vmatpush1.bf16.xpose.msra.mxu0 0
      %650 = vmatprep.subr.bf16.mxu0 0
      %651 = vmatpush1.bf16.xpose.msra.mxu0 0
      %652 = vmatprep.subr.bf16.mxu0 0
      %653 = vmatpush1.bf16.xpose.msra.mxu0 0
      %654 = vmatprep.subr.bf16.mxu0 0
      %655 = vmatpush1.bf16.xpose.msra.mxu0 0
      %656 = vmatprep.mubr.bf16.mxu0 0
      %657 = vmatmul.mubr.bf16.gmra.mrb[0].mxu0 %v619
      %v658 = vpop.f32.mrb[0].mxu0
      %v659 = vadd.f32 0.0, %v658
      %v660 = vpop.f32.mrb[0].mxu0
      %v661 = vpop.f32.mrb[0].mxu0
      %v662 = vpop.f32.mrb[0].mxu0
      %663 = vdwg.mxu0
      %v664 = vsel %vm314, %v659, -inf
      %665 = vmax.xlane.f32.xlu0 %v664
      %v666 = vpop.xlane.xlu0 %665
      %v667 = vsub.f32 %v659, %v666
      %v668 = vmul.f32 %v667, 1.442695
      %v669 = vpow.pop %v668
      %v670 = vsel %vm314, %v669, 0.0
      %671 = vadd.xlane.f32.xlu0 %v670
      %v672 = vpop.xlane.xlu0 %671
      %v673 = vrcp.pop %v672
      %v674 = vmul.f32 %v669, %v673
      %v675 = vpack.c.bf16 %v674, %v674
      %676 = vrot.lane.b32.xlu0 %v455, 32
      %v677 = vpop.permute.xlu0 %676
      %v679 = vsel %vm327, %v675, 0
      %v682 = vsel %vm331, %v677, 0
      %684 = vmatprep.subr.bf16.mxu0 0
      %685 = vmatpush1.bf16.msra.mxu0 %v682
      %686 = vmatprep.subr.bf16.mxu0 0
      %687 = vmatpush1.bf16.msra.mxu0 0
      %688 = vmatprep.subr.bf16.mxu0 0
      %689 = vmatpush1.bf16.msra.mxu0 0
      %690 = vmatprep.subr.bf16.mxu0 0
      %691 = vmatpush1.bf16.msra.mxu0 0
      %692 = vmatprep.subr.bf16.mxu0 0
      %693 = vmatpush1.bf16.msra.mxu0 0
      %694 = vmatprep.subr.bf16.mxu0 0
      %695 = vmatpush1.bf16.msra.mxu0 0
      %696 = vmatprep.subr.bf16.mxu0 0
      %697 = vmatpush1.bf16.msra.mxu0 0
      %698 = vmatprep.subr.bf16.mxu0 0
      %699 = vmatpush1.bf16.msra.mxu0 0
      %700 = vmatprep.subr.bf16.mxu0 0
      %701 = vmatpush1.bf16.msra.mxu0 0
      %702 = vmatprep.subr.bf16.mxu0 0
      %703 = vmatpush1.bf16.msra.mxu0 0
      %704 = vmatprep.subr.bf16.mxu0 0
      %705 = vmatpush1.bf16.msra.mxu0 0
      %706 = vmatprep.subr.bf16.mxu0 0
      %707 = vmatpush1.bf16.msra.mxu0 0
      %708 = vmatprep.subr.bf16.mxu0 0
      %709 = vmatpush1.bf16.msra.mxu0 0
      %710 = vmatprep.subr.bf16.mxu0 0
      %711 = vmatpush1.bf16.msra.mxu0 0
      %712 = vmatprep.subr.bf16.mxu0 0
      %713 = vmatpush1.bf16.msra.mxu0 0
      %714 = vmatprep.subr.bf16.mxu0 0
      %715 = vmatpush1.bf16.msra.mxu0 0
      %716 = vmatprep.mubr.bf16.mxu0 0
      %717 = vmatmul.mubr.bf16.gmra.mrb[0].mxu0 %v679
      %v718 = vpop.f32.mrb[0].mxu0
      %v719 = vadd.f32 0.0, %v718
      %v720 = vpop.f32.mrb[0].mxu0
      %v721 = vpop.f32.mrb[0].mxu0
      %v722 = vpop.f32.mrb[0].mxu0
      %723 = vdwg.mxu0
      %725 = vrot.lane.b32.xlu0 %v499, 32
      %v726 = vpop.permute.xlu0 %725
      %729 = vrot.lane.b32.xlu0 %v609, 64
      %v730 = vpop.permute.xlu0 %729
      %733 = vrot.lane.b32.xlu0 %v719, 96
      %v734 = vpop.permute.xlu0 %733
      %v736 = vsel %vm267, %v370, %v726
      %vm737 = vcmask 523264
      %v738 = vsel %vm737, %v736, %v730
      %vm739 = vcmask 785408
      %v740 = vsel %vm739, %v738, %v734
      %v741 = vpack.c.bf16 %v740, %v740
      %vm742 = vcmask 1043456
      %vm743 = vsmask.f32 3328
      %vm744 = vmand %vm742, %vm743
      %v745 = vld [vmem:[%s261] sm:$0xf]
      %v746 = vsel %vm744, %v741, %v745
      %747 = vst [vmem:[%s261] sm:$0xf] %v746
      %s748 = scalar_lea.vmem %s241, 2
      %v749 = vld [vmem:[%s748] sm:$0x3]
      %s750 = scalar_lea.vmem %s251, 2
      %v751 = vld [vmem:[%s750] sm:$0x3]
      %v753 = vsel %vm267, %v749, 0
      %755 = vmatprep.subr.bf16.mxu0 0
      %756 = vmatpush1.bf16.xpose.msra.mxu0 %v753
      %757 = vmatprep.subr.bf16.mxu0 0
      %758 = vmatpush1.bf16.xpose.msra.mxu0 0
      %759 = vmatprep.subr.bf16.mxu0 0
      %760 = vmatpush1.bf16.xpose.msra.mxu0 0
      %761 = vmatprep.subr.bf16.mxu0 0
      %762 = vmatpush1.bf16.xpose.msra.mxu0 0
      %763 = vmatprep.subr.bf16.mxu0 0
      %764 = vmatpush1.bf16.xpose.msra.mxu0 0
      %765 = vmatprep.subr.bf16.mxu0 0
      %766 = vmatpush1.bf16.xpose.msra.mxu0 0
      %767 = vmatprep.subr.bf16.mxu0 0
      %768 = vmatpush1.bf16.xpose.msra.mxu0 0
      %769 = vmatprep.subr.bf16.mxu0 0
      %770 = vmatpush1.bf16.xpose.msra.mxu0 0
      %771 = vmatprep.subr.bf16.mxu0 0
      %772 = vmatpush1.bf16.xpose.msra.mxu0 0
      %773 = vmatprep.subr.bf16.mxu0 0
      %774 = vmatpush1.bf16.xpose.msra.mxu0 0
      %775 = vmatprep.subr.bf16.mxu0 0
      %776 = vmatpush1.bf16.xpose.msra.mxu0 0
      %777 = vmatprep.subr.bf16.mxu0 0
      %778 = vmatpush1.bf16.xpose.msra.mxu0 0
      %779 = vmatprep.subr.bf16.mxu0 0
      %780 = vmatpush1.bf16.xpose.msra.mxu0 0
      %781 = vmatprep.subr.bf16.mxu0 0
      %782 = vmatpush1.bf16.xpose.msra.mxu0 0
      %783 = vmatprep.subr.bf16.mxu0 0
      %784 = vmatpush1.bf16.xpose.msra.mxu0 0
      %785 = vmatprep.subr.bf16.mxu0 0
      %786 = vmatpush1.bf16.xpose.msra.mxu0 0
      %787 = vmatprep.mubr.bf16.mxu0 0
      %788 = vmatmul.mubr.bf16.gmra.mrb[0].mxu0 %v269
      %v789 = vpop.f32.mrb[0].mxu0
      %v790 = vadd.f32 0.0, %v789
      %v791 = vpop.f32.mrb[0].mxu0
      %v792 = vpop.f32.mrb[0].mxu0
      %v793 = vpop.f32.mrb[0].mxu0
      %794 = vdwg.mxu0
      %v795 = vsel %vm314, %v790, -inf
      %796 = vmax.xlane.f32.xlu0 %v795
      %v797 = vpop.xlane.xlu0 %796
      %v798 = vsub.f32 %v790, %v797
      %v799 = vmul.f32 %v798, 1.442695
      %v800 = vpow.pop %v799
      %v801 = vsel %vm314, %v800, 0.0
      %802 = vadd.xlane.f32.xlu0 %v801
      %v803 = vpop.xlane.xlu0 %802
      %v804 = vrcp.pop %v803
      %v805 = vmul.f32 %v800, %v804
      %v806 = vpack.c.bf16 %v805, %v805
      %v808 = vsel %vm327, %v806, 0
      %v811 = vsel %vm331, %v751, 0
      %813 = vmatprep.subr.bf16.mxu0 0
      %814 = vmatpush1.bf16.msra.mxu0 %v811
      %815 = vmatprep.subr.bf16.mxu0 0
      %816 = vmatpush1.bf16.msra.mxu0 0
      %817 = vmatprep.subr.bf16.mxu0 0
      %818 = vmatpush1.bf16.msra.mxu0 0
      %819 = vmatprep.subr.bf16.mxu0 0
      %820 = vmatpush1.bf16.msra.mxu0 0
      %821 = vmatprep.subr.bf16.mxu0 0
      %822 = vmatpush1.bf16.msra.mxu0 0
      %823 = vmatprep.subr.bf16.mxu0 0
      %824 = vmatpush1.bf16.msra.mxu0 0
      %825 = vmatprep.subr.bf16.mxu0 0
      %826 = vmatpush1.bf16.msra.mxu0 0
      %827 = vmatprep.subr.bf16.mxu0 0
      %828 = vmatpush1.bf16.msra.mxu0 0
      %829 = vmatprep.subr.bf16.mxu0 0
      %830 = vmatpush1.bf16.msra.mxu0 0
      %831 = vmatprep.subr.bf16.mxu0 0
      %832 = vmatpush1.bf16.msra.mxu0 0
      %833 = vmatprep.subr.bf16.mxu0 0
      %834 = vmatpush1.bf16.msra.mxu0 0
      %835 = vmatprep.subr.bf16.mxu0 0
      %836 = vmatpush1.bf16.msra.mxu0 0
      %837 = vmatprep.subr.bf16.mxu0 0
      %838 = vmatpush1.bf16.msra.mxu0 0
      %839 = vmatprep.subr.bf16.mxu0 0
      %840 = vmatpush1.bf16.msra.mxu0 0
      %841 = vmatprep.subr.bf16.mxu0 0
      %842 = vmatpush1.bf16.msra.mxu0 0
      %843 = vmatprep.subr.bf16.mxu0 0
      %844 = vmatpush1.bf16.msra.mxu0 0
      %845 = vmatprep.mubr.bf16.mxu0 0
      %846 = vmatmul.mubr.bf16.gmra.mrb[0].mxu0 %v808
      %v847 = vpop.f32.mrb[0].mxu0
      %v848 = vadd.f32 0.0, %v847
      %v849 = vpop.f32.mrb[0].mxu0
      %v850 = vpop.f32.mrb[0].mxu0
      %v851 = vpop.f32.mrb[0].mxu0
      %852 = vdwg.mxu0
      %v855 = vunpack.c.l.s4 1983009808
      %v856 = vunpack.c.0.s8 %v855
      %v857 = vlaneseq
      %v858 = vshrl.u32 %v857, 7
      %v859 = vsub.s32 %v856, %v858
      %v860 = vrot.slane %v749, %v859
      %861 = vrot.lane.b32.xlu0 %v860, 96
      %v862 = vpop.permute.xlu0 %861
      %v864 = vsel %vm267, %v862, 0
      %866 = vmatprep.subr.bf16.mxu0 0
      %867 = vmatpush1.bf16.xpose.msra.mxu0 %v864
      %868 = vmatprep.subr.bf16.mxu0 0
      %869 = vmatpush1.bf16.xpose.msra.mxu0 0
      %870 = vmatprep.subr.bf16.mxu0 0
      %871 = vmatpush1.bf16.xpose.msra.mxu0 0
      %872 = vmatprep.subr.bf16.mxu0 0
      %873 = vmatpush1.bf16.xpose.msra.mxu0 0
      %874 = vmatprep.subr.bf16.mxu0 0
      %875 = vmatpush1.bf16.xpose.msra.mxu0 0
      %876 = vmatprep.subr.bf16.mxu0 0
      %877 = vmatpush1.bf16.xpose.msra.mxu0 0
      %878 = vmatprep.subr.bf16.mxu0 0
      %879 = vmatpush1.bf16.xpose.msra.mxu0 0
      %880 = vmatprep.subr.bf16.mxu0 0
      %881 = vmatpush1.bf16.xpose.msra.mxu0 0
      %882 = vmatprep.subr.bf16.mxu0 0
      %883 = vmatpush1.bf16.xpose.msra.mxu0 0
      %884 = vmatprep.subr.bf16.mxu0 0
      %885 = vmatpush1.bf16.xpose.msra.mxu0 0
      %886 = vmatprep.subr.bf16.mxu0 0
      %887 = vmatpush1.bf16.xpose.msra.mxu0 0
      %888 = vmatprep.subr.bf16.mxu0 0
      %889 = vmatpush1.bf16.xpose.msra.mxu0 0
      %890 = vmatprep.subr.bf16.mxu0 0
      %891 = vmatpush1.bf16.xpose.msra.mxu0 0
      %892 = vmatprep.subr.bf16.mxu0 0
      %893 = vmatpush1.bf16.xpose.msra.mxu0 0
      %894 = vmatprep.subr.bf16.mxu0 0
      %895 = vmatpush1.bf16.xpose.msra.mxu0 0
      %896 = vmatprep.subr.bf16.mxu0 0
      %897 = vmatpush1.bf16.xpose.msra.mxu0 0
      %898 = vmatprep.mubr.bf16.mxu0 0
      %899 = vmatmul.mubr.bf16.gmra.mrb[0].mxu0 %v391
      %v900 = vpop.f32.mrb[0].mxu0
      %v901 = vadd.f32 0.0, %v900
      %v902 = vpop.f32.mrb[0].mxu0
      %v903 = vpop.f32.mrb[0].mxu0
      %v904 = vpop.f32.mrb[0].mxu0
      %905 = vdwg.mxu0
      %v906 = vsel %vm314, %v901, -inf
      %907 = vmax.xlane.f32.xlu0 %v906
      %v908 = vpop.xlane.xlu0 %907
      %v909 = vsub.f32 %v901, %v908
      %v910 = vmul.f32 %v909, 1.442695
      %v911 = vpow.pop %v910
      %v912 = vsel %vm314, %v911, 0.0
      %913 = vadd.xlane.f32.xlu0 %v912
      %v914 = vpop.xlane.xlu0 %913
      %v915 = vrcp.pop %v914
      %v916 = vmul.f32 %v911, %v915
      %v917 = vpack.c.bf16 %v916, %v916
      %v920 = vunpack.c.l.s4 1983009808
      %v921 = vunpack.c.0.s8 %v920
      %v922 = vlaneseq
      %v923 = vshrl.u32 %v922, 7
      %v924 = vsub.s32 %v921, %v923
      %v925 = vrot.slane %v751, %v924
      %926 = vrot.lane.b32.xlu0 %v925, 96
      %v927 = vpop.permute.xlu0 %926
      %v929 = vsel %vm327, %v917, 0
      %v932 = vsel %vm331, %v927, 0
      %934 = vmatprep.subr.bf16.mxu0 0
      %935 = vmatpush1.bf16.msra.mxu0 %v932
      %936 = vmatprep.subr.bf16.mxu0 0
      %937 = vmatpush1.bf16.msra.mxu0 0
      %938 = vmatprep.subr.bf16.mxu0 0
      %939 = vmatpush1.bf16.msra.mxu0 0
      %940 = vmatprep.subr.bf16.mxu0 0
      %941 = vmatpush1.bf16.msra.mxu0 0
      %942 = vmatprep.subr.bf16.mxu0 0
      %943 = vmatpush1.bf16.msra.mxu0 0
      %944 = vmatprep.subr.bf16.mxu0 0
      %945 = vmatpush1.bf16.msra.mxu0 0
      %946 = vmatprep.subr.bf16.mxu0 0
      %947 = vmatpush1.bf16.msra.mxu0 0
      %948 = vmatprep.subr.bf16.mxu0 0
      %949 = vmatpush1.bf16.msra.mxu0 0
      %950 = vmatprep.subr.bf16.mxu0 0
      %951 = vmatpush1.bf16.msra.mxu0 0
      %952 = vmatprep.subr.bf16.mxu0 0
      %953 = vmatpush1.bf16.msra.mxu0 0
      %954 = vmatprep.subr.bf16.mxu0 0
      %955 = vmatpush1.bf16.msra.mxu0 0
      %956 = vmatprep.subr.bf16.mxu0 0
      %957 = vmatpush1.bf16.msra.mxu0 0
      %958 = vmatprep.subr.bf16.mxu0 0
      %959 = vmatpush1.bf16.msra.mxu0 0
      %960 = vmatprep.subr.bf16.mxu0 0
      %961 = vmatpush1.bf16.msra.mxu0 0
      %962 = vmatprep.subr.bf16.mxu0 0
      %963 = vmatpush1.bf16.msra.mxu0 0
      %964 = vmatprep.subr.bf16.mxu0 0
      %965 = vmatpush1.bf16.msra.mxu0 0
      %966 = vmatprep.mubr.bf16.mxu0 0
      %967 = vmatmul.mubr.bf16.gmra.mrb[0].mxu0 %v929
      %v968 = vpop.f32.mrb[0].mxu0
      %v969 = vadd.f32 0.0, %v968
      %v970 = vpop.f32.mrb[0].mxu0
      %v971 = vpop.f32.mrb[0].mxu0
      %v972 = vpop.f32.mrb[0].mxu0
      %973 = vdwg.mxu0
      %974 = vrot.lane.b32.xlu0 %v860, 64
      %v975 = vpop.permute.xlu0 %974
      %v977 = vsel %vm267, %v975, 0
      %979 = vmatprep.subr.bf16.mxu0 0
      %980 = vmatpush1.bf16.xpose.msra.mxu0 %v977
      %981 = vmatprep.subr.bf16.mxu0 0
      %982 = vmatpush1.bf16.xpose.msra.mxu0 0
      %983 = vmatprep.subr.bf16.mxu0 0
      %984 = vmatpush1.bf16.xpose.msra.mxu0 0
      %985 = vmatprep.subr.bf16.mxu0 0
      %986 = vmatpush1.bf16.xpose.msra.mxu0 0
      %987 = vmatprep.subr.bf16.mxu0 0
      %988 = vmatpush1.bf16.xpose.msra.mxu0 0
      %989 = vmatprep.subr.bf16.mxu0 0
      %990 = vmatpush1.bf16.xpose.msra.mxu0 0
      %991 = vmatprep.subr.bf16.mxu0 0
      %992 = vmatpush1.bf16.xpose.msra.mxu0 0
      %993 = vmatprep.subr.bf16.mxu0 0
      %994 = vmatpush1.bf16.xpose.msra.mxu0 0
      %995 = vmatprep.subr.bf16.mxu0 0
      %996 = vmatpush1.bf16.xpose.msra.mxu0 0
      %997 = vmatprep.subr.bf16.mxu0 0
      %998 = vmatpush1.bf16.xpose.msra.mxu0 0
      %999 = vmatprep.subr.bf16.mxu0 0
      %1000 = vmatpush1.bf16.xpose.msra.mxu0 0
      %1001 = vmatprep.subr.bf16.mxu0 0
      %1002 = vmatpush1.bf16.xpose.msra.mxu0 0
      %1003 = vmatprep.subr.bf16.mxu0 0
      %1004 = vmatpush1.bf16.xpose.msra.mxu0 0
      %1005 = vmatprep.subr.bf16.mxu0 0
      %1006 = vmatpush1.bf16.xpose.msra.mxu0 0
      %1007 = vmatprep.subr.bf16.mxu0 0
      %1008 = vmatpush1.bf16.xpose.msra.mxu0 0
      %1009 = vmatprep.subr.bf16.mxu0 0
      %1010 = vmatpush1.bf16.xpose.msra.mxu0 0
      %1011 = vmatprep.mubr.bf16.mxu0 0
      %1012 = vmatmul.mubr.bf16.gmra.mrb[0].mxu0 %v509
      %v1013 = vpop.f32.mrb[0].mxu0
      %v1014 = vadd.f32 0.0, %v1013
      %v1015 = vpop.f32.mrb[0].mxu0
      %v1016 = vpop.f32.mrb[0].mxu0
      %v1017 = vpop.f32.mrb[0].mxu0
      %1018 = vdwg.mxu0
      %v1019 = vsel %vm314, %v1014, -inf
      %1020 = vmax.xlane.f32.xlu0 %v1019
      %v1021 = vpop.xlane.xlu0 %1020
      %v1022 = vsub.f32 %v1014, %v1021
      %v1023 = vmul.f32 %v1022, 1.442695
      %v1024 = vpow.pop %v1023
      %v1025 = vsel %vm314, %v1024, 0.0
      %1026 = vadd.xlane.f32.xlu0 %v1025
      %v1027 = vpop.xlane.xlu0 %1026
      %v1028 = vrcp.pop %v1027
      %v1029 = vmul.f32 %v1024, %v1028
      %v1030 = vpack.c.bf16 %v1029, %v1029
      %1031 = vrot.lane.b32.xlu0 %v925, 64
      %v1032 = vpop.permute.xlu0 %1031
      %v1034 = vsel %vm327, %v1030, 0
      %v1037 = vsel %vm331, %v1032, 0
      %1039 = vmatprep.subr.bf16.mxu0 0
      %1040 = vmatpush1.bf16.msra.mxu0 %v1037
      %1041 = vmatprep.subr.bf16.mxu0 0
      %1042 = vmatpush1.bf16.msra.mxu0 0
      %1043 = vmatprep.subr.bf16.mxu0 0
      %1044 = vmatpush1.bf16.msra.mxu0 0
      %1045 = vmatprep.subr.bf16.mxu0 0
      %1046 = vmatpush1.bf16.msra.mxu0 0
      %1047 = vmatprep.subr.bf16.mxu0 0
      %1048 = vmatpush1.bf16.msra.mxu0 0
      %1049 = vmatprep.subr.bf16.mxu0 0
      %1050 = vmatpush1.bf16.msra.mxu0 0
      %1051 = vmatprep.subr.bf16.mxu0 0
      %1052 = vmatpush1.bf16.msra.mxu0 0
      %1053 = vmatprep.subr.bf16.mxu0 0
      %1054 = vmatpush1.bf16.msra.mxu0 0
      %1055 = vmatprep.subr.bf16.mxu0 0
      %1056 = vmatpush1.bf16.msra.mxu0 0
      %1057 = vmatprep.subr.bf16.mxu0 0
      %1058 = vmatpush1.bf16.msra.mxu0 0
      %1059 = vmatprep.subr.bf16.mxu0 0
      %1060 = vmatpush1.bf16.msra.mxu0 0
      %1061 = vmatprep.subr.bf16.mxu0 0
      %1062 = vmatpush1.bf16.msra.mxu0 0
      %1063 = vmatprep.subr.bf16.mxu0 0
      %1064 = vmatpush1.bf16.msra.mxu0 0
      %1065 = vmatprep.subr.bf16.mxu0 0
      %1066 = vmatpush1.bf16.msra.mxu0 0
      %1067 = vmatprep.subr.bf16.mxu0 0
      %1068 = vmatpush1.bf16.msra.mxu0 0
      %1069 = vmatprep.subr.bf16.mxu0 0
      %1070 = vmatpush1.bf16.msra.mxu0 0
      %1071 = vmatprep.mubr.bf16.mxu0 0
      %1072 = vmatmul.mubr.bf16.gmra.mrb[0].mxu0 %v1034
      %v1073 = vpop.f32.mrb[0].mxu0
      %v1074 = vadd.f32 0.0, %v1073
      %v1075 = vpop.f32.mrb[0].mxu0
      %v1076 = vpop.f32.mrb[0].mxu0
      %v1077 = vpop.f32.mrb[0].mxu0
      %1078 = vdwg.mxu0
      %1079 = vrot.lane.b32.xlu0 %v860, 32
      %v1080 = vpop.permute.xlu0 %1079
      %v1082 = vsel %vm267, %v1080, 0
      %1084 = vmatprep.subr.bf16.mxu0 0
      %1085 = vmatpush1.bf16.xpose.msra.mxu0 %v1082
      %1086 = vmatprep.subr.bf16.mxu0 0
      %1087 = vmatpush1.bf16.xpose.msra.mxu0 0
      %1088 = vmatprep.subr.bf16.mxu0 0
      %1089 = vmatpush1.bf16.xpose.msra.mxu0 0
      %1090 = vmatprep.subr.bf16.mxu0 0
      %1091 = vmatpush1.bf16.xpose.msra.mxu0 0
      %1092 = vmatprep.subr.bf16.mxu0 0
      %1093 = vmatpush1.bf16.xpose.msra.mxu0 0
      %1094 = vmatprep.subr.bf16.mxu0 0
      %1095 = vmatpush1.bf16.xpose.msra.mxu0 0
      %1096 = vmatprep.subr.bf16.mxu0 0
      %1097 = vmatpush1.bf16.xpose.msra.mxu0 0
      %1098 = vmatprep.subr.bf16.mxu0 0
      %1099 = vmatpush1.bf16.xpose.msra.mxu0 0
      %1100 = vmatprep.subr.bf16.mxu0 0
      %1101 = vmatpush1.bf16.xpose.msra.mxu0 0
      %1102 = vmatprep.subr.bf16.mxu0 0
      %1103 = vmatpush1.bf16.xpose.msra.mxu0 0
      %1104 = vmatprep.subr.bf16.mxu0 0
      %1105 = vmatpush1.bf16.xpose.msra.mxu0 0
      %1106 = vmatprep.subr.bf16.mxu0 0
      %1107 = vmatpush1.bf16.xpose.msra.mxu0 0
      %1108 = vmatprep.subr.bf16.mxu0 0
      %1109 = vmatpush1.bf16.xpose.msra.mxu0 0
      %1110 = vmatprep.subr.bf16.mxu0 0
      %1111 = vmatpush1.bf16.xpose.msra.mxu0 0
      %1112 = vmatprep.subr.bf16.mxu0 0
      %1113 = vmatpush1.bf16.xpose.msra.mxu0 0
      %1114 = vmatprep.subr.bf16.mxu0 0
      %1115 = vmatpush1.bf16.xpose.msra.mxu0 0
      %1116 = vmatprep.mubr.bf16.mxu0 0
      %1117 = vmatmul.mubr.bf16.gmra.mrb[0].mxu0 %v619
      %v1118 = vpop.f32.mrb[0].mxu0
      %v1119 = vadd.f32 0.0, %v1118
      %v1120 = vpop.f32.mrb[0].mxu0
      %v1121 = vpop.f32.mrb[0].mxu0
      %v1122 = vpop.f32.mrb[0].mxu0
      %1123 = vdwg.mxu0
      %v1124 = vsel %vm314, %v1119, -inf
      %1125 = vmax.xlane.f32.xlu0 %v1124
      %v1126 = vpop.xlane.xlu0 %1125
      %v1127 = vsub.f32 %v1119, %v1126
      %v1128 = vmul.f32 %v1127, 1.442695
      %v1129 = vpow.pop %v1128
      %v1130 = vsel %vm314, %v1129, 0.0
      %1131 = vadd.xlane.f32.xlu0 %v1130
      %v1132 = vpop.xlane.xlu0 %1131
      %v1133 = vrcp.pop %v1132
      %v1134 = vmul.f32 %v1129, %v1133
      %v1135 = vpack.c.bf16 %v1134, %v1134
      %1136 = vrot.lane.b32.xlu0 %v925, 32
      %v1137 = vpop.permute.xlu0 %1136
      %v1139 = vsel %vm327, %v1135, 0
      %v1142 = vsel %vm331, %v1137, 0
      %1144 = vmatprep.subr.bf16.mxu0 0
      %1145 = vmatpush1.bf16.msra.mxu0 %v1142
      %1146 = vmatprep.subr.bf16.mxu0 0
      %1147 = vmatpush1.bf16.msra.mxu0 0
      %1148 = vmatprep.subr.bf16.mxu0 0
      %1149 = vmatpush1.bf16.msra.mxu0 0
      %1150 = vmatprep.subr.bf16.mxu0 0
      %1151 = vmatpush1.bf16.msra.mxu0 0
      %1152 = vmatprep.subr.bf16.mxu0 0
      %1153 = vmatpush1.bf16.msra.mxu0 0
      %1154 = vmatprep.subr.bf16.mxu0 0
      %1155 = vmatpush1.bf16.msra.mxu0 0
      %1156 = vmatprep.subr.bf16.mxu0 0
      %1157 = vmatpush1.bf16.msra.mxu0 0
      %1158 = vmatprep.subr.bf16.mxu0 0
      %1159 = vmatpush1.bf16.msra.mxu0 0
      %1160 = vmatprep.subr.bf16.mxu0 0
      %1161 = vmatpush1.bf16.msra.mxu0 0
      %1162 = vmatprep.subr.bf16.mxu0 0
      %1163 = vmatpush1.bf16.msra.mxu0 0
      %1164 = vmatprep.subr.bf16.mxu0 0
      %1165 = vmatpush1.bf16.msra.mxu0 0
      %1166 = vmatprep.subr.bf16.mxu0 0
      %1167 = vmatpush1.bf16.msra.mxu0 0
      %1168 = vmatprep.subr.bf16.mxu0 0
      %1169 = vmatpush1.bf16.msra.mxu0 0
      %1170 = vmatprep.subr.bf16.mxu0 0
      %1171 = vmatpush1.bf16.msra.mxu0 0
      %1172 = vmatprep.subr.bf16.mxu0 0
      %1173 = vmatpush1.bf16.msra.mxu0 0
      %1174 = vmatprep.subr.bf16.mxu0 0
      %1175 = vmatpush1.bf16.msra.mxu0 0
      %1176 = vmatprep.mubr.bf16.mxu0 0
      %1177 = vmatmul.mubr.bf16.gmra.mrb[0].mxu0 %v1139
      %v1178 = vpop.f32.mrb[0].mxu0
      %v1179 = vadd.f32 0.0, %v1178
      %v1180 = vpop.f32.mrb[0].mxu0
      %v1181 = vpop.f32.mrb[0].mxu0
      %v1182 = vpop.f32.mrb[0].mxu0
      %1183 = vdwg.mxu0
      %1185 = vrot.lane.b32.xlu0 %v969, 32
      %v1186 = vpop.permute.xlu0 %1185
      %1189 = vrot.lane.b32.xlu0 %v1074, 64
      %v1190 = vpop.permute.xlu0 %1189
      %1193 = vrot.lane.b32.xlu0 %v1179, 96
      %v1194 = vpop.permute.xlu0 %1193
      %v1196 = vsel %vm267, %v848, %v1186
      %v1197 = vsel %vm737, %v1196, %v1190
      %v1198 = vsel %vm739, %v1197, %v1194
      %v1199 = vpack.c.bf16 %v1198, %v1198
      %s1200 = scalar_lea.vmem %s261, 4
      %v1201 = vld [vmem:[%s1200] sm:$0xf]
      %v1202 = vsel %vm744, %v1199, %v1201
      %1203 = vst [vmem:[%s1200] sm:$0xf] %v1202
      %s1204 = smul.u32 2, %s19
      %p1205 = scmp.lt.s32.totalorder %s18, 1
      %s1206 = scalar_select %p1205, %s18, 1
      %p1207 = scmp.lt.s32.totalorder %s1204, 1
      %s1208 = scalar_select %p1207, %s1204, 1
      %s1209 = smul.addr %s1206, 2
      %s1210 = sadd.s32 %s1208, %s1209
      %s1211 = smul.addr %s1210, 4
      %s1212 = scalar_lea.vmem %s3, %s1211
      // Predicated region
      $region33: #{cross_mha_forward.12} parent=31 // pred_check
        %p1213 = pneg %p128
      $region34: #{cross_mha_forward.12} parent=31 // pred_check_branch
        %1215 = sbr.rel (%p1213) target = $region36
      $region35: #{cross_mha_forward.12} parent=31 // pred_region
        %s1216 = smul.u32 2, %s19
      $region36: #{cross_mha_forward.12} parent=31 // pred_fallthru
        _
    $region32: #{cross_mha_forward.12} parent=5 // pred_fallthru
      _
    %p1217 = scmp.le.s32.totalorder 2, %s9
    // Predicated region
    $region37: #{cross_mha_forward.12} parent=5 // pred_check
      %p1218 = pneg %p1217
    $region38: #{cross_mha_forward.12} parent=5 // pred_check_branch
      %1220 = sbr.rel (%p1218) target = $region40
    $region39: #{cross_mha_forward.12} parent=5 // pred_region
      %s1221 = ssub.s32 %s9, 2
      // Predicated region
      $region41: #{cross_mha_forward.12} parent=39 // pred_check
        %p1222 = pneg %p134
      $region42: #{cross_mha_forward.12} parent=39 // pred_check_branch
        %1224 = sbr.rel (%p1222) target = $region44
      $region43: #{cross_mha_forward.12} parent=39 // pred_region
        %s1225 = smul.u32 2, %s21
        %p1226 = scmp.lt.s32.totalorder %s20, 1
        %s1227 = scalar_select %p1226, %s20, 1
        %p1228 = scmp.lt.s32.totalorder %s1225, 1
        %s1229 = scalar_select %p1228, %s1225, 1
        %s1230 = smul.addr %s1227, 2
        %s1231 = sadd.s32 %s1229, %s1230
        %s1232 = smul.addr %s1231, 4
        %s1233 = scalar_lea.vmem %s3, %s1232
      $region44: #{cross_mha_forward.12} parent=39 // pred_fallthru
        _
    $region40: #{cross_mha_forward.12} parent=5 // pred_fallthru
      _
  $region6: #{cross_mha_forward.12} parent=0 // loop_footer
    %s13 = sadd.s32 1, %s9
  $region7: #{cross_mha_forward.12} parent=0 // loop_footer_branch
    %8 = sbr.rel target = $region3
  $region8: #{cross_mha_forward.12} parent=0 // loop_exit
    _

// kernel: cross_mha_forward.14
$region0: #{cross_mha_forward.14}
  #allocation0 [shape = 'u32[]', space=smem, size = 0x4, offset = 0x4, fixed_abs, tag = 'smem constant byte address 0x4 - core index']
  #allocation1 [shape = 'u32[144,128]{1,0:T(1,128)}', space=vmem, size = 0x12000, scoped, tag = 'internal scratch']
  #allocation2 [shape = 'f32[28,128]{1,0:T(8,128)}', space=vmem, size = 0x4000, scoped, tag = 'scratch operand']
  #allocation3 [shape = 'f32[28,128]{1,0:T(8,128)}', space=vmem, size = 0x4000, scoped, tag = 'scratch operand']
  %s0 = inlined_call_operand.vmem [shape: bf16[28,128], index: 0, kind: input, shape index: {}]
  %s1 = inlined_call_operand.vmem [shape: bf16[128,128], index: 1, kind: input, shape index: {}]
  %s2 = inlined_call_operand.vmem [shape: bf16[128,128], index: 2, kind: input, shape index: {}]
  %s3 = inlined_call_operand.vmem [shape: f32[1,128], index: 3, kind: input, shape index: {}]
  %s4 = inlined_call_operand.vmem [shape: f32[1,128], index: 4, kind: input, shape index: {}]
  %s5 = inlined_call_operand.vmem [shape: bf16[28,128], index: 5, kind: output, shape index: {0}]
  %s6 = inlined_call_operand.vmem [shape: bf16[28,128], index: 6, kind: output, shape index: {1}]
  %7 = xla_tuple %s5, %s6
  %s8 = sld [smem:[#allocation0]]
  $region46: #{cross_mha_forward.14} parent=0
    _
  %s10 = ssub.s32 1, %s8
  %s11 = scalar_select 0, %s10, %s8
  // Predicated region
  $region2: #{cross_mha_forward.14} parent=0 // pred_check
    _
  $region3: #{cross_mha_forward.14} parent=0 // pred_check_branch
    %13 = sbr.rel (0) target = $region5
  $region4: #{cross_mha_forward.14} parent=0 // pred_region
    _
  $region5: #{cross_mha_forward.14} parent=0 // pred_fallthru
    _
  // Predicated region
  $region6: #{cross_mha_forward.14} parent=0 // pred_check
    _
  $region7: #{cross_mha_forward.14} parent=0 // pred_check_branch
    %15 = sbr.rel (0) target = $region9
  $region8: #{cross_mha_forward.14} parent=0 // pred_region
    _
  $region9: #{cross_mha_forward.14} parent=0 // pred_fallthru
    _
  // Predicated region
  $region10: #{cross_mha_forward.14} parent=0 // pred_check
    _
  $region11: #{cross_mha_forward.14} parent=0 // pred_check_branch
    %17 = sbr.rel (0) target = $region13
  $region12: #{cross_mha_forward.14} parent=0 // pred_region
    _
  $region13: #{cross_mha_forward.14} parent=0 // pred_fallthru
    _
  // Predicated region
  $region14: #{cross_mha_forward.14} parent=0 // pred_check
    _
  $region15: #{cross_mha_forward.14} parent=0 // pred_check_branch
    %19 = sbr.rel (0) target = $region17
  $region16: #{cross_mha_forward.14} parent=0 // pred_region
    _
  $region17: #{cross_mha_forward.14} parent=0 // pred_fallthru
    _
  // Predicated region
  $region18: #{cross_mha_forward.14} parent=0 // pred_check
    _
  $region19: #{cross_mha_forward.14} parent=0 // pred_check_branch
    %21 = sbr.rel (0) target = $region21
  $region20: #{cross_mha_forward.14} parent=0 // pred_region
    _
  $region21: #{cross_mha_forward.14} parent=0 // pred_fallthru
    _
  %p23 = scmp.eq.s32.totalorder 0, 0
  // Predicated region
  $region22: #{cross_mha_forward.14} parent=0 // pred_check
    %p24 = pneg %p23
  $region23: #{cross_mha_forward.14} parent=0 // pred_check_branch
    %26 = sbr.rel (%p24) target = $region25
  $region24: #{cross_mha_forward.14} parent=0 // pred_region
    %27 = vst [vmem:[#allocation2] sm:$0xff] 0.0
    %28 = vst [vmem:[#allocation2 + $0x8] sm:$0xff] 0.0
    %29 = vst [vmem:[#allocation2 + $0x10] sm:$0xff] 0.0
    %30 = vst [vmem:[#allocation2 + $0x18] sm:$0xf] 0.0
    %31 = vst [vmem:[#allocation3] sm:$0xff] 0.0
    %32 = vst [vmem:[#allocation3 + $0x8] sm:$0xff] 0.0
    %33 = vst [vmem:[#allocation3 + $0x10] sm:$0xff] 0.0
    %34 = vst [vmem:[#allocation3 + $0x18] sm:$0xf] 0.0
  $region25: #{cross_mha_forward.14} parent=0 // pred_fallthru
    _
  %v35 = vld [vmem:[%s0] sm:$0xf]
  %v36 = vld [vmem:[%s0 + $0x4] sm:$0xf]
  %v37 = vld [vmem:[%s0 + $0x8] sm:$0xf]
  %v38 = vld [vmem:[%s0 + $0xc] sm:$0x3]
  %v39 = vld [vmem:[#allocation2] sm:$0xff]
  %v40 = vld [vmem:[#allocation2 + $0x8] sm:$0xff]
  %v41 = vld [vmem:[#allocation2 + $0x10] sm:$0xff]
  %v42 = vld [vmem:[#allocation2 + $0x18] sm:$0xf]
  %v43 = vld [vmem:[%s1] sm:$0xf]
  %v44 = vld [vmem:[%s1 + $0x4] sm:$0xf]
  %v45 = vld [vmem:[%s1 + $0x8] sm:$0xf]
  %v46 = vld [vmem:[%s1 + $0xc] sm:$0xf]
  %v47 = vld [vmem:[%s1 + $0x10] sm:$0xf]
  %v48 = vld [vmem:[%s1 + $0x14] sm:$0xf]
  %v49 = vld [vmem:[%s1 + $0x18] sm:$0xf]
  %v50 = vld [vmem:[%s1 + $0x1c] sm:$0xf]
  %v51 = vld [vmem:[%s1 + $0x20] sm:$0xf]
  %v52 = vld [vmem:[%s1 + $0x24] sm:$0xf]
  %v53 = vld [vmem:[%s1 + $0x28] sm:$0xf]
  %v54 = vld [vmem:[%s1 + $0x2c] sm:$0xf]
  %v55 = vld [vmem:[%s1 + $0x30] sm:$0xf]
  %v56 = vld [vmem:[%s1 + $0x34] sm:$0xf]
  %v57 = vld [vmem:[%s1 + $0x38] sm:$0xf]
  %v58 = vld [vmem:[%s1 + $0x3c] sm:$0xf]
  %v63 = vunpack.c.l.b16 %v35
  %v64 = vunpack.c.l.b16 %v36
  %v65 = vunpack.c.l.b16 %v37
  %v66 = vunpack.c.l.b16 %v38
  %v67 = vpack.c.b16 %v64, %v63
  %v68 = vpack.c.b16 %v66, %v65
  %v87 = vunpack.c.l.b16 %v43
  %v88 = vunpack.c.l.b16 %v44
  %v89 = vunpack.c.l.b16 %v45
  %v90 = vunpack.c.l.b16 %v46
  %v91 = vunpack.c.l.b16 %v47
  %v92 = vunpack.c.l.b16 %v48
  %v93 = vunpack.c.l.b16 %v49
  %v94 = vunpack.c.l.b16 %v50
  %v95 = vunpack.c.l.b16 %v51
  %v96 = vunpack.c.l.b16 %v52
  %v97 = vunpack.c.l.b16 %v53
  %v98 = vunpack.c.l.b16 %v54
  %v99 = vunpack.c.l.b16 %v55
  %v100 = vunpack.c.l.b16 %v56
  %v101 = vunpack.c.l.b16 %v57
  %v102 = vunpack.c.l.b16 %v58
  %v103 = vpack.c.b16 %v88, %v87
  %v104 = vpack.c.b16 %v90, %v89
  %v105 = vpack.c.b16 %v92, %v91
  %v106 = vpack.c.b16 %v94, %v93
  %v107 = vpack.c.b16 %v96, %v95
  %v108 = vpack.c.b16 %v98, %v97
  %v109 = vpack.c.b16 %v100, %v99
  %v110 = vpack.c.b16 %v102, %v101
  %119 = vmatprep.subr.bf16.mxu0 0
  %120 = vmatpush1.bf16.msra.mxu0 %v103
  %121 = vmatprep.subr.bf16.mxu0 0
  %122 = vmatpush1.bf16.msra.mxu0 %v104
  %123 = vmatprep.subr.bf16.mxu0 0
  %124 = vmatpush1.bf16.msra.mxu0 %v105
  %125 = vmatprep.subr.bf16.mxu0 0
  %126 = vmatpush1.bf16.msra.mxu0 %v106
  %127 = vmatprep.subr.bf16.mxu0 0
  %128 = vmatpush1.bf16.msra.mxu0 %v107
  %129 = vmatprep.subr.bf16.mxu0 0
  %130 = vmatpush1.bf16.msra.mxu0 %v108
  %131 = vmatprep.subr.bf16.mxu0 0
  %132 = vmatpush1.bf16.msra.mxu0 %v109
  %133 = vmatprep.subr.bf16.mxu0 0
  %134 = vmatpush1.bf16.msra.mxu0 %v110
  %135 = vmatprep.subr.bf16.mxu0 0
  %136 = vmatpush1.bf16.msra.mxu0 0
  %137 = vmatprep.subr.bf16.mxu0 0
  %138 = vmatpush1.bf16.msra.mxu0 0
  %139 = vmatprep.subr.bf16.mxu0 0
  %140 = vmatpush1.bf16.msra.mxu0 0
  %141 = vmatprep.subr.bf16.mxu0 0
  %142 = vmatpush1.bf16.msra.mxu0 0
  %143 = vmatprep.subr.bf16.mxu0 0
  %144 = vmatpush1.bf16.msra.mxu0 0
  %145 = vmatprep.subr.bf16.mxu0 0
  %146 = vmatpush1.bf16.msra.mxu0 0
  %147 = vmatprep.subr.bf16.mxu0 0
  %148 = vmatpush1.bf16.msra.mxu0 0
  %149 = vmatprep.subr.bf16.mxu0 0
  %150 = vmatpush1.bf16.msra.mxu0 0
  %151 = vmatprep.mubr.bf16.mxu0 0
  %152 = vmatmul.mubr.bf16.gmra.mrb[0].mxu0 %v67
  %v153 = vpop.f32.mrb[0].mxu0
  %v154 = vadd.f32 0.0, %v153
  %v155 = vpop.f32.mrb[0].mxu0
  %v156 = vpop.f32.mrb[0].mxu0
  %v157 = vadd.f32 0.0, %v156
  %v158 = vpop.f32.mrb[0].mxu0
  %159 = vmatprep.mubr.bf16.mxu0 0
  %160 = vmatmul.mubr.bf16.gmra.mrb[0].mxu0 %v68
  %v161 = vpop.f32.mrb[0].mxu0
  %v162 = vadd.f32 0.0, %v161
  %v163 = vpop.f32.mrb[0].mxu0
  %v164 = vpop.f32.mrb[0].mxu0
  %v165 = vadd.f32 0.0, %v164
  %v166 = vpop.f32.mrb[0].mxu0
  %167 = vdwg.mxu0
  %v168 = vadd.f32 %v39, %v154
  %v169 = vadd.f32 %v40, %v157
  %v170 = vadd.f32 %v41, %v162
  %v171 = vadd.f32 %v42, %v165
  %172 = vst [vmem:[#allocation2] sm:$0xff] %v168
  %173 = vst [vmem:[#allocation2 + $0x8] sm:$0xff] %v169
  %174 = vst [vmem:[#allocation2 + $0x10] sm:$0xff] %v170
  %175 = vst [vmem:[#allocation2 + $0x18] sm:$0xf] %v171
  %v176 = vld [vmem:[#allocation3] sm:$0xff]
  %v177 = vld [vmem:[#allocation3 + $0x8] sm:$0xff]
  %v178 = vld [vmem:[#allocation3 + $0x10] sm:$0xff]
  %v179 = vld [vmem:[#allocation3 + $0x18] sm:$0xf]
  %v180 = vld [vmem:[%s2] sm:$0xf]
  %v181 = vld [vmem:[%s2 + $0x4] sm:$0xf]
  %v182 = vld [vmem:[%s2 + $0x8] sm:$0xf]
  %v183 = vld [vmem:[%s2 + $0xc] sm:$0xf]
  %v184 = vld [vmem:[%s2 + $0x10] sm:$0xf]
  %v185 = vld [vmem:[%s2 + $0x14] sm:$0xf]
  %v186 = vld [vmem:[%s2 + $0x18] sm:$0xf]
  %v187 = vld [vmem:[%s2 + $0x1c] sm:$0xf]
  %v188 = vld [vmem:[%s2 + $0x20] sm:$0xf]
  %v189 = vld [vmem:[%s2 + $0x24] sm:$0xf]
  %v190 = vld [vmem:[%s2 + $0x28] sm:$0xf]
  %v191 = vld [vmem:[%s2 + $0x2c] sm:$0xf]
  %v192 = vld [vmem:[%s2 + $0x30] sm:$0xf]
  %v193 = vld [vmem:[%s2 + $0x34] sm:$0xf]
  %v194 = vld [vmem:[%s2 + $0x38] sm:$0xf]
  %v195 = vld [vmem:[%s2 + $0x3c] sm:$0xf]
  %v212 = vunpack.c.l.b16 %v180
  %v213 = vunpack.c.l.b16 %v181
  %v214 = vunpack.c.l.b16 %v182
  %v215 = vunpack.c.l.b16 %v183
  %v216 = vunpack.c.l.b16 %v184
  %v217 = vunpack.c.l.b16 %v185
  %v218 = vunpack.c.l.b16 %v186
  %v219 = vunpack.c.l.b16 %v187
  %v220 = vunpack.c.l.b16 %v188
  %v221 = vunpack.c.l.b16 %v189
  %v222 = vunpack.c.l.b16 %v190
  %v223 = vunpack.c.l.b16 %v191
  %v224 = vunpack.c.l.b16 %v192
  %v225 = vunpack.c.l.b16 %v193
  %v226 = vunpack.c.l.b16 %v194
  %v227 = vunpack.c.l.b16 %v195
  %v228 = vpack.c.b16 %v213, %v212
  %v229 = vpack.c.b16 %v215, %v214
  %v230 = vpack.c.b16 %v217, %v216
  %v231 = vpack.c.b16 %v219, %v218
  %v232 = vpack.c.b16 %v221, %v220
  %v233 = vpack.c.b16 %v223, %v222
  %v234 = vpack.c.b16 %v225, %v224
  %v235 = vpack.c.b16 %v227, %v226
  %244 = vmatprep.subr.bf16.mxu0 0
  %245 = vmatpush1.bf16.msra.mxu0 %v228
  %246 = vmatprep.subr.bf16.mxu0 0
  %247 = vmatpush1.bf16.msra.mxu0 %v229
  %248 = vmatprep.subr.bf16.mxu0 0
  %249 = vmatpush1.bf16.msra.mxu0 %v230
  %250 = vmatprep.subr.bf16.mxu0 0
  %251 = vmatpush1.bf16.msra.mxu0 %v231
  %252 = vmatprep.subr.bf16.mxu0 0
  %253 = vmatpush1.bf16.msra.mxu0 %v232
  %254 = vmatprep.subr.bf16.mxu0 0
  %255 = vmatpush1.bf16.msra.mxu0 %v233
  %256 = vmatprep.subr.bf16.mxu0 0
  %257 = vmatpush1.bf16.msra.mxu0 %v234
  %258 = vmatprep.subr.bf16.mxu0 0
  %259 = vmatpush1.bf16.msra.mxu0 %v235
  %260 = vmatprep.subr.bf16.mxu0 0
  %261 = vmatpush1.bf16.msra.mxu0 0
  %262 = vmatprep.subr.bf16.mxu0 0
  %263 = vmatpush1.bf16.msra.mxu0 0
  %264 = vmatprep.subr.bf16.mxu0 0
  %265 = vmatpush1.bf16.msra.mxu0 0
  %266 = vmatprep.subr.bf16.mxu0 0
  %267 = vmatpush1.bf16.msra.mxu0 0
  %268 = vmatprep.subr.bf16.mxu0 0
  %269 = vmatpush1.bf16.msra.mxu0 0
  %270 = vmatprep.subr.bf16.mxu0 0
  %271 = vmatpush1.bf16.msra.mxu0 0
  %272 = vmatprep.subr.bf16.mxu0 0
  %273 = vmatpush1.bf16.msra.mxu0 0
  %274 = vmatprep.subr.bf16.mxu0 0
  %275 = vmatpush1.bf16.msra.mxu0 0
  %276 = vmatprep.mubr.bf16.mxu0 0
  %277 = vmatmul.mubr.bf16.gmra.mrb[0].mxu0 %v67
  %v278 = vpop.f32.mrb[0].mxu0
  %v279 = vadd.f32 0.0, %v278
  %v280 = vpop.f32.mrb[0].mxu0
  %v281 = vpop.f32.mrb[0].mxu0
  %v282 = vadd.f32 0.0, %v281
  %v283 = vpop.f32.mrb[0].mxu0
  %284 = vmatprep.mubr.bf16.mxu0 0
  %285 = vmatmul.mubr.bf16.gmra.mrb[0].mxu0 %v68
  %v286 = vpop.f32.mrb[0].mxu0
  %v287 = vadd.f32 0.0, %v286
  %v288 = vpop.f32.mrb[0].mxu0
  %v289 = vpop.f32.mrb[0].mxu0
  %v290 = vadd.f32 0.0, %v289
  %v291 = vpop.f32.mrb[0].mxu0
  %292 = vdwg.mxu0
  %v293 = vadd.f32 %v176, %v279
  %v294 = vadd.f32 %v177, %v282
  %v295 = vadd.f32 %v178, %v287
  %v296 = vadd.f32 %v179, %v290
  %297 = vst [vmem:[#allocation3] sm:$0xff] %v293
  %298 = vst [vmem:[#allocation3 + $0x8] sm:$0xff] %v294
  %299 = vst [vmem:[#allocation3 + $0x10] sm:$0xff] %v295
  %300 = vst [vmem:[#allocation3 + $0x18] sm:$0xf] %v296
  // Predicated region
  $region26: #{cross_mha_forward.14} parent=0 // pred_check
    %p301 = pneg %p23
  $region27: #{cross_mha_forward.14} parent=0 // pred_check_branch
    %303 = sbr.rel (%p301) target = $region29
  $region28: #{cross_mha_forward.14} parent=0 // pred_region
    %v304 = vld [vmem:[#allocation2] sm:$0xff]
    %v305 = vld [vmem:[#allocation2 + $0x8] sm:$0xff]
    %v306 = vld [vmem:[#allocation2 + $0x10] sm:$0xff]
    %v307 = vld [vmem:[#allocation2 + $0x18] sm:$0xf]
    %v308 = vld [vmem:[%s3] sm:$0x1]
    %v310 = vlaneseq
    %v311 = vshrl.u32 %v310, 7
    %v312 = vsub.s32 0, %v311
    %v313 = vrot.slane %v308, %v312
    %v315 = vadd.f32 %v304, %v313
    %v316 = vadd.f32 %v305, %v313
    %v317 = vadd.f32 %v306, %v313
    %v318 = vadd.f32 %v307, %v313
    %v319 = vpack.c.bf16 %v316, %v315
    %v320 = vpack.c.bf16 %v318, %v317
    %v323 = vunpack.c.l.b16 %v319
    %v324 = vunpack.c.h.b16 %v319
    %v325 = vunpack.c.l.b16 %v320
    %v326 = vunpack.c.h.b16 %v320
    %v327 = vpack.c.b16 %v323, %v323
    %v328 = vpack.c.b16 %v324, %v324
    %v329 = vpack.c.b16 %v325, %v325
    %v330 = vpack.c.b16 %v326, %v326
    %335 = vst [vmem:[%s5] sm:$0xf] %v327
    %336 = vst [vmem:[%s5 + $0x4] sm:$0xf] %v328
    %337 = vst [vmem:[%s5 + $0x8] sm:$0xf] %v329
    %338 = vst [vmem:[%s5 + $0xc] sm:$0x3] %v330
    %v339 = vld [vmem:[#allocation3] sm:$0xff]
    %v340 = vld [vmem:[#allocation3 + $0x8] sm:$0xff]
    %v341 = vld [vmem:[#allocation3 + $0x10] sm:$0xff]
    %v342 = vld [vmem:[#allocation3 + $0x18] sm:$0xf]
    %v343 = vld [vmem:[%s4] sm:$0x1]
    %v345 = vlaneseq
    %v346 = vshrl.u32 %v345, 7
    %v347 = vsub.s32 0, %v346
    %v348 = vrot.slane %v343, %v347
    %v350 = vadd.f32 %v339, %v348
    %v351 = vadd.f32 %v340, %v348
    %v352 = vadd.f32 %v341, %v348
    %v353 = vadd.f32 %v342, %v348
    %v354 = vpack.c.bf16 %v351, %v350
    %v355 = vpack.c.bf16 %v353, %v352
    %v358 = vunpack.c.l.b16 %v354
    %v359 = vunpack.c.h.b16 %v354
    %v360 = vunpack.c.l.b16 %v355
    %v361 = vunpack.c.h.b16 %v355
    %v362 = vpack.c.b16 %v358, %v358
    %v363 = vpack.c.b16 %v359, %v359
    %v364 = vpack.c.b16 %v360, %v360
    %v365 = vpack.c.b16 %v361, %v361
    %370 = vst [vmem:[%s6] sm:$0xf] %v362
    %371 = vst [vmem:[%s6 + $0x4] sm:$0xf] %v363
    %372 = vst [vmem:[%s6 + $0x8] sm:$0xf] %v364
    %373 = vst [vmem:[%s6 + $0xc] sm:$0x3] %v365
  $region29: #{cross_mha_forward.14} parent=0 // pred_fallthru
    _
  // Predicated region
  $region30: #{cross_mha_forward.14} parent=0 // pred_check
    _
  $region31: #{cross_mha_forward.14} parent=0 // pred_check_branch
    %375 = sbr.rel (0) target = $region33
  $region32: #{cross_mha_forward.14} parent=0 // pred_region
    _
  $region33: #{cross_mha_forward.14} parent=0 // pred_fallthru
    _
  // Predicated region
  $region34: #{cross_mha_forward.14} parent=0 // pred_check
    _
  $region35: #{cross_mha_forward.14} parent=0 // pred_check_branch
    %377 = sbr.rel (0) target = $region37
  $region36: #{cross_mha_forward.14} parent=0 // pred_region
    _
  $region37: #{cross_mha_forward.14} parent=0 // pred_fallthru
    _
  // Predicated region
  $region38: #{cross_mha_forward.14} parent=0 // pred_check
    _
  $region39: #{cross_mha_forward.14} parent=0 // pred_check_branch
    %379 = sbr.rel (0) target = $region41
  $region40: #{cross_mha_forward.14} parent=0 // pred_region
    _
  $region41: #{cross_mha_forward.14} parent=0 // pred_fallthru
    _
  // Predicated region
  $region42: #{cross_mha_forward.14} parent=0 // pred_check
    _
  $region43: #{cross_mha_forward.14} parent=0 // pred_check_branch
    %381 = sbr.rel (0) target = $region45
  $region44: #{cross_mha_forward.14} parent=0 // pred_region
    _
  $region45: #{cross_mha_forward.14} parent=0 // pred_fallthru
    _

// kernel: cross_mha_forward.16
$region0: #{cross_mha_forward.16}
  #allocation0 [shape = 'u32[]', space=smem, size = 0x4, offset = 0x4, fixed_abs, tag = 'smem constant byte address 0x4 - core index']
  #allocation1 [shape = 'u32[144,128]{1,0:T(1,128)}', space=vmem, size = 0x12000, scoped, tag = 'internal scratch']
  %s0 = inlined_call_operand.vmem [shape: bf16[2,1,128], index: 0, kind: input, shape index: {}]
  %s1 = inlined_call_operand.vmem [shape: bf16[2,2,4,128], index: 1, kind: input, shape index: {}]
  %s2 = inlined_call_operand.vmem [shape: bf16[2,8,128], index: 2, kind: input, shape index: {}]
  %s3 = inlined_call_operand.vmem [shape: bf16[2,8,128], index: 3, kind: input, shape index: {}]
  %s4 = inlined_call_operand.vmem [shape: bf16[2,2,4,128], index: 4, kind: input, shape index: {}]
  %s5 = inlined_call_operand.vmem [shape: bf16[2,2,4,128], index: 5, kind: input, shape index: {}]
  %s6 = inlined_call_operand.vmem [shape: f32[2,1,8], index: 6, kind: input, shape index: {}]
  %s7 = inlined_call_operand.vmem [shape: f32[2,1,4], index: 7, kind: input, shape index: {}]
  %s8 = inlined_call_operand.vmem [shape: bf16[2,2,1,128], index: 8, kind: output, shape index: {0}]
  %s9 = inlined_call_operand.vmem [shape: bf16[2,2,4,128], index: 9, kind: output, shape index: {1}]
  %10 = xla_tuple %s8, %s9
  %s11 = sld [smem:[#allocation0]]
  $region73: #{cross_mha_forward.16} parent=0
    _
  %s13 = ssub.s32 1, %s11
  %s14 = scalar_select 0, %s13, %s11
  loop: start=0, step=1, limit=4
  $region2: #{cross_mha_forward.16} parent=0 // loop_pre_header
    _
  $region3: #{cross_mha_forward.16} parent=0 // loop_header
    %s16 = sphi 0, %s20
    %p17 = scmp.ge.s32.totalorder %s16, 4
    %s23 = sphi 0, %s35
    %s24 = sphi 0, %s31
    %s25 = sphi 0, %s23
    %s26 = sphi 0, %s24
    %s27 = sphi 0, %s25
    %s28 = sphi 0, %s26
    %s38 = sphi 0, %s40
    %s41 = sphi 0, %s38
    %s42 = sphi 0, %s41
    %s58 = sphi 0, %s42
    %s66 = sphi 0, %s68
    %s69 = sphi 0, %s66
    %s70 = sphi 0, %s69
    %s86 = sphi 0, %s70
    %s92 = sphi 0, %s94
    %s95 = sphi 0, %s92
    %s96 = sphi 0, %s95
    %s112 = sphi 0, %s96
    %s118 = sphi 0, %s120
    %s121 = sphi 0, %s118
    %s122 = sphi 0, %s121
    %s138 = sphi 0, %s122
    %s146 = sphi 0, %s148
    %s149 = sphi 0, %s146
    %s150 = sphi 0, %s149
    %s166 = sphi 0, %s150
    %s174 = sphi 0, %s176
    %s177 = sphi 0, %s174
    %s178 = sphi 0, %s177
    %s194 = sphi 0, %s178
    %s200 = sphi 0, %s202
    %s203 = sphi 0, %s200
    %s204 = sphi 0, %s203
    %s220 = sphi 0, %s204
    %s226 = sphi 0, %s228
    %s229 = sphi 0, %s226
    %s230 = sphi 0, %s229
    %s246 = sphi 0, %s230
    %s254 = sphi 0, %s256
    %s257 = sphi 0, %s254
    %s258 = sphi 0, %s257
    %s274 = sphi 0, %s258
    %s282 = sphi 0, %s284
    %s285 = sphi 0, %s282
    %s286 = sphi 0, %s285
    %s302 = sphi 0, %s286
  $region4: #{cross_mha_forward.16} parent=0 // loop_header_branch
    %19 = sbr.rel (%p17) target = $region8
  $region5: #{cross_mha_forward.16} parent=0 // loop_body
    %s21 = ssub.s32 %s16, 1
    %s22 = ssub.s32 %s16, 2
    %s29 = sadd.s32 1, %s24
    %p30 = scmp.ge.s32.totalorder %s29, 1
    %s31 = scalar_select %p30, 0, %s29
    %s32 = sadd.s32 1, %s23
    %s33 = scalar_select %p30, %s32, %s23
    %p34 = scmp.ge.s32.totalorder %s33, 2
    %s35 = scalar_select %p34, 0, %s33
    %s36 = ssub.s32 %s23, %s35
    %p37 = scmp.eq.s32.totalorder %s36, 0
    %s39 = sadd.s32 %s38, 1
    %s40 = scalar_select %p37, %s38, %s39
    %p43 = pneg %p37
    %p44 = scmp.eq.s32.totalorder %s16, 1
    %p45 = por %p43, %p44
    %p46 = scmp.ne.s32.totalorder %s38, %s41
    %p47 = scmp.eq.s32.totalorder %s16, 0
    %p48 = por %p46, %p47
    %p49 = scmp.ne.s32.totalorder %s38, %s41
    %p50 = scmp.eq.s32.totalorder %s21, 1
    %p51 = por %p49, %p50
    %p52 = scmp.ne.s32.totalorder %s41, %s42
    %p53 = scmp.eq.s32.totalorder %s21, 0
    %p54 = por %p52, %p53
    %p55 = scmp.ne.s32.totalorder %s41, %s42
    %p56 = scmp.eq.s32.totalorder %s22, 1
    %p57 = por %p55, %p56
    %p59 = scmp.ne.s32.totalorder %s42, %s58
    %p60 = scmp.eq.s32.totalorder %s22, 0
    %p61 = por %p59, %p60
    %s62 = ssub.s32 %s23, %s35
    %s63 = ssub.s32 %s24, %s31
    %s64 = sor.u32 %s62, %s63
    %p65 = scmp.eq.s32.totalorder %s64, 0
    %s67 = sadd.s32 %s66, 1
    %s68 = scalar_select %p65, %s66, %s67
    %p71 = pneg %p65
    %p72 = scmp.eq.s32.totalorder %s16, 1
    %p73 = por %p71, %p72
    %p74 = scmp.ne.s32.totalorder %s66, %s69
    %p75 = scmp.eq.s32.totalorder %s16, 0
    %p76 = por %p74, %p75
    %p77 = scmp.ne.s32.totalorder %s66, %s69
    %p78 = scmp.eq.s32.totalorder %s21, 1
    %p79 = por %p77, %p78
    %p80 = scmp.ne.s32.totalorder %s69, %s70
    %p81 = scmp.eq.s32.totalorder %s21, 0
    %p82 = por %p80, %p81
    %p83 = scmp.ne.s32.totalorder %s69, %s70
    %p84 = scmp.eq.s32.totalorder %s22, 1
    %p85 = por %p83, %p84
    %p87 = scmp.ne.s32.totalorder %s70, %s86
    %p88 = scmp.eq.s32.totalorder %s22, 0
    %p89 = por %p87, %p88
    %s90 = ssub.s32 %s23, %s35
    %p91 = scmp.eq.s32.totalorder %s90, 0
    %s93 = sadd.s32 %s92, 1
    %s94 = scalar_select %p91, %s92, %s93
    %p97 = pneg %p91
    %p98 = scmp.eq.s32.totalorder %s16, 1
    %p99 = por %p97, %p98
    %p100 = scmp.ne.s32.totalorder %s92, %s95
    %p101 = scmp.eq.s32.totalorder %s16, 0
    %p102 = por %p100, %p101
    %p103 = scmp.ne.s32.totalorder %s92, %s95
    %p104 = scmp.eq.s32.totalorder %s21, 1
    %p105 = por %p103, %p104
    %p106 = scmp.ne.s32.totalorder %s95, %s96
    %p107 = scmp.eq.s32.totalorder %s21, 0
    %p108 = por %p106, %p107
    %p109 = scmp.ne.s32.totalorder %s95, %s96
    %p110 = scmp.eq.s32.totalorder %s22, 1
    %p111 = por %p109, %p110
    %p113 = scmp.ne.s32.totalorder %s96, %s112
    %p114 = scmp.eq.s32.totalorder %s22, 0
    %p115 = por %p113, %p114
    %s116 = ssub.s32 %s23, %s35
    %p117 = scmp.eq.s32.totalorder %s116, 0
    %s119 = sadd.s32 %s118, 1
    %s120 = scalar_select %p117, %s118, %s119
    %p123 = pneg %p117
    %p124 = scmp.eq.s32.totalorder %s16, 1
    %p125 = por %p123, %p124
    %p126 = scmp.ne.s32.totalorder %s118, %s121
    %p127 = scmp.eq.s32.totalorder %s16, 0
    %p128 = por %p126, %p127
    %p129 = scmp.ne.s32.totalorder %s118, %s121
    %p130 = scmp.eq.s32.totalorder %s21, 1
    %p131 = por %p129, %p130
    %p132 = scmp.ne.s32.totalorder %s121, %s122
    %p133 = scmp.eq.s32.totalorder %s21, 0
    %p134 = por %p132, %p133
    %p135 = scmp.ne.s32.totalorder %s121, %s122
    %p136 = scmp.eq.s32.totalorder %s22, 1
    %p137 = por %p135, %p136
    %p139 = scmp.ne.s32.totalorder %s122, %s138
    %p140 = scmp.eq.s32.totalorder %s22, 0
    %p141 = por %p139, %p140
    %s142 = ssub.s32 %s23, %s35
    %s143 = ssub.s32 %s24, %s31
    %s144 = sor.u32 %s142, %s143
    %p145 = scmp.eq.s32.totalorder %s144, 0
    %s147 = sadd.s32 %s146, 1
    %s148 = scalar_select %p145, %s146, %s147
    %p151 = pneg %p145
    %p152 = scmp.eq.s32.totalorder %s16, 1
    %p153 = por %p151, %p152
    %p154 = scmp.ne.s32.totalorder %s146, %s149
    %p155 = scmp.eq.s32.totalorder %s16, 0
    %p156 = por %p154, %p155
    %p157 = scmp.ne.s32.totalorder %s146, %s149
    %p158 = scmp.eq.s32.totalorder %s21, 1
    %p159 = por %p157, %p158
    %p160 = scmp.ne.s32.totalorder %s149, %s150
    %p161 = scmp.eq.s32.totalorder %s21, 0
    %p162 = por %p160, %p161
    %p163 = scmp.ne.s32.totalorder %s149, %s150
    %p164 = scmp.eq.s32.totalorder %s22, 1
    %p165 = por %p163, %p164
    %p167 = scmp.ne.s32.totalorder %s150, %s166
    %p168 = scmp.eq.s32.totalorder %s22, 0
    %p169 = por %p167, %p168
    %s170 = ssub.s32 %s23, %s35
    %s171 = ssub.s32 %s24, %s31
    %s172 = sor.u32 %s170, %s171
    %p173 = scmp.eq.s32.totalorder %s172, 0
    %s175 = sadd.s32 %s174, 1
    %s176 = scalar_select %p173, %s174, %s175
    %p179 = pneg %p173
    %p180 = scmp.eq.s32.totalorder %s16, 1
    %p181 = por %p179, %p180
    %p182 = scmp.ne.s32.totalorder %s174, %s177
    %p183 = scmp.eq.s32.totalorder %s16, 0
    %p184 = por %p182, %p183
    %p185 = scmp.ne.s32.totalorder %s174, %s177
    %p186 = scmp.eq.s32.totalorder %s21, 1
    %p187 = por %p185, %p186
    %p188 = scmp.ne.s32.totalorder %s177, %s178
    %p189 = scmp.eq.s32.totalorder %s21, 0
    %p190 = por %p188, %p189
    %p191 = scmp.ne.s32.totalorder %s177, %s178
    %p192 = scmp.eq.s32.totalorder %s22, 1
    %p193 = por %p191, %p192
    %p195 = scmp.ne.s32.totalorder %s178, %s194
    %p196 = scmp.eq.s32.totalorder %s22, 0
    %p197 = por %p195, %p196
    %s198 = ssub.s32 %s23, %s35
    %p199 = scmp.eq.s32.totalorder %s198, 0
    %s201 = sadd.s32 %s200, 1
    %s202 = scalar_select %p199, %s200, %s201
    %p205 = pneg %p199
    %p206 = scmp.eq.s32.totalorder %s16, 1
    %p207 = por %p205, %p206
    %p208 = scmp.ne.s32.totalorder %s200, %s203
    %p209 = scmp.eq.s32.totalorder %s16, 0
    %p210 = por %p208, %p209
    %p211 = scmp.ne.s32.totalorder %s200, %s203
    %p212 = scmp.eq.s32.totalorder %s21, 1
    %p213 = por %p211, %p212
    %p214 = scmp.ne.s32.totalorder %s203, %s204
    %p215 = scmp.eq.s32.totalorder %s21, 0
    %p216 = por %p214, %p215
    %p217 = scmp.ne.s32.totalorder %s203, %s204
    %p218 = scmp.eq.s32.totalorder %s22, 1
    %p219 = por %p217, %p218
    %p221 = scmp.ne.s32.totalorder %s204, %s220
    %p222 = scmp.eq.s32.totalorder %s22, 0
    %p223 = por %p221, %p222
    %s224 = ssub.s32 %s23, %s35
    %p225 = scmp.eq.s32.totalorder %s224, 0
    %s227 = sadd.s32 %s226, 1
    %s228 = scalar_select %p225, %s226, %s227
    %p231 = pneg %p225
    %p232 = scmp.eq.s32.totalorder %s16, 1
    %p233 = por %p231, %p232
    %p234 = scmp.ne.s32.totalorder %s226, %s229
    %p235 = scmp.eq.s32.totalorder %s16, 0
    %p236 = por %p234, %p235
    %p237 = scmp.ne.s32.totalorder %s226, %s229
    %p238 = scmp.eq.s32.totalorder %s21, 1
    %p239 = por %p237, %p238
    %p240 = scmp.ne.s32.totalorder %s229, %s230
    %p241 = scmp.eq.s32.totalorder %s21, 0
    %p242 = por %p240, %p241
    %p243 = scmp.ne.s32.totalorder %s229, %s230
    %p244 = scmp.eq.s32.totalorder %s22, 1
    %p245 = por %p243, %p244
    %p247 = scmp.ne.s32.totalorder %s230, %s246
    %p248 = scmp.eq.s32.totalorder %s22, 0
    %p249 = por %p247, %p248
    %s250 = ssub.s32 %s23, %s35
    %s251 = ssub.s32 %s24, %s31
    %s252 = sor.u32 %s250, %s251
    %p253 = scmp.eq.s32.totalorder %s252, 0
    %s255 = sadd.s32 %s254, 1
    %s256 = scalar_select %p253, %s254, %s255
    %p259 = pneg %p253
    %p260 = scmp.eq.s32.totalorder %s16, 1
    %p261 = por %p259, %p260
    %p262 = scmp.ne.s32.totalorder %s254, %s257
    %p263 = scmp.eq.s32.totalorder %s16, 0
    %p264 = por %p262, %p263
    %p265 = scmp.ne.s32.totalorder %s254, %s257
    %p266 = scmp.eq.s32.totalorder %s21, 1
    %p267 = por %p265, %p266
    %p268 = scmp.ne.s32.totalorder %s257, %s258
    %p269 = scmp.eq.s32.totalorder %s21, 0
    %p270 = por %p268, %p269
    %p271 = scmp.ne.s32.totalorder %s257, %s258
    %p272 = scmp.eq.s32.totalorder %s22, 1
    %p273 = por %p271, %p272
    %p275 = scmp.ne.s32.totalorder %s258, %s274
    %p276 = scmp.eq.s32.totalorder %s22, 0
    %p277 = por %p275, %p276
    %s278 = ssub.s32 %s23, %s35
    %s279 = ssub.s32 %s24, %s31
    %s280 = sor.u32 %s278, %s279
    %p281 = scmp.eq.s32.totalorder %s280, 0
    %s283 = sadd.s32 %s282, 1
    %s284 = scalar_select %p281, %s282, %s283
    %p287 = pneg %p281
    %p288 = scmp.eq.s32.totalorder %s16, 1
    %p289 = por %p287, %p288
    %p290 = scmp.ne.s32.totalorder %s282, %s285
    %p291 = scmp.eq.s32.totalorder %s16, 0
    %p292 = por %p290, %p291
    %p293 = scmp.ne.s32.totalorder %s282, %s285
    %p294 = scmp.eq.s32.totalorder %s21, 1
    %p295 = por %p293, %p294
    %p296 = scmp.ne.s32.totalorder %s285, %s286
    %p297 = scmp.eq.s32.totalorder %s21, 0
    %p298 = por %p296, %p297
    %p299 = scmp.ne.s32.totalorder %s285, %s286
    %p300 = scmp.eq.s32.totalorder %s22, 1
    %p301 = por %p299, %p300
    %p303 = scmp.ne.s32.totalorder %s286, %s302
    %p304 = scmp.eq.s32.totalorder %s22, 0
    %p305 = por %p303, %p304
    %p306 = scmp.le.s32.totalorder 1, %s16
    %p307 = scmp.lt.s32.totalorder %s16, 3
    %p308 = pnand %p306, %p307
    %p309 = pneg %p308
    // Predicated region
    $region9: #{cross_mha_forward.16} parent=5 // pred_check
      _
    $region10: #{cross_mha_forward.16} parent=5 // pred_check_branch
      %311 = sbr.rel (%p308) target = $region12
    $region11: #{cross_mha_forward.16} parent=5 // pred_region
      %s312 = ssub.s32 %s16, 1
    $region12: #{cross_mha_forward.16} parent=5 // pred_fallthru
      _
    %p313 = scmp.lt.s32.totalorder %s16, 2
    // Predicated region
    $region13: #{cross_mha_forward.16} parent=5 // pred_check
      %p314 = pneg %p313
    $region14: #{cross_mha_forward.16} parent=5 // pred_check_branch
      %316 = sbr.rel (%p314) target = $region16
    $region15: #{cross_mha_forward.16} parent=5 // pred_region
      // Predicated region
      $region17: #{cross_mha_forward.16} parent=15 // pred_check
        %p317 = pneg %p48
      $region18: #{cross_mha_forward.16} parent=15 // pred_check_branch
        %319 = sbr.rel (%p317) target = $region20
      $region19: #{cross_mha_forward.16} parent=15 // pred_region
        %p320 = scmp.lt.s32.totalorder %s23, 1
        %s321 = scalar_select %p320, %s23, 1
        %s322 = scalar_lea.vmem %s0, %s321
      $region20: #{cross_mha_forward.16} parent=15 // pred_fallthru
        _
      // Predicated region
      $region21: #{cross_mha_forward.16} parent=15 // pred_check
        %p323 = pneg %p76
      $region22: #{cross_mha_forward.16} parent=15 // pred_check_branch
        %325 = sbr.rel (%p323) target = $region24
      $region23: #{cross_mha_forward.16} parent=15 // pred_region
        %s326 = smul.u32 2, %s24
        %p327 = scmp.lt.s32.totalorder %s23, 1
        %s328 = scalar_select %p327, %s23, 1
        %p329 = scmp.lt.s32.totalorder %s326, 1
        %s330 = scalar_select %p329, %s326, 1
        %s331 = smul.addr %s328, 2
        %s332 = sadd.s32 %s330, %s331
        %s333 = smul.addr %s332, 2
        %s334 = scalar_lea.vmem %s1, %s333
        %s335 = smul.u32 2, %s24
      $region24: #{cross_mha_forward.16} parent=15 // pred_fallthru
        _
      // Predicated region
      $region25: #{cross_mha_forward.16} parent=15 // pred_check
        %p336 = pneg %p102
      $region26: #{cross_mha_forward.16} parent=15 // pred_check_branch
        %338 = sbr.rel (%p336) target = $region28
      $region27: #{cross_mha_forward.16} parent=15 // pred_region
        %p339 = scmp.lt.s32.totalorder %s23, 1
        %s340 = scalar_select %p339, %s23, 1
        %s341 = smul.addr %s340, 4
        %s342 = scalar_lea.vmem %s2, %s341
      $region28: #{cross_mha_forward.16} parent=15 // pred_fallthru
        _
      // Predicated region
      $region29: #{cross_mha_forward.16} parent=15 // pred_check
        %p343 = pneg %p128
      $region30: #{cross_mha_forward.16} parent=15 // pred_check_branch
        %345 = sbr.rel (%p343) target = $region32
      $region31: #{cross_mha_forward.16} parent=15 // pred_region
        %p346 = scmp.lt.s32.totalorder %s23, 1
        %s347 = scalar_select %p346, %s23, 1
        %s348 = smul.addr %s347, 4
        %s349 = scalar_lea.vmem %s3, %s348
      $region32: #{cross_mha_forward.16} parent=15 // pred_fallthru
        _
      // Predicated region
      $region33: #{cross_mha_forward.16} parent=15 // pred_check
        %p350 = pneg %p156
      $region34: #{cross_mha_forward.16} parent=15 // pred_check_branch
        %352 = sbr.rel (%p350) target = $region36
      $region35: #{cross_mha_forward.16} parent=15 // pred_region
        %s353 = smul.u32 2, %s24
        %p354 = scmp.lt.s32.totalorder %s23, 1
        %s355 = scalar_select %p354, %s23, 1
        %p356 = scmp.lt.s32.totalorder %s353, 1
        %s357 = scalar_select %p356, %s353, 1
        %s358 = smul.addr %s355, 2
        %s359 = sadd.s32 %s357, %s358
        %s360 = smul.addr %s359, 2
        %s361 = scalar_lea.vmem %s4, %s360
        %s362 = smul.u32 2, %s24
      $region36: #{cross_mha_forward.16} parent=15 // pred_fallthru
        _
      // Predicated region
      $region37: #{cross_mha_forward.16} parent=15 // pred_check
        %p363 = pneg %p184
      $region38: #{cross_mha_forward.16} parent=15 // pred_check_branch
        %365 = sbr.rel (%p363) target = $region40
      $region39: #{cross_mha_forward.16} parent=15 // pred_region
        %s366 = smul.u32 2, %s24
        %p367 = scmp.lt.s32.totalorder %s23, 1
        %s368 = scalar_select %p367, %s23, 1
        %p369 = scmp.lt.s32.totalorder %s366, 1
        %s370 = scalar_select %p369, %s366, 1
        %s371 = smul.addr %s368, 2
        %s372 = sadd.s32 %s370, %s371
        %s373 = smul.addr %s372, 2
        %s374 = scalar_lea.vmem %s5, %s373
        %s375 = smul.u32 2, %s24
      $region40: #{cross_mha_forward.16} parent=15 // pred_fallthru
        _
      // Predicated region
      $region41: #{cross_mha_forward.16} parent=15 // pred_check
        %p376 = pneg %p210
      $region42: #{cross_mha_forward.16} parent=15 // pred_check_branch
        %378 = sbr.rel (%p376) target = $region44
      $region43: #{cross_mha_forward.16} parent=15 // pred_region
        %p379 = scmp.lt.s32.totalorder %s23, 1
        %s380 = scalar_select %p379, %s23, 1
        %s381 = scalar_lea.vmem %s6, %s380
      $region44: #{cross_mha_forward.16} parent=15 // pred_fallthru
        _
      // Predicated region
      $region45: #{cross_mha_forward.16} parent=15 // pred_check
        %p382 = pneg %p236
      $region46: #{cross_mha_forward.16} parent=15 // pred_check_branch
        %384 = sbr.rel (%p382) target = $region48
      $region47: #{cross_mha_forward.16} parent=15 // pred_region
        %p385 = scmp.lt.s32.totalorder %s23, 1
        %s386 = scalar_select %p385, %s23, 1
        %s387 = scalar_lea.vmem %s7, %s386
      $region48: #{cross_mha_forward.16} parent=15 // pred_fallthru
        _
    $region16: #{cross_mha_forward.16} parent=5 // pred_fallthru
      _
    %p388 = scmp.le.s32.totalorder 1, %s16
    %p389 = scmp.lt.s32.totalorder %s16, 3
    %p390 = pnand %p388, %p389
    %p391 = pneg %p390
    // Predicated region
    $region49: #{cross_mha_forward.16} parent=5 // pred_check
      _
    $region50: #{cross_mha_forward.16} parent=5 // pred_check_branch
      %393 = sbr.rel (%p390) target = $region52
    $region51: #{cross_mha_forward.16} parent=5 // pred_region
      %s394 = ssub.s32 %s16, 1
      %p395 = scmp.lt.s32.totalorder %s25, 1
      %s396 = scalar_select %p395, %s25, 1
      %s397 = scalar_lea.vmem %s0, %s396
      %p398 = pneg %p54
      %p399 = pneg %p51
      %s400 = smul.u32 2, %s26
      %p401 = scmp.lt.s32.totalorder %s25, 1
      %s402 = scalar_select %p401, %s25, 1
      %p403 = scmp.lt.s32.totalorder %s400, 1
      %s404 = scalar_select %p403, %s400, 1
      %s405 = smul.addr %s402, 2
      %s406 = sadd.s32 %s404, %s405
      %s407 = smul.addr %s406, 2
      %s408 = scalar_lea.vmem %s1, %s407
      %p409 = pneg %p82
      %p410 = pneg %p79
      %p411 = scmp.lt.s32.totalorder %s25, 1
      %s412 = scalar_select %p411, %s25, 1
      %s413 = smul.addr %s412, 4
      %s414 = scalar_lea.vmem %s2, %s413
      %p415 = pneg %p108
      %p416 = pneg %p105
      %p417 = scmp.lt.s32.totalorder %s25, 1
      %s418 = scalar_select %p417, %s25, 1
      %s419 = smul.addr %s418, 4
      %s420 = scalar_lea.vmem %s3, %s419
      %p421 = pneg %p134
      %p422 = pneg %p131
      %s423 = smul.u32 2, %s26
      %p424 = scmp.lt.s32.totalorder %s25, 1
      %s425 = scalar_select %p424, %s25, 1
      %p426 = scmp.lt.s32.totalorder %s423, 1
      %s427 = scalar_select %p426, %s423, 1
      %s428 = smul.addr %s425, 2
      %s429 = sadd.s32 %s427, %s428
      %s430 = smul.addr %s429, 2
      %s431 = scalar_lea.vmem %s4, %s430
      %p432 = pneg %p162
      %p433 = pneg %p159
      %s434 = smul.u32 2, %s26
      %p435 = scmp.lt.s32.totalorder %s25, 1
      %s436 = scalar_select %p435, %s25, 1
      %p437 = scmp.lt.s32.totalorder %s434, 1
      %s438 = scalar_select %p437, %s434, 1
      %s439 = smul.addr %s436, 2
      %s440 = sadd.s32 %s438, %s439
      %s441 = smul.addr %s440, 2
      %s442 = scalar_lea.vmem %s5, %s441
      %p443 = pneg %p190
      %p444 = pneg %p187
      %p445 = scmp.lt.s32.totalorder %s25, 1
      %s446 = scalar_select %p445, %s25, 1
      %s447 = scalar_lea.vmem %s6, %s446
      %p448 = pneg %p216
      %p449 = pneg %p213
      %p450 = scmp.lt.s32.totalorder %s25, 1
      %s451 = scalar_select %p450, %s25, 1
      %s452 = scalar_lea.vmem %s7, %s451
      %p453 = pneg %p242
      %p454 = pneg %p239
      %p455 = pneg %p270
      %p456 = pneg %p267
      %s457 = smul.u32 2, %s26
      %p458 = scmp.lt.s32.totalorder %s25, 1
      %s459 = scalar_select %p458, %s25, 1
      %p460 = scmp.lt.s32.totalorder %s457, 1
      %s461 = scalar_select %p460, %s457, 1
      %s462 = smul.addr %s459, 2
      %s463 = sadd.s32 %s461, %s462
      %s464 = scalar_lea.vmem %s8, %s463
      %p465 = pneg %p298
      %p466 = pneg %p295
      %s467 = smul.u32 2, %s26
      %p468 = scmp.lt.s32.totalorder %s25, 1
      %s469 = scalar_select %p468, %s25, 1
      %p470 = scmp.lt.s32.totalorder %s467, 1
      %s471 = scalar_select %p470, %s467, 1
      %s472 = smul.addr %s469, 2
      %s473 = sadd.s32 %s471, %s472
      %s474 = smul.addr %s473, 2
      %s475 = scalar_lea.vmem %s9, %s474
      %p476 = scmp.lt.s32.totalorder %s25, 1
      %s477 = scalar_select %p476, %s25, 1
      %s478 = scalar_lea.vmem %s0, %s477
      %s479 = smul.u32 2, %s26
      %p480 = scmp.lt.s32.totalorder %s25, 1
      %s481 = scalar_select %p480, %s25, 1
      %p482 = scmp.lt.s32.totalorder %s479, 1
      %s483 = scalar_select %p482, %s479, 1
      %s484 = smul.addr %s481, 2
      %s485 = sadd.s32 %s483, %s484
      %s486 = smul.addr %s485, 2
      %s487 = scalar_lea.vmem %s1, %s486
      %s488 = smul.u32 2, %s26
      %p489 = scmp.lt.s32.totalorder %s25, 1
      %s490 = scalar_select %p489, %s25, 1
      %s491 = smul.addr %s490, 4
      %s492 = scalar_lea.vmem %s2, %s491
      %p493 = scmp.lt.s32.totalorder %s25, 1
      %s494 = scalar_select %p493, %s25, 1
      %s495 = smul.addr %s494, 4
      %s496 = scalar_lea.vmem %s3, %s495
      %s497 = smul.u32 2, %s26
      %p498 = scmp.lt.s32.totalorder %s25, 1
      %s499 = scalar_select %p498, %s25, 1
      %p500 = scmp.lt.s32.totalorder %s497, 1
      %s501 = scalar_select %p500, %s497, 1
      %s502 = smul.addr %s499, 2
      %s503 = sadd.s32 %s501, %s502
      %s504 = smul.addr %s503, 2
      %s505 = scalar_lea.vmem %s4, %s504
      %s506 = smul.u32 2, %s26
      %s507 = smul.u32 2, %s26
      %p508 = scmp.lt.s32.totalorder %s25, 1
      %s509 = scalar_select %p508, %s25, 1
      %p510 = scmp.lt.s32.totalorder %s507, 1
      %s511 = scalar_select %p510, %s507, 1
      %s512 = smul.addr %s509, 2
      %s513 = sadd.s32 %s511, %s512
      %s514 = smul.addr %s513, 2
      %s515 = scalar_lea.vmem %s5, %s514
      %s516 = smul.u32 2, %s26
      %p517 = scmp.lt.s32.totalorder %s25, 1
      %s518 = scalar_select %p517, %s25, 1
      %s519 = scalar_lea.vmem %s6, %s518
      %p520 = scmp.lt.s32.totalorder %s25, 1
      %s521 = scalar_select %p520, %s25, 1
      %s522 = scalar_lea.vmem %s7, %s521
      %s523 = smul.u32 2, %s26
      %p524 = scmp.lt.s32.totalorder %s25, 1
      %s525 = scalar_select %p524, %s25, 1
      %p526 = scmp.lt.s32.totalorder %s523, 1
      %s527 = scalar_select %p526, %s523, 1
      %s528 = smul.addr %s525, 2
      %s529 = sadd.s32 %s527, %s528
      %s530 = scalar_lea.vmem %s8, %s529
      %s531 = smul.u32 2, %s26
      %s532 = smul.u32 2, %s26
      %p533 = scmp.lt.s32.totalorder %s25, 1
      %s534 = scalar_select %p533, %s25, 1
      %p535 = scmp.lt.s32.totalorder %s532, 1
      %s536 = scalar_select %p535, %s532, 1
      %s537 = smul.addr %s534, 2
      %s538 = sadd.s32 %s536, %s537
      %s539 = smul.addr %s538, 2
      %s540 = scalar_lea.vmem %s9, %s539
      %s541 = smul.u32 2, %s26
      %v543 = vld [vmem:[%s478] sm:$0x1]
      %v544 = vld [vmem:[%s492] sm:$0xf]
      %v545 = vld [vmem:[%s496] sm:$0xf]
      %v546 = vld [vmem:[%s519] sm:$0x1]
      %v547 = vld [vmem:[%s522] sm:$0x1]
      %v548 = vld [vmem:[%s487] sm:$0x3]
      %v549 = vld [vmem:[%s505] sm:$0x3]
      %v550 = vld [vmem:[%s515] sm:$0x3]
      %v553 = vunpack.c.l.s4 1983009808
      %v554 = vunpack.c.0.s8 %v553
      %v555 = vlaneseq
      %v556 = vshrl.u32 %v555, 7
      %v557 = vsub.s32 %v554, %v556
      %v558 = vrot.slane %v548, %v557
      %v560 = vshrl.u32 %v558, 16
      %v562 = vrot.slane %v560, 7
      %v563 = vshll.u32 %v558, 16
      %v565 = vor.u32 %v562, %v563
      %vm567 = vcmask 1040384
      %vm568 = vsmask.f32 256
      %vm569 = vmand %vm567, %vm568
      %v570 = vsel %vm569, %v543, %v565
      %v572 = vlaneseq
      %v573 = vshrl.u32 %v572, 7
      %v574 = vsub.s32 0, %v573
      %v575 = vrot.slane %v546, %v574
      %vm577 = vcmask 261120
      %v579 = vsel %vm577, %v570, 0
      %v582 = vsel %vm577, %v544, 0
      %584 = vmatprep.subr.bf16.mxu0 0
      %585 = vmatpush1.bf16.xpose.msra.mxu0 %v582
      %586 = vmatprep.subr.bf16.mxu0 0
      %587 = vmatpush1.bf16.xpose.msra.mxu0 0
      %588 = vmatprep.subr.bf16.mxu0 0
      %589 = vmatpush1.bf16.xpose.msra.mxu0 0
      %590 = vmatprep.subr.bf16.mxu0 0
      %591 = vmatpush1.bf16.xpose.msra.mxu0 0
      %592 = vmatprep.subr.bf16.mxu0 0
      %593 = vmatpush1.bf16.xpose.msra.mxu0 0
      %594 = vmatprep.subr.bf16.mxu0 0
      %595 = vmatpush1.bf16.xpose.msra.mxu0 0
      %596 = vmatprep.subr.bf16.mxu0 0
      %597 = vmatpush1.bf16.xpose.msra.mxu0 0
      %598 = vmatprep.subr.bf16.mxu0 0
      %599 = vmatpush1.bf16.xpose.msra.mxu0 0
      %600 = vmatprep.subr.bf16.mxu0 0
      %601 = vmatpush1.bf16.xpose.msra.mxu0 0
      %602 = vmatprep.subr.bf16.mxu0 0
      %603 = vmatpush1.bf16.xpose.msra.mxu0 0
      %604 = vmatprep.subr.bf16.mxu0 0
      %605 = vmatpush1.bf16.xpose.msra.mxu0 0
      %606 = vmatprep.subr.bf16.mxu0 0
      %607 = vmatpush1.bf16.xpose.msra.mxu0 0
      %608 = vmatprep.subr.bf16.mxu0 0
      %609 = vmatpush1.bf16.xpose.msra.mxu0 0
      %610 = vmatprep.subr.bf16.mxu0 0
      %611 = vmatpush1.bf16.xpose.msra.mxu0 0
      %612 = vmatprep.subr.bf16.mxu0 0
      %613 = vmatpush1.bf16.xpose.msra.mxu0 0
      %614 = vmatprep.subr.bf16.mxu0 0
      %615 = vmatpush1.bf16.xpose.msra.mxu0 0
      %616 = vmatprep.mubr.bf16.mxu0 0
      %617 = vmatmul.mubr.bf16.gmra.mrb[0].mxu0 %v579
      %v618 = vpop.f32.mrb[0].mxu0
      %v619 = vadd.f32 %v575, %v618
      %v620 = vpop.f32.mrb[0].mxu0
      %v621 = vpop.f32.mrb[0].mxu0
      %v622 = vpop.f32.mrb[0].mxu0
      %623 = vdwg.mxu0
      %v625 = vlaneseq
      %v626 = vshrl.u32 %v625, 7
      %v627 = vsub.s32 0, %v626
      %v628 = vrot.slane %v547, %v627
      %v631 = vsel %vm577, %v549, 0
      %633 = vmatprep.subr.bf16.mxu0 0
      %634 = vmatpush1.bf16.xpose.msra.mxu0 %v631
      %635 = vmatprep.subr.bf16.mxu0 0
      %636 = vmatpush1.bf16.xpose.msra.mxu0 0
      %637 = vmatprep.subr.bf16.mxu0 0
      %638 = vmatpush1.bf16.xpose.msra.mxu0 0
      %639 = vmatprep.subr.bf16.mxu0 0
      %640 = vmatpush1.bf16.xpose.msra.mxu0 0
      %641 = vmatprep.subr.bf16.mxu0 0
      %642 = vmatpush1.bf16.xpose.msra.mxu0 0
      %643 = vmatprep.subr.bf16.mxu0 0
      %644 = vmatpush1.bf16.xpose.msra.mxu0 0
      %645 = vmatprep.subr.bf16.mxu0 0
      %646 = vmatpush1.bf16.xpose.msra.mxu0 0
      %647 = vmatprep.subr.bf16.mxu0 0
      %648 = vmatpush1.bf16.xpose.msra.mxu0 0
      %649 = vmatprep.subr.bf16.mxu0 0
      %650 = vmatpush1.bf16.xpose.msra.mxu0 0
      %651 = vmatprep.subr.bf16.mxu0 0
      %652 = vmatpush1.bf16.xpose.msra.mxu0 0
      %653 = vmatprep.subr.bf16.mxu0 0
      %654 = vmatpush1.bf16.xpose.msra.mxu0 0
      %655 = vmatprep.subr.bf16.mxu0 0
      %656 = vmatpush1.bf16.xpose.msra.mxu0 0
      %657 = vmatprep.subr.bf16.mxu0 0
      %658 = vmatpush1.bf16.xpose.msra.mxu0 0
      %659 = vmatprep.subr.bf16.mxu0 0
      %660 = vmatpush1.bf16.xpose.msra.mxu0 0
      %661 = vmatprep.subr.bf16.mxu0 0
      %662 = vmatpush1.bf16.xpose.msra.mxu0 0
      %663 = vmatprep.subr.bf16.mxu0 0
      %664 = vmatpush1.bf16.xpose.msra.mxu0 0
      %665 = vmatprep.mubr.bf16.mxu0 0
      %666 = vmatmul.mubr.bf16.gmra.mrb[0].mxu0 %v579
      %v667 = vpop.f32.mrb[0].mxu0
      %v668 = vadd.f32 %v628, %v667
      %v669 = vpop.f32.mrb[0].mxu0
      %v670 = vpop.f32.mrb[0].mxu0
      %v671 = vpop.f32.mrb[0].mxu0
      %672 = vdwg.mxu0
      %vm673 = vcmask 61440
      %v674 = vsel %vm673, %v619, -inf
      %675 = vmax.xlane.f32.xlu0 %v674
      %v676 = vpop.xlane.xlu0 %675
      %vm677 = vcmask 28672
      %v678 = vsel %vm677, %v668, -inf
      %679 = vmax.xlane.f32.xlu0 %v678
      %v680 = vpop.xlane.xlu0 %679
      %v681 = vmax.f32 %v676, %v680
      %v682 = vsub.f32 %v619, %v681
      %v683 = vmul.f32 %v682, 1.442695
      %v684 = vpow.pop %v683
      %v685 = vsub.f32 %v668, %v681
      %v686 = vmul.f32 %v685, 1.442695
      %v687 = vpow.pop %v686
      %v688 = vsel %vm673, %v684, 0.0
      %689 = vadd.xlane.f32.xlu0 %v688
      %v690 = vpop.xlane.xlu0 %689
      %v691 = vsel %vm677, %v687, 0.0
      %692 = vadd.xlane.f32.xlu0 %v691
      %v693 = vpop.xlane.xlu0 %692
      %v694 = vadd.f32 %v690, %v693
      %v695 = vrcp.pop %v694
      %v696 = vmul.f32 %v684, %v695
      %v697 = vpack.c.bf16 %v696, %v696
      %v698 = vmul.f32 %v687, %v695
      %v699 = vpack.c.bf16 %v698, %v698
      %vm700 = vcmask 31744
      %v702 = vsel %vm700, %v699, 0
      %vm704 = vcmask 1041408
      %v706 = vsel %vm704, %v550, 0
      %708 = vmatprep.subr.bf16.mxu0 0
      %709 = vmatpush1.bf16.msra.mxu0 %v706
      %710 = vmatprep.subr.bf16.mxu0 0
      %711 = vmatpush1.bf16.msra.mxu0 0
      %712 = vmatprep.subr.bf16.mxu0 0
      %713 = vmatpush1.bf16.msra.mxu0 0
      %714 = vmatprep.subr.bf16.mxu0 0
      %715 = vmatpush1.bf16.msra.mxu0 0
      %716 = vmatprep.subr.bf16.mxu0 0
      %717 = vmatpush1.bf16.msra.mxu0 0
      %718 = vmatprep.subr.bf16.mxu0 0
      %719 = vmatpush1.bf16.msra.mxu0 0
      %720 = vmatprep.subr.bf16.mxu0 0
      %721 = vmatpush1.bf16.msra.mxu0 0
      %722 = vmatprep.subr.bf16.mxu0 0
      %723 = vmatpush1.bf16.msra.mxu0 0
      %724 = vmatprep.subr.bf16.mxu0 0
      %725 = vmatpush1.bf16.msra.mxu0 0
      %726 = vmatprep.subr.bf16.mxu0 0
      %727 = vmatpush1.bf16.msra.mxu0 0
      %728 = vmatprep.subr.bf16.mxu0 0
      %729 = vmatpush1.bf16.msra.mxu0 0
      %730 = vmatprep.subr.bf16.mxu0 0
      %731 = vmatpush1.bf16.msra.mxu0 0
      %732 = vmatprep.subr.bf16.mxu0 0
      %733 = vmatpush1.bf16.msra.mxu0 0
      %734 = vmatprep.subr.bf16.mxu0 0
      %735 = vmatpush1.bf16.msra.mxu0 0
      %736 = vmatprep.subr.bf16.mxu0 0
      %737 = vmatpush1.bf16.msra.mxu0 0
      %738 = vmatprep.subr.bf16.mxu0 0
      %739 = vmatpush1.bf16.msra.mxu0 0
      %740 = vmatprep.mubr.bf16.mxu0 0
      %741 = vmatmul.mubr.bf16.gmra.mrb[0].mxu0 %v702
      %v742 = vpop.f32.mrb[0].mxu0
      %v743 = vadd.f32 0.0, %v742
      %v744 = vpop.f32.mrb[0].mxu0
      %v745 = vpop.f32.mrb[0].mxu0
      %v746 = vpop.f32.mrb[0].mxu0
      %747 = vdwg.mxu0
      %vm748 = vcmask 64512
      %v750 = vsel %vm748, %v697, 0
      %vm752 = vcmask 1043456
      %v754 = vsel %vm752, %v545, 0
      %756 = vmatprep.subr.bf16.mxu0 0
      %757 = vmatpush1.bf16.msra.mxu0 %v754
      %758 = vmatprep.subr.bf16.mxu0 0
      %759 = vmatpush1.bf16.msra.mxu0 0
      %760 = vmatprep.subr.bf16.mxu0 0
      %761 = vmatpush1.bf16.msra.mxu0 0
      %762 = vmatprep.subr.bf16.mxu0 0
      %763 = vmatpush1.bf16.msra.mxu0 0
      %764 = vmatprep.subr.bf16.mxu0 0
      %765 = vmatpush1.bf16.msra.mxu0 0
      %766 = vmatprep.subr.bf16.mxu0 0
      %767 = vmatpush1.bf16.msra.mxu0 0
      %768 = vmatprep.subr.bf16.mxu0 0
      %769 = vmatpush1.bf16.msra.mxu0 0
      %770 = vmatprep.subr.bf16.mxu0 0
      %771 = vmatpush1.bf16.msra.mxu0 0
      %772 = vmatprep.subr.bf16.mxu0 0
      %773 = vmatpush1.bf16.msra.mxu0 0
      %774 = vmatprep.subr.bf16.mxu0 0
      %775 = vmatpush1.bf16.msra.mxu0 0
      %776 = vmatprep.subr.bf16.mxu0 0
      %777 = vmatpush1.bf16.msra.mxu0 0
      %778 = vmatprep.subr.bf16.mxu0 0
      %779 = vmatpush1.bf16.msra.mxu0 0
      %780 = vmatprep.subr.bf16.mxu0 0
      %781 = vmatpush1.bf16.msra.mxu0 0
      %782 = vmatprep.subr.bf16.mxu0 0
      %783 = vmatpush1.bf16.msra.mxu0 0
      %784 = vmatprep.subr.bf16.mxu0 0
      %785 = vmatpush1.bf16.msra.mxu0 0
      %786 = vmatprep.subr.bf16.mxu0 0
      %787 = vmatpush1.bf16.msra.mxu0 0
      %788 = vmatprep.mubr.bf16.mxu0 0
      %789 = vmatmul.mubr.bf16.gmra.mrb[0].mxu0 %v750
      %v790 = vpop.f32.mrb[0].mxu0
      %v791 = vadd.f32 %v743, %v790
      %v792 = vpop.f32.mrb[0].mxu0
      %v793 = vpop.f32.mrb[0].mxu0
      %v794 = vpop.f32.mrb[0].mxu0
      %795 = vdwg.mxu0
      %797 = vrot.lane.b32.xlu0 %v570, 96
      %v798 = vpop.permute.xlu0 %797
      %v800 = vunpack.c.l.b16 %v544
      %v801 = vpack.c.b16 %v800, %v800
      %802 = vrot.lane.b32.xlu0 %v801, 96
      %v803 = vpop.permute.xlu0 %802
      %v805 = vsel %vm577, %v798, 0
      %v808 = vsel %vm577, %v803, 0
      %810 = vmatprep.subr.bf16.mxu0 0
      %811 = vmatpush1.bf16.xpose.msra.mxu0 %v808
      %812 = vmatprep.subr.bf16.mxu0 0
      %813 = vmatpush1.bf16.xpose.msra.mxu0 0
      %814 = vmatprep.subr.bf16.mxu0 0
      %815 = vmatpush1.bf16.xpose.msra.mxu0 0
      %816 = vmatprep.subr.bf16.mxu0 0
      %817 = vmatpush1.bf16.xpose.msra.mxu0 0
      %818 = vmatprep.subr.bf16.mxu0 0
      %819 = vmatpush1.bf16.xpose.msra.mxu0 0
      %820 = vmatprep.subr.bf16.mxu0 0
      %821 = vmatpush1.bf16.xpose.msra.mxu0 0
      %822 = vmatprep.subr.bf16.mxu0 0
      %823 = vmatpush1.bf16.xpose.msra.mxu0 0
      %824 = vmatprep.subr.bf16.mxu0 0
      %825 = vmatpush1.bf16.xpose.msra.mxu0 0
      %826 = vmatprep.subr.bf16.mxu0 0
      %827 = vmatpush1.bf16.xpose.msra.mxu0 0
      %828 = vmatprep.subr.bf16.mxu0 0
      %829 = vmatpush1.bf16.xpose.msra.mxu0 0
      %830 = vmatprep.subr.bf16.mxu0 0
      %831 = vmatpush1.bf16.xpose.msra.mxu0 0
      %832 = vmatprep.subr.bf16.mxu0 0
      %833 = vmatpush1.bf16.xpose.msra.mxu0 0
      %834 = vmatprep.subr.bf16.mxu0 0
      %835 = vmatpush1.bf16.xpose.msra.mxu0 0
      %836 = vmatprep.subr.bf16.mxu0 0
      %837 = vmatpush1.bf16.xpose.msra.mxu0 0
      %838 = vmatprep.subr.bf16.mxu0 0
      %839 = vmatpush1.bf16.xpose.msra.mxu0 0
      %840 = vmatprep.subr.bf16.mxu0 0
      %841 = vmatpush1.bf16.xpose.msra.mxu0 0
      %842 = vmatprep.mubr.bf16.mxu0 0
      %843 = vmatmul.mubr.bf16.gmra.mrb[0].mxu0 %v805
      %v844 = vpop.f32.mrb[0].mxu0
      %v845 = vadd.f32 %v575, %v844
      %v846 = vpop.f32.mrb[0].mxu0
      %v847 = vpop.f32.mrb[0].mxu0
      %v848 = vpop.f32.mrb[0].mxu0
      %849 = vdwg.mxu0
      %v852 = vunpack.c.l.s4 1983009808
      %v853 = vunpack.c.0.s8 %v852
      %v854 = vlaneseq
      %v855 = vshrl.u32 %v854, 7
      %v856 = vsub.s32 %v853, %v855
      %v857 = vrot.slane %v549, %v856
      %858 = vrot.lane.b32.xlu0 %v857, 96
      %v859 = vpop.permute.xlu0 %858
      %v861 = vsel %vm577, %v859, 0
      %863 = vmatprep.subr.bf16.mxu0 0
      %864 = vmatpush1.bf16.xpose.msra.mxu0 %v861
      %865 = vmatprep.subr.bf16.mxu0 0
      %866 = vmatpush1.bf16.xpose.msra.mxu0 0
      %867 = vmatprep.subr.bf16.mxu0 0
      %868 = vmatpush1.bf16.xpose.msra.mxu0 0
      %869 = vmatprep.subr.bf16.mxu0 0
      %870 = vmatpush1.bf16.xpose.msra.mxu0 0
      %871 = vmatprep.subr.bf16.mxu0 0
      %872 = vmatpush1.bf16.xpose.msra.mxu0 0
      %873 = vmatprep.subr.bf16.mxu0 0
      %874 = vmatpush1.bf16.xpose.msra.mxu0 0
      %875 = vmatprep.subr.bf16.mxu0 0
      %876 = vmatpush1.bf16.xpose.msra.mxu0 0
      %877 = vmatprep.subr.bf16.mxu0 0
      %878 = vmatpush1.bf16.xpose.msra.mxu0 0
      %879 = vmatprep.subr.bf16.mxu0 0
      %880 = vmatpush1.bf16.xpose.msra.mxu0 0
      %881 = vmatprep.subr.bf16.mxu0 0
      %882 = vmatpush1.bf16.xpose.msra.mxu0 0
      %883 = vmatprep.subr.bf16.mxu0 0
      %884 = vmatpush1.bf16.xpose.msra.mxu0 0
      %885 = vmatprep.subr.bf16.mxu0 0
      %886 = vmatpush1.bf16.xpose.msra.mxu0 0
      %887 = vmatprep.subr.bf16.mxu0 0
      %888 = vmatpush1.bf16.xpose.msra.mxu0 0
      %889 = vmatprep.subr.bf16.mxu0 0
      %890 = vmatpush1.bf16.xpose.msra.mxu0 0
      %891 = vmatprep.subr.bf16.mxu0 0
      %892 = vmatpush1.bf16.xpose.msra.mxu0 0
      %893 = vmatprep.subr.bf16.mxu0 0
      %894 = vmatpush1.bf16.xpose.msra.mxu0 0
      %895 = vmatprep.mubr.bf16.mxu0 0
      %896 = vmatmul.mubr.bf16.gmra.mrb[0].mxu0 %v805
      %v897 = vpop.f32.mrb[0].mxu0
      %v898 = vadd.f32 %v628, %v897
      %v899 = vpop.f32.mrb[0].mxu0
      %v900 = vpop.f32.mrb[0].mxu0
      %v901 = vpop.f32.mrb[0].mxu0
      %902 = vdwg.mxu0
      %v903 = vsel %vm673, %v845, -inf
      %904 = vmax.xlane.f32.xlu0 %v903
      %v905 = vpop.xlane.xlu0 %904
      %v906 = vsel %vm677, %v898, -inf
      %907 = vmax.xlane.f32.xlu0 %v906
      %v908 = vpop.xlane.xlu0 %907
      %v909 = vmax.f32 %v905, %v908
      %v910 = vsub.f32 %v845, %v909
      %v911 = vmul.f32 %v910, 1.442695
      %v912 = vpow.pop %v911
      %v913 = vsub.f32 %v898, %v909
      %v914 = vmul.f32 %v913, 1.442695
      %v915 = vpow.pop %v914
      %v916 = vsel %vm673, %v912, 0.0
      %917 = vadd.xlane.f32.xlu0 %v916
      %v918 = vpop.xlane.xlu0 %917
      %v919 = vsel %vm677, %v915, 0.0
      %920 = vadd.xlane.f32.xlu0 %v919
      %v921 = vpop.xlane.xlu0 %920
      %v922 = vadd.f32 %v918, %v921
      %v923 = vrcp.pop %v922
      %v924 = vmul.f32 %v912, %v923
      %v925 = vpack.c.bf16 %v924, %v924
      %v926 = vmul.f32 %v915, %v923
      %v927 = vpack.c.bf16 %v926, %v926
      %v930 = vunpack.c.l.s4 1983009808
      %v931 = vunpack.c.0.s8 %v930
      %v932 = vlaneseq
      %v933 = vshrl.u32 %v932, 7
      %v934 = vsub.s32 %v931, %v933
      %v935 = vrot.slane %v550, %v934
      %936 = vrot.lane.b32.xlu0 %v935, 96
      %v937 = vpop.permute.xlu0 %936
      %v939 = vsel %vm700, %v927, 0
      %v942 = vsel %vm704, %v937, 0
      %944 = vmatprep.subr.bf16.mxu0 0
      %945 = vmatpush1.bf16.msra.mxu0 %v942
      %946 = vmatprep.subr.bf16.mxu0 0
      %947 = vmatpush1.bf16.msra.mxu0 0
      %948 = vmatprep.subr.bf16.mxu0 0
      %949 = vmatpush1.bf16.msra.mxu0 0
      %950 = vmatprep.subr.bf16.mxu0 0
      %951 = vmatpush1.bf16.msra.mxu0 0
      %952 = vmatprep.subr.bf16.mxu0 0
      %953 = vmatpush1.bf16.msra.mxu0 0
      %954 = vmatprep.subr.bf16.mxu0 0
      %955 = vmatpush1.bf16.msra.mxu0 0
      %956 = vmatprep.subr.bf16.mxu0 0
      %957 = vmatpush1.bf16.msra.mxu0 0
      %958 = vmatprep.subr.bf16.mxu0 0
      %959 = vmatpush1.bf16.msra.mxu0 0
      %960 = vmatprep.subr.bf16.mxu0 0
      %961 = vmatpush1.bf16.msra.mxu0 0
      %962 = vmatprep.subr.bf16.mxu0 0
      %963 = vmatpush1.bf16.msra.mxu0 0
      %964 = vmatprep.subr.bf16.mxu0 0
      %965 = vmatpush1.bf16.msra.mxu0 0
      %966 = vmatprep.subr.bf16.mxu0 0
      %967 = vmatpush1.bf16.msra.mxu0 0
      %968 = vmatprep.subr.bf16.mxu0 0
      %969 = vmatpush1.bf16.msra.mxu0 0
      %970 = vmatprep.subr.bf16.mxu0 0
      %971 = vmatpush1.bf16.msra.mxu0 0
      %972 = vmatprep.subr.bf16.mxu0 0
      %973 = vmatpush1.bf16.msra.mxu0 0
      %974 = vmatprep.subr.bf16.mxu0 0
      %975 = vmatpush1.bf16.msra.mxu0 0
      %976 = vmatprep.mubr.bf16.mxu0 0
      %977 = vmatmul.mubr.bf16.gmra.mrb[0].mxu0 %v939
      %v978 = vpop.f32.mrb[0].mxu0
      %v979 = vadd.f32 0.0, %v978
      %v980 = vpop.f32.mrb[0].mxu0
      %v981 = vpop.f32.mrb[0].mxu0
      %v982 = vpop.f32.mrb[0].mxu0
      %983 = vdwg.mxu0
      %v985 = vunpack.c.l.b16 %v545
      %v986 = vpack.c.b16 %v985, %v985
      %987 = vrot.lane.b32.xlu0 %v986, 96
      %v988 = vpop.permute.xlu0 %987
      %v990 = vsel %vm748, %v925, 0
      %v993 = vsel %vm752, %v988, 0
      %995 = vmatprep.subr.bf16.mxu0 0
      %996 = vmatpush1.bf16.msra.mxu0 %v993
      %997 = vmatprep.subr.bf16.mxu0 0
      %998 = vmatpush1.bf16.msra.mxu0 0
      %999 = vmatprep.subr.bf16.mxu0 0
      %1000 = vmatpush1.bf16.msra.mxu0 0
      %1001 = vmatprep.subr.bf16.mxu0 0
      %1002 = vmatpush1.bf16.msra.mxu0 0
      %1003 = vmatprep.subr.bf16.mxu0 0
      %1004 = vmatpush1.bf16.msra.mxu0 0
      %1005 = vmatprep.subr.bf16.mxu0 0
      %1006 = vmatpush1.bf16.msra.mxu0 0
      %1007 = vmatprep.subr.bf16.mxu0 0
      %1008 = vmatpush1.bf16.msra.mxu0 0
      %1009 = vmatprep.subr.bf16.mxu0 0
      %1010 = vmatpush1.bf16.msra.mxu0 0
      %1011 = vmatprep.subr.bf16.mxu0 0
      %1012 = vmatpush1.bf16.msra.mxu0 0
      %1013 = vmatprep.subr.bf16.mxu0 0
      %1014 = vmatpush1.bf16.msra.mxu0 0
      %1015 = vmatprep.subr.bf16.mxu0 0
      %1016 = vmatpush1.bf16.msra.mxu0 0
      %1017 = vmatprep.subr.bf16.mxu0 0
      %1018 = vmatpush1.bf16.msra.mxu0 0
      %1019 = vmatprep.subr.bf16.mxu0 0
      %1020 = vmatpush1.bf16.msra.mxu0 0
      %1021 = vmatprep.subr.bf16.mxu0 0
      %1022 = vmatpush1.bf16.msra.mxu0 0
      %1023 = vmatprep.subr.bf16.mxu0 0
      %1024 = vmatpush1.bf16.msra.mxu0 0
      %1025 = vmatprep.subr.bf16.mxu0 0
      %1026 = vmatpush1.bf16.msra.mxu0 0
      %1027 = vmatprep.mubr.bf16.mxu0 0
      %1028 = vmatmul.mubr.bf16.gmra.mrb[0].mxu0 %v990
      %v1029 = vpop.f32.mrb[0].mxu0
      %v1030 = vadd.f32 %v979, %v1029
      %v1031 = vpop.f32.mrb[0].mxu0
      %v1032 = vpop.f32.mrb[0].mxu0
      %v1033 = vpop.f32.mrb[0].mxu0
      %1034 = vdwg.mxu0
      %1035 = vrot.lane.b32.xlu0 %v570, 64
      %v1036 = vpop.permute.xlu0 %1035
      %1037 = vrot.lane.b32.xlu0 %v801, 64
      %v1038 = vpop.permute.xlu0 %1037
      %v1040 = vsel %vm577, %v1036, 0
      %v1043 = vsel %vm577, %v1038, 0
      %1045 = vmatprep.subr.bf16.mxu0 0
      %1046 = vmatpush1.bf16.xpose.msra.mxu0 %v1043
      %1047 = vmatprep.subr.bf16.mxu0 0
      %1048 = vmatpush1.bf16.xpose.msra.mxu0 0
      %1049 = vmatprep.subr.bf16.mxu0 0
      %1050 = vmatpush1.bf16.xpose.msra.mxu0 0
      %1051 = vmatprep.subr.bf16.mxu0 0
      %1052 = vmatpush1.bf16.xpose.msra.mxu0 0
      %1053 = vmatprep.subr.bf16.mxu0 0
      %1054 = vmatpush1.bf16.xpose.msra.mxu0 0
      %1055 = vmatprep.subr.bf16.mxu0 0
      %1056 = vmatpush1.bf16.xpose.msra.mxu0 0
      %1057 = vmatprep.subr.bf16.mxu0 0
      %1058 = vmatpush1.bf16.xpose.msra.mxu0 0
      %1059 = vmatprep.subr.bf16.mxu0 0
      %1060 = vmatpush1.bf16.xpose.msra.mxu0 0
      %1061 = vmatprep.subr.bf16.mxu0 0
      %1062 = vmatpush1.bf16.xpose.msra.mxu0 0
      %1063 = vmatprep.subr.bf16.mxu0 0
      %1064 = vmatpush1.bf16.xpose.msra.mxu0 0
      %1065 = vmatprep.subr.bf16.mxu0 0
      %1066 = vmatpush1.bf16.xpose.msra.mxu0 0
      %1067 = vmatprep.subr.bf16.mxu0 0
      %1068 = vmatpush1.bf16.xpose.msra.mxu0 0
      %1069 = vmatprep.subr.bf16.mxu0 0
      %1070 = vmatpush1.bf16.xpose.msra.mxu0 0
      %1071 = vmatprep.subr.bf16.mxu0 0
      %1072 = vmatpush1.bf16.xpose.msra.mxu0 0
      %1073 = vmatprep.subr.bf16.mxu0 0
      %1074 = vmatpush1.bf16.xpose.msra.mxu0 0
      %1075 = vmatprep.subr.bf16.mxu0 0
      %1076 = vmatpush1.bf16.xpose.msra.mxu0 0
      %1077 = vmatprep.mubr.bf16.mxu0 0
      %1078 = vmatmul.mubr.bf16.gmra.mrb[0].mxu0 %v1040
      %v1079 = vpop.f32.mrb[0].mxu0
      %v1080 = vadd.f32 %v575, %v1079
      %v1081 = vpop.f32.mrb[0].mxu0
      %v1082 = vpop.f32.mrb[0].mxu0
      %v1083 = vpop.f32.mrb[0].mxu0
      %1084 = vdwg.mxu0
      %1085 = vrot.lane.b32.xlu0 %v857, 64
      %v1086 = vpop.permute.xlu0 %1085
      %v1088 = vsel %vm577, %v1086, 0
      %1090 = vmatprep.subr.bf16.mxu0 0
      %1091 = vmatpush1.bf16.xpose.msra.mxu0 %v1088
      %1092 = vmatprep.subr.bf16.mxu0 0
      %1093 = vmatpush1.bf16.xpose.msra.mxu0 0
      %1094 = vmatprep.subr.bf16.mxu0 0
      %1095 = vmatpush1.bf16.xpose.msra.mxu0 0
      %1096 = vmatprep.subr.bf16.mxu0 0
      %1097 = vmatpush1.bf16.xpose.msra.mxu0 0
      %1098 = vmatprep.subr.bf16.mxu0 0
      %1099 = vmatpush1.bf16.xpose.msra.mxu0 0
      %1100 = vmatprep.subr.bf16.mxu0 0
      %1101 = vmatpush1.bf16.xpose.msra.mxu0 0
      %1102 = vmatprep.subr.bf16.mxu0 0
      %1103 = vmatpush1.bf16.xpose.msra.mxu0 0
      %1104 = vmatprep.subr.bf16.mxu0 0
      %1105 = vmatpush1.bf16.xpose.msra.mxu0 0
      %1106 = vmatprep.subr.bf16.mxu0 0
      %1107 = vmatpush1.bf16.xpose.msra.mxu0 0
      %1108 = vmatprep.subr.bf16.mxu0 0
      %1109 = vmatpush1.bf16.xpose.msra.mxu0 0
      %1110 = vmatprep.subr.bf16.mxu0 0
      %1111 = vmatpush1.bf16.xpose.msra.mxu0 0
      %1112 = vmatprep.subr.bf16.mxu0 0
      %1113 = vmatpush1.bf16.xpose.msra.mxu0 0
      %1114 = vmatprep.subr.bf16.mxu0 0
      %1115 = vmatpush1.bf16.xpose.msra.mxu0 0
      %1116 = vmatprep.subr.bf16.mxu0 0
      %1117 = vmatpush1.bf16.xpose.msra.mxu0 0
      %1118 = vmatprep.subr.bf16.mxu0 0
      %1119 = vmatpush1.bf16.xpose.msra.mxu0 0
      %1120 = vmatprep.subr.bf16.mxu0 0
      %1121 = vmatpush1.bf16.xpose.msra.mxu0 0
      %1122 = vmatprep.mubr.bf16.mxu0 0
      %1123 = vmatmul.mubr.bf16.gmra.mrb[0].mxu0 %v1040
      %v1124 = vpop.f32.mrb[0].mxu0
      %v1125 = vadd.f32 %v628, %v1124
      %v1126 = vpop.f32.mrb[0].mxu0
      %v1127 = vpop.f32.mrb[0].mxu0
      %v1128 = vpop.f32.mrb[0].mxu0
      %1129 = vdwg.mxu0
      %v1130 = vsel %vm673, %v1080, -inf
      %1131 = vmax.xlane.f32.xlu0 %v1130
      %v1132 = vpop.xlane.xlu0 %1131
      %v1133 = vsel %vm677, %v1125, -inf
      %1134 = vmax.xlane.f32.xlu0 %v1133
      %v1135 = vpop.xlane.xlu0 %1134
      %v1136 = vmax.f32 %v1132, %v1135
      %v1137 = vsub.f32 %v1080, %v1136
      %v1138 = vmul.f32 %v1137, 1.442695
      %v1139 = vpow.pop %v1138
      %v1140 = vsub.f32 %v1125, %v1136
      %v1141 = vmul.f32 %v1140, 1.442695
      %v1142 = vpow.pop %v1141
      %v1143 = vsel %vm673, %v1139, 0.0
      %1144 = vadd.xlane.f32.xlu0 %v1143
      %v1145 = vpop.xlane.xlu0 %1144
      %v1146 = vsel %vm677, %v1142, 0.0
      %1147 = vadd.xlane.f32.xlu0 %v1146
      %v1148 = vpop.xlane.xlu0 %1147
      %v1149 = vadd.f32 %v1145, %v1148
      %v1150 = vrcp.pop %v1149
      %v1151 = vmul.f32 %v1139, %v1150
      %v1152 = vpack.c.bf16 %v1151, %v1151
      %v1153 = vmul.f32 %v1142, %v1150
      %v1154 = vpack.c.bf16 %v1153, %v1153
      %1155 = vrot.lane.b32.xlu0 %v935, 64
      %v1156 = vpop.permute.xlu0 %1155
      %v1158 = vsel %vm700, %v1154, 0
      %v1161 = vsel %vm704, %v1156, 0
      %1163 = vmatprep.subr.bf16.mxu0 0
      %1164 = vmatpush1.bf16.msra.mxu0 %v1161
      %1165 = vmatprep.subr.bf16.mxu0 0
      %1166 = vmatpush1.bf16.msra.mxu0 0
      %1167 = vmatprep.subr.bf16.mxu0 0
      %1168 = vmatpush1.bf16.msra.mxu0 0
      %1169 = vmatprep.subr.bf16.mxu0 0
      %1170 = vmatpush1.bf16.msra.mxu0 0
      %1171 = vmatprep.subr.bf16.mxu0 0
      %1172 = vmatpush1.bf16.msra.mxu0 0
      %1173 = vmatprep.subr.bf16.mxu0 0
      %1174 = vmatpush1.bf16.msra.mxu0 0
      %1175 = vmatprep.subr.bf16.mxu0 0
      %1176 = vmatpush1.bf16.msra.mxu0 0
      %1177 = vmatprep.subr.bf16.mxu0 0
      %1178 = vmatpush1.bf16.msra.mxu0 0
      %1179 = vmatprep.subr.bf16.mxu0 0
      %1180 = vmatpush1.bf16.msra.mxu0 0
      %1181 = vmatprep.subr.bf16.mxu0 0
      %1182 = vmatpush1.bf16.msra.mxu0 0
      %1183 = vmatprep.subr.bf16.mxu0 0
      %1184 = vmatpush1.bf16.msra.mxu0 0
      %1185 = vmatprep.subr.bf16.mxu0 0
      %1186 = vmatpush1.bf16.msra.mxu0 0
      %1187 = vmatprep.subr.bf16.mxu0 0
      %1188 = vmatpush1.bf16.msra.mxu0 0
      %1189 = vmatprep.subr.bf16.mxu0 0
      %1190 = vmatpush1.bf16.msra.mxu0 0
      %1191 = vmatprep.subr.bf16.mxu0 0
      %1192 = vmatpush1.bf16.msra.mxu0 0
      %1193 = vmatprep.subr.bf16.mxu0 0
      %1194 = vmatpush1.bf16.msra.mxu0 0
      %1195 = vmatprep.mubr.bf16.mxu0 0
      %1196 = vmatmul.mubr.bf16.gmra.mrb[0].mxu0 %v1158
      %v1197 = vpop.f32.mrb[0].mxu0
      %v1198 = vadd.f32 0.0, %v1197
      %v1199 = vpop.f32.mrb[0].mxu0
      %v1200 = vpop.f32.mrb[0].mxu0
      %v1201 = vpop.f32.mrb[0].mxu0
      %1202 = vdwg.mxu0
      %1203 = vrot.lane.b32.xlu0 %v986, 64
      %v1204 = vpop.permute.xlu0 %1203
      %v1206 = vsel %vm748, %v1152, 0
      %v1209 = vsel %vm752, %v1204, 0
      %1211 = vmatprep.subr.bf16.mxu0 0
      %1212 = vmatpush1.bf16.msra.mxu0 %v1209
      %1213 = vmatprep.subr.bf16.mxu0 0
      %1214 = vmatpush1.bf16.msra.mxu0 0
      %1215 = vmatprep.subr.bf16.mxu0 0
      %1216 = vmatpush1.bf16.msra.mxu0 0
      %1217 = vmatprep.subr.bf16.mxu0 0
      %1218 = vmatpush1.bf16.msra.mxu0 0
      %1219 = vmatprep.subr.bf16.mxu0 0
      %1220 = vmatpush1.bf16.msra.mxu0 0
      %1221 = vmatprep.subr.bf16.mxu0 0
      %1222 = vmatpush1.bf16.msra.mxu0 0
      %1223 = vmatprep.subr.bf16.mxu0 0
      %1224 = vmatpush1.bf16.msra.mxu0 0
      %1225 = vmatprep.subr.bf16.mxu0 0
      %1226 = vmatpush1.bf16.msra.mxu0 0
      %1227 = vmatprep.subr.bf16.mxu0 0
      %1228 = vmatpush1.bf16.msra.mxu0 0
      %1229 = vmatprep.subr.bf16.mxu0 0
      %1230 = vmatpush1.bf16.msra.mxu0 0
      %1231 = vmatprep.subr.bf16.mxu0 0
      %1232 = vmatpush1.bf16.msra.mxu0 0
      %1233 = vmatprep.subr.bf16.mxu0 0
      %1234 = vmatpush1.bf16.msra.mxu0 0
      %1235 = vmatprep.subr.bf16.mxu0 0
      %1236 = vmatpush1.bf16.msra.mxu0 0
      %1237 = vmatprep.subr.bf16.mxu0 0
      %1238 = vmatpush1.bf16.msra.mxu0 0
      %1239 = vmatprep.subr.bf16.mxu0 0
      %1240 = vmatpush1.bf16.msra.mxu0 0
      %1241 = vmatprep.subr.bf16.mxu0 0
      %1242 = vmatpush1.bf16.msra.mxu0 0
      %1243 = vmatprep.mubr.bf16.mxu0 0
      %1244 = vmatmul.mubr.bf16.gmra.mrb[0].mxu0 %v1206
      %v1245 = vpop.f32.mrb[0].mxu0
      %v1246 = vadd.f32 %v1198, %v1245
      %v1247 = vpop.f32.mrb[0].mxu0
      %v1248 = vpop.f32.mrb[0].mxu0
      %v1249 = vpop.f32.mrb[0].mxu0
      %1250 = vdwg.mxu0
      %1251 = vrot.lane.b32.xlu0 %v570, 32
      %v1252 = vpop.permute.xlu0 %1251
      %1253 = vrot.lane.b32.xlu0 %v801, 32
      %v1254 = vpop.permute.xlu0 %1253
      %v1256 = vsel %vm577, %v1252, 0
      %v1259 = vsel %vm577, %v1254, 0
      %1261 = vmatprep.subr.bf16.mxu0 0
      %1262 = vmatpush1.bf16.xpose.msra.mxu0 %v1259
      %1263 = vmatprep.subr.bf16.mxu0 0
      %1264 = vmatpush1.bf16.xpose.msra.mxu0 0
      %1265 = vmatprep.subr.bf16.mxu0 0
      %1266 = vmatpush1.bf16.xpose.msra.mxu0 0
      %1267 = vmatprep.subr.bf16.mxu0 0
      %1268 = vmatpush1.bf16.xpose.msra.mxu0 0
      %1269 = vmatprep.subr.bf16.mxu0 0
      %1270 = vmatpush1.bf16.xpose.msra.mxu0 0
      %1271 = vmatprep.subr.bf16.mxu0 0
      %1272 = vmatpush1.bf16.xpose.msra.mxu0 0
      %1273 = vmatprep.subr.bf16.mxu0 0
      %1274 = vmatpush1.bf16.xpose.msra.mxu0 0
      %1275 = vmatprep.subr.bf16.mxu0 0
      %1276 = vmatpush1.bf16.xpose.msra.mxu0 0
      %1277 = vmatprep.subr.bf16.mxu0 0
      %1278 = vmatpush1.bf16.xpose.msra.mxu0 0
      %1279 = vmatprep.subr.bf16.mxu0 0
      %1280 = vmatpush1.bf16.xpose.msra.mxu0 0
      %1281 = vmatprep.subr.bf16.mxu0 0
      %1282 = vmatpush1.bf16.xpose.msra.mxu0 0
      %1283 = vmatprep.subr.bf16.mxu0 0
      %1284 = vmatpush1.bf16.xpose.msra.mxu0 0
      %1285 = vmatprep.subr.bf16.mxu0 0
      %1286 = vmatpush1.bf16.xpose.msra.mxu0 0
      %1287 = vmatprep.subr.bf16.mxu0 0
      %1288 = vmatpush1.bf16.xpose.msra.mxu0 0
      %1289 = vmatprep.subr.bf16.mxu0 0
      %1290 = vmatpush1.bf16.xpose.msra.mxu0 0
      %1291 = vmatprep.subr.bf16.mxu0 0
      %1292 = vmatpush1.bf16.xpose.msra.mxu0 0
      %1293 = vmatprep.mubr.bf16.mxu0 0
      %1294 = vmatmul.mubr.bf16.gmra.mrb[0].mxu0 %v1256
      %v1295 = vpop.f32.mrb[0].mxu0
      %v1296 = vadd.f32 %v575, %v1295
      %v1297 = vpop.f32.mrb[0].mxu0
      %v1298 = vpop.f32.mrb[0].mxu0
      %v1299 = vpop.f32.mrb[0].mxu0
      %1300 = vdwg.mxu0
      %1301 = vrot.lane.b32.xlu0 %v857, 32
      %v1302 = vpop.permute.xlu0 %1301
      %v1304 = vsel %vm577, %v1302, 0
      %1306 = vmatprep.subr.bf16.mxu0 0
      %1307 = vmatpush1.bf16.xpose.msra.mxu0 %v1304
      %1308 = vmatprep.subr.bf16.mxu0 0
      %1309 = vmatpush1.bf16.xpose.msra.mxu0 0
      %1310 = vmatprep.subr.bf16.mxu0 0
      %1311 = vmatpush1.bf16.xpose.msra.mxu0 0
      %1312 = vmatprep.subr.bf16.mxu0 0
      %1313 = vmatpush1.bf16.xpose.msra.mxu0 0
      %1314 = vmatprep.subr.bf16.mxu0 0
      %1315 = vmatpush1.bf16.xpose.msra.mxu0 0
      %1316 = vmatprep.subr.bf16.mxu0 0
      %1317 = vmatpush1.bf16.xpose.msra.mxu0 0
      %1318 = vmatprep.subr.bf16.mxu0 0
      %1319 = vmatpush1.bf16.xpose.msra.mxu0 0
      %1320 = vmatprep.subr.bf16.mxu0 0
      %1321 = vmatpush1.bf16.xpose.msra.mxu0 0
      %1322 = vmatprep.subr.bf16.mxu0 0
      %1323 = vmatpush1.bf16.xpose.msra.mxu0 0
      %1324 = vmatprep.subr.bf16.mxu0 0
      %1325 = vmatpush1.bf16.xpose.msra.mxu0 0
      %1326 = vmatprep.subr.bf16.mxu0 0
      %1327 = vmatpush1.bf16.xpose.msra.mxu0 0
      %1328 = vmatprep.subr.bf16.mxu0 0
      %1329 = vmatpush1.bf16.xpose.msra.mxu0 0
      %1330 = vmatprep.subr.bf16.mxu0 0
      %1331 = vmatpush1.bf16.xpose.msra.mxu0 0
      %1332 = vmatprep.subr.bf16.mxu0 0
      %1333 = vmatpush1.bf16.xpose.msra.mxu0 0
      %1334 = vmatprep.subr.bf16.mxu0 0
      %1335 = vmatpush1.bf16.xpose.msra.mxu0 0
      %1336 = vmatprep.subr.bf16.mxu0 0
      %1337 = vmatpush1.bf16.xpose.msra.mxu0 0
      %1338 = vmatprep.mubr.bf16.mxu0 0
      %1339 = vmatmul.mubr.bf16.gmra.mrb[0].mxu0 %v1256
      %v1340 = vpop.f32.mrb[0].mxu0
      %v1341 = vadd.f32 %v628, %v1340
      %v1342 = vpop.f32.mrb[0].mxu0
      %v1343 = vpop.f32.mrb[0].mxu0
      %v1344 = vpop.f32.mrb[0].mxu0
      %1345 = vdwg.mxu0
      %v1346 = vsel %vm673, %v1296, -inf
      %1347 = vmax.xlane.f32.xlu0 %v1346
      %v1348 = vpop.xlane.xlu0 %1347
      %v1349 = vsel %vm677, %v1341, -inf
      %1350 = vmax.xlane.f32.xlu0 %v1349
      %v1351 = vpop.xlane.xlu0 %1350
      %v1352 = vmax.f32 %v1348, %v1351
      %v1353 = vsub.f32 %v1296, %v1352
      %v1354 = vmul.f32 %v1353, 1.442695
      %v1355 = vpow.pop %v1354
      %v1356 = vsub.f32 %v1341, %v1352
      %v1357 = vmul.f32 %v1356, 1.442695
      %v1358 = vpow.pop %v1357
      %v1359 = vsel %vm673, %v1355, 0.0
      %1360 = vadd.xlane.f32.xlu0 %v1359
      %v1361 = vpop.xlane.xlu0 %1360
      %v1362 = vsel %vm677, %v1358, 0.0
      %1363 = vadd.xlane.f32.xlu0 %v1362
      %v1364 = vpop.xlane.xlu0 %1363
      %v1365 = vadd.f32 %v1361, %v1364
      %v1366 = vrcp.pop %v1365
      %v1367 = vmul.f32 %v1355, %v1366
      %v1368 = vpack.c.bf16 %v1367, %v1367
      %v1369 = vmul.f32 %v1358, %v1366
      %v1370 = vpack.c.bf16 %v1369, %v1369
      %1371 = vrot.lane.b32.xlu0 %v935, 32
      %v1372 = vpop.permute.xlu0 %1371
      %v1374 = vsel %vm700, %v1370, 0
      %v1377 = vsel %vm704, %v1372, 0
      %1379 = vmatprep.subr.bf16.mxu0 0
      %1380 = vmatpush1.bf16.msra.mxu0 %v1377
      %1381 = vmatprep.subr.bf16.mxu0 0
      %1382 = vmatpush1.bf16.msra.mxu0 0
      %1383 = vmatprep.subr.bf16.mxu0 0
      %1384 = vmatpush1.bf16.msra.mxu0 0
      %1385 = vmatprep.subr.bf16.mxu0 0
      %1386 = vmatpush1.bf16.msra.mxu0 0
      %1387 = vmatprep.subr.bf16.mxu0 0
      %1388 = vmatpush1.bf16.msra.mxu0 0
      %1389 = vmatprep.subr.bf16.mxu0 0
      %1390 = vmatpush1.bf16.msra.mxu0 0
      %1391 = vmatprep.subr.bf16.mxu0 0
      %1392 = vmatpush1.bf16.msra.mxu0 0
      %1393 = vmatprep.subr.bf16.mxu0 0
      %1394 = vmatpush1.bf16.msra.mxu0 0
      %1395 = vmatprep.subr.bf16.mxu0 0
      %1396 = vmatpush1.bf16.msra.mxu0 0
      %1397 = vmatprep.subr.bf16.mxu0 0
      %1398 = vmatpush1.bf16.msra.mxu0 0
      %1399 = vmatprep.subr.bf16.mxu0 0
      %1400 = vmatpush1.bf16.msra.mxu0 0
      %1401 = vmatprep.subr.bf16.mxu0 0
      %1402 = vmatpush1.bf16.msra.mxu0 0
      %1403 = vmatprep.subr.bf16.mxu0 0
      %1404 = vmatpush1.bf16.msra.mxu0 0
      %1405 = vmatprep.subr.bf16.mxu0 0
      %1406 = vmatpush1.bf16.msra.mxu0 0
      %1407 = vmatprep.subr.bf16.mxu0 0
      %1408 = vmatpush1.bf16.msra.mxu0 0
      %1409 = vmatprep.subr.bf16.mxu0 0
      %1410 = vmatpush1.bf16.msra.mxu0 0
      %1411 = vmatprep.mubr.bf16.mxu0 0
      %1412 = vmatmul.mubr.bf16.gmra.mrb[0].mxu0 %v1374
      %v1413 = vpop.f32.mrb[0].mxu0
      %v1414 = vadd.f32 0.0, %v1413
      %v1415 = vpop.f32.mrb[0].mxu0
      %v1416 = vpop.f32.mrb[0].mxu0
      %v1417 = vpop.f32.mrb[0].mxu0
      %1418 = vdwg.mxu0
      %1419 = vrot.lane.b32.xlu0 %v986, 32
      %v1420 = vpop.permute.xlu0 %1419
      %v1422 = vsel %vm748, %v1368, 0
      %v1425 = vsel %vm752, %v1420, 0
      %1427 = vmatprep.subr.bf16.mxu0 0
      %1428 = vmatpush1.bf16.msra.mxu0 %v1425
      %1429 = vmatprep.subr.bf16.mxu0 0
      %1430 = vmatpush1.bf16.msra.mxu0 0
      %1431 = vmatprep.subr.bf16.mxu0 0
      %1432 = vmatpush1.bf16.msra.mxu0 0
      %1433 = vmatprep.subr.bf16.mxu0 0
      %1434 = vmatpush1.bf16.msra.mxu0 0
      %1435 = vmatprep.subr.bf16.mxu0 0
      %1436 = vmatpush1.bf16.msra.mxu0 0
      %1437 = vmatprep.subr.bf16.mxu0 0
      %1438 = vmatpush1.bf16.msra.mxu0 0
      %1439 = vmatprep.subr.bf16.mxu0 0
      %1440 = vmatpush1.bf16.msra.mxu0 0
      %1441 = vmatprep.subr.bf16.mxu0 0
      %1442 = vmatpush1.bf16.msra.mxu0 0
      %1443 = vmatprep.subr.bf16.mxu0 0
      %1444 = vmatpush1.bf16.msra.mxu0 0
      %1445 = vmatprep.subr.bf16.mxu0 0
      %1446 = vmatpush1.bf16.msra.mxu0 0
      %1447 = vmatprep.subr.bf16.mxu0 0
      %1448 = vmatpush1.bf16.msra.mxu0 0
      %1449 = vmatprep.subr.bf16.mxu0 0
      %1450 = vmatpush1.bf16.msra.mxu0 0
      %1451 = vmatprep.subr.bf16.mxu0 0
      %1452 = vmatpush1.bf16.msra.mxu0 0
      %1453 = vmatprep.subr.bf16.mxu0 0
      %1454 = vmatpush1.bf16.msra.mxu0 0
      %1455 = vmatprep.subr.bf16.mxu0 0
      %1456 = vmatpush1.bf16.msra.mxu0 0
      %1457 = vmatprep.subr.bf16.mxu0 0
      %1458 = vmatpush1.bf16.msra.mxu0 0
      %1459 = vmatprep.mubr.bf16.mxu0 0
      %1460 = vmatmul.mubr.bf16.gmra.mrb[0].mxu0 %v1422
      %v1461 = vpop.f32.mrb[0].mxu0
      %v1462 = vadd.f32 %v1414, %v1461
      %v1463 = vpop.f32.mrb[0].mxu0
      %v1464 = vpop.f32.mrb[0].mxu0
      %v1465 = vpop.f32.mrb[0].mxu0
      %1466 = vdwg.mxu0
      %1468 = vrot.lane.b32.xlu0 %v1030, 32
      %v1469 = vpop.permute.xlu0 %1468
      %1472 = vrot.lane.b32.xlu0 %v1246, 64
      %v1473 = vpop.permute.xlu0 %1472
      %1476 = vrot.lane.b32.xlu0 %v1462, 96
      %v1477 = vpop.permute.xlu0 %1476
      %v1479 = vsel %vm577, %v791, %v1469
      %vm1480 = vcmask 523264
      %v1481 = vsel %vm1480, %v1479, %v1473
      %vm1482 = vcmask 785408
      %v1483 = vsel %vm1482, %v1481, %v1477
      %v1484 = vpack.c.bf16 %v1483, %v1483
      %v1485 = vld [vmem:[%s530] sm:$0x1]
      %v1486 = vsel %vm569, %v1484, %v1485
      %1487 = vst [vmem:[%s530] sm:$0x1] %v1486
      %v1490 = vunpack.c.l.s4 1983009808
      %v1491 = vunpack.c.0.s8 %v1490
      %v1492 = vlaneseq
      %v1493 = vshrl.u32 %v1492, 7
      %v1494 = vsub.s32 %v1491, %v1493
      %v1495 = vrot.slane %v1484, %v1494
      %v1496 = vcombine.high %v1495, %v1495
      %vm1497 = vsmask.f32 1280
      %vm1498 = vsmask.f32 3336
      %vm1499 = vmor %vm1497, %vm1498
      %vm1500 = vsmask.f32 5392
      %vm1501 = vmor %vm1499, %vm1500
      %vm1502 = vsmask.f32 7448
      %vm1503 = vmor %vm1501, %vm1502
      %v1505 = vshrl.u32 %v1495, 16
      %v1507 = vrot.slane %v1505, 6
      %v1508 = vshll.u32 %v1495, 16
      %v1510 = vrot.slane %v1508, 7
      %v1511 = vor.u32 %v1507, %v1510
      %v1512 = vrot.slane %v1511, 2
      %v1514 = vshll.u32 %v1496, 16
      %v1516 = vrot.slane %v1514, 7
      %v1517 = vsel %vm1503, %v1512, %v1516
      %1519 = vst [vmem:[%s540] sm:$0x3] %v1517
      %s1520 = scalar_lea.vmem %s487, 2
      %v1521 = vld [vmem:[%s1520] sm:$0x3]
      %s1522 = scalar_lea.vmem %s505, 2
      %v1523 = vld [vmem:[%s1522] sm:$0x3]
      %s1524 = scalar_lea.vmem %s515, 2
      %v1525 = vld [vmem:[%s1524] sm:$0x3]
      %v1528 = vunpack.c.l.s4 1983009808
      %v1529 = vunpack.c.0.s8 %v1528
      %v1530 = vlaneseq
      %v1531 = vshrl.u32 %v1530, 7
      %v1532 = vsub.s32 %v1529, %v1531
      %v1533 = vrot.slane %v1521, %v1532
      %v1535 = vshrl.u32 %v1533, 16
      %v1537 = vrot.slane %v1535, 7
      %v1538 = vshll.u32 %v1533, 16
      %v1540 = vor.u32 %v1537, %v1538
      %v1542 = vsel %vm569, %v543, %v1540
      %v1544 = vsel %vm577, %v1542, 0
      %1546 = vmatprep.subr.bf16.mxu0 0
      %1547 = vmatpush1.bf16.xpose.msra.mxu0 %v582
      %1548 = vmatprep.subr.bf16.mxu0 0
      %1549 = vmatpush1.bf16.xpose.msra.mxu0 0
      %1550 = vmatprep.subr.bf16.mxu0 0
      %1551 = vmatpush1.bf16.xpose.msra.mxu0 0
      %1552 = vmatprep.subr.bf16.mxu0 0
      %1553 = vmatpush1.bf16.xpose.msra.mxu0 0
      %1554 = vmatprep.subr.bf16.mxu0 0
      %1555 = vmatpush1.bf16.xpose.msra.mxu0 0
      %1556 = vmatprep.subr.bf16.mxu0 0
      %1557 = vmatpush1.bf16.xpose.msra.mxu0 0
      %1558 = vmatprep.subr.bf16.mxu0 0
      %1559 = vmatpush1.bf16.xpose.msra.mxu0 0
      %1560 = vmatprep.subr.bf16.mxu0 0
      %1561 = vmatpush1.bf16.xpose.msra.mxu0 0
      %1562 = vmatprep.subr.bf16.mxu0 0
      %1563 = vmatpush1.bf16.xpose.msra.mxu0 0
      %1564 = vmatprep.subr.bf16.mxu0 0
      %1565 = vmatpush1.bf16.xpose.msra.mxu0 0
      %1566 = vmatprep.subr.bf16.mxu0 0
      %1567 = vmatpush1.bf16.xpose.msra.mxu0 0
      %1568 = vmatprep.subr.bf16.mxu0 0
      %1569 = vmatpush1.bf16.xpose.msra.mxu0 0
      %1570 = vmatprep.subr.bf16.mxu0 0
      %1571 = vmatpush1.bf16.xpose.msra.mxu0 0
      %1572 = vmatprep.subr.bf16.mxu0 0
      %1573 = vmatpush1.bf16.xpose.msra.mxu0 0
      %1574 = vmatprep.subr.bf16.mxu0 0
      %1575 = vmatpush1.bf16.xpose.msra.mxu0 0
      %1576 = vmatprep.subr.bf16.mxu0 0
      %1577 = vmatpush1.bf16.xpose.msra.mxu0 0
      %1578 = vmatprep.mubr.bf16.mxu0 0
      %1579 = vmatmul.mubr.bf16.gmra.mrb[0].mxu0 %v1544
      %v1580 = vpop.f32.mrb[0].mxu0
      %v1581 = vadd.f32 %v575, %v1580
      %v1582 = vpop.f32.mrb[0].mxu0
      %v1583 = vpop.f32.mrb[0].mxu0
      %v1584 = vpop.f32.mrb[0].mxu0
      %1585 = vdwg.mxu0
      %v1587 = vsel %vm577, %v1523, 0
      %1589 = vmatprep.subr.bf16.mxu0 0
      %1590 = vmatpush1.bf16.xpose.msra.mxu0 %v1587
      %1591 = vmatprep.subr.bf16.mxu0 0
      %1592 = vmatpush1.bf16.xpose.msra.mxu0 0
      %1593 = vmatprep.subr.bf16.mxu0 0
      %1594 = vmatpush1.bf16.xpose.msra.mxu0 0
      %1595 = vmatprep.subr.bf16.mxu0 0
      %1596 = vmatpush1.bf16.xpose.msra.mxu0 0
      %1597 = vmatprep.subr.bf16.mxu0 0
      %1598 = vmatpush1.bf16.xpose.msra.mxu0 0
      %1599 = vmatprep.subr.bf16.mxu0 0
      %1600 = vmatpush1.bf16.xpose.msra.mxu0 0
      %1601 = vmatprep.subr.bf16.mxu0 0
      %1602 = vmatpush1.bf16.xpose.msra.mxu0 0
      %1603 = vmatprep.subr.bf16.mxu0 0
      %1604 = vmatpush1.bf16.xpose.msra.mxu0 0
      %1605 = vmatprep.subr.bf16.mxu0 0
      %1606 = vmatpush1.bf16.xpose.msra.mxu0 0
      %1607 = vmatprep.subr.bf16.mxu0 0
      %1608 = vmatpush1.bf16.xpose.msra.mxu0 0
      %1609 = vmatprep.subr.bf16.mxu0 0
      %1610 = vmatpush1.bf16.xpose.msra.mxu0 0
      %1611 = vmatprep.subr.bf16.mxu0 0
      %1612 = vmatpush1.bf16.xpose.msra.mxu0 0
      %1613 = vmatprep.subr.bf16.mxu0 0
      %1614 = vmatpush1.bf16.xpose.msra.mxu0 0
      %1615 = vmatprep.subr.bf16.mxu0 0
      %1616 = vmatpush1.bf16.xpose.msra.mxu0 0
      %1617 = vmatprep.subr.bf16.mxu0 0
      %1618 = vmatpush1.bf16.xpose.msra.mxu0 0
      %1619 = vmatprep.subr.bf16.mxu0 0
      %1620 = vmatpush1.bf16.xpose.msra.mxu0 0
      %1621 = vmatprep.mubr.bf16.mxu0 0
      %1622 = vmatmul.mubr.bf16.gmra.mrb[0].mxu0 %v1544
      %v1623 = vpop.f32.mrb[0].mxu0
      %v1624 = vadd.f32 %v628, %v1623
      %v1625 = vpop.f32.mrb[0].mxu0
      %v1626 = vpop.f32.mrb[0].mxu0
      %v1627 = vpop.f32.mrb[0].mxu0
      %1628 = vdwg.mxu0
      %v1629 = vsel %vm673, %v1581, -inf
      %1630 = vmax.xlane.f32.xlu0 %v1629
      %v1631 = vpop.xlane.xlu0 %1630
      %v1632 = vsel %vm677, %v1624, -inf
      %1633 = vmax.xlane.f32.xlu0 %v1632
      %v1634 = vpop.xlane.xlu0 %1633
      %v1635 = vmax.f32 %v1631, %v1634
      %v1636 = vsub.f32 %v1581, %v1635
      %v1637 = vmul.f32 %v1636, 1.442695
      %v1638 = vpow.pop %v1637
      %v1639 = vsub.f32 %v1624, %v1635
      %v1640 = vmul.f32 %v1639, 1.442695
      %v1641 = vpow.pop %v1640
      %v1642 = vsel %vm673, %v1638, 0.0
      %1643 = vadd.xlane.f32.xlu0 %v1642
      %v1644 = vpop.xlane.xlu0 %1643
      %v1645 = vsel %vm677, %v1641, 0.0
      %1646 = vadd.xlane.f32.xlu0 %v1645
      %v1647 = vpop.xlane.xlu0 %1646
      %v1648 = vadd.f32 %v1644, %v1647
      %v1649 = vrcp.pop %v1648
      %v1650 = vmul.f32 %v1638, %v1649
      %v1651 = vpack.c.bf16 %v1650, %v1650
      %v1652 = vmul.f32 %v1641, %v1649
      %v1653 = vpack.c.bf16 %v1652, %v1652
      %v1655 = vsel %vm700, %v1653, 0
      %v1658 = vsel %vm704, %v1525, 0
      %1660 = vmatprep.subr.bf16.mxu0 0
      %1661 = vmatpush1.bf16.msra.mxu0 %v1658
      %1662 = vmatprep.subr.bf16.mxu0 0
      %1663 = vmatpush1.bf16.msra.mxu0 0
      %1664 = vmatprep.subr.bf16.mxu0 0
      %1665 = vmatpush1.bf16.msra.mxu0 0
      %1666 = vmatprep.subr.bf16.mxu0 0
      %1667 = vmatpush1.bf16.msra.mxu0 0
      %1668 = vmatprep.subr.bf16.mxu0 0
      %1669 = vmatpush1.bf16.msra.mxu0 0
      %1670 = vmatprep.subr.bf16.mxu0 0
      %1671 = vmatpush1.bf16.msra.mxu0 0
      %1672 = vmatprep.subr.bf16.mxu0 0
      %1673 = vmatpush1.bf16.msra.mxu0 0
      %1674 = vmatprep.subr.bf16.mxu0 0
      %1675 = vmatpush1.bf16.msra.mxu0 0
      %1676 = vmatprep.subr.bf16.mxu0 0
      %1677 = vmatpush1.bf16.msra.mxu0 0
      %1678 = vmatprep.subr.bf16.mxu0 0
      %1679 = vmatpush1.bf16.msra.mxu0 0
      %1680 = vmatprep.subr.bf16.mxu0 0
      %1681 = vmatpush1.bf16.msra.mxu0 0
      %1682 = vmatprep.subr.bf16.mxu0 0
      %1683 = vmatpush1.bf16.msra.mxu0 0
      %1684 = vmatprep.subr.bf16.mxu0 0
      %1685 = vmatpush1.bf16.msra.mxu0 0
      %1686 = vmatprep.subr.bf16.mxu0 0
      %1687 = vmatpush1.bf16.msra.mxu0 0
      %1688 = vmatprep.subr.bf16.mxu0 0
      %1689 = vmatpush1.bf16.msra.mxu0 0
      %1690 = vmatprep.subr.bf16.mxu0 0
      %1691 = vmatpush1.bf16.msra.mxu0 0
      %1692 = vmatprep.mubr.bf16.mxu0 0
      %1693 = vmatmul.mubr.bf16.gmra.mrb[0].mxu0 %v1655
      %v1694 = vpop.f32.mrb[0].mxu0
      %v1695 = vadd.f32 0.0, %v1694
      %v1696 = vpop.f32.mrb[0].mxu0
      %v1697 = vpop.f32.mrb[0].mxu0
      %v1698 = vpop.f32.mrb[0].mxu0
      %1699 = vdwg.mxu0
      %v1701 = vsel %vm748, %v1651, 0
      %1703 = vmatprep.subr.bf16.mxu0 0
      %1704 = vmatpush1.bf16.msra.mxu0 %v754
      %1705 = vmatprep.subr.bf16.mxu0 0
      %1706 = vmatpush1.bf16.msra.mxu0 0
      %1707 = vmatprep.subr.bf16.mxu0 0
      %1708 = vmatpush1.bf16.msra.mxu0 0
      %1709 = vmatprep.subr.bf16.mxu0 0
      %1710 = vmatpush1.bf16.msra.mxu0 0
      %1711 = vmatprep.subr.bf16.mxu0 0
      %1712 = vmatpush1.bf16.msra.mxu0 0
      %1713 = vmatprep.subr.bf16.mxu0 0
      %1714 = vmatpush1.bf16.msra.mxu0 0
      %1715 = vmatprep.subr.bf16.mxu0 0
      %1716 = vmatpush1.bf16.msra.mxu0 0
      %1717 = vmatprep.subr.bf16.mxu0 0
      %1718 = vmatpush1.bf16.msra.mxu0 0
      %1719 = vmatprep.subr.bf16.mxu0 0
      %1720 = vmatpush1.bf16.msra.mxu0 0
      %1721 = vmatprep.subr.bf16.mxu0 0
      %1722 = vmatpush1.bf16.msra.mxu0 0
      %1723 = vmatprep.subr.bf16.mxu0 0
      %1724 = vmatpush1.bf16.msra.mxu0 0
      %1725 = vmatprep.subr.bf16.mxu0 0
      %1726 = vmatpush1.bf16.msra.mxu0 0
      %1727 = vmatprep.subr.bf16.mxu0 0
      %1728 = vmatpush1.bf16.msra.mxu0 0
      %1729 = vmatprep.subr.bf16.mxu0 0
      %1730 = vmatpush1.bf16.msra.mxu0 0
      %1731 = vmatprep.subr.bf16.mxu0 0
      %1732 = vmatpush1.bf16.msra.mxu0 0
      %1733 = vmatprep.subr.bf16.mxu0 0
      %1734 = vmatpush1.bf16.msra.mxu0 0
      %1735 = vmatprep.mubr.bf16.mxu0 0
      %1736 = vmatmul.mubr.bf16.gmra.mrb[0].mxu0 %v1701
      %v1737 = vpop.f32.mrb[0].mxu0
      %v1738 = vadd.f32 %v1695, %v1737
      %v1739 = vpop.f32.mrb[0].mxu0
      %v1740 = vpop.f32.mrb[0].mxu0
      %v1741 = vpop.f32.mrb[0].mxu0
      %1742 = vdwg.mxu0
      %1744 = vrot.lane.b32.xlu0 %v1542, 96
      %v1745 = vpop.permute.xlu0 %1744
      %v1747 = vsel %vm577, %v1745, 0
      %1749 = vmatprep.subr.bf16.mxu0 0
      %1750 = vmatpush1.bf16.xpose.msra.mxu0 %v808
      %1751 = vmatprep.subr.bf16.mxu0 0
      %1752 = vmatpush1.bf16.xpose.msra.mxu0 0
      %1753 = vmatprep.subr.bf16.mxu0 0
      %1754 = vmatpush1.bf16.xpose.msra.mxu0 0
      %1755 = vmatprep.subr.bf16.mxu0 0
      %1756 = vmatpush1.bf16.xpose.msra.mxu0 0
      %1757 = vmatprep.subr.bf16.mxu0 0
      %1758 = vmatpush1.bf16.xpose.msra.mxu0 0
      %1759 = vmatprep.subr.bf16.mxu0 0
      %1760 = vmatpush1.bf16.xpose.msra.mxu0 0
      %1761 = vmatprep.subr.bf16.mxu0 0
      %1762 = vmatpush1.bf16.xpose.msra.mxu0 0
      %1763 = vmatprep.subr.bf16.mxu0 0
      %1764 = vmatpush1.bf16.xpose.msra.mxu0 0
      %1765 = vmatprep.subr.bf16.mxu0 0
      %1766 = vmatpush1.bf16.xpose.msra.mxu0 0
      %1767 = vmatprep.subr.bf16.mxu0 0
      %1768 = vmatpush1.bf16.xpose.msra.mxu0 0
      %1769 = vmatprep.subr.bf16.mxu0 0
      %1770 = vmatpush1.bf16.xpose.msra.mxu0 0
      %1771 = vmatprep.subr.bf16.mxu0 0
      %1772 = vmatpush1.bf16.xpose.msra.mxu0 0
      %1773 = vmatprep.subr.bf16.mxu0 0
      %1774 = vmatpush1.bf16.xpose.msra.mxu0 0
      %1775 = vmatprep.subr.bf16.mxu0 0
      %1776 = vmatpush1.bf16.xpose.msra.mxu0 0
      %1777 = vmatprep.subr.bf16.mxu0 0
      %1778 = vmatpush1.bf16.xpose.msra.mxu0 0
      %1779 = vmatprep.subr.bf16.mxu0 0
      %1780 = vmatpush1.bf16.xpose.msra.mxu0 0
      %1781 = vmatprep.mubr.bf16.mxu0 0
      %1782 = vmatmul.mubr.bf16.gmra.mrb[0].mxu0 %v1747
      %v1783 = vpop.f32.mrb[0].mxu0
      %v1784 = vadd.f32 %v575, %v1783
      %v1785 = vpop.f32.mrb[0].mxu0
      %v1786 = vpop.f32.mrb[0].mxu0
      %v1787 = vpop.f32.mrb[0].mxu0
      %1788 = vdwg.mxu0
      %v1791 = vunpack.c.l.s4 1983009808
      %v1792 = vunpack.c.0.s8 %v1791
      %v1793 = vlaneseq
      %v1794 = vshrl.u32 %v1793, 7
      %v1795 = vsub.s32 %v1792, %v1794
      %v1796 = vrot.slane %v1523, %v1795
      %1797 = vrot.lane.b32.xlu0 %v1796, 96
      %v1798 = vpop.permute.xlu0 %1797
      %v1800 = vsel %vm577, %v1798, 0
      %1802 = vmatprep.subr.bf16.mxu0 0
      %1803 = vmatpush1.bf16.xpose.msra.mxu0 %v1800
      %1804 = vmatprep.subr.bf16.mxu0 0
      %1805 = vmatpush1.bf16.xpose.msra.mxu0 0
      %1806 = vmatprep.subr.bf16.mxu0 0
      %1807 = vmatpush1.bf16.xpose.msra.mxu0 0
      %1808 = vmatprep.subr.bf16.mxu0 0
      %1809 = vmatpush1.bf16.xpose.msra.mxu0 0
      %1810 = vmatprep.subr.bf16.mxu0 0
      %1811 = vmatpush1.bf16.xpose.msra.mxu0 0
      %1812 = vmatprep.subr.bf16.mxu0 0
      %1813 = vmatpush1.bf16.xpose.msra.mxu0 0
      %1814 = vmatprep.subr.bf16.mxu0 0
      %1815 = vmatpush1.bf16.xpose.msra.mxu0 0
      %1816 = vmatprep.subr.bf16.mxu0 0
      %1817 = vmatpush1.bf16.xpose.msra.mxu0 0
      %1818 = vmatprep.subr.bf16.mxu0 0
      %1819 = vmatpush1.bf16.xpose.msra.mxu0 0
      %1820 = vmatprep.subr.bf16.mxu0 0
      %1821 = vmatpush1.bf16.xpose.msra.mxu0 0
      %1822 = vmatprep.subr.bf16.mxu0 0
      %1823 = vmatpush1.bf16.xpose.msra.mxu0 0
      %1824 = vmatprep.subr.bf16.mxu0 0
      %1825 = vmatpush1.bf16.xpose.msra.mxu0 0
      %1826 = vmatprep.subr.bf16.mxu0 0
      %1827 = vmatpush1.bf16.xpose.msra.mxu0 0
      %1828 = vmatprep.subr.bf16.mxu0 0
      %1829 = vmatpush1.bf16.xpose.msra.mxu0 0
      %1830 = vmatprep.subr.bf16.mxu0 0
      %1831 = vmatpush1.bf16.xpose.msra.mxu0 0
      %1832 = vmatprep.subr.bf16.mxu0 0
      %1833 = vmatpush1.bf16.xpose.msra.mxu0 0
      %1834 = vmatprep.mubr.bf16.mxu0 0
      %1835 = vmatmul.mubr.bf16.gmra.mrb[0].mxu0 %v1747
      %v1836 = vpop.f32.mrb[0].mxu0
      %v1837 = vadd.f32 %v628, %v1836
      %v1838 = vpop.f32.mrb[0].mxu0
      %v1839 = vpop.f32.mrb[0].mxu0
      %v1840 = vpop.f32.mrb[0].mxu0
      %1841 = vdwg.mxu0
      %v1842 = vsel %vm673, %v1784, -inf
      %1843 = vmax.xlane.f32.xlu0 %v1842
      %v1844 = vpop.xlane.xlu0 %1843
      %v1845 = vsel %vm677, %v1837, -inf
      %1846 = vmax.xlane.f32.xlu0 %v1845
      %v1847 = vpop.xlane.xlu0 %1846
      %v1848 = vmax.f32 %v1844, %v1847
      %v1849 = vsub.f32 %v1784, %v1848
      %v1850 = vmul.f32 %v1849, 1.442695
      %v1851 = vpow.pop %v1850
      %v1852 = vsub.f32 %v1837, %v1848
      %v1853 = vmul.f32 %v1852, 1.442695
      %v1854 = vpow.pop %v1853
      %v1855 = vsel %vm673, %v1851, 0.0
      %1856 = vadd.xlane.f32.xlu0 %v1855
      %v1857 = vpop.xlane.xlu0 %1856
      %v1858 = vsel %vm677, %v1854, 0.0
      %1859 = vadd.xlane.f32.xlu0 %v1858
      %v1860 = vpop.xlane.xlu0 %1859
      %v1861 = vadd.f32 %v1857, %v1860
      %v1862 = vrcp.pop %v1861
      %v1863 = vmul.f32 %v1851, %v1862
      %v1864 = vpack.c.bf16 %v1863, %v1863
      %v1865 = vmul.f32 %v1854, %v1862
      %v1866 = vpack.c.bf16 %v1865, %v1865
      %v1869 = vunpack.c.l.s4 1983009808
      %v1870 = vunpack.c.0.s8 %v1869
      %v1871 = vlaneseq
      %v1872 = vshrl.u32 %v1871, 7
      %v1873 = vsub.s32 %v1870, %v1872
      %v1874 = vrot.slane %v1525, %v1873
      %1875 = vrot.lane.b32.xlu0 %v1874, 96
      %v1876 = vpop.permute.xlu0 %1875
      %v1878 = vsel %vm700, %v1866, 0
      %v1881 = vsel %vm704, %v1876, 0
      %1883 = vmatprep.subr.bf16.mxu0 0
      %1884 = vmatpush1.bf16.msra.mxu0 %v1881
      %1885 = vmatprep.subr.bf16.mxu0 0
      %1886 = vmatpush1.bf16.msra.mxu0 0
      %1887 = vmatprep.subr.bf16.mxu0 0
      %1888 = vmatpush1.bf16.msra.mxu0 0
      %1889 = vmatprep.subr.bf16.mxu0 0
      %1890 = vmatpush1.bf16.msra.mxu0 0
      %1891 = vmatprep.subr.bf16.mxu0 0
      %1892 = vmatpush1.bf16.msra.mxu0 0
      %1893 = vmatprep.subr.bf16.mxu0 0
      %1894 = vmatpush1.bf16.msra.mxu0 0
      %1895 = vmatprep.subr.bf16.mxu0 0
      %1896 = vmatpush1.bf16.msra.mxu0 0
      %1897 = vmatprep.subr.bf16.mxu0 0
      %1898 = vmatpush1.bf16.msra.mxu0 0
      %1899 = vmatprep.subr.bf16.mxu0 0
      %1900 = vmatpush1.bf16.msra.mxu0 0
      %1901 = vmatprep.subr.bf16.mxu0 0
      %1902 = vmatpush1.bf16.msra.mxu0 0
      %1903 = vmatprep.subr.bf16.mxu0 0
      %1904 = vmatpush1.bf16.msra.mxu0 0
      %1905 = vmatprep.subr.bf16.mxu0 0
      %1906 = vmatpush1.bf16.msra.mxu0 0
      %1907 = vmatprep.subr.bf16.mxu0 0
      %1908 = vmatpush1.bf16.msra.mxu0 0
      %1909 = vmatprep.subr.bf16.mxu0 0
      %1910 = vmatpush1.bf16.msra.mxu0 0
      %1911 = vmatprep.subr.bf16.mxu0 0
      %1912 = vmatpush1.bf16.msra.mxu0 0
      %1913 = vmatprep.subr.bf16.mxu0 0
      %1914 = vmatpush1.bf16.msra.mxu0 0
      %1915 = vmatprep.mubr.bf16.mxu0 0
      %1916 = vmatmul.mubr.bf16.gmra.mrb[0].mxu0 %v1878
      %v1917 = vpop.f32.mrb[0].mxu0
      %v1918 = vadd.f32 0.0, %v1917
      %v1919 = vpop.f32.mrb[0].mxu0
      %v1920 = vpop.f32.mrb[0].mxu0
      %v1921 = vpop.f32.mrb[0].mxu0
      %1922 = vdwg.mxu0
      %v1924 = vsel %vm748, %v1864, 0
      %1926 = vmatprep.subr.bf16.mxu0 0
      %1927 = vmatpush1.bf16.msra.mxu0 %v993
      %1928 = vmatprep.subr.bf16.mxu0 0
      %1929 = vmatpush1.bf16.msra.mxu0 0
      %1930 = vmatprep.subr.bf16.mxu0 0
      %1931 = vmatpush1.bf16.msra.mxu0 0
      %1932 = vmatprep.subr.bf16.mxu0 0
      %1933 = vmatpush1.bf16.msra.mxu0 0
      %1934 = vmatprep.subr.bf16.mxu0 0
      %1935 = vmatpush1.bf16.msra.mxu0 0
      %1936 = vmatprep.subr.bf16.mxu0 0
      %1937 = vmatpush1.bf16.msra.mxu0 0
      %1938 = vmatprep.subr.bf16.mxu0 0
      %1939 = vmatpush1.bf16.msra.mxu0 0
      %1940 = vmatprep.subr.bf16.mxu0 0
      %1941 = vmatpush1.bf16.msra.mxu0 0
      %1942 = vmatprep.subr.bf16.mxu0 0
      %1943 = vmatpush1.bf16.msra.mxu0 0
      %1944 = vmatprep.subr.bf16.mxu0 0
      %1945 = vmatpush1.bf16.msra.mxu0 0
      %1946 = vmatprep.subr.bf16.mxu0 0
      %1947 = vmatpush1.bf16.msra.mxu0 0
      %1948 = vmatprep.subr.bf16.mxu0 0
      %1949 = vmatpush1.bf16.msra.mxu0 0
      %1950 = vmatprep.subr.bf16.mxu0 0
      %1951 = vmatpush1.bf16.msra.mxu0 0
      %1952 = vmatprep.subr.bf16.mxu0 0
      %1953 = vmatpush1.bf16.msra.mxu0 0
      %1954 = vmatprep.subr.bf16.mxu0 0
      %1955 = vmatpush1.bf16.msra.mxu0 0
      %1956 = vmatprep.subr.bf16.mxu0 0
      %1957 = vmatpush1.bf16.msra.mxu0 0
      %1958 = vmatprep.mubr.bf16.mxu0 0
      %1959 = vmatmul.mubr.bf16.gmra.mrb[0].mxu0 %v1924
      %v1960 = vpop.f32.mrb[0].mxu0
      %v1961 = vadd.f32 %v1918, %v1960
      %v1962 = vpop.f32.mrb[0].mxu0
      %v1963 = vpop.f32.mrb[0].mxu0
      %v1964 = vpop.f32.mrb[0].mxu0
      %1965 = vdwg.mxu0
      %1966 = vrot.lane.b32.xlu0 %v1542, 64
      %v1967 = vpop.permute.xlu0 %1966
      %v1969 = vsel %vm577, %v1967, 0
      %1971 = vmatprep.subr.bf16.mxu0 0
      %1972 = vmatpush1.bf16.xpose.msra.mxu0 %v1043
      %1973 = vmatprep.subr.bf16.mxu0 0
      %1974 = vmatpush1.bf16.xpose.msra.mxu0 0
      %1975 = vmatprep.subr.bf16.mxu0 0
      %1976 = vmatpush1.bf16.xpose.msra.mxu0 0
      %1977 = vmatprep.subr.bf16.mxu0 0
      %1978 = vmatpush1.bf16.xpose.msra.mxu0 0
      %1979 = vmatprep.subr.bf16.mxu0 0
      %1980 = vmatpush1.bf16.xpose.msra.mxu0 0
      %1981 = vmatprep.subr.bf16.mxu0 0
      %1982 = vmatpush1.bf16.xpose.msra.mxu0 0
      %1983 = vmatprep.subr.bf16.mxu0 0
      %1984 = vmatpush1.bf16.xpose.msra.mxu0 0
      %1985 = vmatprep.subr.bf16.mxu0 0
      %1986 = vmatpush1.bf16.xpose.msra.mxu0 0
      %1987 = vmatprep.subr.bf16.mxu0 0
      %1988 = vmatpush1.bf16.xpose.msra.mxu0 0
      %1989 = vmatprep.subr.bf16.mxu0 0
      %1990 = vmatpush1.bf16.xpose.msra.mxu0 0
      %1991 = vmatprep.subr.bf16.mxu0 0
      %1992 = vmatpush1.bf16.xpose.msra.mxu0 0
      %1993 = vmatprep.subr.bf16.mxu0 0
      %1994 = vmatpush1.bf16.xpose.msra.mxu0 0
      %1995 = vmatprep.subr.bf16.mxu0 0
      %1996 = vmatpush1.bf16.xpose.msra.mxu0 0
      %1997 = vmatprep.subr.bf16.mxu0 0
      %1998 = vmatpush1.bf16.xpose.msra.mxu0 0
      %1999 = vmatprep.subr.bf16.mxu0 0
      %2000 = vmatpush1.bf16.xpose.msra.mxu0 0
      %2001 = vmatprep.subr.bf16.mxu0 0
      %2002 = vmatpush1.bf16.xpose.msra.mxu0 0
      %2003 = vmatprep.mubr.bf16.mxu0 0
      %2004 = vmatmul.mubr.bf16.gmra.mrb[0].mxu0 %v1969
      %v2005 = vpop.f32.mrb[0].mxu0
      %v2006 = vadd.f32 %v575, %v2005
      %v2007 = vpop.f32.mrb[0].mxu0
      %v2008 = vpop.f32.mrb[0].mxu0
      %v2009 = vpop.f32.mrb[0].mxu0
      %2010 = vdwg.mxu0
      %2011 = vrot.lane.b32.xlu0 %v1796, 64
      %v2012 = vpop.permute.xlu0 %2011
      %v2014 = vsel %vm577, %v2012, 0
      %2016 = vmatprep.subr.bf16.mxu0 0
      %2017 = vmatpush1.bf16.xpose.msra.mxu0 %v2014
      %2018 = vmatprep.subr.bf16.mxu0 0
      %2019 = vmatpush1.bf16.xpose.msra.mxu0 0
      %2020 = vmatprep.subr.bf16.mxu0 0
      %2021 = vmatpush1.bf16.xpose.msra.mxu0 0
      %2022 = vmatprep.subr.bf16.mxu0 0
      %2023 = vmatpush1.bf16.xpose.msra.mxu0 0
      %2024 = vmatprep.subr.bf16.mxu0 0
      %2025 = vmatpush1.bf16.xpose.msra.mxu0 0
      %2026 = vmatprep.subr.bf16.mxu0 0
      %2027 = vmatpush1.bf16.xpose.msra.mxu0 0
      %2028 = vmatprep.subr.bf16.mxu0 0
      %2029 = vmatpush1.bf16.xpose.msra.mxu0 0
      %2030 = vmatprep.subr.bf16.mxu0 0
      %2031 = vmatpush1.bf16.xpose.msra.mxu0 0
      %2032 = vmatprep.subr.bf16.mxu0 0
      %2033 = vmatpush1.bf16.xpose.msra.mxu0 0
      %2034 = vmatprep.subr.bf16.mxu0 0
      %2035 = vmatpush1.bf16.xpose.msra.mxu0 0
      %2036 = vmatprep.subr.bf16.mxu0 0
      %2037 = vmatpush1.bf16.xpose.msra.mxu0 0
      %2038 = vmatprep.subr.bf16.mxu0 0
      %2039 = vmatpush1.bf16.xpose.msra.mxu0 0
      %2040 = vmatprep.subr.bf16.mxu0 0
      %2041 = vmatpush1.bf16.xpose.msra.mxu0 0
      %2042 = vmatprep.subr.bf16.mxu0 0
      %2043 = vmatpush1.bf16.xpose.msra.mxu0 0
      %2044 = vmatprep.subr.bf16.mxu0 0
      %2045 = vmatpush1.bf16.xpose.msra.mxu0 0
      %2046 = vmatprep.subr.bf16.mxu0 0
      %2047 = vmatpush1.bf16.xpose.msra.mxu0 0
      %2048 = vmatprep.mubr.bf16.mxu0 0
      %2049 = vmatmul.mubr.bf16.gmra.mrb[0].mxu0 %v1969
      %v2050 = vpop.f32.mrb[0].mxu0
      %v2051 = vadd.f32 %v628, %v2050
      %v2052 = vpop.f32.mrb[0].mxu0
      %v2053 = vpop.f32.mrb[0].mxu0
      %v2054 = vpop.f32.mrb[0].mxu0
      %2055 = vdwg.mxu0
      %v2056 = vsel %vm673, %v2006, -inf
      %2057 = vmax.xlane.f32.xlu0 %v2056
      %v2058 = vpop.xlane.xlu0 %2057
      %v2059 = vsel %vm677, %v2051, -inf
      %2060 = vmax.xlane.f32.xlu0 %v2059
      %v2061 = vpop.xlane.xlu0 %2060
      %v2062 = vmax.f32 %v2058, %v2061
      %v2063 = vsub.f32 %v2006, %v2062
      %v2064 = vmul.f32 %v2063, 1.442695
      %v2065 = vpow.pop %v2064
      %v2066 = vsub.f32 %v2051, %v2062
      %v2067 = vmul.f32 %v2066, 1.442695
      %v2068 = vpow.pop %v2067
      %v2069 = vsel %vm673, %v2065, 0.0
      %2070 = vadd.xlane.f32.xlu0 %v2069
      %v2071 = vpop.xlane.xlu0 %2070
      %v2072 = vsel %vm677, %v2068, 0.0
      %2073 = vadd.xlane.f32.xlu0 %v2072
      %v2074 = vpop.xlane.xlu0 %2073
      %v2075 = vadd.f32 %v2071, %v2074
      %v2076 = vrcp.pop %v2075
      %v2077 = vmul.f32 %v2065, %v2076
      %v2078 = vpack.c.bf16 %v2077, %v2077
      %v2079 = vmul.f32 %v2068, %v2076
      %v2080 = vpack.c.bf16 %v2079, %v2079
      %2081 = vrot.lane.b32.xlu0 %v1874, 64
      %v2082 = vpop.permute.xlu0 %2081
      %v2084 = vsel %vm700, %v2080, 0
      %v2087 = vsel %vm704, %v2082, 0
      %2089 = vmatprep.subr.bf16.mxu0 0
      %2090 = vmatpush1.bf16.msra.mxu0 %v2087
      %2091 = vmatprep.subr.bf16.mxu0 0
      %2092 = vmatpush1.bf16.msra.mxu0 0
      %2093 = vmatprep.subr.bf16.mxu0 0
      %2094 = vmatpush1.bf16.msra.mxu0 0
      %2095 = vmatprep.subr.bf16.mxu0 0
      %2096 = vmatpush1.bf16.msra.mxu0 0
      %2097 = vmatprep.subr.bf16.mxu0 0
      %2098 = vmatpush1.bf16.msra.mxu0 0
      %2099 = vmatprep.subr.bf16.mxu0 0
      %2100 = vmatpush1.bf16.msra.mxu0 0
      %2101 = vmatprep.subr.bf16.mxu0 0
      %2102 = vmatpush1.bf16.msra.mxu0 0
      %2103 = vmatprep.subr.bf16.mxu0 0
      %2104 = vmatpush1.bf16.msra.mxu0 0
      %2105 = vmatprep.subr.bf16.mxu0 0
      %2106 = vmatpush1.bf16.msra.mxu0 0
      %2107 = vmatprep.subr.bf16.mxu0 0
      %2108 = vmatpush1.bf16.msra.mxu0 0
      %2109 = vmatprep.subr.bf16.mxu0 0
      %2110 = vmatpush1.bf16.msra.mxu0 0
      %2111 = vmatprep.subr.bf16.mxu0 0
      %2112 = vmatpush1.bf16.msra.mxu0 0
      %2113 = vmatprep.subr.bf16.mxu0 0
      %2114 = vmatpush1.bf16.msra.mxu0 0
      %2115 = vmatprep.subr.bf16.mxu0 0
      %2116 = vmatpush1.bf16.msra.mxu0 0
      %2117 = vmatprep.subr.bf16.mxu0 0
      %2118 = vmatpush1.bf16.msra.mxu0 0
      %2119 = vmatprep.subr.bf16.mxu0 0
      %2120 = vmatpush1.bf16.msra.mxu0 0
      %2121 = vmatprep.mubr.bf16.mxu0 0
      %2122 = vmatmul.mubr.bf16.gmra.mrb[0].mxu0 %v2084
      %v2123 = vpop.f32.mrb[0].mxu0
      %v2124 = vadd.f32 0.0, %v2123
      %v2125 = vpop.f32.mrb[0].mxu0
      %v2126 = vpop.f32.mrb[0].mxu0
      %v2127 = vpop.f32.mrb[0].mxu0
      %2128 = vdwg.mxu0
      %v2130 = vsel %vm748, %v2078, 0
      %2132 = vmatprep.subr.bf16.mxu0 0
      %2133 = vmatpush1.bf16.msra.mxu0 %v1209
      %2134 = vmatprep.subr.bf16.mxu0 0
      %2135 = vmatpush1.bf16.msra.mxu0 0
      %2136 = vmatprep.subr.bf16.mxu0 0
      %2137 = vmatpush1.bf16.msra.mxu0 0
      %2138 = vmatprep.subr.bf16.mxu0 0
      %2139 = vmatpush1.bf16.msra.mxu0 0
      %2140 = vmatprep.subr.bf16.mxu0 0
      %2141 = vmatpush1.bf16.msra.mxu0 0
      %2142 = vmatprep.subr.bf16.mxu0 0
      %2143 = vmatpush1.bf16.msra.mxu0 0
      %2144 = vmatprep.subr.bf16.mxu0 0
      %2145 = vmatpush1.bf16.msra.mxu0 0
      %2146 = vmatprep.subr.bf16.mxu0 0
      %2147 = vmatpush1.bf16.msra.mxu0 0
      %2148 = vmatprep.subr.bf16.mxu0 0
      %2149 = vmatpush1.bf16.msra.mxu0 0
      %2150 = vmatprep.subr.bf16.mxu0 0
      %2151 = vmatpush1.bf16.msra.mxu0 0
      %2152 = vmatprep.subr.bf16.mxu0 0
      %2153 = vmatpush1.bf16.msra.mxu0 0
      %2154 = vmatprep.subr.bf16.mxu0 0
      %2155 = vmatpush1.bf16.msra.mxu0 0
      %2156 = vmatprep.subr.bf16.mxu0 0
      %2157 = vmatpush1.bf16.msra.mxu0 0
      %2158 = vmatprep.subr.bf16.mxu0 0
      %2159 = vmatpush1.bf16.msra.mxu0 0
      %2160 = vmatprep.subr.bf16.mxu0 0
      %2161 = vmatpush1.bf16.msra.mxu0 0
      %2162 = vmatprep.subr.bf16.mxu0 0
      %2163 = vmatpush1.bf16.msra.mxu0 0
      %2164 = vmatprep.mubr.bf16.mxu0 0
      %2165 = vmatmul.mubr.bf16.gmra.mrb[0].mxu0 %v2130
      %v2166 = vpop.f32.mrb[0].mxu0
      %v2167 = vadd.f32 %v2124, %v2166
      %v2168 = vpop.f32.mrb[0].mxu0
      %v2169 = vpop.f32.mrb[0].mxu0
      %v2170 = vpop.f32.mrb[0].mxu0
      %2171 = vdwg.mxu0
      %2172 = vrot.lane.b32.xlu0 %v1542, 32
      %v2173 = vpop.permute.xlu0 %2172
      %v2175 = vsel %vm577, %v2173, 0
      %2177 = vmatprep.subr.bf16.mxu0 0
      %2178 = vmatpush1.bf16.xpose.msra.mxu0 %v1259
      %2179 = vmatprep.subr.bf16.mxu0 0
      %2180 = vmatpush1.bf16.xpose.msra.mxu0 0
      %2181 = vmatprep.subr.bf16.mxu0 0
      %2182 = vmatpush1.bf16.xpose.msra.mxu0 0
      %2183 = vmatprep.subr.bf16.mxu0 0
      %2184 = vmatpush1.bf16.xpose.msra.mxu0 0
      %2185 = vmatprep.subr.bf16.mxu0 0
      %2186 = vmatpush1.bf16.xpose.msra.mxu0 0
      %2187 = vmatprep.subr.bf16.mxu0 0
      %2188 = vmatpush1.bf16.xpose.msra.mxu0 0
      %2189 = vmatprep.subr.bf16.mxu0 0
      %2190 = vmatpush1.bf16.xpose.msra.mxu0 0
      %2191 = vmatprep.subr.bf16.mxu0 0
      %2192 = vmatpush1.bf16.xpose.msra.mxu0 0
      %2193 = vmatprep.subr.bf16.mxu0 0
      %2194 = vmatpush1.bf16.xpose.msra.mxu0 0
      %2195 = vmatprep.subr.bf16.mxu0 0
      %2196 = vmatpush1.bf16.xpose.msra.mxu0 0
      %2197 = vmatprep.subr.bf16.mxu0 0
      %2198 = vmatpush1.bf16.xpose.msra.mxu0 0
      %2199 = vmatprep.subr.bf16.mxu0 0
      %2200 = vmatpush1.bf16.xpose.msra.mxu0 0
      %2201 = vmatprep.subr.bf16.mxu0 0
      %2202 = vmatpush1.bf16.xpose.msra.mxu0 0
      %2203 = vmatprep.subr.bf16.mxu0 0
      %2204 = vmatpush1.bf16.xpose.msra.mxu0 0
      %2205 = vmatprep.subr.bf16.mxu0 0
      %2206 = vmatpush1.bf16.xpose.msra.mxu0 0
      %2207 = vmatprep.subr.bf16.mxu0 0
      %2208 = vmatpush1.bf16.xpose.msra.mxu0 0
      %2209 = vmatprep.mubr.bf16.mxu0 0
      %2210 = vmatmul.mubr.bf16.gmra.mrb[0].mxu0 %v2175
      %v2211 = vpop.f32.mrb[0].mxu0
      %v2212 = vadd.f32 %v575, %v2211
      %v2213 = vpop.f32.mrb[0].mxu0
      %v2214 = vpop.f32.mrb[0].mxu0
      %v2215 = vpop.f32.mrb[0].mxu0
      %2216 = vdwg.mxu0
      %2217 = vrot.lane.b32.xlu0 %v1796, 32
      %v2218 = vpop.permute.xlu0 %2217
      %v2220 = vsel %vm577, %v2218, 0
      %2222 = vmatprep.subr.bf16.mxu0 0
      %2223 = vmatpush1.bf16.xpose.msra.mxu0 %v2220
      %2224 = vmatprep.subr.bf16.mxu0 0
      %2225 = vmatpush1.bf16.xpose.msra.mxu0 0
      %2226 = vmatprep.subr.bf16.mxu0 0
      %2227 = vmatpush1.bf16.xpose.msra.mxu0 0
      %2228 = vmatprep.subr.bf16.mxu0 0
      %2229 = vmatpush1.bf16.xpose.msra.mxu0 0
      %2230 = vmatprep.subr.bf16.mxu0 0
      %2231 = vmatpush1.bf16.xpose.msra.mxu0 0
      %2232 = vmatprep.subr.bf16.mxu0 0
      %2233 = vmatpush1.bf16.xpose.msra.mxu0 0
      %2234 = vmatprep.subr.bf16.mxu0 0
      %2235 = vmatpush1.bf16.xpose.msra.mxu0 0
      %2236 = vmatprep.subr.bf16.mxu0 0
      %2237 = vmatpush1.bf16.xpose.msra.mxu0 0
      %2238 = vmatprep.subr.bf16.mxu0 0
      %2239 = vmatpush1.bf16.xpose.msra.mxu0 0
      %2240 = vmatprep.subr.bf16.mxu0 0
      %2241 = vmatpush1.bf16.xpose.msra.mxu0 0
      %2242 = vmatprep.subr.bf16.mxu0 0
      %2243 = vmatpush1.bf16.xpose.msra.mxu0 0
      %2244 = vmatprep.subr.bf16.mxu0 0
      %2245 = vmatpush1.bf16.xpose.msra.mxu0 0
      %2246 = vmatprep.subr.bf16.mxu0 0
      %2247 = vmatpush1.bf16.xpose.msra.mxu0 0
      %2248 = vmatprep.subr.bf16.mxu0 0
      %2249 = vmatpush1.bf16.xpose.msra.mxu0 0
      %2250 = vmatprep.subr.bf16.mxu0 0
      %2251 = vmatpush1.bf16.xpose.msra.mxu0 0
      %2252 = vmatprep.subr.bf16.mxu0 0
      %2253 = vmatpush1.bf16.xpose.msra.mxu0 0
      %2254 = vmatprep.mubr.bf16.mxu0 0
      %2255 = vmatmul.mubr.bf16.gmra.mrb[0].mxu0 %v2175
      %v2256 = vpop.f32.mrb[0].mxu0
      %v2257 = vadd.f32 %v628, %v2256
      %v2258 = vpop.f32.mrb[0].mxu0
      %v2259 = vpop.f32.mrb[0].mxu0
      %v2260 = vpop.f32.mrb[0].mxu0
      %2261 = vdwg.mxu0
      %v2262 = vsel %vm673, %v2212, -inf
      %2263 = vmax.xlane.f32.xlu0 %v2262
      %v2264 = vpop.xlane.xlu0 %2263
      %v2265 = vsel %vm677, %v2257, -inf
      %2266 = vmax.xlane.f32.xlu0 %v2265
      %v2267 = vpop.xlane.xlu0 %2266
      %v2268 = vmax.f32 %v2264, %v2267
      %v2269 = vsub.f32 %v2212, %v2268
      %v2270 = vmul.f32 %v2269, 1.442695
      %v2271 = vpow.pop %v2270
      %v2272 = vsub.f32 %v2257, %v2268
      %v2273 = vmul.f32 %v2272, 1.442695
      %v2274 = vpow.pop %v2273
      %v2275 = vsel %vm673, %v2271, 0.0
      %2276 = vadd.xlane.f32.xlu0 %v2275
      %v2277 = vpop.xlane.xlu0 %2276
      %v2278 = vsel %vm677, %v2274, 0.0
      %2279 = vadd.xlane.f32.xlu0 %v2278
      %v2280 = vpop.xlane.xlu0 %2279
      %v2281 = vadd.f32 %v2277, %v2280
      %v2282 = vrcp.pop %v2281
      %v2283 = vmul.f32 %v2271, %v2282
      %v2284 = vpack.c.bf16 %v2283, %v2283
      %v2285 = vmul.f32 %v2274, %v2282
      %v2286 = vpack.c.bf16 %v2285, %v2285
      %2287 = vrot.lane.b32.xlu0 %v1874, 32
      %v2288 = vpop.permute.xlu0 %2287
      %v2290 = vsel %vm700, %v2286, 0
      %v2293 = vsel %vm704, %v2288, 0
      %2295 = vmatprep.subr.bf16.mxu0 0
      %2296 = vmatpush1.bf16.msra.mxu0 %v2293
      %2297 = vmatprep.subr.bf16.mxu0 0
      %2298 = vmatpush1.bf16.msra.mxu0 0
      %2299 = vmatprep.subr.bf16.mxu0 0
      %2300 = vmatpush1.bf16.msra.mxu0 0
      %2301 = vmatprep.subr.bf16.mxu0 0
      %2302 = vmatpush1.bf16.msra.mxu0 0
      %2303 = vmatprep.subr.bf16.mxu0 0
      %2304 = vmatpush1.bf16.msra.mxu0 0
      %2305 = vmatprep.subr.bf16.mxu0 0
      %2306 = vmatpush1.bf16.msra.mxu0 0
      %2307 = vmatprep.subr.bf16.mxu0 0
      %2308 = vmatpush1.bf16.msra.mxu0 0
      %2309 = vmatprep.subr.bf16.mxu0 0
      %2310 = vmatpush1.bf16.msra.mxu0 0
      %2311 = vmatprep.subr.bf16.mxu0 0
      %2312 = vmatpush1.bf16.msra.mxu0 0
      %2313 = vmatprep.subr.bf16.mxu0 0
      %2314 = vmatpush1.bf16.msra.mxu0 0
      %2315 = vmatprep.subr.bf16.mxu0 0
      %2316 = vmatpush1.bf16.msra.mxu0 0
      %2317 = vmatprep.subr.bf16.mxu0 0
      %2318 = vmatpush1.bf16.msra.mxu0 0
      %2319 = vmatprep.subr.bf16.mxu0 0
      %2320 = vmatpush1.bf16.msra.mxu0 0
      %2321 = vmatprep.subr.bf16.mxu0 0
      %2322 = vmatpush1.bf16.msra.mxu0 0
      %2323 = vmatprep.subr.bf16.mxu0 0
      %2324 = vmatpush1.bf16.msra.mxu0 0
      %2325 = vmatprep.subr.bf16.mxu0 0
      %2326 = vmatpush1.bf16.msra.mxu0 0
      %2327 = vmatprep.mubr.bf16.mxu0 0
      %2328 = vmatmul.mubr.bf16.gmra.mrb[0].mxu0 %v2290
      %v2329 = vpop.f32.mrb[0].mxu0
      %v2330 = vadd.f32 0.0, %v2329
      %v2331 = vpop.f32.mrb[0].mxu0
      %v2332 = vpop.f32.mrb[0].mxu0
      %v2333 = vpop.f32.mrb[0].mxu0
      %2334 = vdwg.mxu0
      %v2336 = vsel %vm748, %v2284, 0
      %2338 = vmatprep.subr.bf16.mxu0 0
      %2339 = vmatpush1.bf16.msra.mxu0 %v1425
      %2340 = vmatprep.subr.bf16.mxu0 0
      %2341 = vmatpush1.bf16.msra.mxu0 0
      %2342 = vmatprep.subr.bf16.mxu0 0
      %2343 = vmatpush1.bf16.msra.mxu0 0
      %2344 = vmatprep.subr.bf16.mxu0 0
      %2345 = vmatpush1.bf16.msra.mxu0 0
      %2346 = vmatprep.subr.bf16.mxu0 0
      %2347 = vmatpush1.bf16.msra.mxu0 0
      %2348 = vmatprep.subr.bf16.mxu0 0
      %2349 = vmatpush1.bf16.msra.mxu0 0
      %2350 = vmatprep.subr.bf16.mxu0 0
      %2351 = vmatpush1.bf16.msra.mxu0 0
      %2352 = vmatprep.subr.bf16.mxu0 0
      %2353 = vmatpush1.bf16.msra.mxu0 0
      %2354 = vmatprep.subr.bf16.mxu0 0
      %2355 = vmatpush1.bf16.msra.mxu0 0
      %2356 = vmatprep.subr.bf16.mxu0 0
      %2357 = vmatpush1.bf16.msra.mxu0 0
      %2358 = vmatprep.subr.bf16.mxu0 0
      %2359 = vmatpush1.bf16.msra.mxu0 0
      %2360 = vmatprep.subr.bf16.mxu0 0
      %2361 = vmatpush1.bf16.msra.mxu0 0
      %2362 = vmatprep.subr.bf16.mxu0 0
      %2363 = vmatpush1.bf16.msra.mxu0 0
      %2364 = vmatprep.subr.bf16.mxu0 0
      %2365 = vmatpush1.bf16.msra.mxu0 0
      %2366 = vmatprep.subr.bf16.mxu0 0
      %2367 = vmatpush1.bf16.msra.mxu0 0
      %2368 = vmatprep.subr.bf16.mxu0 0
      %2369 = vmatpush1.bf16.msra.mxu0 0
      %2370 = vmatprep.mubr.bf16.mxu0 0
      %2371 = vmatmul.mubr.bf16.gmra.mrb[0].mxu0 %v2336
      %v2372 = vpop.f32.mrb[0].mxu0
      %v2373 = vadd.f32 %v2330, %v2372
      %v2374 = vpop.f32.mrb[0].mxu0
      %v2375 = vpop.f32.mrb[0].mxu0
      %v2376 = vpop.f32.mrb[0].mxu0
      %2377 = vdwg.mxu0
      %2379 = vrot.lane.b32.xlu0 %v1961, 32
      %v2380 = vpop.permute.xlu0 %2379
      %2383 = vrot.lane.b32.xlu0 %v2167, 64
      %v2384 = vpop.permute.xlu0 %2383
      %2387 = vrot.lane.b32.xlu0 %v2373, 96
      %v2388 = vpop.permute.xlu0 %2387
      %v2390 = vsel %vm577, %v1738, %v2380
      %v2391 = vsel %vm1480, %v2390, %v2384
      %v2392 = vsel %vm1482, %v2391, %v2388
      %v2393 = vpack.c.bf16 %v2392, %v2392
      %s2394 = scalar_lea.vmem %s530, 1
      %v2395 = vld [vmem:[%s2394] sm:$0x1]
      %v2396 = vsel %vm569, %v2393, %v2395
      %2397 = vst [vmem:[%s2394] sm:$0x1] %v2396
      %v2400 = vunpack.c.l.s4 1983009808
      %v2401 = vunpack.c.0.s8 %v2400
      %v2402 = vlaneseq
      %v2403 = vshrl.u32 %v2402, 7
      %v2404 = vsub.s32 %v2401, %v2403
      %v2405 = vrot.slane %v2393, %v2404
      %v2406 = vcombine.high %v2405, %v2405
      %v2408 = vshrl.u32 %v2405, 16
      %v2410 = vrot.slane %v2408, 6
      %v2411 = vshll.u32 %v2405, 16
      %v2413 = vrot.slane %v2411, 7
      %v2414 = vor.u32 %v2410, %v2413
      %v2415 = vrot.slane %v2414, 2
      %v2417 = vshll.u32 %v2406, 16
      %v2419 = vrot.slane %v2417, 7
      %v2420 = vsel %vm1503, %v2415, %v2419
      %s2422 = scalar_lea.vmem %s540, 2
      %2423 = vst [vmem:[%s2422] sm:$0x3] %v2420
      %s2424 = smul.u32 2, %s26
      %p2425 = scmp.lt.s32.totalorder %s25, 1
      %s2426 = scalar_select %p2425, %s25, 1
      %p2427 = scmp.lt.s32.totalorder %s2424, 1
      %s2428 = scalar_select %p2427, %s2424, 1
      %s2429 = smul.addr %s2426, 2
      %s2430 = sadd.s32 %s2428, %s2429
      %s2431 = scalar_lea.vmem %s8, %s2430
      %s2432 = smul.u32 2, %s26
      %p2433 = scmp.lt.s32.totalorder %s25, 1
      %s2434 = scalar_select %p2433, %s25, 1
      %p2435 = scmp.lt.s32.totalorder %s2432, 1
      %s2436 = scalar_select %p2435, %s2432, 1
      %s2437 = smul.addr %s2434, 2
      %s2438 = sadd.s32 %s2436, %s2437
      %s2439 = smul.addr %s2438, 2
      %s2440 = scalar_lea.vmem %s9, %s2439
      // Predicated region
      $region53: #{cross_mha_forward.16} parent=51 // pred_check
        %p2441 = pneg %p267
      $region54: #{cross_mha_forward.16} parent=51 // pred_check_branch
        %2443 = sbr.rel (%p2441) target = $region56
      $region55: #{cross_mha_forward.16} parent=51 // pred_region
        %s2444 = smul.u32 2, %s26
      $region56: #{cross_mha_forward.16} parent=51 // pred_fallthru
        _
      // Predicated region
      $region57: #{cross_mha_forward.16} parent=51 // pred_check
        %p2445 = pneg %p295
      $region58: #{cross_mha_forward.16} parent=51 // pred_check_branch
        %2447 = sbr.rel (%p2445) target = $region60
      $region59: #{cross_mha_forward.16} parent=51 // pred_region
        %s2448 = smul.u32 2, %s26
      $region60: #{cross_mha_forward.16} parent=51 // pred_fallthru
        _
    $region52: #{cross_mha_forward.16} parent=5 // pred_fallthru
      _
    %p2449 = scmp.le.s32.totalorder 2, %s16
    // Predicated region
    $region61: #{cross_mha_forward.16} parent=5 // pred_check
      %p2450 = pneg %p2449
    $region62: #{cross_mha_forward.16} parent=5 // pred_check_branch
      %2452 = sbr.rel (%p2450) target = $region64
    $region63: #{cross_mha_forward.16} parent=5 // pred_region
      %s2453 = ssub.s32 %s16, 2
      // Predicated region
      $region65: #{cross_mha_forward.16} parent=63 // pred_check
        %p2454 = pneg %p273
      $region66: #{cross_mha_forward.16} parent=63 // pred_check_branch
        %2456 = sbr.rel (%p2454) target = $region68
      $region67: #{cross_mha_forward.16} parent=63 // pred_region
        %s2457 = smul.u32 2, %s28
        %p2458 = scmp.lt.s32.totalorder %s27, 1
        %s2459 = scalar_select %p2458, %s27, 1
        %p2460 = scmp.lt.s32.totalorder %s2457, 1
        %s2461 = scalar_select %p2460, %s2457, 1
        %s2462 = smul.addr %s2459, 2
        %s2463 = sadd.s32 %s2461, %s2462
        %s2464 = scalar_lea.vmem %s8, %s2463
      $region68: #{cross_mha_forward.16} parent=63 // pred_fallthru
        _
      // Predicated region
      $region69: #{cross_mha_forward.16} parent=63 // pred_check
        %p2465 = pneg %p301
      $region70: #{cross_mha_forward.16} parent=63 // pred_check_branch
        %2467 = sbr.rel (%p2465) target = $region72
      $region71: #{cross_mha_forward.16} parent=63 // pred_region
        %s2468 = smul.u32 2, %s28
        %p2469 = scmp.lt.s32.totalorder %s27, 1
        %s2470 = scalar_select %p2469, %s27, 1
        %p2471 = scmp.lt.s32.totalorder %s2468, 1
        %s2472 = scalar_select %p2471, %s2468, 1
        %s2473 = smul.addr %s2470, 2
        %s2474 = sadd.s32 %s2472, %s2473
        %s2475 = smul.addr %s2474, 2
        %s2476 = scalar_lea.vmem %s9, %s2475
      $region72: #{cross_mha_forward.16} parent=63 // pred_fallthru
        _
    $region64: #{cross_mha_forward.16} parent=5 // pred_fallthru
      _
  $region6: #{cross_mha_forward.16} parent=0 // loop_footer
    %s20 = sadd.s32 1, %s16
  $region7: #{cross_mha_forward.16} parent=0 // loop_footer_branch
    %15 = sbr.rel target = $region3
  $region8: #{cross_mha_forward.16} parent=0 // loop_exit
    _

// kernel: cross_mha_forward.17
$region0: #{cross_mha_forward.17}
  #allocation0 [shape = 'u32[]', space=smem, size = 0x4, offset = 0x4, fixed_abs, tag = 'smem constant byte address 0x4 - core index']
  #allocation1 [shape = 'u32[144,128]{1,0:T(1,128)}', space=vmem, size = 0x12000, scoped, tag = 'internal scratch']
  #allocation2 [shape = 'f32[32,128]{1,0:T(8,128)}', space=vmem, size = 0x4000, scoped, tag = 'scratch operand']
  %s0 = inlined_call_operand.vmem [shape: bf16[32,128], index: 0, kind: input, shape index: {}]
  %s1 = inlined_call_operand.vmem [shape: bf16[128,128], index: 1, kind: input, shape index: {}]
  %s2 = inlined_call_operand.vmem [shape: f32[1,128], index: 2, kind: input, shape index: {}]
  %s3 = inlined_call_operand.hbm [shape: f32[32,128], index: 3, kind: output, shape index: {}]
  %s4 = sld [smem:[#allocation0]]
  $region30: #{cross_mha_forward.17} parent=0
    _
  %s6 = ssub.s32 1, %s4
  %s7 = scalar_select 0, %s6, %s4
  $region1: #{cross_mha_forward.17} parent=0
    #allocation3 [shape = 'u8[16384]{0}', space=vmem, size = 0x4000, scoped, tag = 'output window, operand 0, single buffered']
    #allocation4 [shape = 's32[1]{0}', space=sflag, size = 0x4, scoped, tag = 'scoped memory for cross_mha_forward.17']
    %8 = vsyncpa [#allocation4], 0
    // Predicated region
    $region2: #{cross_mha_forward.17} parent=1 // pred_check
      _
    $region3: #{cross_mha_forward.17} parent=1 // pred_check_branch
      %10 = sbr.rel (0) target = $region5
    $region4: #{cross_mha_forward.17} parent=1 // pred_region
      _
    $region5: #{cross_mha_forward.17} parent=1 // pred_fallthru
      _
    // Predicated region
    $region6: #{cross_mha_forward.17} parent=1 // pred_check
      _
    $region7: #{cross_mha_forward.17} parent=1 // pred_check_branch
      %12 = sbr.rel (0) target = $region9
    $region8: #{cross_mha_forward.17} parent=1 // pred_region
      _
    $region9: #{cross_mha_forward.17} parent=1 // pred_fallthru
      _
    // Predicated region
    $region10: #{cross_mha_forward.17} parent=1 // pred_check
      _
    $region11: #{cross_mha_forward.17} parent=1 // pred_check_branch
      %14 = sbr.rel (0) target = $region13
    $region12: #{cross_mha_forward.17} parent=1 // pred_region
      _
    $region13: #{cross_mha_forward.17} parent=1 // pred_fallthru
      _
    %p16 = scmp.eq.s32.totalorder 0, 0
    // Predicated region
    $region14: #{cross_mha_forward.17} parent=1 // pred_check
      %p17 = pneg %p16
    $region15: #{cross_mha_forward.17} parent=1 // pred_check_branch
      %19 = sbr.rel (%p17) target = $region17
    $region16: #{cross_mha_forward.17} parent=1 // pred_region
      %20 = vst [vmem:[#allocation2] sm:$0xff] 0.0
      %21 = vst [vmem:[#allocation2 + $0x8] sm:$0xff] 0.0
      %22 = vst [vmem:[#allocation2 + $0x10] sm:$0xff] 0.0
      %23 = vst [vmem:[#allocation2 + $0x18] sm:$0xff] 0.0
    $region17: #{cross_mha_forward.17} parent=1 // pred_fallthru
      _
    %v24 = vld [vmem:[%s0] sm:$0xf]
    %v25 = vld [vmem:[%s0 + $0x4] sm:$0xf]
    %v26 = vld [vmem:[%s0 + $0x8] sm:$0xf]
    %v27 = vld [vmem:[%s0 + $0xc] sm:$0xf]
    %v28 = vld [vmem:[#allocation2] sm:$0xff]
    %v29 = vld [vmem:[#allocation2 + $0x8] sm:$0xff]
    %v30 = vld [vmem:[#allocation2 + $0x10] sm:$0xff]
    %v31 = vld [vmem:[#allocation2 + $0x18] sm:$0xff]
    %v32 = vld [vmem:[%s1] sm:$0xf]
    %v33 = vld [vmem:[%s1 + $0x4] sm:$0xf]
    %v34 = vld [vmem:[%s1 + $0x8] sm:$0xf]
    %v35 = vld [vmem:[%s1 + $0xc] sm:$0xf]
    %v36 = vld [vmem:[%s1 + $0x10] sm:$0xf]
    %v37 = vld [vmem:[%s1 + $0x14] sm:$0xf]
    %v38 = vld [vmem:[%s1 + $0x18] sm:$0xf]
    %v39 = vld [vmem:[%s1 + $0x1c] sm:$0xf]
    %v40 = vld [vmem:[%s1 + $0x20] sm:$0xf]
    %v41 = vld [vmem:[%s1 + $0x24] sm:$0xf]
    %v42 = vld [vmem:[%s1 + $0x28] sm:$0xf]
    %v43 = vld [vmem:[%s1 + $0x2c] sm:$0xf]
    %v44 = vld [vmem:[%s1 + $0x30] sm:$0xf]
    %v45 = vld [vmem:[%s1 + $0x34] sm:$0xf]
    %v46 = vld [vmem:[%s1 + $0x38] sm:$0xf]
    %v47 = vld [vmem:[%s1 + $0x3c] sm:$0xf]
    %v52 = vunpack.c.l.b16 %v24
    %v53 = vunpack.c.l.b16 %v25
    %v54 = vunpack.c.l.b16 %v26
    %v55 = vunpack.c.l.b16 %v27
    %v56 = vpack.c.b16 %v53, %v52
    %v57 = vpack.c.b16 %v55, %v54
    %v76 = vunpack.c.l.b16 %v32
    %v77 = vunpack.c.l.b16 %v33
    %v78 = vunpack.c.l.b16 %v34
    %v79 = vunpack.c.l.b16 %v35
    %v80 = vunpack.c.l.b16 %v36
    %v81 = vunpack.c.l.b16 %v37
    %v82 = vunpack.c.l.b16 %v38
    %v83 = vunpack.c.l.b16 %v39
    %v84 = vunpack.c.l.b16 %v40
    %v85 = vunpack.c.l.b16 %v41
    %v86 = vunpack.c.l.b16 %v42
    %v87 = vunpack.c.l.b16 %v43
    %v88 = vunpack.c.l.b16 %v44
    %v89 = vunpack.c.l.b16 %v45
    %v90 = vunpack.c.l.b16 %v46
    %v91 = vunpack.c.l.b16 %v47
    %v92 = vpack.c.b16 %v77, %v76
    %v93 = vpack.c.b16 %v79, %v78
    %v94 = vpack.c.b16 %v81, %v80
    %v95 = vpack.c.b16 %v83, %v82
    %v96 = vpack.c.b16 %v85, %v84
    %v97 = vpack.c.b16 %v87, %v86
    %v98 = vpack.c.b16 %v89, %v88
    %v99 = vpack.c.b16 %v91, %v90
    %108 = vmatprep.subr.bf16.mxu0 0
    %109 = vmatpush1.bf16.msra.mxu0 %v92
    %110 = vmatprep.subr.bf16.mxu0 0
    %111 = vmatpush1.bf16.msra.mxu0 %v93
    %112 = vmatprep.subr.bf16.mxu0 0
    %113 = vmatpush1.bf16.msra.mxu0 %v94
    %114 = vmatprep.subr.bf16.mxu0 0
    %115 = vmatpush1.bf16.msra.mxu0 %v95
    %116 = vmatprep.subr.bf16.mxu0 0
    %117 = vmatpush1.bf16.msra.mxu0 %v96
    %118 = vmatprep.subr.bf16.mxu0 0
    %119 = vmatpush1.bf16.msra.mxu0 %v97
    %120 = vmatprep.subr.bf16.mxu0 0
    %121 = vmatpush1.bf16.msra.mxu0 %v98
    %122 = vmatprep.subr.bf16.mxu0 0
    %123 = vmatpush1.bf16.msra.mxu0 %v99
    %124 = vmatprep.subr.bf16.mxu0 0
    %125 = vmatpush1.bf16.msra.mxu0 0
    %126 = vmatprep.subr.bf16.mxu0 0
    %127 = vmatpush1.bf16.msra.mxu0 0
    %128 = vmatprep.subr.bf16.mxu0 0
    %129 = vmatpush1.bf16.msra.mxu0 0
    %130 = vmatprep.subr.bf16.mxu0 0
    %131 = vmatpush1.bf16.msra.mxu0 0
    %132 = vmatprep.subr.bf16.mxu0 0
    %133 = vmatpush1.bf16.msra.mxu0 0
    %134 = vmatprep.subr.bf16.mxu0 0
    %135 = vmatpush1.bf16.msra.mxu0 0
    %136 = vmatprep.subr.bf16.mxu0 0
    %137 = vmatpush1.bf16.msra.mxu0 0
    %138 = vmatprep.subr.bf16.mxu0 0
    %139 = vmatpush1.bf16.msra.mxu0 0
    %140 = vmatprep.mubr.bf16.mxu0 0
    %141 = vmatmul.mubr.bf16.gmra.mrb[0].mxu0 %v56
    %v142 = vpop.f32.mrb[0].mxu0
    %v143 = vadd.f32 0.0, %v142
    %v144 = vpop.f32.mrb[0].mxu0
    %v145 = vpop.f32.mrb[0].mxu0
    %v146 = vadd.f32 0.0, %v145
    %v147 = vpop.f32.mrb[0].mxu0
    %148 = vmatprep.mubr.bf16.mxu0 0
    %149 = vmatmul.mubr.bf16.gmra.mrb[0].mxu0 %v57
    %v150 = vpop.f32.mrb[0].mxu0
    %v151 = vadd.f32 0.0, %v150
    %v152 = vpop.f32.mrb[0].mxu0
    %v153 = vpop.f32.mrb[0].mxu0
    %v154 = vadd.f32 0.0, %v153
    %v155 = vpop.f32.mrb[0].mxu0
    %156 = vdwg.mxu0
    %v157 = vadd.f32 %v28, %v143
    %v158 = vadd.f32 %v29, %v146
    %v159 = vadd.f32 %v30, %v151
    %v160 = vadd.f32 %v31, %v154
    %161 = vst [vmem:[#allocation2] sm:$0xff] %v157
    %162 = vst [vmem:[#allocation2 + $0x8] sm:$0xff] %v158
    %163 = vst [vmem:[#allocation2 + $0x10] sm:$0xff] %v159
    %164 = vst [vmem:[#allocation2 + $0x18] sm:$0xff] %v160
    // Predicated region
    $region18: #{cross_mha_forward.17} parent=1 // pred_check
      %p165 = pneg %p16
    $region19: #{cross_mha_forward.17} parent=1 // pred_check_branch
      %167 = sbr.rel (%p165) target = $region21
    $region20: #{cross_mha_forward.17} parent=1 // pred_region
      %v168 = vld [vmem:[#allocation2] sm:$0xff]
      %v169 = vld [vmem:[#allocation2 + $0x8] sm:$0xff]
      %v170 = vld [vmem:[#allocation2 + $0x10] sm:$0xff]
      %v171 = vld [vmem:[#allocation2 + $0x18] sm:$0xff]
      %v172 = vld [vmem:[%s2] sm:$0x1]
      %v174 = vlaneseq
      %v175 = vshrl.u32 %v174, 7
      %v176 = vsub.s32 0, %v175
      %v177 = vrot.slane %v172, %v176
      %v179 = vadd.f32 %v168, %v177
      %v180 = vadd.f32 %v169, %v177
      %v181 = vadd.f32 %v170, %v177
      %v182 = vadd.f32 %v171, %v177
      %183 = vst [vmem:[#allocation3] sm:$0xff] %v179
      %184 = vst [vmem:[#allocation3 + $0x8] sm:$0xff] %v180
      %185 = vst [vmem:[#allocation3 + $0x10] sm:$0xff] %v181
      %186 = vst [vmem:[#allocation3 + $0x18] sm:$0xff] %v182
    $region21: #{cross_mha_forward.17} parent=1 // pred_fallthru
      _
    // Predicated region
    $region22: #{cross_mha_forward.17} parent=1 // pred_check
      _
    $region23: #{cross_mha_forward.17} parent=1 // pred_check_branch
      %188 = sbr.rel (0) target = $region25
    $region24: #{cross_mha_forward.17} parent=1 // pred_region
      %s190 = ssub.s32 512, 512
      %191 = vsyncadd [#allocation4], %s190
      %s192 = sshll.u32 [#allocation3], 4
      %s193 = int_to_ptr.vmem [resolvable:$true] %s192
      %198 = dma.vmem_to_hbm [thread:$0]  %s193, 512, %s3, [#allocation4], 128, 128, 8
    $region25: #{cross_mha_forward.17} parent=1 // pred_fallthru
      _
    // Predicated region
    $region26: #{cross_mha_forward.17} parent=1 // pred_check
      _
    $region27: #{cross_mha_forward.17} parent=1 // pred_check_branch
      %200 = sbr.rel (0) target = $region29
    $region28: #{cross_mha_forward.17} parent=1 // pred_region
      %201 = dma.done [#allocation4], 512
    $region29: #{cross_mha_forward.17} parent=1 // pred_fallthru
      _
    %202 = vsyncpa [#allocation4], 1

// kernel: cross_mha_forward.15
$region0: #{cross_mha_forward.15}
  #allocation0 [shape = 'u32[]', space=smem, size = 0x4, offset = 0x4, fixed_abs, tag = 'smem constant byte address 0x4 - core index']
  #allocation1 [shape = 'u32[144,128]{1,0:T(1,128)}', space=vmem, size = 0x12000, scoped, tag = 'internal scratch']
  %s0 = inlined_call_operand.vmem [shape: bf16[2,7,128], index: 0, kind: input, shape index: {}]
  %s1 = inlined_call_operand.vmem [shape: bf16[2,7,128], index: 1, kind: input, shape index: {}]
  %s2 = inlined_call_operand.vmem [shape: bf16[2,7,128], index: 2, kind: input, shape index: {}]
  %s3 = inlined_call_operand.vmem [shape: bf16[2,2,7,128], index: 3, kind: input, shape index: {}]
  %s4 = inlined_call_operand.vmem [shape: bf16[2,2,7,128], index: 4, kind: input, shape index: {}]
  %s5 = inlined_call_operand.vmem [shape: f32[2,1,7], index: 5, kind: input, shape index: {}]
  %s6 = inlined_call_operand.vmem [shape: f32[2,1,2], index: 6, kind: input, shape index: {}]
  %s7 = inlined_call_operand.vmem [shape: bf16[2,7,128], index: 7, kind: output, shape index: {}]
  %s8 = sld [smem:[#allocation0]]
  $region61: #{cross_mha_forward.15} parent=0
    _
  %s10 = ssub.s32 1, %s8
  %s11 = scalar_select 0, %s10, %s8
  loop: start=0, step=1, limit=4
  $region2: #{cross_mha_forward.15} parent=0 // loop_pre_header
    _
  $region3: #{cross_mha_forward.15} parent=0 // loop_header
    %s13 = sphi 0, %s17
    %p14 = scmp.ge.s32.totalorder %s13, 4
    %s23 = sphi 0, %s25
    %s26 = sphi 0, %s23
    %s27 = sphi 0, %s26
    %s43 = sphi 0, %s27
    %s49 = sphi 0, %s51
    %s52 = sphi 0, %s49
    %s53 = sphi 0, %s52
    %s69 = sphi 0, %s53
    %s75 = sphi 0, %s77
    %s78 = sphi 0, %s75
    %s79 = sphi 0, %s78
    %s95 = sphi 0, %s79
    %s101 = sphi 0, %s103
    %s104 = sphi 0, %s101
    %s105 = sphi 0, %s104
    %s121 = sphi 0, %s105
    %s127 = sphi 0, %s129
    %s130 = sphi 0, %s127
    %s131 = sphi 0, %s130
    %s147 = sphi 0, %s131
    %s153 = sphi 0, %s155
    %s156 = sphi 0, %s153
    %s157 = sphi 0, %s156
    %s173 = sphi 0, %s157
    %s179 = sphi 0, %s181
    %s182 = sphi 0, %s179
    %s183 = sphi 0, %s182
    %s199 = sphi 0, %s183
    %s205 = sphi 0, %s207
    %s208 = sphi 0, %s205
    %s209 = sphi 0, %s208
    %s225 = sphi 0, %s209
  $region4: #{cross_mha_forward.15} parent=0 // loop_header_branch
    %16 = sbr.rel (%p14) target = $region8
  $region5: #{cross_mha_forward.15} parent=0 // loop_body
    %s18 = ssub.s32 %s13, 1
    %s19 = ssub.s32 %s13, 2
    %s20 = sadd.s32 %s13, 1
    %s21 = ssub.s32 %s13, %s20
    %p22 = scmp.eq.s32.totalorder %s21, 0
    %s24 = sadd.s32 %s23, 1
    %s25 = scalar_select %p22, %s23, %s24
    %p28 = pneg %p22
    %p29 = scmp.eq.s32.totalorder %s13, 1
    %p30 = por %p28, %p29
    %p31 = scmp.ne.s32.totalorder %s23, %s26
    %p32 = scmp.eq.s32.totalorder %s13, 0
    %p33 = por %p31, %p32
    %p34 = scmp.ne.s32.totalorder %s23, %s26
    %p35 = scmp.eq.s32.totalorder %s18, 1
    %p36 = por %p34, %p35
    %p37 = scmp.ne.s32.totalorder %s26, %s27
    %p38 = scmp.eq.s32.totalorder %s18, 0
    %p39 = por %p37, %p38
    %p40 = scmp.ne.s32.totalorder %s26, %s27
    %p41 = scmp.eq.s32.totalorder %s19, 1
    %p42 = por %p40, %p41
    %p44 = scmp.ne.s32.totalorder %s27, %s43
    %p45 = scmp.eq.s32.totalorder %s19, 0
    %p46 = por %p44, %p45
    %s47 = ssub.s32 %s13, %s20
    %p48 = scmp.eq.s32.totalorder %s47, 0
    %s50 = sadd.s32 %s49, 1
    %s51 = scalar_select %p48, %s49, %s50
    %p54 = pneg %p48
    %p55 = scmp.eq.s32.totalorder %s13, 1
    %p56 = por %p54, %p55
    %p57 = scmp.ne.s32.totalorder %s49, %s52
    %p58 = scmp.eq.s32.totalorder %s13, 0
    %p59 = por %p57, %p58
    %p60 = scmp.ne.s32.totalorder %s49, %s52
    %p61 = scmp.eq.s32.totalorder %s18, 1
    %p62 = por %p60, %p61
    %p63 = scmp.ne.s32.totalorder %s52, %s53
    %p64 = scmp.eq.s32.totalorder %s18, 0
    %p65 = por %p63, %p64
    %p66 = scmp.ne.s32.totalorder %s52, %s53
    %p67 = scmp.eq.s32.totalorder %s19, 1
    %p68 = por %p66, %p67
    %p70 = scmp.ne.s32.totalorder %s53, %s69
    %p71 = scmp.eq.s32.totalorder %s19, 0
    %p72 = por %p70, %p71
    %s73 = ssub.s32 %s13, %s20
    %p74 = scmp.eq.s32.totalorder %s73, 0
    %s76 = sadd.s32 %s75, 1
    %s77 = scalar_select %p74, %s75, %s76
    %p80 = pneg %p74
    %p81 = scmp.eq.s32.totalorder %s13, 1
    %p82 = por %p80, %p81
    %p83 = scmp.ne.s32.totalorder %s75, %s78
    %p84 = scmp.eq.s32.totalorder %s13, 0
    %p85 = por %p83, %p84
    %p86 = scmp.ne.s32.totalorder %s75, %s78
    %p87 = scmp.eq.s32.totalorder %s18, 1
    %p88 = por %p86, %p87
    %p89 = scmp.ne.s32.totalorder %s78, %s79
    %p90 = scmp.eq.s32.totalorder %s18, 0
    %p91 = por %p89, %p90
    %p92 = scmp.ne.s32.totalorder %s78, %s79
    %p93 = scmp.eq.s32.totalorder %s19, 1
    %p94 = por %p92, %p93
    %p96 = scmp.ne.s32.totalorder %s79, %s95
    %p97 = scmp.eq.s32.totalorder %s19, 0
    %p98 = por %p96, %p97
    %s99 = ssub.s32 %s13, %s20
    %p100 = scmp.eq.s32.totalorder %s99, 0
    %s102 = sadd.s32 %s101, 1
    %s103 = scalar_select %p100, %s101, %s102
    %p106 = pneg %p100
    %p107 = scmp.eq.s32.totalorder %s13, 1
    %p108 = por %p106, %p107
    %p109 = scmp.ne.s32.totalorder %s101, %s104
    %p110 = scmp.eq.s32.totalorder %s13, 0
    %p111 = por %p109, %p110
    %p112 = scmp.ne.s32.totalorder %s101, %s104
    %p113 = scmp.eq.s32.totalorder %s18, 1
    %p114 = por %p112, %p113
    %p115 = scmp.ne.s32.totalorder %s104, %s105
    %p116 = scmp.eq.s32.totalorder %s18, 0
    %p117 = por %p115, %p116
    %p118 = scmp.ne.s32.totalorder %s104, %s105
    %p119 = scmp.eq.s32.totalorder %s19, 1
    %p120 = por %p118, %p119
    %p122 = scmp.ne.s32.totalorder %s105, %s121
    %p123 = scmp.eq.s32.totalorder %s19, 0
    %p124 = por %p122, %p123
    %s125 = ssub.s32 %s13, %s20
    %p126 = scmp.eq.s32.totalorder %s125, 0
    %s128 = sadd.s32 %s127, 1
    %s129 = scalar_select %p126, %s127, %s128
    %p132 = pneg %p126
    %p133 = scmp.eq.s32.totalorder %s13, 1
    %p134 = por %p132, %p133
    %p135 = scmp.ne.s32.totalorder %s127, %s130
    %p136 = scmp.eq.s32.totalorder %s13, 0
    %p137 = por %p135, %p136
    %p138 = scmp.ne.s32.totalorder %s127, %s130
    %p139 = scmp.eq.s32.totalorder %s18, 1
    %p140 = por %p138, %p139
    %p141 = scmp.ne.s32.totalorder %s130, %s131
    %p142 = scmp.eq.s32.totalorder %s18, 0
    %p143 = por %p141, %p142
    %p144 = scmp.ne.s32.totalorder %s130, %s131
    %p145 = scmp.eq.s32.totalorder %s19, 1
    %p146 = por %p144, %p145
    %p148 = scmp.ne.s32.totalorder %s131, %s147
    %p149 = scmp.eq.s32.totalorder %s19, 0
    %p150 = por %p148, %p149
    %s151 = ssub.s32 %s13, %s20
    %p152 = scmp.eq.s32.totalorder %s151, 0
    %s154 = sadd.s32 %s153, 1
    %s155 = scalar_select %p152, %s153, %s154
    %p158 = pneg %p152
    %p159 = scmp.eq.s32.totalorder %s13, 1
    %p160 = por %p158, %p159
    %p161 = scmp.ne.s32.totalorder %s153, %s156
    %p162 = scmp.eq.s32.totalorder %s13, 0
    %p163 = por %p161, %p162
    %p164 = scmp.ne.s32.totalorder %s153, %s156
    %p165 = scmp.eq.s32.totalorder %s18, 1
    %p166 = por %p164, %p165
    %p167 = scmp.ne.s32.totalorder %s156, %s157
    %p168 = scmp.eq.s32.totalorder %s18, 0
    %p169 = por %p167, %p168
    %p170 = scmp.ne.s32.totalorder %s156, %s157
    %p171 = scmp.eq.s32.totalorder %s19, 1
    %p172 = por %p170, %p171
    %p174 = scmp.ne.s32.totalorder %s157, %s173
    %p175 = scmp.eq.s32.totalorder %s19, 0
    %p176 = por %p174, %p175
    %s177 = ssub.s32 %s13, %s20
    %p178 = scmp.eq.s32.totalorder %s177, 0
    %s180 = sadd.s32 %s179, 1
    %s181 = scalar_select %p178, %s179, %s180
    %p184 = pneg %p178
    %p185 = scmp.eq.s32.totalorder %s13, 1
    %p186 = por %p184, %p185
    %p187 = scmp.ne.s32.totalorder %s179, %s182
    %p188 = scmp.eq.s32.totalorder %s13, 0
    %p189 = por %p187, %p188
    %p190 = scmp.ne.s32.totalorder %s179, %s182
    %p191 = scmp.eq.s32.totalorder %s18, 1
    %p192 = por %p190, %p191
    %p193 = scmp.ne.s32.totalorder %s182, %s183
    %p194 = scmp.eq.s32.totalorder %s18, 0
    %p195 = por %p193, %p194
    %p196 = scmp.ne.s32.totalorder %s182, %s183
    %p197 = scmp.eq.s32.totalorder %s19, 1
    %p198 = por %p196, %p197
    %p200 = scmp.ne.s32.totalorder %s183, %s199
    %p201 = scmp.eq.s32.totalorder %s19, 0
    %p202 = por %p200, %p201
    %s203 = ssub.s32 %s13, %s20
    %p204 = scmp.eq.s32.totalorder %s203, 0
    %s206 = sadd.s32 %s205, 1
    %s207 = scalar_select %p204, %s205, %s206
    %p210 = pneg %p204
    %p211 = scmp.eq.s32.totalorder %s13, 1
    %p212 = por %p210, %p211
    %p213 = scmp.ne.s32.totalorder %s205, %s208
    %p214 = scmp.eq.s32.totalorder %s13, 0
    %p215 = por %p213, %p214
    %p216 = scmp.ne.s32.totalorder %s205, %s208
    %p217 = scmp.eq.s32.totalorder %s18, 1
    %p218 = por %p216, %p217
    %p219 = scmp.ne.s32.totalorder %s208, %s209
    %p220 = scmp.eq.s32.totalorder %s18, 0
    %p221 = por %p219, %p220
    %p222 = scmp.ne.s32.totalorder %s208, %s209
    %p223 = scmp.eq.s32.totalorder %s19, 1
    %p224 = por %p222, %p223
    %p226 = scmp.ne.s32.totalorder %s209, %s225
    %p227 = scmp.eq.s32.totalorder %s19, 0
    %p228 = por %p226, %p227
    %p229 = scmp.le.s32.totalorder 1, %s13
    %p230 = scmp.lt.s32.totalorder %s13, 3
    %p231 = pnand %p229, %p230
    %p232 = pneg %p231
    // Predicated region
    $region9: #{cross_mha_forward.15} parent=5 // pred_check
      _
    $region10: #{cross_mha_forward.15} parent=5 // pred_check_branch
      %234 = sbr.rel (%p231) target = $region12
    $region11: #{cross_mha_forward.15} parent=5 // pred_region
      %s235 = ssub.s32 %s13, 1
    $region12: #{cross_mha_forward.15} parent=5 // pred_fallthru
      _
    %p236 = scmp.lt.s32.totalorder %s13, 2
    // Predicated region
    $region13: #{cross_mha_forward.15} parent=5 // pred_check
      %p237 = pneg %p236
    $region14: #{cross_mha_forward.15} parent=5 // pred_check_branch
      %239 = sbr.rel (%p237) target = $region16
    $region15: #{cross_mha_forward.15} parent=5 // pred_region
      // Predicated region
      $region17: #{cross_mha_forward.15} parent=15 // pred_check
        %p240 = pneg %p33
      $region18: #{cross_mha_forward.15} parent=15 // pred_check_branch
        %242 = sbr.rel (%p240) target = $region20
      $region19: #{cross_mha_forward.15} parent=15 // pred_region
        %p243 = scmp.lt.s32.totalorder %s13, 1
        %s244 = scalar_select %p243, %s13, 1
        %s245 = smul.addr %s244, 4
        %s246 = scalar_lea.vmem %s0, %s245
      $region20: #{cross_mha_forward.15} parent=15 // pred_fallthru
        _
      // Predicated region
      $region21: #{cross_mha_forward.15} parent=15 // pred_check
        %p247 = pneg %p59
      $region22: #{cross_mha_forward.15} parent=15 // pred_check_branch
        %249 = sbr.rel (%p247) target = $region24
      $region23: #{cross_mha_forward.15} parent=15 // pred_region
        %p250 = scmp.lt.s32.totalorder %s13, 1
        %s251 = scalar_select %p250, %s13, 1
        %s252 = smul.addr %s251, 4
        %s253 = scalar_lea.vmem %s1, %s252
      $region24: #{cross_mha_forward.15} parent=15 // pred_fallthru
        _
      // Predicated region
      $region25: #{cross_mha_forward.15} parent=15 // pred_check
        %p254 = pneg %p85
      $region26: #{cross_mha_forward.15} parent=15 // pred_check_branch
        %256 = sbr.rel (%p254) target = $region28
      $region27: #{cross_mha_forward.15} parent=15 // pred_region
        %p257 = scmp.lt.s32.totalorder %s13, 1
        %s258 = scalar_select %p257, %s13, 1
        %s259 = smul.addr %s258, 4
        %s260 = scalar_lea.vmem %s2, %s259
      $region28: #{cross_mha_forward.15} parent=15 // pred_fallthru
        _
      // Predicated region
      $region29: #{cross_mha_forward.15} parent=15 // pred_check
        %p261 = pneg %p111
      $region30: #{cross_mha_forward.15} parent=15 // pred_check_branch
        %263 = sbr.rel (%p261) target = $region32
      $region31: #{cross_mha_forward.15} parent=15 // pred_region
        %p264 = scmp.lt.s32.totalorder %s13, 1
        %s265 = scalar_select %p264, %s13, 1
        %s266 = smul.addr %s265, 2
        %s267 = smul.addr %s266, 4
        %s268 = scalar_lea.vmem %s3, %s267
      $region32: #{cross_mha_forward.15} parent=15 // pred_fallthru
        _
      // Predicated region
      $region33: #{cross_mha_forward.15} parent=15 // pred_check
        %p269 = pneg %p137
      $region34: #{cross_mha_forward.15} parent=15 // pred_check_branch
        %271 = sbr.rel (%p269) target = $region36
      $region35: #{cross_mha_forward.15} parent=15 // pred_region
        %p272 = scmp.lt.s32.totalorder %s13, 1
        %s273 = scalar_select %p272, %s13, 1
        %s274 = smul.addr %s273, 2
        %s275 = smul.addr %s274, 4
        %s276 = scalar_lea.vmem %s4, %s275
      $region36: #{cross_mha_forward.15} parent=15 // pred_fallthru
        _
      // Predicated region
      $region37: #{cross_mha_forward.15} parent=15 // pred_check
        %p277 = pneg %p163
      $region38: #{cross_mha_forward.15} parent=15 // pred_check_branch
        %279 = sbr.rel (%p277) target = $region40
      $region39: #{cross_mha_forward.15} parent=15 // pred_region
        %p280 = scmp.lt.s32.totalorder %s13, 1
        %s281 = scalar_select %p280, %s13, 1
        %s282 = scalar_lea.vmem %s5, %s281
      $region40: #{cross_mha_forward.15} parent=15 // pred_fallthru
        _
      // Predicated region
      $region41: #{cross_mha_forward.15} parent=15 // pred_check
        %p283 = pneg %p189
      $region42: #{cross_mha_forward.15} parent=15 // pred_check_branch
        %285 = sbr.rel (%p283) target = $region44
      $region43: #{cross_mha_forward.15} parent=15 // pred_region
        %p286 = scmp.lt.s32.totalorder %s13, 1
        %s287 = scalar_select %p286, %s13, 1
        %s288 = scalar_lea.vmem %s6, %s287
      $region44: #{cross_mha_forward.15} parent=15 // pred_fallthru
        _
    $region16: #{cross_mha_forward.15} parent=5 // pred_fallthru
      _
    %p289 = scmp.le.s32.totalorder 1, %s13
    %p290 = scmp.lt.s32.totalorder %s13, 3
    %p291 = pnand %p289, %p290
    %p292 = pneg %p291
    // Predicated region
    $region45: #{cross_mha_forward.15} parent=5 // pred_check
      _
    $region46: #{cross_mha_forward.15} parent=5 // pred_check_branch
      %294 = sbr.rel (%p291) target = $region48
    $region47: #{cross_mha_forward.15} parent=5 // pred_region
      %s295 = ssub.s32 %s13, 1
      %p296 = scmp.lt.s32.totalorder %s18, 1
      %s297 = scalar_select %p296, %s18, 1
      %s298 = smul.addr %s297, 4
      %s299 = scalar_lea.vmem %s0, %s298
      %p300 = pneg %p39
      %p301 = pneg %p36
      %p302 = scmp.lt.s32.totalorder %s18, 1
      %s303 = scalar_select %p302, %s18, 1
      %s304 = smul.addr %s303, 4
      %s305 = scalar_lea.vmem %s1, %s304
      %p306 = pneg %p65
      %p307 = pneg %p62
      %p308 = scmp.lt.s32.totalorder %s18, 1
      %s309 = scalar_select %p308, %s18, 1
      %s310 = smul.addr %s309, 4
      %s311 = scalar_lea.vmem %s2, %s310
      %p312 = pneg %p91
      %p313 = pneg %p88
      %p314 = scmp.lt.s32.totalorder %s18, 1
      %s315 = scalar_select %p314, %s18, 1
      %s316 = smul.addr %s315, 2
      %s317 = smul.addr %s316, 4
      %s318 = scalar_lea.vmem %s3, %s317
      %p319 = pneg %p117
      %p320 = pneg %p114
      %p321 = scmp.lt.s32.totalorder %s18, 1
      %s322 = scalar_select %p321, %s18, 1
      %s323 = smul.addr %s322, 2
      %s324 = smul.addr %s323, 4
      %s325 = scalar_lea.vmem %s4, %s324
      %p326 = pneg %p143
      %p327 = pneg %p140
      %p328 = scmp.lt.s32.totalorder %s18, 1
      %s329 = scalar_select %p328, %s18, 1
      %s330 = scalar_lea.vmem %s5, %s329
      %p331 = pneg %p169
      %p332 = pneg %p166
      %p333 = scmp.lt.s32.totalorder %s18, 1
      %s334 = scalar_select %p333, %s18, 1
      %s335 = scalar_lea.vmem %s6, %s334
      %p336 = pneg %p195
      %p337 = pneg %p192
      %p338 = pneg %p221
      %p339 = pneg %p218
      %p340 = scmp.lt.s32.totalorder %s18, 1
      %s341 = scalar_select %p340, %s18, 1
      %s342 = smul.addr %s341, 4
      %s343 = scalar_lea.vmem %s7, %s342
      %p344 = scmp.lt.s32.totalorder %s18, 1
      %s345 = scalar_select %p344, %s18, 1
      %s346 = smul.addr %s345, 4
      %s347 = scalar_lea.vmem %s0, %s346
      %p348 = scmp.lt.s32.totalorder %s18, 1
      %s349 = scalar_select %p348, %s18, 1
      %s350 = smul.addr %s349, 4
      %s351 = scalar_lea.vmem %s1, %s350
      %p352 = scmp.lt.s32.totalorder %s18, 1
      %s353 = scalar_select %p352, %s18, 1
      %s354 = smul.addr %s353, 4
      %s355 = scalar_lea.vmem %s2, %s354
      %p356 = scmp.lt.s32.totalorder %s18, 1
      %s357 = scalar_select %p356, %s18, 1
      %s358 = smul.addr %s357, 2
      %s359 = smul.addr %s358, 4
      %s360 = scalar_lea.vmem %s3, %s359
      %p361 = scmp.lt.s32.totalorder %s18, 1
      %s362 = scalar_select %p361, %s18, 1
      %s363 = smul.addr %s362, 2
      %s364 = smul.addr %s363, 4
      %s365 = scalar_lea.vmem %s4, %s364
      %p366 = scmp.lt.s32.totalorder %s18, 1
      %s367 = scalar_select %p366, %s18, 1
      %s368 = scalar_lea.vmem %s5, %s367
      %p369 = scmp.lt.s32.totalorder %s18, 1
      %s370 = scalar_select %p369, %s18, 1
      %s371 = scalar_lea.vmem %s6, %s370
      %p372 = scmp.lt.s32.totalorder %s18, 1
      %s373 = scalar_select %p372, %s18, 1
      %s374 = smul.addr %s373, 4
      %s375 = scalar_lea.vmem %s7, %s374
      %v377 = vld [vmem:[%s347] sm:$0xf]
      %v378 = vld [vmem:[%s351] sm:$0xf]
      %v379 = vld [vmem:[%s355] sm:$0xf]
      %v380 = vld [vmem:[%s368] sm:$0x1]
      %v381 = vld [vmem:[%s371] sm:$0x1]
      %v382 = vunpack.c.l.bf16 %v377
      %v384 = vlaneseq
      %v385 = vshrl.u32 %v384, 7
      %v386 = vsub.s32 0, %v385
      %v387 = vrot.slane %v380, %v386
      %vm389 = vcmask 261120
      %v391 = vsel %vm389, %v377, 0
      %v394 = vsel %vm389, %v378, 0
      %396 = vmatprep.subr.bf16.mxu0 0
      %397 = vmatpush1.bf16.xpose.msra.mxu0 %v394
      %398 = vmatprep.subr.bf16.mxu0 0
      %399 = vmatpush1.bf16.xpose.msra.mxu0 0
      %400 = vmatprep.subr.bf16.mxu0 0
      %401 = vmatpush1.bf16.xpose.msra.mxu0 0
      %402 = vmatprep.subr.bf16.mxu0 0
      %403 = vmatpush1.bf16.xpose.msra.mxu0 0
      %404 = vmatprep.subr.bf16.mxu0 0
      %405 = vmatpush1.bf16.xpose.msra.mxu0 0
      %406 = vmatprep.subr.bf16.mxu0 0
      %407 = vmatpush1.bf16.xpose.msra.mxu0 0
      %408 = vmatprep.subr.bf16.mxu0 0
      %409 = vmatpush1.bf16.xpose.msra.mxu0 0
      %410 = vmatprep.subr.bf16.mxu0 0
      %411 = vmatpush1.bf16.xpose.msra.mxu0 0
      %412 = vmatprep.subr.bf16.mxu0 0
      %413 = vmatpush1.bf16.xpose.msra.mxu0 0
      %414 = vmatprep.subr.bf16.mxu0 0
      %415 = vmatpush1.bf16.xpose.msra.mxu0 0
      %416 = vmatprep.subr.bf16.mxu0 0
      %417 = vmatpush1.bf16.xpose.msra.mxu0 0
      %418 = vmatprep.subr.bf16.mxu0 0
      %419 = vmatpush1.bf16.xpose.msra.mxu0 0
      %420 = vmatprep.subr.bf16.mxu0 0
      %421 = vmatpush1.bf16.xpose.msra.mxu0 0
      %422 = vmatprep.subr.bf16.mxu0 0
      %423 = vmatpush1.bf16.xpose.msra.mxu0 0
      %424 = vmatprep.subr.bf16.mxu0 0
      %425 = vmatpush1.bf16.xpose.msra.mxu0 0
      %426 = vmatprep.subr.bf16.mxu0 0
      %427 = vmatpush1.bf16.xpose.msra.mxu0 0
      %428 = vmatprep.mubr.bf16.mxu0 0
      %429 = vmatmul.mubr.bf16.gmra.mrb[0].mxu0 %v391
      %v430 = vpop.f32.mrb[0].mxu0
      %v431 = vadd.f32 %v387, %v430
      %v432 = vpop.f32.mrb[0].mxu0
      %v433 = vpop.f32.mrb[0].mxu0
      %v434 = vpop.f32.mrb[0].mxu0
      %435 = vdwg.mxu0
      %vm436 = vcmask 55296
      %v437 = vsel %vm436, %v431, -inf
      %438 = vmax.xlane.f32.xlu0 %v437
      %v439 = vpop.xlane.xlu0 %438
      %v440 = vld [vmem:[%s360] sm:$0xf]
      %v441 = vunpack.c.l.bf16 %v440
      %v442 = vmul.f32 %v382, %v441
      %vm443 = vcmask 260096
      %v444 = vsel %vm443, %v442, 0.0
      %445 = vadd.xlane.f32.xlu0 %v444
      %v446 = vpop.xlane.xlu0 %445
      %v448 = vlaneseq
      %v449 = vshrl.u32 %v448, 7
      %v450 = vsub.s32 0, %v449
      %v451 = vrot.slane %v381, %v450
      %v453 = vadd.f32 %v446, %v451
      %v454 = vmax.f32 %v439, %v453
      %s455 = scalar_lea.vmem %s360, 4
      %v456 = vld [vmem:[%s455] sm:$0xf]
      %v457 = vunpack.c.l.bf16 %v456
      %v458 = vmul.f32 %v382, %v457
      %v459 = vsel %vm443, %v458, 0.0
      %460 = vadd.xlane.f32.xlu0 %v459
      %v461 = vpop.xlane.xlu0 %460
      %v462 = vadd.f32 %v461, %v451
      %464 = vrot.lane.b32.xlu0 %v462, 127
      %v465 = vpop.permute.xlu0 %464
      %v467 = vmax.f32 %v454, %v465
      %469 = vset.pattern.permute.xlu0 0
      %470 = vperm.xlu0 %469, %v467
      %v471 = vpop.permute.xlu0 %470
      %v473 = vsub.f32 %v431, %v471
      %v474 = vmul.f32 %v473, 1.442695
      %v475 = vpow.pop %v474
      %v476 = vsel %vm436, %v475, 0.0
      %477 = vadd.xlane.f32.xlu0 %v476
      %v478 = vpop.xlane.xlu0 %477
      %v479 = vpack.c.bf16 %v475, %v475
      %v480 = vsub.f32 %v453, %v467
      %v481 = vmul.f32 %v480, 1.442695
      %v482 = vpow.pop %v481
      %v483 = vadd.f32 %v478, %v482
      %v484 = vld [vmem:[%s365] sm:$0xf]
      %v485 = vunpack.c.l.bf16 %v484
      %487 = vset.pattern.permute.xlu0 0
      %488 = vperm.xlu0 %487, %v482
      %v489 = vpop.permute.xlu0 %488
      %v491 = vmul.f32 %v489, %v485
      %vm492 = vcmask 56320
      %v494 = vsel %vm492, %v479, 0
      %vm496 = vcmask 1042432
      %vm497 = vcmask 1043456
      %v498 = vsel %vm496, 4294967295, 65535
      %v499 = vsel %vm497, %v498, 0
      %v501 = vand.u32 %v379, %v499
      %503 = vmatprep.subr.bf16.mxu0 0
      %504 = vmatpush1.bf16.msra.mxu0 %v501
      %505 = vmatprep.subr.bf16.mxu0 0
      %506 = vmatpush1.bf16.msra.mxu0 0
      %507 = vmatprep.subr.bf16.mxu0 0
      %508 = vmatpush1.bf16.msra.mxu0 0
      %509 = vmatprep.subr.bf16.mxu0 0
      %510 = vmatpush1.bf16.msra.mxu0 0
      %511 = vmatprep.subr.bf16.mxu0 0
      %512 = vmatpush1.bf16.msra.mxu0 0
      %513 = vmatprep.subr.bf16.mxu0 0
      %514 = vmatpush1.bf16.msra.mxu0 0
      %515 = vmatprep.subr.bf16.mxu0 0
      %516 = vmatpush1.bf16.msra.mxu0 0
      %517 = vmatprep.subr.bf16.mxu0 0
      %518 = vmatpush1.bf16.msra.mxu0 0
      %519 = vmatprep.subr.bf16.mxu0 0
      %520 = vmatpush1.bf16.msra.mxu0 0
      %521 = vmatprep.subr.bf16.mxu0 0
      %522 = vmatpush1.bf16.msra.mxu0 0
      %523 = vmatprep.subr.bf16.mxu0 0
      %524 = vmatpush1.bf16.msra.mxu0 0
      %525 = vmatprep.subr.bf16.mxu0 0
      %526 = vmatpush1.bf16.msra.mxu0 0
      %527 = vmatprep.subr.bf16.mxu0 0
      %528 = vmatpush1.bf16.msra.mxu0 0
      %529 = vmatprep.subr.bf16.mxu0 0
      %530 = vmatpush1.bf16.msra.mxu0 0
      %531 = vmatprep.subr.bf16.mxu0 0
      %532 = vmatpush1.bf16.msra.mxu0 0
      %533 = vmatprep.subr.bf16.mxu0 0
      %534 = vmatpush1.bf16.msra.mxu0 0
      %535 = vmatprep.mubr.bf16.mxu0 0
      %536 = vmatmul.mubr.bf16.gmra.mrb[0].mxu0 %v494
      %v537 = vpop.f32.mrb[0].mxu0
      %v538 = vadd.f32 %v491, %v537
      %v539 = vpop.f32.mrb[0].mxu0
      %v540 = vpop.f32.mrb[0].mxu0
      %v541 = vpop.f32.mrb[0].mxu0
      %542 = vdwg.mxu0
      %543 = vrot.lane.b32.xlu0 %v467, 1
      %v544 = vpop.permute.xlu0 %543
      %v546 = vsub.f32 %v462, %v544
      %v547 = vmul.f32 %v546, 1.442695
      %v548 = vpow.pop %v547
      %550 = vrot.lane.b32.xlu0 %v548, 127
      %v551 = vpop.permute.xlu0 %550
      %v553 = vadd.f32 %v483, %v551
      %s554 = scalar_lea.vmem %s365, 4
      %v555 = vld [vmem:[%s554] sm:$0xf]
      %v556 = vunpack.c.l.bf16 %v555
      %557 = vset.pattern.permute.xlu0 1
      %558 = vperm.xlu0 %557, %v548
      %v559 = vpop.permute.xlu0 %558
      %v561 = vmul.f32 %v559, %v556
      %v562 = vadd.f32 %v538, %v561
      %v563 = vrcp.pop %v553
      %565 = vset.pattern.permute.xlu0 0
      %566 = vperm.xlu0 %565, %v563
      %v567 = vpop.permute.xlu0 %566
      %v569 = vmul.f32 %v562, %v567
      %v571 = vunpack.c.l.b16 %v377
      %v572 = vpack.c.b16 %v571, %v571
      %573 = vrot.lane.b32.xlu0 %v572, 96
      %v574 = vpop.permute.xlu0 %573
      %v576 = vunpack.c.l.b16 %v378
      %v577 = vpack.c.b16 %v576, %v576
      %578 = vrot.lane.b32.xlu0 %v577, 96
      %v579 = vpop.permute.xlu0 %578
      %v581 = vsel %vm389, %v574, 0
      %v584 = vsel %vm389, %v579, 0
      %586 = vmatprep.subr.bf16.mxu0 0
      %587 = vmatpush1.bf16.xpose.msra.mxu0 %v584
      %588 = vmatprep.subr.bf16.mxu0 0
      %589 = vmatpush1.bf16.xpose.msra.mxu0 0
      %590 = vmatprep.subr.bf16.mxu0 0
      %591 = vmatpush1.bf16.xpose.msra.mxu0 0
      %592 = vmatprep.subr.bf16.mxu0 0
      %593 = vmatpush1.bf16.xpose.msra.mxu0 0
      %594 = vmatprep.subr.bf16.mxu0 0
      %595 = vmatpush1.bf16.xpose.msra.mxu0 0
      %596 = vmatprep.subr.bf16.mxu0 0
      %597 = vmatpush1.bf16.xpose.msra.mxu0 0
      %598 = vmatprep.subr.bf16.mxu0 0
      %599 = vmatpush1.bf16.xpose.msra.mxu0 0
      %600 = vmatprep.subr.bf16.mxu0 0
      %601 = vmatpush1.bf16.xpose.msra.mxu0 0
      %602 = vmatprep.subr.bf16.mxu0 0
      %603 = vmatpush1.bf16.xpose.msra.mxu0 0
      %604 = vmatprep.subr.bf16.mxu0 0
      %605 = vmatpush1.bf16.xpose.msra.mxu0 0
      %606 = vmatprep.subr.bf16.mxu0 0
      %607 = vmatpush1.bf16.xpose.msra.mxu0 0
      %608 = vmatprep.subr.bf16.mxu0 0
      %609 = vmatpush1.bf16.xpose.msra.mxu0 0
      %610 = vmatprep.subr.bf16.mxu0 0
      %611 = vmatpush1.bf16.xpose.msra.mxu0 0
      %612 = vmatprep.subr.bf16.mxu0 0
      %613 = vmatpush1.bf16.xpose.msra.mxu0 0
      %614 = vmatprep.subr.bf16.mxu0 0
      %615 = vmatpush1.bf16.xpose.msra.mxu0 0
      %616 = vmatprep.subr.bf16.mxu0 0
      %617 = vmatpush1.bf16.xpose.msra.mxu0 0
      %618 = vmatprep.mubr.bf16.mxu0 0
      %619 = vmatmul.mubr.bf16.gmra.mrb[0].mxu0 %v581
      %v620 = vpop.f32.mrb[0].mxu0
      %v621 = vadd.f32 %v387, %v620
      %v622 = vpop.f32.mrb[0].mxu0
      %v623 = vpop.f32.mrb[0].mxu0
      %v624 = vpop.f32.mrb[0].mxu0
      %625 = vdwg.mxu0
      %v626 = vsel %vm436, %v621, -inf
      %627 = vmax.xlane.f32.xlu0 %v626
      %v628 = vpop.xlane.xlu0 %627
      %630 = vrot.lane.b32.xlu0 %v442, 96
      %v631 = vpop.permute.xlu0 %630
      %v633 = vsel %vm443, %v631, 0.0
      %634 = vadd.xlane.f32.xlu0 %v633
      %v635 = vpop.xlane.xlu0 %634
      %v636 = vadd.f32 %v635, %v451
      %v637 = vmax.f32 %v628, %v636
      %639 = vrot.lane.b32.xlu0 %v458, 96
      %v640 = vpop.permute.xlu0 %639
      %v642 = vsel %vm443, %v640, 0.0
      %643 = vadd.xlane.f32.xlu0 %v642
      %v644 = vpop.xlane.xlu0 %643
      %v645 = vadd.f32 %v644, %v451
      %647 = vrot.lane.b32.xlu0 %v645, 127
      %v648 = vpop.permute.xlu0 %647
      %v650 = vmax.f32 %v637, %v648
      %652 = vset.pattern.permute.xlu0 0
      %653 = vperm.xlu0 %652, %v650
      %v654 = vpop.permute.xlu0 %653
      %v656 = vsub.f32 %v621, %v654
      %v657 = vmul.f32 %v656, 1.442695
      %v658 = vpow.pop %v657
      %v659 = vsel %vm436, %v658, 0.0
      %660 = vadd.xlane.f32.xlu0 %v659
      %v661 = vpop.xlane.xlu0 %660
      %v662 = vpack.c.bf16 %v658, %v658
      %v663 = vsub.f32 %v636, %v650
      %v664 = vmul.f32 %v663, 1.442695
      %v665 = vpow.pop %v664
      %v666 = vadd.f32 %v661, %v665
      %668 = vset.pattern.permute.xlu0 0
      %669 = vperm.xlu0 %668, %v665
      %v670 = vpop.permute.xlu0 %669
      %v672 = vmul.f32 %v670, %v485
      %v674 = vunpack.c.l.b16 %v379
      %v675 = vpack.c.b16 %v674, %v674
      %676 = vrot.lane.b32.xlu0 %v675, 96
      %v677 = vpop.permute.xlu0 %676
      %679 = vrot.lane.b32.xlu0 %v672, 96
      %v680 = vpop.permute.xlu0 %679
      %v683 = vsel %vm492, %v662, 0
      %v686 = vand.u32 %v677, %v499
      %688 = vmatprep.subr.bf16.mxu0 0
      %689 = vmatpush1.bf16.msra.mxu0 %v686
      %690 = vmatprep.subr.bf16.mxu0 0
      %691 = vmatpush1.bf16.msra.mxu0 0
      %692 = vmatprep.subr.bf16.mxu0 0
      %693 = vmatpush1.bf16.msra.mxu0 0
      %694 = vmatprep.subr.bf16.mxu0 0
      %695 = vmatpush1.bf16.msra.mxu0 0
      %696 = vmatprep.subr.bf16.mxu0 0
      %697 = vmatpush1.bf16.msra.mxu0 0
      %698 = vmatprep.subr.bf16.mxu0 0
      %699 = vmatpush1.bf16.msra.mxu0 0
      %700 = vmatprep.subr.bf16.mxu0 0
      %701 = vmatpush1.bf16.msra.mxu0 0
      %702 = vmatprep.subr.bf16.mxu0 0
      %703 = vmatpush1.bf16.msra.mxu0 0
      %704 = vmatprep.subr.bf16.mxu0 0
      %705 = vmatpush1.bf16.msra.mxu0 0
      %706 = vmatprep.subr.bf16.mxu0 0
      %707 = vmatpush1.bf16.msra.mxu0 0
      %708 = vmatprep.subr.bf16.mxu0 0
      %709 = vmatpush1.bf16.msra.mxu0 0
      %710 = vmatprep.subr.bf16.mxu0 0
      %711 = vmatpush1.bf16.msra.mxu0 0
      %712 = vmatprep.subr.bf16.mxu0 0
      %713 = vmatpush1.bf16.msra.mxu0 0
      %714 = vmatprep.subr.bf16.mxu0 0
      %715 = vmatpush1.bf16.msra.mxu0 0
      %716 = vmatprep.subr.bf16.mxu0 0
      %717 = vmatpush1.bf16.msra.mxu0 0
      %718 = vmatprep.subr.bf16.mxu0 0
      %719 = vmatpush1.bf16.msra.mxu0 0
      %720 = vmatprep.mubr.bf16.mxu0 0
      %721 = vmatmul.mubr.bf16.gmra.mrb[0].mxu0 %v683
      %v722 = vpop.f32.mrb[0].mxu0
      %v723 = vadd.f32 %v680, %v722
      %v724 = vpop.f32.mrb[0].mxu0
      %v725 = vpop.f32.mrb[0].mxu0
      %v726 = vpop.f32.mrb[0].mxu0
      %727 = vdwg.mxu0
      %728 = vrot.lane.b32.xlu0 %v650, 1
      %v729 = vpop.permute.xlu0 %728
      %v731 = vsub.f32 %v645, %v729
      %v732 = vmul.f32 %v731, 1.442695
      %v733 = vpow.pop %v732
      %735 = vrot.lane.b32.xlu0 %v733, 127
      %v736 = vpop.permute.xlu0 %735
      %v738 = vadd.f32 %v666, %v736
      %739 = vset.pattern.permute.xlu0 1
      %740 = vperm.xlu0 %739, %v733
      %v741 = vpop.permute.xlu0 %740
      %v743 = vmul.f32 %v741, %v556
      %745 = vrot.lane.b32.xlu0 %v743, 96
      %v746 = vpop.permute.xlu0 %745
      %v748 = vadd.f32 %v723, %v746
      %v749 = vrcp.pop %v738
      %751 = vset.pattern.permute.xlu0 0
      %752 = vperm.xlu0 %751, %v749
      %v753 = vpop.permute.xlu0 %752
      %v755 = vmul.f32 %v748, %v753
      %756 = vrot.lane.b32.xlu0 %v572, 64
      %v757 = vpop.permute.xlu0 %756
      %758 = vrot.lane.b32.xlu0 %v577, 64
      %v759 = vpop.permute.xlu0 %758
      %v761 = vsel %vm389, %v757, 0
      %v764 = vsel %vm389, %v759, 0
      %766 = vmatprep.subr.bf16.mxu0 0
      %767 = vmatpush1.bf16.xpose.msra.mxu0 %v764
      %768 = vmatprep.subr.bf16.mxu0 0
      %769 = vmatpush1.bf16.xpose.msra.mxu0 0
      %770 = vmatprep.subr.bf16.mxu0 0
      %771 = vmatpush1.bf16.xpose.msra.mxu0 0
      %772 = vmatprep.subr.bf16.mxu0 0
      %773 = vmatpush1.bf16.xpose.msra.mxu0 0
      %774 = vmatprep.subr.bf16.mxu0 0
      %775 = vmatpush1.bf16.xpose.msra.mxu0 0
      %776 = vmatprep.subr.bf16.mxu0 0
      %777 = vmatpush1.bf16.xpose.msra.mxu0 0
      %778 = vmatprep.subr.bf16.mxu0 0
      %779 = vmatpush1.bf16.xpose.msra.mxu0 0
      %780 = vmatprep.subr.bf16.mxu0 0
      %781 = vmatpush1.bf16.xpose.msra.mxu0 0
      %782 = vmatprep.subr.bf16.mxu0 0
      %783 = vmatpush1.bf16.xpose.msra.mxu0 0
      %784 = vmatprep.subr.bf16.mxu0 0
      %785 = vmatpush1.bf16.xpose.msra.mxu0 0
      %786 = vmatprep.subr.bf16.mxu0 0
      %787 = vmatpush1.bf16.xpose.msra.mxu0 0
      %788 = vmatprep.subr.bf16.mxu0 0
      %789 = vmatpush1.bf16.xpose.msra.mxu0 0
      %790 = vmatprep.subr.bf16.mxu0 0
      %791 = vmatpush1.bf16.xpose.msra.mxu0 0
      %792 = vmatprep.subr.bf16.mxu0 0
      %793 = vmatpush1.bf16.xpose.msra.mxu0 0
      %794 = vmatprep.subr.bf16.mxu0 0
      %795 = vmatpush1.bf16.xpose.msra.mxu0 0
      %796 = vmatprep.subr.bf16.mxu0 0
      %797 = vmatpush1.bf16.xpose.msra.mxu0 0
      %798 = vmatprep.mubr.bf16.mxu0 0
      %799 = vmatmul.mubr.bf16.gmra.mrb[0].mxu0 %v761
      %v800 = vpop.f32.mrb[0].mxu0
      %v801 = vadd.f32 %v387, %v800
      %v802 = vpop.f32.mrb[0].mxu0
      %v803 = vpop.f32.mrb[0].mxu0
      %v804 = vpop.f32.mrb[0].mxu0
      %805 = vdwg.mxu0
      %v806 = vsel %vm436, %v801, -inf
      %807 = vmax.xlane.f32.xlu0 %v806
      %v808 = vpop.xlane.xlu0 %807
      %809 = vrot.lane.b32.xlu0 %v442, 64
      %v810 = vpop.permute.xlu0 %809
      %v812 = vsel %vm443, %v810, 0.0
      %813 = vadd.xlane.f32.xlu0 %v812
      %v814 = vpop.xlane.xlu0 %813
      %v815 = vadd.f32 %v814, %v451
      %v816 = vmax.f32 %v808, %v815
      %817 = vrot.lane.b32.xlu0 %v458, 64
      %v818 = vpop.permute.xlu0 %817
      %v820 = vsel %vm443, %v818, 0.0
      %821 = vadd.xlane.f32.xlu0 %v820
      %v822 = vpop.xlane.xlu0 %821
      %v823 = vadd.f32 %v822, %v451
      %825 = vrot.lane.b32.xlu0 %v823, 127
      %v826 = vpop.permute.xlu0 %825
      %v828 = vmax.f32 %v816, %v826
      %830 = vset.pattern.permute.xlu0 0
      %831 = vperm.xlu0 %830, %v828
      %v832 = vpop.permute.xlu0 %831
      %v834 = vsub.f32 %v801, %v832
      %v835 = vmul.f32 %v834, 1.442695
      %v836 = vpow.pop %v835
      %v837 = vsel %vm436, %v836, 0.0
      %838 = vadd.xlane.f32.xlu0 %v837
      %v839 = vpop.xlane.xlu0 %838
      %v840 = vpack.c.bf16 %v836, %v836
      %v841 = vsub.f32 %v815, %v828
      %v842 = vmul.f32 %v841, 1.442695
      %v843 = vpow.pop %v842
      %v844 = vadd.f32 %v839, %v843
      %846 = vset.pattern.permute.xlu0 0
      %847 = vperm.xlu0 %846, %v843
      %v848 = vpop.permute.xlu0 %847
      %v850 = vmul.f32 %v848, %v485
      %851 = vrot.lane.b32.xlu0 %v675, 64
      %v852 = vpop.permute.xlu0 %851
      %854 = vrot.lane.b32.xlu0 %v850, 64
      %v855 = vpop.permute.xlu0 %854
      %v858 = vsel %vm492, %v840, 0
      %v861 = vand.u32 %v852, %v499
      %863 = vmatprep.subr.bf16.mxu0 0
      %864 = vmatpush1.bf16.msra.mxu0 %v861
      %865 = vmatprep.subr.bf16.mxu0 0
      %866 = vmatpush1.bf16.msra.mxu0 0
      %867 = vmatprep.subr.bf16.mxu0 0
      %868 = vmatpush1.bf16.msra.mxu0 0
      %869 = vmatprep.subr.bf16.mxu0 0
      %870 = vmatpush1.bf16.msra.mxu0 0
      %871 = vmatprep.subr.bf16.mxu0 0
      %872 = vmatpush1.bf16.msra.mxu0 0
      %873 = vmatprep.subr.bf16.mxu0 0
      %874 = vmatpush1.bf16.msra.mxu0 0
      %875 = vmatprep.subr.bf16.mxu0 0
      %876 = vmatpush1.bf16.msra.mxu0 0
      %877 = vmatprep.subr.bf16.mxu0 0
      %878 = vmatpush1.bf16.msra.mxu0 0
      %879 = vmatprep.subr.bf16.mxu0 0
      %880 = vmatpush1.bf16.msra.mxu0 0
      %881 = vmatprep.subr.bf16.mxu0 0
      %882 = vmatpush1.bf16.msra.mxu0 0
      %883 = vmatprep.subr.bf16.mxu0 0
      %884 = vmatpush1.bf16.msra.mxu0 0
      %885 = vmatprep.subr.bf16.mxu0 0
      %886 = vmatpush1.bf16.msra.mxu0 0
      %887 = vmatprep.subr.bf16.mxu0 0
      %888 = vmatpush1.bf16.msra.mxu0 0
      %889 = vmatprep.subr.bf16.mxu0 0
      %890 = vmatpush1.bf16.msra.mxu0 0
      %891 = vmatprep.subr.bf16.mxu0 0
      %892 = vmatpush1.bf16.msra.mxu0 0
      %893 = vmatprep.subr.bf16.mxu0 0
      %894 = vmatpush1.bf16.msra.mxu0 0
      %895 = vmatprep.mubr.bf16.mxu0 0
      %896 = vmatmul.mubr.bf16.gmra.mrb[0].mxu0 %v858
      %v897 = vpop.f32.mrb[0].mxu0
      %v898 = vadd.f32 %v855, %v897
      %v899 = vpop.f32.mrb[0].mxu0
      %v900 = vpop.f32.mrb[0].mxu0
      %v901 = vpop.f32.mrb[0].mxu0
      %902 = vdwg.mxu0
      %903 = vrot.lane.b32.xlu0 %v828, 1
      %v904 = vpop.permute.xlu0 %903
      %v906 = vsub.f32 %v823, %v904
      %v907 = vmul.f32 %v906, 1.442695
      %v908 = vpow.pop %v907
      %910 = vrot.lane.b32.xlu0 %v908, 127
      %v911 = vpop.permute.xlu0 %910
      %v913 = vadd.f32 %v844, %v911
      %914 = vset.pattern.permute.xlu0 1
      %915 = vperm.xlu0 %914, %v908
      %v916 = vpop.permute.xlu0 %915
      %v918 = vmul.f32 %v916, %v556
      %920 = vrot.lane.b32.xlu0 %v918, 64
      %v921 = vpop.permute.xlu0 %920
      %v923 = vadd.f32 %v898, %v921
      %v924 = vrcp.pop %v913
      %926 = vset.pattern.permute.xlu0 0
      %927 = vperm.xlu0 %926, %v924
      %v928 = vpop.permute.xlu0 %927
      %v930 = vmul.f32 %v923, %v928
      %931 = vrot.lane.b32.xlu0 %v572, 32
      %v932 = vpop.permute.xlu0 %931
      %933 = vrot.lane.b32.xlu0 %v577, 32
      %v934 = vpop.permute.xlu0 %933
      %v936 = vsel %vm389, %v932, 0
      %v939 = vsel %vm389, %v934, 0
      %941 = vmatprep.subr.bf16.mxu0 0
      %942 = vmatpush1.bf16.xpose.msra.mxu0 %v939
      %943 = vmatprep.subr.bf16.mxu0 0
      %944 = vmatpush1.bf16.xpose.msra.mxu0 0
      %945 = vmatprep.subr.bf16.mxu0 0
      %946 = vmatpush1.bf16.xpose.msra.mxu0 0
      %947 = vmatprep.subr.bf16.mxu0 0
      %948 = vmatpush1.bf16.xpose.msra.mxu0 0
      %949 = vmatprep.subr.bf16.mxu0 0
      %950 = vmatpush1.bf16.xpose.msra.mxu0 0
      %951 = vmatprep.subr.bf16.mxu0 0
      %952 = vmatpush1.bf16.xpose.msra.mxu0 0
      %953 = vmatprep.subr.bf16.mxu0 0
      %954 = vmatpush1.bf16.xpose.msra.mxu0 0
      %955 = vmatprep.subr.bf16.mxu0 0
      %956 = vmatpush1.bf16.xpose.msra.mxu0 0
      %957 = vmatprep.subr.bf16.mxu0 0
      %958 = vmatpush1.bf16.xpose.msra.mxu0 0
      %959 = vmatprep.subr.bf16.mxu0 0
      %960 = vmatpush1.bf16.xpose.msra.mxu0 0
      %961 = vmatprep.subr.bf16.mxu0 0
      %962 = vmatpush1.bf16.xpose.msra.mxu0 0
      %963 = vmatprep.subr.bf16.mxu0 0
      %964 = vmatpush1.bf16.xpose.msra.mxu0 0
      %965 = vmatprep.subr.bf16.mxu0 0
      %966 = vmatpush1.bf16.xpose.msra.mxu0 0
      %967 = vmatprep.subr.bf16.mxu0 0
      %968 = vmatpush1.bf16.xpose.msra.mxu0 0
      %969 = vmatprep.subr.bf16.mxu0 0
      %970 = vmatpush1.bf16.xpose.msra.mxu0 0
      %971 = vmatprep.subr.bf16.mxu0 0
      %972 = vmatpush1.bf16.xpose.msra.mxu0 0
      %973 = vmatprep.mubr.bf16.mxu0 0
      %974 = vmatmul.mubr.bf16.gmra.mrb[0].mxu0 %v936
      %v975 = vpop.f32.mrb[0].mxu0
      %v976 = vadd.f32 %v387, %v975
      %v977 = vpop.f32.mrb[0].mxu0
      %v978 = vpop.f32.mrb[0].mxu0
      %v979 = vpop.f32.mrb[0].mxu0
      %980 = vdwg.mxu0
      %v981 = vsel %vm436, %v976, -inf
      %982 = vmax.xlane.f32.xlu0 %v981
      %v983 = vpop.xlane.xlu0 %982
      %984 = vrot.lane.b32.xlu0 %v442, 32
      %v985 = vpop.permute.xlu0 %984
      %v987 = vsel %vm443, %v985, 0.0
      %988 = vadd.xlane.f32.xlu0 %v987
      %v989 = vpop.xlane.xlu0 %988
      %v990 = vadd.f32 %v989, %v451
      %v991 = vmax.f32 %v983, %v990
      %992 = vrot.lane.b32.xlu0 %v458, 32
      %v993 = vpop.permute.xlu0 %992
      %v995 = vsel %vm443, %v993, 0.0
      %996 = vadd.xlane.f32.xlu0 %v995
      %v997 = vpop.xlane.xlu0 %996
      %v998 = vadd.f32 %v997, %v451
      %1000 = vrot.lane.b32.xlu0 %v998, 127
      %v1001 = vpop.permute.xlu0 %1000
      %v1003 = vmax.f32 %v991, %v1001
      %1005 = vset.pattern.permute.xlu0 0
      %1006 = vperm.xlu0 %1005, %v1003
      %v1007 = vpop.permute.xlu0 %1006
      %v1009 = vsub.f32 %v976, %v1007
      %v1010 = vmul.f32 %v1009, 1.442695
      %v1011 = vpow.pop %v1010
      %v1012 = vsel %vm436, %v1011, 0.0
      %1013 = vadd.xlane.f32.xlu0 %v1012
      %v1014 = vpop.xlane.xlu0 %1013
      %v1015 = vpack.c.bf16 %v1011, %v1011
      %v1016 = vsub.f32 %v990, %v1003
      %v1017 = vmul.f32 %v1016, 1.442695
      %v1018 = vpow.pop %v1017
      %v1019 = vadd.f32 %v1014, %v1018
      %1021 = vset.pattern.permute.xlu0 0
      %1022 = vperm.xlu0 %1021, %v1018
      %v1023 = vpop.permute.xlu0 %1022
      %v1025 = vmul.f32 %v1023, %v485
      %1026 = vrot.lane.b32.xlu0 %v675, 32
      %v1027 = vpop.permute.xlu0 %1026
      %1029 = vrot.lane.b32.xlu0 %v1025, 32
      %v1030 = vpop.permute.xlu0 %1029
      %v1033 = vsel %vm492, %v1015, 0
      %v1036 = vand.u32 %v1027, %v499
      %1038 = vmatprep.subr.bf16.mxu0 0
      %1039 = vmatpush1.bf16.msra.mxu0 %v1036
      %1040 = vmatprep.subr.bf16.mxu0 0
      %1041 = vmatpush1.bf16.msra.mxu0 0
      %1042 = vmatprep.subr.bf16.mxu0 0
      %1043 = vmatpush1.bf16.msra.mxu0 0
      %1044 = vmatprep.subr.bf16.mxu0 0
      %1045 = vmatpush1.bf16.msra.mxu0 0
      %1046 = vmatprep.subr.bf16.mxu0 0
      %1047 = vmatpush1.bf16.msra.mxu0 0
      %1048 = vmatprep.subr.bf16.mxu0 0
      %1049 = vmatpush1.bf16.msra.mxu0 0
      %1050 = vmatprep.subr.bf16.mxu0 0
      %1051 = vmatpush1.bf16.msra.mxu0 0
      %1052 = vmatprep.subr.bf16.mxu0 0
      %1053 = vmatpush1.bf16.msra.mxu0 0
      %1054 = vmatprep.subr.bf16.mxu0 0
      %1055 = vmatpush1.bf16.msra.mxu0 0
      %1056 = vmatprep.subr.bf16.mxu0 0
      %1057 = vmatpush1.bf16.msra.mxu0 0
      %1058 = vmatprep.subr.bf16.mxu0 0
      %1059 = vmatpush1.bf16.msra.mxu0 0
      %1060 = vmatprep.subr.bf16.mxu0 0
      %1061 = vmatpush1.bf16.msra.mxu0 0
      %1062 = vmatprep.subr.bf16.mxu0 0
      %1063 = vmatpush1.bf16.msra.mxu0 0
      %1064 = vmatprep.subr.bf16.mxu0 0
      %1065 = vmatpush1.bf16.msra.mxu0 0
      %1066 = vmatprep.subr.bf16.mxu0 0
      %1067 = vmatpush1.bf16.msra.mxu0 0
      %1068 = vmatprep.subr.bf16.mxu0 0
      %1069 = vmatpush1.bf16.msra.mxu0 0
      %1070 = vmatprep.mubr.bf16.mxu0 0
      %1071 = vmatmul.mubr.bf16.gmra.mrb[0].mxu0 %v1033
      %v1072 = vpop.f32.mrb[0].mxu0
      %v1073 = vadd.f32 %v1030, %v1072
      %v1074 = vpop.f32.mrb[0].mxu0
      %v1075 = vpop.f32.mrb[0].mxu0
      %v1076 = vpop.f32.mrb[0].mxu0
      %1077 = vdwg.mxu0
      %1078 = vrot.lane.b32.xlu0 %v1003, 1
      %v1079 = vpop.permute.xlu0 %1078
      %v1081 = vsub.f32 %v998, %v1079
      %v1082 = vmul.f32 %v1081, 1.442695
      %v1083 = vpow.pop %v1082
      %1085 = vrot.lane.b32.xlu0 %v1083, 127
      %v1086 = vpop.permute.xlu0 %1085
      %v1088 = vadd.f32 %v1019, %v1086
      %1089 = vset.pattern.permute.xlu0 1
      %1090 = vperm.xlu0 %1089, %v1083
      %v1091 = vpop.permute.xlu0 %1090
      %v1093 = vmul.f32 %v1091, %v556
      %1095 = vrot.lane.b32.xlu0 %v1093, 32
      %v1096 = vpop.permute.xlu0 %1095
      %v1098 = vadd.f32 %v1073, %v1096
      %v1099 = vrcp.pop %v1088
      %1101 = vset.pattern.permute.xlu0 0
      %1102 = vperm.xlu0 %1101, %v1099
      %v1103 = vpop.permute.xlu0 %1102
      %v1105 = vmul.f32 %v1098, %v1103
      %1107 = vrot.lane.b32.xlu0 %v755, 32
      %v1108 = vpop.permute.xlu0 %1107
      %1111 = vrot.lane.b32.xlu0 %v930, 64
      %v1112 = vpop.permute.xlu0 %1111
      %1115 = vrot.lane.b32.xlu0 %v1105, 96
      %v1116 = vpop.permute.xlu0 %1115
      %v1118 = vsel %vm389, %v569, %v1108
      %vm1119 = vcmask 523264
      %v1120 = vsel %vm1119, %v1118, %v1112
      %vm1121 = vcmask 785408
      %v1122 = vsel %vm1121, %v1120, %v1116
      %v1123 = vpack.c.bf16 %v1122, %v1122
      %vm1124 = vcmask 1043456
      %vm1125 = vsmask.f32 3328
      %vm1126 = vmand %vm1124, %vm1125
      %v1127 = vld [vmem:[%s375] sm:$0xf]
      %v1128 = vsel %vm1126, %v1123, %v1127
      %1129 = vst [vmem:[%s375] sm:$0xf] %v1128
      %p1130 = scmp.lt.s32.totalorder %s18, 1
      %s1131 = scalar_select %p1130, %s18, 1
      %s1132 = smul.addr %s1131, 4
      %s1133 = scalar_lea.vmem %s7, %s1132
      // Predicated region
      $region49: #{cross_mha_forward.15} parent=47 // pred_check
        %p1134 = pneg %p218
      $region50: #{cross_mha_forward.15} parent=47 // pred_check_branch
        %1136 = sbr.rel (%p1134) target = $region52
      $region51: #{cross_mha_forward.15} parent=47 // pred_region
        _
      $region52: #{cross_mha_forward.15} parent=47 // pred_fallthru
        _
    $region48: #{cross_mha_forward.15} parent=5 // pred_fallthru
      _
    %p1137 = scmp.le.s32.totalorder 2, %s13
    // Predicated region
    $region53: #{cross_mha_forward.15} parent=5 // pred_check
      %p1138 = pneg %p1137
    $region54: #{cross_mha_forward.15} parent=5 // pred_check_branch
      %1140 = sbr.rel (%p1138) target = $region56
    $region55: #{cross_mha_forward.15} parent=5 // pred_region
      %s1141 = ssub.s32 %s13, 2
      // Predicated region
      $region57: #{cross_mha_forward.15} parent=55 // pred_check
        %p1142 = pneg %p224
      $region58: #{cross_mha_forward.15} parent=55 // pred_check_branch
        %1144 = sbr.rel (%p1142) target = $region60
      $region59: #{cross_mha_forward.15} parent=55 // pred_region
        %p1145 = scmp.lt.s32.totalorder %s19, 1
        %s1146 = scalar_select %p1145, %s19, 1
        %s1147 = smul.addr %s1146, 4
        %s1148 = scalar_lea.vmem %s7, %s1147
      $region60: #{cross_mha_forward.15} parent=55 // pred_fallthru
        _
    $region56: #{cross_mha_forward.15} parent=5 // pred_fallthru
      _
  $region6: #{cross_mha_forward.15} parent=0 // loop_footer
    %s17 = sadd.s32 1, %s13
  $region7: #{cross_mha_forward.15} parent=0 // loop_footer_branch
    %12 = sbr.rel target = $region3
  $region8: #{cross_mha_forward.15} parent=0 // loop_exit
    _

</llo_original>
